<compile_context>
chip_gen: v7x
topology: tpu7x:2x2x1
jax: 0.10.0
libtpu: 0.0.40
codegen_flags: <defaults>
</compile_context>

<pallas_src>
import functools

import jax
import jax.numpy as jnp
import numpy as np
from jax.experimental import pallas as pl
from jax.experimental.pallas import tpu as pltpu

HID1 = 2000          # enc1 / dec1 output width (fixed in the module)
HID1_PAD = 2048      # lane-padded HID1 used inside the kernels (2 x 1024)
HID2 = 40            # embedding width (fixed in the module)
EMB_PAD = 128        # lane-padded embedding width
N1_SPLIT = 2         # "parallel" split of HID1_PAD in phase 1 (v7x megacore)
BN_EPS = 1e-5
VMEM_LIMIT = 48 * 1024 * 1024


def _round_up(a, m):
    return (a + m - 1) // m * m


def _bn_relu(h, gamma, beta):
    """BatchNorm1d (training mode, biased batch variance, eps=1e-5) + ReLU.

    Single pass for the statistics (sum and sum-of-squares); rsqrt on the EUP;
    all math in f32.  Column-wise, so it is safe to apply per N-tile."""
    inv_n = 1.0 / h.shape[0]
    mu = jnp.sum(h, axis=0, keepdims=True) * inv_n
    ex2 = jnp.sum(h * h, axis=0, keepdims=True) * inv_n
    var = jnp.maximum(ex2 - mu * mu, 0.0)
    hn = (h - mu) * jax.lax.rsqrt(var + BN_EPS)
    return jnp.maximum(hn * gamma + beta, 0.0)


# ----------------------------------------------------------------------------
# Phase 1: enc1 (grid = (N split over HID1_PAD, K tiles over d)) + bn1 + relu.
#   x is fully resident (sliced per K step); w1 tiles are streamed; f32 VMEM
#   accumulator; bn1+relu is per-column so it runs per N-tile at the last K.
# ----------------------------------------------------------------------------
def _enc1_kernel(x_ref, w1_ref, b1_ref, g1_ref, be1_ref, h1_ref, acc_ref, *, td):
    k = pl.program_id(1)

    @pl.when(k == 0)
    def _():
        acc_ref[...] = jnp.zeros_like(acc_ref)

    off = pl.multiple_of(k * td, 128)
    acc_ref[...] += jnp.dot(x_ref[:, pl.ds(off, td)], w1_ref[...],
                            preferred_element_type=jnp.float32)

    @pl.when(k == pl.num_programs(1) - 1)
    def _():
        # Dropout(p=0) is the identity.
        h1_ref[...] = _bn_relu(acc_ref[...] + b1_ref[...],
                               g1_ref[...], be1_ref[...])


# ----------------------------------------------------------------------------
# Phase 2 (micro call): enc2 -> bn2 -> relu (=> embedding, lane-padded) ->
#   dec1 -> bn3 -> relu.  Everything resident; bf16 matmuls, f32 accumulation.
# ----------------------------------------------------------------------------
def _bottleneck_kernel(h1_ref, w2_ref, b2_ref, g2_ref, be2_ref,
                       w3_ref, b3_ref, g3_ref, be3_ref,
                       emb_ref, h3_ref):
    h1 = h1_ref[...].astype(jnp.bfloat16)
    h2 = jnp.dot(h1, w2_ref[...], preferred_element_type=jnp.float32) + b2_ref[...]
    emb = _bn_relu(h2, g2_ref[...], be2_ref[...])
    emb_ref[...] = emb

    h3p = jnp.dot(emb.astype(jnp.bfloat16), w3_ref[...],
                  preferred_element_type=jnp.float32) + b3_ref[...]
    h3_ref[...] = _bn_relu(h3p, g3_ref[...], be3_ref[...]).astype(h3_ref.dtype)


# ----------------------------------------------------------------------------
# Phase 3: dec2, N-tiled over d.  w4 streamed; h3 resident; "parallel" axis.
# ----------------------------------------------------------------------------
def _dec2_kernel(h3_ref, w4_ref, b4_ref, o_ref):
    o_ref[...] = (jnp.dot(h3_ref[...], w4_ref[...],
                          preferred_element_type=jnp.float32) + b4_ref[...])


# ----------------------------------------------------------------------------
# One-time parameter preparation (padding + bf16 casting), OUTSIDE the per-call
# path.  tile_d: 2048 recommended for v7x/v6e, 1024 is enough on v5e.
# ----------------------------------------------------------------------------
def prepare_params(params, d, tile_d=2048):
    assert tile_d % 128 == 0
    (w1, b1, g1, be1, w2, b2, g2, be2, w3, b3, g3, be3, w4, b4) = params

    td = min(tile_d, _round_up(d, 128))
    d_pad = _round_up(d, td)

    def pad2(a, shape, dtype):
        out = jnp.zeros(shape, dtype)
        return out.at[:a.shape[0], :a.shape[1]].set(a.astype(dtype))

    arrays = (
        pad2(w1, (d_pad, HID1_PAD), jnp.bfloat16),    # enc1
        pad2(b1, (1, HID1_PAD), jnp.float32),
        pad2(g1, (1, HID1_PAD), jnp.float32),
        pad2(be1, (1, HID1_PAD), jnp.float32),
        pad2(w2, (HID1_PAD, EMB_PAD), jnp.bfloat16),  # enc2
        pad2(b2, (1, EMB_PAD), jnp.float32),
        pad2(g2, (1, EMB_PAD), jnp.float32),
        pad2(be2, (1, EMB_PAD), jnp.float32),
        pad2(w3, (EMB_PAD, HID1_PAD), jnp.bfloat16),  # dec1
        pad2(b3, (1, HID1_PAD), jnp.float32),
        pad2(g3, (1, HID1_PAD), jnp.float32),
        pad2(be3, (1, HID1_PAD), jnp.float32),
        pad2(w4, (HID1_PAD, d_pad), jnp.bfloat16),    # dec2
        pad2(b4, (1, d_pad), jnp.float32),
    )
    return {"arrays": arrays, "d": d, "d_pad": d_pad, "td": td}


@functools.partial(jax.jit, static_argnames=("d", "d_pad", "td"))
def _forward_impl(x, arrays, *, d, d_pad, td):
    (w1p, b1p, g1p, be1p, w2p, b2p, g2p, be2p,
     w3p, b3p, g3p, be3p, w4p, b4p) = arrays
    B, n_mfcc, n_frames = x.shape
    num_k = d_pad // td
    num_n = d_pad // td
    tn1 = HID1_PAD // N1_SPLIT

    xr = x.reshape(B, d).astype(jnp.bfloat16)
    if d_pad != d:
        x2d = jnp.zeros((B, d_pad), jnp.bfloat16).at[:, :d].set(xr)
    else:
        x2d = xr

    # ---- Phase 1: enc1 + bn1 + relu (K-tiled stream of w1, N split for v7x)
    h1 = pl.pallas_call(
        functools.partial(_enc1_kernel, td=td),
        out_shape=jax.ShapeDtypeStruct((B, HID1_PAD), jnp.float32),
        grid=(N1_SPLIT, num_k),
        in_specs=[
            pl.BlockSpec((B, d_pad), lambda n, k: (0, 0)),   # x resident
            pl.BlockSpec((td, tn1), lambda n, k: (k, n)),    # w1 tile (streamed)
            pl.BlockSpec((1, tn1), lambda n, k: (0, n)),     # b1
            pl.BlockSpec((1, tn1), lambda n, k: (0, n)),     # gamma1
            pl.BlockSpec((1, tn1), lambda n, k: (0, n)),     # beta1
        ],
        out_specs=pl.BlockSpec((B, tn1), lambda n, k: (0, n)),
        scratch_shapes=[pltpu.VMEM((B, tn1), jnp.float32)],  # f32 accumulator
        compiler_params=pltpu.CompilerParams(
            dimension_semantics=("parallel", "arbitrary"),
            vmem_limit_bytes=VMEM_LIMIT),
    )(x2d, w1p, b1p, g1p, be1p)

    # ---- Phase 2: tiny resident bottleneck (enc2/bn2/relu -> dec1/bn3/relu)
    emb_pad, h3 = pl.pallas_call(
        _bottleneck_kernel,
        out_shape=(jax.ShapeDtypeStruct((B, EMB_PAD), jnp.float32),
                   jax.ShapeDtypeStruct((B, HID1_PAD), jnp.bfloat16)),
        grid=(1,),
        in_specs=[
            pl.BlockSpec((B, HID1_PAD), lambda i: (0, 0)),
            pl.BlockSpec((HID1_PAD, EMB_PAD), lambda i: (0, 0)),
            pl.BlockSpec((1, EMB_PAD), lambda i: (0, 0)),
            pl.BlockSpec((1, EMB_PAD), lambda i: (0, 0)),
            pl.BlockSpec((1, EMB_PAD), lambda i: (0, 0)),
            pl.BlockSpec((EMB_PAD, HID1_PAD), lambda i: (0, 0)),
            pl.BlockSpec((1, HID1_PAD), lambda i: (0, 0)),
            pl.BlockSpec((1, HID1_PAD), lambda i: (0, 0)),
            pl.BlockSpec((1, HID1_PAD), lambda i: (0, 0)),
        ],
        out_specs=(pl.BlockSpec((B, EMB_PAD), lambda i: (0, 0)),
                   pl.BlockSpec((B, HID1_PAD), lambda i: (0, 0))),
        compiler_params=pltpu.CompilerParams(vmem_limit_bytes=VMEM_LIMIT),
    )(h1, w2p, b2p, g2p, be2p, w3p, b3p, g3p, be3p)

    # ---- Phase 3: dec2, streamed over output columns of d
    o_pad = pl.pallas_call(
        _dec2_kernel,
        out_shape=jax.ShapeDtypeStruct((B, d_pad), jnp.float32),
        grid=(num_n,),
        in_specs=[
            pl.BlockSpec((B, HID1_PAD), lambda n: (0, 0)),   # h3 resident
            pl.BlockSpec((HID1_PAD, td), lambda n: (0, n)),  # w4 tile (streamed)
            pl.BlockSpec((1, td), lambda n: (0, n)),         # b4 tile
        ],
        out_specs=pl.BlockSpec((B, td), lambda n: (0, n)),
        compiler_params=pltpu.CompilerParams(
            dimension_semantics=("parallel",),
            vmem_limit_bytes=VMEM_LIMIT),
    )(h3, w4p, b4p)

    o = o_pad[:, :d].reshape(B, n_mfcc, n_frames)
    embedding = emb_pad[:, :HID2]
    return o, embedding


def autoencoder_forward(x, prepared):
    """x: (B, n_mfcc, n_frames) f32 -> (o: same shape f32, embedding: (B, 40) f32)."""
    return _forward_impl(x, prepared["arrays"],
                         d=prepared["d"], d_pad=prepared["d_pad"], td=prepared["td"])


def reference_forward(x, params):
    """Pure-JAX reference with the same bf16 weight/activation policy."""
    (w1, b1, g1, be1, w2, b2, g2, be2, w3, b3, g3, be3, w4, b4) = params
    B = x.shape[0]
    x2 = x.reshape(B, -1).astype(jnp.bfloat16)
    h1 = jnp.dot(x2, w1.astype(jnp.bfloat16), preferred_element_type=jnp.float32) + b1
    h1 = _bn_relu(h1, g1, be1)
    h2 = jnp.dot(h1.astype(jnp.bfloat16), w2.astype(jnp.bfloat16),
                 preferred_element_type=jnp.float32) + b2
    emb = _bn_relu(h2, g2, be2)
    h3 = jnp.dot(emb.astype(jnp.bfloat16), w3.astype(jnp.bfloat16),
                 preferred_element_type=jnp.float32) + b3
    h3 = _bn_relu(h3, g3, be3).astype(jnp.bfloat16)
    o = jnp.dot(h3, w4.astype(jnp.bfloat16), preferred_element_type=jnp.float32) + b4
    return o.reshape(x.shape), emb


def init_params(key, d):
    """Xavier-normal weights, PyTorch-default uniform biases, BN gamma=1/beta=0.
    Weights are returned pre-transposed as (in_features, out_features)."""
    def xavier(k, fan_in, fan_out):
        std = (2.0 / (fan_in + fan_out)) ** 0.5
        return std * jax.random.normal(k, (fan_in, fan_out), jnp.float32)

    def bias(k, fan_in, fan_out):
        bound = 1.0 / (fan_in ** 0.5)
        return jax.random.uniform(k, (1, fan_out), jnp.float32, -bound, bound)

    ks = jax.random.split(key, 8)
    w1, b1 = xavier(ks[0], d, HID1),    bias(ks[1], d, HID1)
    w2, b2 = xavier(ks[2], HID1, HID2), bias(ks[3], HID1, HID2)
    w3, b3 = xavier(ks[4], HID2, HID1), bias(ks[5], HID2, HID1)
    w4, b4 = xavier(ks[6], HID1, d),    bias(ks[7], HID1, d)

    g1, be1 = jnp.ones((1, HID1), jnp.float32), jnp.zeros((1, HID1), jnp.float32)
    g2, be2 = jnp.ones((1, HID2), jnp.float32), jnp.zeros((1, HID2), jnp.float32)
    g3, be3 = jnp.ones((1, HID1), jnp.float32), jnp.zeros((1, HID1), jnp.float32)

    return (w1, b1, g1, be1, w2, b2, g2, be2, w3, b3, g3, be3, w4, b4)


if __name__ == "__main__":
    key = jax.random.PRNGKey(0)
    k_x, k_p = jax.random.split(key)

    # Small shapes; B=2 keeps every matmul memory-bound, so the kernels are
    # tuned for weight streaming, not MXU utilization.
    B, n_mfcc, n_frames = 2, 4, 80          # d = 320 -> three 128-wide tiles
    d = n_mfcc * n_frames

    x = jax.random.normal(k_x, (B, n_mfcc, n_frames), jnp.float32)
    params = init_params(k_p, d)

    # One-time padding / bf16 casting, outside the per-call path.  tile_d=128
    # here to exercise the K/N streaming pipeline at test size; production
    # default is 2048 (v7x / v6e) within their VMEM budgets.
    prepared = prepare_params(params, d, tile_d=128)
    jax.block_until_ready(prepared["arrays"])

    o, embedding = autoencoder_forward(x, prepared)
    jax.block_until_ready((o, embedding))

    assert o.shape == (B, n_mfcc, n_frames) and o.dtype == jnp.float32
    assert embedding.shape == (B, HID2) and embedding.dtype == jnp.float32

    o_ref, emb_ref = jax.jit(reference_forward)(x, params)
    jax.block_until_ready((o_ref, emb_ref))
    np.testing.assert_allclose(np.asarray(o), np.asarray(o_ref), rtol=5e-2, atol=5e-2)
    np.testing.assert_allclose(np.asarray(embedding), np.asarray(emb_ref),
                               rtol=5e-2, atol=5e-2)

    # TODO(synk): Dropout with p>0 (training) would need pltpu.prng_*; the
    # module default p=0 is the identity and is omitted here.
    print("KERNEL_OK")
</pallas_src>

<mosaic_0001>
module attributes {stable_mosaic.version = 11 : i64} {
  func.func @_bottleneck_kernel(%arg0: i32, %arg1: memref<2x2048xf32, #tpu.memory_space<vmem>>, %arg2: memref<2048x128xbf16, #tpu.memory_space<vmem>>, %arg3: memref<1x128xf32, #tpu.memory_space<vmem>>, %arg4: memref<1x128xf32, #tpu.memory_space<vmem>>, %arg5: memref<1x128xf32, #tpu.memory_space<vmem>>, %arg6: memref<128x2048xbf16, #tpu.memory_space<vmem>>, %arg7: memref<1x2048xf32, #tpu.memory_space<vmem>>, %arg8: memref<1x2048xf32, #tpu.memory_space<vmem>>, %arg9: memref<1x2048xf32, #tpu.memory_space<vmem>>, %arg10: memref<2x128xf32, #tpu.memory_space<vmem>>, %arg11: memref<2x2048xbf16, #tpu.memory_space<vmem>>) attributes {dimension_semantics = [#tpu.dimension_semantics<arbitrary>], iteration_bounds = array<i64: 1>, scalar_prefetch = 0 : i64, scratch_operands = 0 : i64, tpu.core_type = #tpu.core_type<tc>, window_params = [{pipeline_mode = #tpu.pipeline_mode<synchronous>, transform_indices = @transform_0, window_bounds = array<i64: 2, 2048>}, {pipeline_mode = #tpu.pipeline_mode<synchronous>, transform_indices = @transform_1, window_bounds = array<i64: 2048, 128>}, {pipeline_mode = #tpu.pipeline_mode<synchronous>, transform_indices = @transform_2, window_bounds = array<i64: 1, 128>}, {pipeline_mode = #tpu.pipeline_mode<synchronous>, transform_indices = @transform_3, window_bounds = array<i64: 1, 128>}, {pipeline_mode = #tpu.pipeline_mode<synchronous>, transform_indices = @transform_4, window_bounds = array<i64: 1, 128>}, {pipeline_mode = #tpu.pipeline_mode<synchronous>, transform_indices = @transform_5, window_bounds = array<i64: 128, 2048>}, {pipeline_mode = #tpu.pipeline_mode<synchronous>, transform_indices = @transform_6, window_bounds = array<i64: 1, 2048>}, {pipeline_mode = #tpu.pipeline_mode<synchronous>, transform_indices = @transform_7, window_bounds = array<i64: 1, 2048>}, {pipeline_mode = #tpu.pipeline_mode<synchronous>, transform_indices = @transform_8, window_bounds = array<i64: 1, 2048>}, {pipeline_mode = #tpu.pipeline_mode<synchronous>, transform_indices = @transform_9, window_bounds = array<i64: 2, 128>}, {pipeline_mode = #tpu.pipeline_mode<synchronous>, transform_indices = @transform_10, window_bounds = array<i64: 2, 2048>}]} {
    %c0 = arith.constant 0 : index
    %c0_0 = arith.constant 0 : index
    %0 = vector.load %arg1[%c0, %c0_0] : memref<2x2048xf32, #tpu.memory_space<vmem>>, vector<2x2048xf32>
    %1 = arith.truncf %0 : vector<2x2048xf32> to vector<2x2048xbf16>
    %c0_1 = arith.constant 0 : index
    %c0_2 = arith.constant 0 : index
    %2 = vector.load %arg2[%c0_1, %c0_2] : memref<2048x128xbf16, #tpu.memory_space<vmem>>, vector<2048x128xbf16>
    %cst = arith.constant dense<0.000000e+00> : vector<2x128xf32>
    %3 = tpu.matmul %1, %2, %cst {dimension_numbers = #tpu.dot_dimension_numbers<[1], [0], [0], [1], [0, 0, 1, 1], [], []>} : vector<2x2048xbf16>, vector<2048x128xbf16>, vector<2x128xf32> -> vector<2x128xf32>
    %c0_3 = arith.constant 0 : index
    %c0_4 = arith.constant 0 : index
    %4 = vector.load %arg3[%c0_3, %c0_4] : memref<1x128xf32, #tpu.memory_space<vmem>>, vector<1x128xf32>
    %5 = vector.broadcast %4 : vector<1x128xf32> to vector<2x128xf32>
    %6 = arith.addf %3, %5 : vector<2x128xf32>
    %c0_5 = arith.constant 0 : index
    %c0_6 = arith.constant 0 : index
    %7 = vector.load %arg4[%c0_5, %c0_6] : memref<1x128xf32, #tpu.memory_space<vmem>>, vector<1x128xf32>
    %c0_7 = arith.constant 0 : index
    %c0_8 = arith.constant 0 : index
    %8 = vector.load %arg5[%c0_7, %c0_8] : memref<1x128xf32, #tpu.memory_space<vmem>>, vector<1x128xf32>
    %cst_9 = arith.constant dense<0.000000e+00> : vector<128xf32>
    %9 = vector.multi_reduction <add>, %6, %cst_9 [0] : vector<2x128xf32> to vector<128xf32>
    %10 = vector.shape_cast %9 : vector<128xf32> to vector<1x128xf32>
    %cst_10 = arith.constant 5.000000e-01 : f32
    %11 = vector.broadcast %cst_10 : f32 to vector<1x128xf32>
    %12 = arith.mulf %10, %11 : vector<1x128xf32>
    %13 = arith.mulf %6, %6 : vector<2x128xf32>
    %cst_11 = arith.constant dense<0.000000e+00> : vector<128xf32>
    %14 = vector.multi_reduction <add>, %13, %cst_11 [0] : vector<2x128xf32> to vector<128xf32>
    %15 = vector.shape_cast %14 : vector<128xf32> to vector<1x128xf32>
    %cst_12 = arith.constant 5.000000e-01 : f32
    %16 = vector.broadcast %cst_12 : f32 to vector<1x128xf32>
    %17 = arith.mulf %15, %16 : vector<1x128xf32>
    %18 = arith.mulf %12, %12 : vector<1x128xf32>
    %19 = arith.subf %17, %18 : vector<1x128xf32>
    %cst_13 = arith.constant 0.000000e+00 : f32
    %20 = vector.broadcast %cst_13 : f32 to vector<1x128xf32>
    %21 = arith.maximumf %19, %20 : vector<1x128xf32>
    %22 = vector.broadcast %12 : vector<1x128xf32> to vector<2x128xf32>
    %23 = arith.subf %6, %22 : vector<2x128xf32>
    %cst_14 = arith.constant 9.99999974E-6 : f32
    %24 = vector.broadcast %cst_14 : f32 to vector<1x128xf32>
    %25 = arith.addf %21, %24 : vector<1x128xf32>
    %26 = math.rsqrt %25 : vector<1x128xf32>
    %27 = vector.broadcast %26 : vector<1x128xf32> to vector<2x128xf32>
    %28 = arith.mulf %23, %27 : vector<2x128xf32>
    %29 = vector.broadcast %7 : vector<1x128xf32> to vector<2x128xf32>
    %30 = arith.mulf %28, %29 : vector<2x128xf32>
    %31 = vector.broadcast %8 : vector<1x128xf32> to vector<2x128xf32>
    %32 = arith.addf %30, %31 : vector<2x128xf32>
    %cst_15 = arith.constant 0.000000e+00 : f32
    %33 = vector.broadcast %cst_15 : f32 to vector<2x128xf32>
    %34 = arith.maximumf %32, %33 : vector<2x128xf32>
    %c0_16 = arith.constant 0 : index
    %c0_17 = arith.constant 0 : index
    %35 = vector.load %arg10[%c0_16, %c0_17] : memref<2x128xf32, #tpu.memory_space<vmem>>, vector<2x128xf32>
    tpu.vector_store %arg10[%c0_16, %c0_17], %34 {strides = array<i32>} : memref<2x128xf32, #tpu.memory_space<vmem>>, vector<2x128xf32>,
    %36 = arith.truncf %34 : vector<2x128xf32> to vector<2x128xbf16>
    %c0_18 = arith.constant 0 : index
    %c0_19 = arith.constant 0 : index
    %37 = vector.load %arg6[%c0_18, %c0_19] : memref<128x2048xbf16, #tpu.memory_space<vmem>>, vector<128x2048xbf16>
    %cst_20 = arith.constant dense<0.000000e+00> : vector<2x2048xf32>
    %38 = tpu.matmul %36, %37, %cst_20 {dimension_numbers = #tpu.dot_dimension_numbers<[1], [0], [0], [1], [0, 0, 1, 1], [], []>} : vector<2x128xbf16>, vector<128x2048xbf16>, vector<2x2048xf32> -> vector<2x2048xf32>
    %c0_21 = arith.constant 0 : index
    %c0_22 = arith.constant 0 : index
    %39 = vector.load %arg7[%c0_21, %c0_22] : memref<1x2048xf32, #tpu.memory_space<vmem>>, vector<1x2048xf32>
    %40 = vector.broadcast %39 : vector<1x2048xf32> to vector<2x2048xf32>
    %41 = arith.addf %38, %40 : vector<2x2048xf32>
    %c0_23 = arith.constant 0 : index
    %c0_24 = arith.constant 0 : index
    %42 = vector.load %arg8[%c0_23, %c0_24] : memref<1x2048xf32, #tpu.memory_space<vmem>>, vector<1x2048xf32>
    %c0_25 = arith.constant 0 : index
    %c0_26 = arith.constant 0 : index
    %43 = vector.load %arg9[%c0_25, %c0_26] : memref<1x2048xf32, #tpu.memory_space<vmem>>, vector<1x2048xf32>
    %cst_27 = arith.constant dense<0.000000e+00> : vector<2048xf32>
    %44 = vector.multi_reduction <add>, %41, %cst_27 [0] : vector<2x2048xf32> to vector<2048xf32>
    %45 = vector.shape_cast %44 : vector<2048xf32> to vector<1x2048xf32>
    %cst_28 = arith.constant 5.000000e-01 : f32
    %46 = vector.broadcast %cst_28 : f32 to vector<1x2048xf32>
    %47 = arith.mulf %45, %46 : vector<1x2048xf32>
    %48 = arith.mulf %41, %41 : vector<2x2048xf32>
    %cst_29 = arith.constant dense<0.000000e+00> : vector<2048xf32>
    %49 = vector.multi_reduction <add>, %48, %cst_29 [0] : vector<2x2048xf32> to vector<2048xf32>
    %50 = vector.shape_cast %49 : vector<2048xf32> to vector<1x2048xf32>
    %cst_30 = arith.constant 5.000000e-01 : f32
    %51 = vector.broadcast %cst_30 : f32 to vector<1x2048xf32>
    %52 = arith.mulf %50, %51 : vector<1x2048xf32>
    %53 = arith.mulf %47, %47 : vector<1x2048xf32>
    %54 = arith.subf %52, %53 : vector<1x2048xf32>
    %cst_31 = arith.constant 0.000000e+00 : f32
    %55 = vector.broadcast %cst_31 : f32 to vector<1x2048xf32>
    %56 = arith.maximumf %54, %55 : vector<1x2048xf32>
    %57 = vector.broadcast %47 : vector<1x2048xf32> to vector<2x2048xf32>
    %58 = arith.subf %41, %57 : vector<2x2048xf32>
    %cst_32 = arith.constant 9.99999974E-6 : f32
    %59 = vector.broadcast %cst_32 : f32 to vector<1x2048xf32>
    %60 = arith.addf %56, %59 : vector<1x2048xf32>
    %61 = math.rsqrt %60 : vector<1x2048xf32>
    %62 = vector.broadcast %61 : vector<1x2048xf32> to vector<2x2048xf32>
    %63 = arith.mulf %58, %62 : vector<2x2048xf32>
    %64 = vector.broadcast %42 : vector<1x2048xf32> to vector<2x2048xf32>
    %65 = arith.mulf %63, %64 : vector<2x2048xf32>
    %66 = vector.broadcast %43 : vector<1x2048xf32> to vector<2x2048xf32>
    %67 = arith.addf %65, %66 : vector<2x2048xf32>
    %cst_33 = arith.constant 0.000000e+00 : f32
    %68 = vector.broadcast %cst_33 : f32 to vector<2x2048xf32>
    %69 = arith.maximumf %67, %68 : vector<2x2048xf32>
    %70 = arith.truncf %69 : vector<2x2048xf32> to vector<2x2048xbf16>
    %c0_34 = arith.constant 0 : index
    %c0_35 = arith.constant 0 : index
    %71 = vector.load %arg11[%c0_34, %c0_35] : memref<2x2048xbf16, #tpu.memory_space<vmem>>, vector<2x2048xbf16>
    tpu.vector_store %arg11[%c0_34, %c0_35], %70 {strides = array<i32>} : memref<2x2048xbf16, #tpu.memory_space<vmem>>, vector<2x2048xbf16>,
    return
  }
  func.func @transform_0(%arg0: i32) -> (i32, i32) {
    %c0_i32 = arith.constant 0 : i32
    %c0_i32_0 = arith.constant 0 : i32
    %c0_i32_1 = arith.constant 0 : i32
    return %c0_i32, %c0_i32_0 : i32, i32
  }
  func.func @transform_1(%arg0: i32) -> (i32, i32) {
    %c0_i32 = arith.constant 0 : i32
    %c0_i32_0 = arith.constant 0 : i32
    %c0_i32_1 = arith.constant 0 : i32
    return %c0_i32, %c0_i32_0 : i32, i32
  }
  func.func @transform_2(%arg0: i32) -> (i32, i32) {
    %c0_i32 = arith.constant 0 : i32
    %c0_i32_0 = arith.constant 0 : i32
    %c0_i32_1 = arith.constant 0 : i32
    return %c0_i32, %c0_i32_0 : i32, i32
  }
  func.func @transform_3(%arg0: i32) -> (i32, i32) {
    %c0_i32 = arith.constant 0 : i32
    %c0_i32_0 = arith.constant 0 : i32
    %c0_i32_1 = arith.constant 0 : i32
    return %c0_i32, %c0_i32_0 : i32, i32
  }
  func.func @transform_4(%arg0: i32) -> (i32, i32) {
    %c0_i32 = arith.constant 0 : i32
    %c0_i32_0 = arith.constant 0 : i32
    %c0_i32_1 = arith.constant 0 : i32
    return %c0_i32, %c0_i32_0 : i32, i32
  }
  func.func @transform_5(%arg0: i32) -> (i32, i32) {
    %c0_i32 = arith.constant 0 : i32
    %c0_i32_0 = arith.constant 0 : i32
    %c0_i32_1 = arith.constant 0 : i32
    return %c0_i32, %c0_i32_0 : i32, i32
  }
  func.func @transform_6(%arg0: i32) -> (i32, i32) {
    %c0_i32 = arith.constant 0 : i32
    %c0_i32_0 = arith.constant 0 : i32
    %c0_i32_1 = arith.constant 0 : i32
    return %c0_i32, %c0_i32_0 : i32, i32
  }
  func.func @transform_7(%arg0: i32) -> (i32, i32) {
    %c0_i32 = arith.constant 0 : i32
    %c0_i32_0 = arith.constant 0 : i32
    %c0_i32_1 = arith.constant 0 : i32
    return %c0_i32, %c0_i32_0 : i32, i32
  }
  func.func @transform_8(%arg0: i32) -> (i32, i32) {
    %c0_i32 = arith.constant 0 : i32
    %c0_i32_0 = arith.constant 0 : i32
    %c0_i32_1 = arith.constant 0 : i32
    return %c0_i32, %c0_i32_0 : i32, i32
  }
  func.func @transform_9(%arg0: i32) -> (i32, i32) {
    %c0_i32 = arith.constant 0 : i32
    %c0_i32_0 = arith.constant 0 : i32
    %c0_i32_1 = arith.constant 0 : i32
    return %c0_i32, %c0_i32_0 : i32, i32
  }
  func.func @transform_10(%arg0: i32) -> (i32, i32) {
    %c0_i32 = arith.constant 0 : i32
    %c0_i32_0 = arith.constant 0 : i32
    %c0_i32_1 = arith.constant 0 : i32
    return %c0_i32, %c0_i32_0 : i32, i32
  }
}

module attributes {stable_mosaic.version = 11 : i64} {
  func.func @_dec2_kernel(%arg0: i32, %arg1: memref<2x2048xbf16, #tpu.memory_space<vmem>>, %arg2: memref<2048x128xbf16, #tpu.memory_space<vmem>>, %arg3: memref<1x128xf32, #tpu.memory_space<vmem>>, %arg4: memref<2x128xf32, #tpu.memory_space<vmem>>) attributes {dimension_semantics = [#tpu.dimension_semantics<parallel>], iteration_bounds = array<i64: 3>, scalar_prefetch = 0 : i64, scratch_operands = 0 : i64, tpu.core_type = #tpu.core_type<tc>, window_params = [{pipeline_mode = #tpu.pipeline_mode<synchronous>, transform_indices = @transform_0, window_bounds = array<i64: 2, 2048>}, {transform_indices = @transform_1, window_bounds = array<i64: 2048, 128>}, {transform_indices = @transform_2, window_bounds = array<i64: 1, 128>}, {transform_indices = @transform_3, window_bounds = array<i64: 2, 128>}]} {
    %c0 = arith.constant 0 : index
    %c0_0 = arith.constant 0 : index
    %0 = vector.load %arg1[%c0, %c0_0] : memref<2x2048xbf16, #tpu.memory_space<vmem>>, vector<2x2048xbf16>
    %c0_1 = arith.constant 0 : index
    %c0_2 = arith.constant 0 : index
    %1 = vector.load %arg2[%c0_1, %c0_2] : memref<2048x128xbf16, #tpu.memory_space<vmem>>, vector<2048x128xbf16>
    %cst = arith.constant dense<0.000000e+00> : vector<2x128xf32>
    %2 = tpu.matmul %0, %1, %cst {dimension_numbers = #tpu.dot_dimension_numbers<[1], [0], [0], [1], [0, 0, 1, 1], [], []>} : vector<2x2048xbf16>, vector<2048x128xbf16>, vector<2x128xf32> -> vector<2x128xf32>
    %c0_3 = arith.constant 0 : index
    %c0_4 = arith.constant 0 : index
    %3 = vector.load %arg3[%c0_3, %c0_4] : memref<1x128xf32, #tpu.memory_space<vmem>>, vector<1x128xf32>
    %4 = vector.broadcast %3 : vector<1x128xf32> to vector<2x128xf32>
    %5 = arith.addf %2, %4 : vector<2x128xf32>
    %c0_5 = arith.constant 0 : index
    %c0_6 = arith.constant 0 : index
    %6 = vector.load %arg4[%c0_5, %c0_6] : memref<2x128xf32, #tpu.memory_space<vmem>>, vector<2x128xf32>
    tpu.vector_store %arg4[%c0_5, %c0_6], %5 {strides = array<i32>} : memref<2x128xf32, #tpu.memory_space<vmem>>, vector<2x128xf32>,
    return
  }
  func.func @transform_0(%arg0: i32) -> (i32, i32) {
    %c0_i32 = arith.constant 0 : i32
    %c0_i32_0 = arith.constant 0 : i32
    %c0_i32_1 = arith.constant 0 : i32
    return %c0_i32, %c0_i32_0 : i32, i32
  }
  func.func @transform_1(%arg0: i32) -> (i32, i32) {
    %c0_i32 = arith.constant 0 : i32
    %c0_i32_0 = arith.constant 0 : i32
    return %c0_i32, %arg0 : i32, i32
  }
  func.func @transform_2(%arg0: i32) -> (i32, i32) {
    %c0_i32 = arith.constant 0 : i32
    %c0_i32_0 = arith.constant 0 : i32
    return %c0_i32, %arg0 : i32, i32
  }
  func.func @transform_3(%arg0: i32) -> (i32, i32) {
    %c0_i32 = arith.constant 0 : i32
    %c0_i32_0 = arith.constant 0 : i32
    return %c0_i32, %arg0 : i32, i32
  }
}

module attributes {stable_mosaic.version = 11 : i64} {
  func.func @_enc1_kernel(%arg0: i32, %arg1: i32, %arg2: memref<2x384xbf16, #tpu.memory_space<vmem>>, %arg3: memref<128x1024xbf16, #tpu.memory_space<vmem>>, %arg4: memref<1x1024xf32, #tpu.memory_space<vmem>>, %arg5: memref<1x1024xf32, #tpu.memory_space<vmem>>, %arg6: memref<1x1024xf32, #tpu.memory_space<vmem>>, %arg7: memref<2x1024xf32, #tpu.memory_space<vmem>>, %arg8: memref<2x1024xf32, #tpu.memory_space<vmem>>) attributes {dimension_semantics = [#tpu.dimension_semantics<parallel>, #tpu.dimension_semantics<arbitrary>], iteration_bounds = array<i64: 2, 3>, scalar_prefetch = 0 : i64, scratch_operands = 1 : i64, tpu.core_type = #tpu.core_type<tc>, window_params = [{pipeline_mode = #tpu.pipeline_mode<synchronous>, transform_indices = @transform_0, window_bounds = array<i64: 2, 384>}, {transform_indices = @transform_1, window_bounds = array<i64: 128, 1024>}, {transform_indices = @transform_2, window_bounds = array<i64: 1, 1024>}, {transform_indices = @transform_3, window_bounds = array<i64: 1, 1024>}, {transform_indices = @transform_4, window_bounds = array<i64: 1, 1024>}, {transform_indices = @transform_5, window_bounds = array<i64: 2, 1024>}]} {
    %c0_i32 = arith.constant 0 : i32
    %0 = arith.cmpi eq, %arg1, %c0_i32 : i32
    %1 = arith.extui %0 : i1 to i32
    %c0_i32_0 = arith.constant 0 : i32
    %2 = arith.cmpi ne, %1, %c0_i32_0 : i32
    scf.if %2 {
      %cst_8 = arith.constant 0.000000e+00 : f32
      %15 = vector.broadcast %cst_8 : f32 to vector<2x1024xf32>
      %c0_9 = arith.constant 0 : index
      %c0_10 = arith.constant 0 : index
      %16 = vector.load %arg8[%c0_9, %c0_10] : memref<2x1024xf32, #tpu.memory_space<vmem>>, vector<2x1024xf32>
      tpu.vector_store %arg8[%c0_9, %c0_10], %15 {strides = array<i32>} : memref<2x1024xf32, #tpu.memory_space<vmem>>, vector<2x1024xf32>,
    } else {
    }
    %c128_i32 = arith.constant 128 : i32
    %3 = arith.muli %arg1, %c128_i32 : i32
    %4 = tpu.assume_multiple %3, 128 : i32
    %c0 = arith.constant 0 : index
    %c0_1 = arith.constant 0 : index
    %5 = vector.load %arg8[%c0, %c0_1] : memref<2x1024xf32, #tpu.memory_space<vmem>>, vector<2x1024xf32>
    %c0_2 = arith.constant 0 : index
    %6 = arith.index_cast %4 : i32 to index
    %7 = vector.load %arg2[%c0_2, %6] : memref<2x384xbf16, #tpu.memory_space<vmem>>, vector<2x128xbf16>
    %c0_3 = arith.constant 0 : index
    %c0_4 = arith.constant 0 : index
    %8 = vector.load %arg3[%c0_3, %c0_4] : memref<128x1024xbf16, #tpu.memory_space<vmem>>, vector<128x1024xbf16>
    %cst = arith.constant dense<0.000000e+00> : vector<2x1024xf32>
    %9 = tpu.matmul %7, %8, %cst {dimension_numbers = #tpu.dot_dimension_numbers<[1], [0], [0], [1], [0, 0, 1, 1], [], []>} : vector<2x128xbf16>, vector<128x1024xbf16>, vector<2x1024xf32> -> vector<2x1024xf32>
    %10 = arith.addf %5, %9 : vector<2x1024xf32>
    %c0_5 = arith.constant 0 : index
    %c0_6 = arith.constant 0 : index
    %11 = vector.load %arg8[%c0_5, %c0_6] : memref<2x1024xf32, #tpu.memory_space<vmem>>, vector<2x1024xf32>
    tpu.vector_store %arg8[%c0_5, %c0_6], %10 {strides = array<i32>} : memref<2x1024xf32, #tpu.memory_space<vmem>>, vector<2x1024xf32>,
    %c2_i32 = arith.constant 2 : i32
    %12 = arith.cmpi eq, %arg1, %c2_i32 : i32
    %13 = arith.extui %12 : i1 to i32
    %c0_i32_7 = arith.constant 0 : i32
    %14 = arith.cmpi ne, %13, %c0_i32_7 : i32
    scf.if %14 {
      %c0_8 = arith.constant 0 : index
      %c0_9 = arith.constant 0 : index
      %15 = vector.load %arg8[%c0_8, %c0_9] : memref<2x1024xf32, #tpu.memory_space<vmem>>, vector<2x1024xf32>
      %c0_10 = arith.constant 0 : index
      %c0_11 = arith.constant 0 : index
      %16 = vector.load %arg4[%c0_10, %c0_11] : memref<1x1024xf32, #tpu.memory_space<vmem>>, vector<1x1024xf32>
      %17 = vector.broadcast %16 : vector<1x1024xf32> to vector<2x1024xf32>
      %18 = arith.addf %15, %17 : vector<2x1024xf32>
      %c0_12 = arith.constant 0 : index
      %c0_13 = arith.constant 0 : index
      %19 = vector.load %arg5[%c0_12, %c0_13] : memref<1x1024xf32, #tpu.memory_space<vmem>>, vector<1x1024xf32>
      %c0_14 = arith.constant 0 : index
      %c0_15 = arith.constant 0 : index
      %20 = vector.load %arg6[%c0_14, %c0_15] : memref<1x1024xf32, #tpu.memory_space<vmem>>, vector<1x1024xf32>
      %cst_16 = arith.constant dense<0.000000e+00> : vector<1024xf32>
      %21 = vector.multi_reduction <add>, %18, %cst_16 [0] : vector<2x1024xf32> to vector<1024xf32>
      %22 = vector.shape_cast %21 : vector<1024xf32> to vector<1x1024xf32>
      %cst_17 = arith.constant 5.000000e-01 : f32
      %23 = vector.broadcast %cst_17 : f32 to vector<1x1024xf32>
      %24 = arith.mulf %22, %23 : vector<1x1024xf32>
      %25 = arith.mulf %18, %18 : vector<2x1024xf32>
      %cst_18 = arith.constant dense<0.000000e+00> : vector<1024xf32>
      %26 = vector.multi_reduction <add>, %25, %cst_18 [0] : vector<2x1024xf32> to vector<1024xf32>
      %27 = vector.shape_cast %26 : vector<1024xf32> to vector<1x1024xf32>
      %cst_19 = arith.constant 5.000000e-01 : f32
      %28 = vector.broadcast %cst_19 : f32 to vector<1x1024xf32>
      %29 = arith.mulf %27, %28 : vector<1x1024xf32>
      %30 = arith.mulf %24, %24 : vector<1x1024xf32>
      %31 = arith.subf %29, %30 : vector<1x1024xf32>
      %cst_20 = arith.constant 0.000000e+00 : f32
      %32 = vector.broadcast %cst_20 : f32 to vector<1x1024xf32>
      %33 = arith.maximumf %31, %32 : vector<1x1024xf32>
      %34 = vector.broadcast %24 : vector<1x1024xf32> to vector<2x1024xf32>
      %35 = arith.subf %18, %34 : vector<2x1024xf32>
      %cst_21 = arith.constant 9.99999974E-6 : f32
      %36 = vector.broadcast %cst_21 : f32 to vector<1x1024xf32>
      %37 = arith.addf %33, %36 : vector<1x1024xf32>
      %38 = math.rsqrt %37 : vector<1x1024xf32>
      %39 = vector.broadcast %38 : vector<1x1024xf32> to vector<2x1024xf32>
      %40 = arith.mulf %35, %39 : vector<2x1024xf32>
      %41 = vector.broadcast %19 : vector<1x1024xf32> to vector<2x1024xf32>
      %42 = arith.mulf %40, %41 : vector<2x1024xf32>
      %43 = vector.broadcast %20 : vector<1x1024xf32> to vector<2x1024xf32>
      %44 = arith.addf %42, %43 : vector<2x1024xf32>
      %cst_22 = arith.constant 0.000000e+00 : f32
      %45 = vector.broadcast %cst_22 : f32 to vector<2x1024xf32>
      %46 = arith.maximumf %44, %45 : vector<2x1024xf32>
      %c0_23 = arith.constant 0 : index
      %c0_24 = arith.constant 0 : index
      %47 = vector.load %arg7[%c0_23, %c0_24] : memref<2x1024xf32, #tpu.memory_space<vmem>>, vector<2x1024xf32>
      tpu.vector_store %arg7[%c0_23, %c0_24], %46 {strides = array<i32>} : memref<2x1024xf32, #tpu.memory_space<vmem>>, vector<2x1024xf32>,
    } else {
    }
    return
  }
  func.func @transform_0(%arg0: i32, %arg1: i32) -> (i32, i32) {
    %c0_i32 = arith.constant 0 : i32
    %c0_i32_0 = arith.constant 0 : i32
    %c0_i32_1 = arith.constant 0 : i32
    return %c0_i32, %c0_i32_0 : i32, i32
  }
  func.func @transform_1(%arg0: i32, %arg1: i32) -> (i32, i32) {
    %c0_i32 = arith.constant 0 : i32
    return %arg1, %arg0 : i32, i32
  }
  func.func @transform_2(%arg0: i32, %arg1: i32) -> (i32, i32) {
    %c0_i32 = arith.constant 0 : i32
    %c0_i32_0 = arith.constant 0 : i32
    return %c0_i32, %arg0 : i32, i32
  }
  func.func @transform_3(%arg0: i32, %arg1: i32) -> (i32, i32) {
    %c0_i32 = arith.constant 0 : i32
    %c0_i32_0 = arith.constant 0 : i32
    return %c0_i32, %arg0 : i32, i32
  }
  func.func @transform_4(%arg0: i32, %arg1: i32) -> (i32, i32) {
    %c0_i32 = arith.constant 0 : i32
    %c0_i32_0 = arith.constant 0 : i32
    return %c0_i32, %arg0 : i32, i32
  }
  func.func @transform_5(%arg0: i32, %arg1: i32) -> (i32, i32) {
    %c0_i32 = arith.constant 0 : i32
    %c0_i32_0 = arith.constant 0 : i32
    return %c0_i32, %arg0 : i32, i32
  }
}

</mosaic_0001>

<llo_original>
// kernel: _forward_impl.3
$region0: #{_forward_impl.3}
  #allocation0 [shape = 'u32[]', space=smem, size = 0x4, offset = 0x4, fixed_abs, tag = 'smem constant byte address 0x4 - core index']
  #allocation1 [shape = 'u32[144,128]{1,0:T(1,128)}', space=vmem, size = 0x12000, scoped, tag = 'internal scratch']
  #allocation2 [shape = 'f32[2,1024]{1,0:T(2,128)}', space=vmem, size = 0x2000, scoped, tag = 'scratch operand']
  %s0 = inlined_call_operand.vmem [shape: bf16[2,384], index: 0, kind: input, shape index: {}]
  %s1 = inlined_call_operand.hbm [shape: bf16[384,2048], index: 1, kind: input, shape index: {}]
  %s2 = inlined_call_operand.hbm [shape: f32[1,2048], index: 2, kind: input, shape index: {}]
  %s3 = inlined_call_operand.hbm [shape: f32[1,2048], index: 3, kind: input, shape index: {}]
  %s4 = inlined_call_operand.hbm [shape: f32[1,2048], index: 4, kind: input, shape index: {}]
  %s5 = inlined_call_operand.vmem [shape: f32[2,2048], index: 5, kind: output, shape index: {}]
  %s6 = sld [smem:[#allocation0]]
  $region77: #{_forward_impl.3} parent=0
    _
  %s8 = ssub.s32 1, %s6
  %s9 = scalar_select 0, %s8, %s6
  $region1: #{_forward_impl.3} parent=0
    #allocation3 [shape = 'u8[524288]{0}', space=vmem, size = 0x80000, scoped, tag = 'input window, operand 1']
    #allocation4 [shape = 's32[2]{0}', space=sflag, size = 0x8, scoped, tag = 'scoped memory for _forward_impl.3']
    #allocation5 [shape = 'u8[8192]{0}', space=vmem, size = 0x2000, scoped, tag = 'input window, operand 2']
    #allocation6 [shape = 's32[2]{0}', space=sflag, size = 0x8, scoped, tag = 'scoped memory for _forward_impl.3']
    #allocation7 [shape = 'u8[8192]{0}', space=vmem, size = 0x2000, scoped, tag = 'input window, operand 3']
    #allocation8 [shape = 'u8[8192]{0}', space=vmem, size = 0x2000, scoped, tag = 'input window, operand 4']
    #allocation9 [shape = 's32[2]{0}', space=sflag, size = 0x8, scoped, tag = 'scoped memory for _forward_impl.3']
    %10 = vsyncpa [#allocation4], 0
    %s11 = scalar_lea.sflag [#allocation4], 1
    %12 = vsyncpa %s11, 0
    %13 = vsyncpa [#allocation6], 0
    %s14 = scalar_lea.sflag [#allocation6], 1
    %15 = vsyncpa %s14, 0
    %16 = vsyncpa [#allocation9], 0
    %s17 = scalar_lea.sflag [#allocation9], 1
    %18 = vsyncpa %s17, 0
    loop: start=0, step=1, limit=8
    $region2: #{_forward_impl.3} parent=1 // loop_pre_header
      _
    $region3: #{_forward_impl.3} parent=1 // loop_header
      %s20 = sphi 0, %s24
      %p21 = scmp.ge.s32.totalorder %s20, 8
      %s27 = sphi 0, %s39
      %s28 = sphi 0, %s35
      %s29 = sphi 0, %s27
      %s30 = sphi 0, %s28
      %s31 = sphi 0, %s29
      %s32 = sphi 0, %s30
      %s40 = sphi 0, %s40
      %s42 = sphi 0, %s40
      %s43 = sphi 0, %s42
      %s57 = sphi 0, %s43
      %s65 = sphi 0, %s67
      %s68 = sphi 0, %s65
      %s69 = sphi 0, %s68
      %s85 = sphi 0, %s69
      %s91 = sphi 0, %s93
      %s94 = sphi 0, %s91
      %s95 = sphi 0, %s94
      %s111 = sphi 0, %s95
      %s117 = sphi 0, %s119
      %s120 = sphi 0, %s117
      %s121 = sphi 0, %s120
      %s137 = sphi 0, %s121
      %s143 = sphi 0, %s145
      %s146 = sphi 0, %s143
      %s147 = sphi 0, %s146
      %s163 = sphi 0, %s147
      %s169 = sphi 0, %s171
      %s172 = sphi 0, %s169
      %s173 = sphi 0, %s172
      %s189 = sphi 0, %s173
    $region4: #{_forward_impl.3} parent=1 // loop_header_branch
      %23 = sbr.rel (%p21) target = $region8
    $region5: #{_forward_impl.3} parent=1 // loop_body
      %s25 = ssub.s32 %s20, 1
      %s26 = ssub.s32 %s20, 2
      %s33 = sadd.s32 1, %s28
      %p34 = scmp.ge.s32.totalorder %s33, 3
      %s35 = scalar_select %p34, 0, %s33
      %s36 = sadd.s32 1, %s27
      %s37 = scalar_select %p34, %s36, %s27
      %p38 = scmp.ge.s32.totalorder %s37, 2
      %s39 = scalar_select %p38, 0, %s37
      %s41 = sadd.s32 %s40, 1
      %p44 = scmp.eq.s32.totalorder %s20, 5
      %p45 = scmp.ne.s32.totalorder %s40, %s42
      %p46 = scmp.eq.s32.totalorder %s20, 0
      %p47 = por %p45, %p46
      %p48 = scmp.ne.s32.totalorder %s40, %s42
      %p49 = scmp.eq.s32.totalorder %s25, 5
      %p50 = por %p48, %p49
      %p51 = scmp.ne.s32.totalorder %s42, %s43
      %p52 = scmp.eq.s32.totalorder %s25, 0
      %p53 = por %p51, %p52
      %p54 = scmp.ne.s32.totalorder %s42, %s43
      %p55 = scmp.eq.s32.totalorder %s26, 5
      %p56 = por %p54, %p55
      %p58 = scmp.ne.s32.totalorder %s43, %s57
      %p59 = scmp.eq.s32.totalorder %s26, 0
      %p60 = por %p58, %p59
      %s61 = ssub.s32 %s28, %s35
      %s62 = ssub.s32 %s27, %s39
      %s63 = sor.u32 %s61, %s62
      %p64 = scmp.eq.s32.totalorder %s63, 0
      %s66 = sadd.s32 %s65, 1
      %s67 = scalar_select %p64, %s65, %s66
      %p70 = pneg %p64
      %p71 = scmp.eq.s32.totalorder %s20, 5
      %p72 = por %p70, %p71
      %p73 = scmp.ne.s32.totalorder %s65, %s68
      %p74 = scmp.eq.s32.totalorder %s20, 0
      %p75 = por %p73, %p74
      %p76 = scmp.ne.s32.totalorder %s65, %s68
      %p77 = scmp.eq.s32.totalorder %s25, 5
      %p78 = por %p76, %p77
      %p79 = scmp.ne.s32.totalorder %s68, %s69
      %p80 = scmp.eq.s32.totalorder %s25, 0
      %p81 = por %p79, %p80
      %p82 = scmp.ne.s32.totalorder %s68, %s69
      %p83 = scmp.eq.s32.totalorder %s26, 5
      %p84 = por %p82, %p83
      %p86 = scmp.ne.s32.totalorder %s69, %s85
      %p87 = scmp.eq.s32.totalorder %s26, 0
      %p88 = por %p86, %p87
      %s89 = ssub.s32 %s27, %s39
      %p90 = scmp.eq.s32.totalorder %s89, 0
      %s92 = sadd.s32 %s91, 1
      %s93 = scalar_select %p90, %s91, %s92
      %p96 = pneg %p90
      %p97 = scmp.eq.s32.totalorder %s20, 5
      %p98 = por %p96, %p97
      %p99 = scmp.ne.s32.totalorder %s91, %s94
      %p100 = scmp.eq.s32.totalorder %s20, 0
      %p101 = por %p99, %p100
      %p102 = scmp.ne.s32.totalorder %s91, %s94
      %p103 = scmp.eq.s32.totalorder %s25, 5
      %p104 = por %p102, %p103
      %p105 = scmp.ne.s32.totalorder %s94, %s95
      %p106 = scmp.eq.s32.totalorder %s25, 0
      %p107 = por %p105, %p106
      %p108 = scmp.ne.s32.totalorder %s94, %s95
      %p109 = scmp.eq.s32.totalorder %s26, 5
      %p110 = por %p108, %p109
      %p112 = scmp.ne.s32.totalorder %s95, %s111
      %p113 = scmp.eq.s32.totalorder %s26, 0
      %p114 = por %p112, %p113
      %s115 = ssub.s32 %s27, %s39
      %p116 = scmp.eq.s32.totalorder %s115, 0
      %s118 = sadd.s32 %s117, 1
      %s119 = scalar_select %p116, %s117, %s118
      %p122 = pneg %p116
      %p123 = scmp.eq.s32.totalorder %s20, 5
      %p124 = por %p122, %p123
      %p125 = scmp.ne.s32.totalorder %s117, %s120
      %p126 = scmp.eq.s32.totalorder %s20, 0
      %p127 = por %p125, %p126
      %p128 = scmp.ne.s32.totalorder %s117, %s120
      %p129 = scmp.eq.s32.totalorder %s25, 5
      %p130 = por %p128, %p129
      %p131 = scmp.ne.s32.totalorder %s120, %s121
      %p132 = scmp.eq.s32.totalorder %s25, 0
      %p133 = por %p131, %p132
      %p134 = scmp.ne.s32.totalorder %s120, %s121
      %p135 = scmp.eq.s32.totalorder %s26, 5
      %p136 = por %p134, %p135
      %p138 = scmp.ne.s32.totalorder %s121, %s137
      %p139 = scmp.eq.s32.totalorder %s26, 0
      %p140 = por %p138, %p139
      %s141 = ssub.s32 %s27, %s39
      %p142 = scmp.eq.s32.totalorder %s141, 0
      %s144 = sadd.s32 %s143, 1
      %s145 = scalar_select %p142, %s143, %s144
      %p148 = pneg %p142
      %p149 = scmp.eq.s32.totalorder %s20, 5
      %p150 = por %p148, %p149
      %p151 = scmp.ne.s32.totalorder %s143, %s146
      %p152 = scmp.eq.s32.totalorder %s20, 0
      %p153 = por %p151, %p152
      %p154 = scmp.ne.s32.totalorder %s143, %s146
      %p155 = scmp.eq.s32.totalorder %s25, 5
      %p156 = por %p154, %p155
      %p157 = scmp.ne.s32.totalorder %s146, %s147
      %p158 = scmp.eq.s32.totalorder %s25, 0
      %p159 = por %p157, %p158
      %p160 = scmp.ne.s32.totalorder %s146, %s147
      %p161 = scmp.eq.s32.totalorder %s26, 5
      %p162 = por %p160, %p161
      %p164 = scmp.ne.s32.totalorder %s147, %s163
      %p165 = scmp.eq.s32.totalorder %s26, 0
      %p166 = por %p164, %p165
      %s167 = ssub.s32 %s27, %s39
      %p168 = scmp.eq.s32.totalorder %s167, 0
      %s170 = sadd.s32 %s169, 1
      %s171 = scalar_select %p168, %s169, %s170
      %p174 = pneg %p168
      %p175 = scmp.eq.s32.totalorder %s20, 5
      %p176 = por %p174, %p175
      %p177 = scmp.ne.s32.totalorder %s169, %s172
      %p178 = scmp.eq.s32.totalorder %s20, 0
      %p179 = por %p177, %p178
      %p180 = scmp.ne.s32.totalorder %s169, %s172
      %p181 = scmp.eq.s32.totalorder %s25, 5
      %p182 = por %p180, %p181
      %p183 = scmp.ne.s32.totalorder %s172, %s173
      %p184 = scmp.eq.s32.totalorder %s25, 0
      %p185 = por %p183, %p184
      %p186 = scmp.ne.s32.totalorder %s172, %s173
      %p187 = scmp.eq.s32.totalorder %s26, 5
      %p188 = por %p186, %p187
      %p190 = scmp.ne.s32.totalorder %s173, %s189
      %p191 = scmp.eq.s32.totalorder %s26, 0
      %p192 = por %p190, %p191
      %p193 = scmp.le.s32.totalorder 1, %s20
      %p194 = scmp.lt.s32.totalorder %s20, 7
      %p195 = pnand %p193, %p194
      %p196 = pneg %p195
      // Predicated region
      $region9: #{_forward_impl.3} parent=5 // pred_check
        _
      $region10: #{_forward_impl.3} parent=5 // pred_check_branch
        %198 = sbr.rel (%p195) target = $region12
      $region11: #{_forward_impl.3} parent=5 // pred_region
        %s199 = ssub.s32 %s20, 1
        // Predicated region
        $region13: #{_forward_impl.3} parent=11 // pred_check
          %p200 = pneg %p53
        $region14: #{_forward_impl.3} parent=11 // pred_check_branch
          %202 = sbr.rel (%p200) target = $region16
        $region15: #{_forward_impl.3} parent=11 // pred_region
          _
        $region16: #{_forward_impl.3} parent=11 // pred_fallthru
          _
      $region12: #{_forward_impl.3} parent=5 // pred_fallthru
        _
      %p203 = scmp.lt.s32.totalorder %s20, 6
      // Predicated region
      $region17: #{_forward_impl.3} parent=5 // pred_check
        %p204 = pneg %p203
      $region18: #{_forward_impl.3} parent=5 // pred_check_branch
        %206 = sbr.rel (%p204) target = $region20
      $region19: #{_forward_impl.3} parent=5 // pred_region
        // Predicated region
        $region21: #{_forward_impl.3} parent=19 // pred_check
          %p207 = pneg %p75
        $region22: #{_forward_impl.3} parent=19 // pred_check_branch
          %209 = sbr.rel (%p207) target = $region24
        $region23: #{_forward_impl.3} parent=19 // pred_region
          %s210 = sand.u32 %s65, 1
          %s211 = scalar_lea.sflag [#allocation4], %s210
          %s212 = sand.u32 %s65, 1
          %s213 = smul.addr %s212, 512
          %s214 = scalar_lea.vmem [#allocation3], %s213
          %s215 = smul.u32 16, %s28
          %s216 = smul.u32 8, %s27
          %s218 = ssub.s32 8192, 8192
          %219 = vsyncadd %s211, %s218
          %s220 = smul.addr %s215, 16
          %s221 = sadd.s32 %s216, %s220
          %s222 = smul.addr %s221, 64
          %s223 = scalar_lea.hbm %s1, %s222
          %s224 = sshll.u32 %s214, 4
          %s225 = int_to_ptr.vmem [resolvable:$true] %s224
          %230 = dma.hbm_to_vmem [thread:$0]  %s223, 8192, %s225, %s211, 1024, 512, 32
        $region24: #{_forward_impl.3} parent=19 // pred_fallthru
          _
        // Predicated region
        $region25: #{_forward_impl.3} parent=19 // pred_check
          %p231 = pneg %p101
        $region26: #{_forward_impl.3} parent=19 // pred_check_branch
          %233 = sbr.rel (%p231) target = $region28
        $region27: #{_forward_impl.3} parent=19 // pred_region
          %s234 = sand.u32 %s20, 1
          %s235 = scalar_lea.sflag [#allocation6], %s234
          %s236 = sand.u32 %s91, 1
          %s237 = smul.addr %s236, 8
          %s238 = scalar_lea.vmem [#allocation5], %s237
          %s239 = smul.u32 8, %s27
          %s241 = ssub.s32 128, 128
          %242 = vsyncadd %s235, %s241
          %s243 = smul.addr %s239, 16
          %s244 = scalar_lea.hbm %s2, %s243
          %s246 = sshll.u32 %s238, 4
          %s247 = int_to_ptr.vmem [resolvable:$true] %s246
          %249 = dma.hbm_to_vmem [thread:$0]  %s244, 128, %s247, %s235
        $region28: #{_forward_impl.3} parent=19 // pred_fallthru
          _
        // Predicated region
        $region29: #{_forward_impl.3} parent=19 // pred_check
          %p250 = pneg %p127
        $region30: #{_forward_impl.3} parent=19 // pred_check_branch
          %252 = sbr.rel (%p250) target = $region32
        $region31: #{_forward_impl.3} parent=19 // pred_region
          %s253 = sand.u32 %s20, 1
          %s254 = scalar_lea.sflag [#allocation6], %s253
          %s255 = sand.u32 %s117, 1
          %s256 = smul.addr %s255, 8
          %s257 = scalar_lea.vmem [#allocation7], %s256
          %s258 = smul.u32 8, %s27
          %s260 = ssub.s32 128, 128
          %261 = vsyncadd %s254, %s260
          %s262 = smul.addr %s258, 16
          %s263 = scalar_lea.hbm %s3, %s262
          %s265 = sshll.u32 %s257, 4
          %s266 = int_to_ptr.vmem [resolvable:$true] %s265
          %268 = dma.hbm_to_vmem [thread:$0]  %s263, 128, %s266, %s254
        $region32: #{_forward_impl.3} parent=19 // pred_fallthru
          _
        // Predicated region
        $region33: #{_forward_impl.3} parent=19 // pred_check
          %p269 = pneg %p153
        $region34: #{_forward_impl.3} parent=19 // pred_check_branch
          %271 = sbr.rel (%p269) target = $region36
        $region35: #{_forward_impl.3} parent=19 // pred_region
          %s272 = sand.u32 %s143, 1
          %s273 = scalar_lea.sflag [#allocation9], %s272
          %s274 = sand.u32 %s143, 1
          %s275 = smul.addr %s274, 8
          %s276 = scalar_lea.vmem [#allocation8], %s275
          %s277 = smul.u32 8, %s27
          %s279 = ssub.s32 128, 128
          %280 = vsyncadd %s273, %s279
          %s281 = smul.addr %s277, 16
          %s282 = scalar_lea.hbm %s4, %s281
          %s284 = sshll.u32 %s276, 4
          %s285 = int_to_ptr.vmem [resolvable:$true] %s284
          %287 = dma.hbm_to_vmem [thread:$0]  %s282, 128, %s285, %s273
        $region36: #{_forward_impl.3} parent=19 // pred_fallthru
          _
      $region20: #{_forward_impl.3} parent=5 // pred_fallthru
        _
      %p288 = scmp.le.s32.totalorder 1, %s20
      %p289 = scmp.lt.s32.totalorder %s20, 7
      %p290 = pnand %p288, %p289
      %p291 = pneg %p290
      // Predicated region
      $region37: #{_forward_impl.3} parent=5 // pred_check
        _
      $region38: #{_forward_impl.3} parent=5 // pred_check_branch
        %293 = sbr.rel (%p290) target = $region40
      $region39: #{_forward_impl.3} parent=5 // pred_region
        %s294 = ssub.s32 %s20, 1
        %s295 = sand.u32 %s68, 1
        %s296 = scalar_lea.sflag [#allocation4], %s295
        %s297 = sand.u32 %s68, 1
        %s298 = smul.addr %s297, 512
        %s299 = scalar_lea.vmem [#allocation3], %s298
        // Predicated region
        $region41: #{_forward_impl.3} parent=39 // pred_check
          %p300 = pneg %p81
        $region42: #{_forward_impl.3} parent=39 // pred_check_branch
          %302 = sbr.rel (%p300) target = $region44
        $region43: #{_forward_impl.3} parent=39 // pred_region
          %303 = dma.done %s296, 8192
        $region44: #{_forward_impl.3} parent=39 // pred_fallthru
          _
        %s304 = sand.u32 %s25, 1
        %s305 = scalar_lea.sflag [#allocation6], %s304
        %s306 = sand.u32 %s94, 1
        %s307 = smul.addr %s306, 8
        %s308 = scalar_lea.vmem [#allocation5], %s307
        // Predicated region
        $region45: #{_forward_impl.3} parent=39 // pred_check
          %p309 = pneg %p107
        $region46: #{_forward_impl.3} parent=39 // pred_check_branch
          %311 = sbr.rel (%p309) target = $region48
        $region47: #{_forward_impl.3} parent=39 // pred_region
          %312 = dma.done %s305, 128
        $region48: #{_forward_impl.3} parent=39 // pred_fallthru
          _
        %s313 = sand.u32 %s25, 1
        %s314 = scalar_lea.sflag [#allocation6], %s313
        %s315 = sand.u32 %s120, 1
        %s316 = smul.addr %s315, 8
        %s317 = scalar_lea.vmem [#allocation7], %s316
        // Predicated region
        $region49: #{_forward_impl.3} parent=39 // pred_check
          %p318 = pneg %p133
        $region50: #{_forward_impl.3} parent=39 // pred_check_branch
          %320 = sbr.rel (%p318) target = $region52
        $region51: #{_forward_impl.3} parent=39 // pred_region
          %321 = dma.done %s314, 128
        $region52: #{_forward_impl.3} parent=39 // pred_fallthru
          _
        %s322 = sand.u32 %s146, 1
        %s323 = scalar_lea.sflag [#allocation9], %s322
        %s324 = sand.u32 %s146, 1
        %s325 = smul.addr %s324, 8
        %s326 = scalar_lea.vmem [#allocation8], %s325
        // Predicated region
        $region53: #{_forward_impl.3} parent=39 // pred_check
          %p327 = pneg %p159
        $region54: #{_forward_impl.3} parent=39 // pred_check_branch
          %329 = sbr.rel (%p327) target = $region56
        $region55: #{_forward_impl.3} parent=39 // pred_region
          %330 = dma.done %s323, 128
        $region56: #{_forward_impl.3} parent=39 // pred_fallthru
          _
        %p331 = pneg %p53
        %p332 = pneg %p50
        %s333 = sand.u32 %s68, 1
        %s334 = scalar_lea.sflag [#allocation4], %s333
        %s335 = sand.u32 %s68, 1
        %s336 = smul.addr %s335, 512
        %s337 = scalar_lea.vmem [#allocation3], %s336
        %p338 = pneg %p81
        %p339 = pneg %p78
        %s340 = sand.u32 %s25, 1
        %s341 = scalar_lea.sflag [#allocation6], %s340
        %s342 = sand.u32 %s94, 1
        %s343 = smul.addr %s342, 8
        %s344 = scalar_lea.vmem [#allocation5], %s343
        %p345 = pneg %p107
        %p346 = pneg %p104
        %s347 = sand.u32 %s25, 1
        %s348 = scalar_lea.sflag [#allocation6], %s347
        %s349 = sand.u32 %s120, 1
        %s350 = smul.addr %s349, 8
        %s351 = scalar_lea.vmem [#allocation7], %s350
        %p352 = pneg %p133
        %p353 = pneg %p130
        %s354 = sand.u32 %s146, 1
        %s355 = scalar_lea.sflag [#allocation9], %s354
        %s356 = sand.u32 %s146, 1
        %s357 = smul.addr %s356, 8
        %s358 = scalar_lea.vmem [#allocation8], %s357
        %p359 = pneg %p159
        %p360 = pneg %p156
        %p361 = pneg %p185
        %p362 = pneg %p182
        %s363 = smul.u32 8, %s29
        %p364 = scmp.lt.s32.totalorder %s363, 15
        %s365 = scalar_select %p364, %s363, 15
        %s366 = smul.addr %s365, 2
        %s367 = scalar_lea.vmem %s5, %s366
        %s368 = smul.u32 16, %s30
        %s369 = smul.u32 8, %s29
        %s370 = smul.u32 8, %s29
        %s371 = smul.u32 8, %s29
        %s372 = smul.u32 8, %s29
        %s373 = smul.u32 8, %s29
        %p374 = scmp.lt.s32.totalorder %s373, 15
        %s375 = scalar_select %p374, %s373, 15
        %s376 = smul.addr %s375, 2
        %s377 = scalar_lea.vmem %s5, %s376
        %s378 = smul.u32 8, %s29
        %p380 = scmp.eq.s32.totalorder %s30, 0
        // Predicated region
        $region57: #{_forward_impl.3} parent=39 // pred_check
          %p381 = pneg %p380
        $region58: #{_forward_impl.3} parent=39 // pred_check_branch
          %383 = sbr.rel (%p381) target = $region60
        $region59: #{_forward_impl.3} parent=39 // pred_region
          %384 = vst [vmem:[#allocation2] sm:$0xff] 0.0
          %385 = vst [vmem:[#allocation2 + $0x8] sm:$0xff] 0.0
        $region60: #{_forward_impl.3} parent=39 // pred_fallthru
          _
        %s386 = smul.u32 %s30, 128
        %v387 = vld [vmem:[#allocation2] sm:$0xff]
        %v388 = vld [vmem:[#allocation2 + $0x8] sm:$0xff]
        %s389 = sshra.s32 %s386, 7
        %s390 = sand.u32 %s386, 127
        %s391 = scalar_lea.vmem %s0, %s389
        %v392 = vld [vmem:[%s391] sm:$0x1]
        %v393 = vld [vmem:[%s299] sm:$0xff]
        %v394 = vld [vmem:[%s299 + $0x8] sm:$0xff]
        %v395 = vld [vmem:[%s299 + $0x10] sm:$0xff]
        %v396 = vld [vmem:[%s299 + $0x18] sm:$0xff]
        %v397 = vld [vmem:[%s299 + $0x20] sm:$0xff]
        %v398 = vld [vmem:[%s299 + $0x28] sm:$0xff]
        %v399 = vld [vmem:[%s299 + $0x30] sm:$0xff]
        %v400 = vld [vmem:[%s299 + $0x38] sm:$0xff]
        %v401 = vld [vmem:[%s299 + $0x40] sm:$0xff]
        %v402 = vld [vmem:[%s299 + $0x48] sm:$0xff]
        %v403 = vld [vmem:[%s299 + $0x50] sm:$0xff]
        %v404 = vld [vmem:[%s299 + $0x58] sm:$0xff]
        %v405 = vld [vmem:[%s299 + $0x60] sm:$0xff]
        %v406 = vld [vmem:[%s299 + $0x68] sm:$0xff]
        %v407 = vld [vmem:[%s299 + $0x70] sm:$0xff]
        %v408 = vld [vmem:[%s299 + $0x78] sm:$0xff]
        %v409 = vld [vmem:[%s299 + $0x80] sm:$0xff]
        %v410 = vld [vmem:[%s299 + $0x88] sm:$0xff]
        %v411 = vld [vmem:[%s299 + $0x90] sm:$0xff]
        %v412 = vld [vmem:[%s299 + $0x98] sm:$0xff]
        %v413 = vld [vmem:[%s299 + $0xa0] sm:$0xff]
        %v414 = vld [vmem:[%s299 + $0xa8] sm:$0xff]
        %v415 = vld [vmem:[%s299 + $0xb0] sm:$0xff]
        %v416 = vld [vmem:[%s299 + $0xb8] sm:$0xff]
        %v417 = vld [vmem:[%s299 + $0xc0] sm:$0xff]
        %v418 = vld [vmem:[%s299 + $0xc8] sm:$0xff]
        %v419 = vld [vmem:[%s299 + $0xd0] sm:$0xff]
        %v420 = vld [vmem:[%s299 + $0xd8] sm:$0xff]
        %v421 = vld [vmem:[%s299 + $0xe0] sm:$0xff]
        %v422 = vld [vmem:[%s299 + $0xe8] sm:$0xff]
        %v423 = vld [vmem:[%s299 + $0xf0] sm:$0xff]
        %v424 = vld [vmem:[%s299 + $0xf8] sm:$0xff]
        %v425 = vld [vmem:[%s299 + $0x100] sm:$0xff]
        %v426 = vld [vmem:[%s299 + $0x108] sm:$0xff]
        %v427 = vld [vmem:[%s299 + $0x110] sm:$0xff]
        %v428 = vld [vmem:[%s299 + $0x118] sm:$0xff]
        %v429 = vld [vmem:[%s299 + $0x120] sm:$0xff]
        %v430 = vld [vmem:[%s299 + $0x128] sm:$0xff]
        %v431 = vld [vmem:[%s299 + $0x130] sm:$0xff]
        %v432 = vld [vmem:[%s299 + $0x138] sm:$0xff]
        %v433 = vld [vmem:[%s299 + $0x140] sm:$0xff]
        %v434 = vld [vmem:[%s299 + $0x148] sm:$0xff]
        %v435 = vld [vmem:[%s299 + $0x150] sm:$0xff]
        %v436 = vld [vmem:[%s299 + $0x158] sm:$0xff]
        %v437 = vld [vmem:[%s299 + $0x160] sm:$0xff]
        %v438 = vld [vmem:[%s299 + $0x168] sm:$0xff]
        %v439 = vld [vmem:[%s299 + $0x170] sm:$0xff]
        %v440 = vld [vmem:[%s299 + $0x178] sm:$0xff]
        %v441 = vld [vmem:[%s299 + $0x180] sm:$0xff]
        %v442 = vld [vmem:[%s299 + $0x188] sm:$0xff]
        %v443 = vld [vmem:[%s299 + $0x190] sm:$0xff]
        %v444 = vld [vmem:[%s299 + $0x198] sm:$0xff]
        %v445 = vld [vmem:[%s299 + $0x1a0] sm:$0xff]
        %v446 = vld [vmem:[%s299 + $0x1a8] sm:$0xff]
        %v447 = vld [vmem:[%s299 + $0x1b0] sm:$0xff]
        %v448 = vld [vmem:[%s299 + $0x1b8] sm:$0xff]
        %v449 = vld [vmem:[%s299 + $0x1c0] sm:$0xff]
        %v450 = vld [vmem:[%s299 + $0x1c8] sm:$0xff]
        %v451 = vld [vmem:[%s299 + $0x1d0] sm:$0xff]
        %v452 = vld [vmem:[%s299 + $0x1d8] sm:$0xff]
        %v453 = vld [vmem:[%s299 + $0x1e0] sm:$0xff]
        %v454 = vld [vmem:[%s299 + $0x1e8] sm:$0xff]
        %v455 = vld [vmem:[%s299 + $0x1f0] sm:$0xff]
        %v456 = vld [vmem:[%s299 + $0x1f8] sm:$0xff]
        %v521 = vunpack.c.l.b16 %v393
        %v522 = vunpack.c.h.b16 %v393
        %v523 = vunpack.c.l.b16 %v394
        %v524 = vunpack.c.h.b16 %v394
        %v525 = vunpack.c.l.b16 %v395
        %v526 = vunpack.c.h.b16 %v395
        %v527 = vunpack.c.l.b16 %v396
        %v528 = vunpack.c.h.b16 %v396
        %v529 = vunpack.c.l.b16 %v397
        %v530 = vunpack.c.h.b16 %v397
        %v531 = vunpack.c.l.b16 %v398
        %v532 = vunpack.c.h.b16 %v398
        %v533 = vunpack.c.l.b16 %v399
        %v534 = vunpack.c.h.b16 %v399
        %v535 = vunpack.c.l.b16 %v400
        %v536 = vunpack.c.h.b16 %v400
        %v537 = vunpack.c.l.b16 %v401
        %v538 = vunpack.c.h.b16 %v401
        %v539 = vunpack.c.l.b16 %v402
        %v540 = vunpack.c.h.b16 %v402
        %v541 = vunpack.c.l.b16 %v403
        %v542 = vunpack.c.h.b16 %v403
        %v543 = vunpack.c.l.b16 %v404
        %v544 = vunpack.c.h.b16 %v404
        %v545 = vunpack.c.l.b16 %v405
        %v546 = vunpack.c.h.b16 %v405
        %v547 = vunpack.c.l.b16 %v406
        %v548 = vunpack.c.h.b16 %v406
        %v549 = vunpack.c.l.b16 %v407
        %v550 = vunpack.c.h.b16 %v407
        %v551 = vunpack.c.l.b16 %v408
        %v552 = vunpack.c.h.b16 %v408
        %v553 = vunpack.c.l.b16 %v409
        %v554 = vunpack.c.h.b16 %v409
        %v555 = vunpack.c.l.b16 %v410
        %v556 = vunpack.c.h.b16 %v410
        %v557 = vunpack.c.l.b16 %v411
        %v558 = vunpack.c.h.b16 %v411
        %v559 = vunpack.c.l.b16 %v412
        %v560 = vunpack.c.h.b16 %v412
        %v561 = vunpack.c.l.b16 %v413
        %v562 = vunpack.c.h.b16 %v413
        %v563 = vunpack.c.l.b16 %v414
        %v564 = vunpack.c.h.b16 %v414
        %v565 = vunpack.c.l.b16 %v415
        %v566 = vunpack.c.h.b16 %v415
        %v567 = vunpack.c.l.b16 %v416
        %v568 = vunpack.c.h.b16 %v416
        %v569 = vunpack.c.l.b16 %v417
        %v570 = vunpack.c.h.b16 %v417
        %v571 = vunpack.c.l.b16 %v418
        %v572 = vunpack.c.h.b16 %v418
        %v573 = vunpack.c.l.b16 %v419
        %v574 = vunpack.c.h.b16 %v419
        %v575 = vunpack.c.l.b16 %v420
        %v576 = vunpack.c.h.b16 %v420
        %v577 = vunpack.c.l.b16 %v421
        %v578 = vunpack.c.h.b16 %v421
        %v579 = vunpack.c.l.b16 %v422
        %v580 = vunpack.c.h.b16 %v422
        %v581 = vunpack.c.l.b16 %v423
        %v582 = vunpack.c.h.b16 %v423
        %v583 = vunpack.c.l.b16 %v424
        %v584 = vunpack.c.h.b16 %v424
        %v585 = vunpack.c.l.b16 %v425
        %v586 = vunpack.c.h.b16 %v425
        %v587 = vunpack.c.l.b16 %v426
        %v588 = vunpack.c.h.b16 %v426
        %v589 = vunpack.c.l.b16 %v427
        %v590 = vunpack.c.h.b16 %v427
        %v591 = vunpack.c.l.b16 %v428
        %v592 = vunpack.c.h.b16 %v428
        %v593 = vunpack.c.l.b16 %v429
        %v594 = vunpack.c.h.b16 %v429
        %v595 = vunpack.c.l.b16 %v430
        %v596 = vunpack.c.h.b16 %v430
        %v597 = vunpack.c.l.b16 %v431
        %v598 = vunpack.c.h.b16 %v431
        %v599 = vunpack.c.l.b16 %v432
        %v600 = vunpack.c.h.b16 %v432
        %v601 = vunpack.c.l.b16 %v433
        %v602 = vunpack.c.h.b16 %v433
        %v603 = vunpack.c.l.b16 %v434
        %v604 = vunpack.c.h.b16 %v434
        %v605 = vunpack.c.l.b16 %v435
        %v606 = vunpack.c.h.b16 %v435
        %v607 = vunpack.c.l.b16 %v436
        %v608 = vunpack.c.h.b16 %v436
        %v609 = vunpack.c.l.b16 %v437
        %v610 = vunpack.c.h.b16 %v437
        %v611 = vunpack.c.l.b16 %v438
        %v612 = vunpack.c.h.b16 %v438
        %v613 = vunpack.c.l.b16 %v439
        %v614 = vunpack.c.h.b16 %v439
        %v615 = vunpack.c.l.b16 %v440
        %v616 = vunpack.c.h.b16 %v440
        %v617 = vunpack.c.l.b16 %v441
        %v618 = vunpack.c.h.b16 %v441
        %v619 = vunpack.c.l.b16 %v442
        %v620 = vunpack.c.h.b16 %v442
        %v621 = vunpack.c.l.b16 %v443
        %v622 = vunpack.c.h.b16 %v443
        %v623 = vunpack.c.l.b16 %v444
        %v624 = vunpack.c.h.b16 %v444
        %v625 = vunpack.c.l.b16 %v445
        %v626 = vunpack.c.h.b16 %v445
        %v627 = vunpack.c.l.b16 %v446
        %v628 = vunpack.c.h.b16 %v446
        %v629 = vunpack.c.l.b16 %v447
        %v630 = vunpack.c.h.b16 %v447
        %v631 = vunpack.c.l.b16 %v448
        %v632 = vunpack.c.h.b16 %v448
        %v633 = vunpack.c.l.b16 %v449
        %v634 = vunpack.c.h.b16 %v449
        %v635 = vunpack.c.l.b16 %v450
        %v636 = vunpack.c.h.b16 %v450
        %v637 = vunpack.c.l.b16 %v451
        %v638 = vunpack.c.h.b16 %v451
        %v639 = vunpack.c.l.b16 %v452
        %v640 = vunpack.c.h.b16 %v452
        %v641 = vunpack.c.l.b16 %v453
        %v642 = vunpack.c.h.b16 %v453
        %v643 = vunpack.c.l.b16 %v454
        %v644 = vunpack.c.h.b16 %v454
        %v645 = vunpack.c.l.b16 %v455
        %v646 = vunpack.c.h.b16 %v455
        %v647 = vunpack.c.l.b16 %v456
        %v648 = vunpack.c.h.b16 %v456
        %v649 = vpack.c.b16 %v529, %v521
        %v650 = vpack.c.b16 %v530, %v522
        %v651 = vpack.c.b16 %v531, %v523
        %v652 = vpack.c.b16 %v532, %v524
        %v653 = vpack.c.b16 %v533, %v525
        %v654 = vpack.c.b16 %v534, %v526
        %v655 = vpack.c.b16 %v535, %v527
        %v656 = vpack.c.b16 %v536, %v528
        %v657 = vpack.c.b16 %v545, %v537
        %v658 = vpack.c.b16 %v546, %v538
        %v659 = vpack.c.b16 %v547, %v539
        %v660 = vpack.c.b16 %v548, %v540
        %v661 = vpack.c.b16 %v549, %v541
        %v662 = vpack.c.b16 %v550, %v542
        %v663 = vpack.c.b16 %v551, %v543
        %v664 = vpack.c.b16 %v552, %v544
        %v665 = vpack.c.b16 %v561, %v553
        %v666 = vpack.c.b16 %v562, %v554
        %v667 = vpack.c.b16 %v563, %v555
        %v668 = vpack.c.b16 %v564, %v556
        %v669 = vpack.c.b16 %v565, %v557
        %v670 = vpack.c.b16 %v566, %v558
        %v671 = vpack.c.b16 %v567, %v559
        %v672 = vpack.c.b16 %v568, %v560
        %v673 = vpack.c.b16 %v577, %v569
        %v674 = vpack.c.b16 %v578, %v570
        %v675 = vpack.c.b16 %v579, %v571
        %v676 = vpack.c.b16 %v580, %v572
        %v677 = vpack.c.b16 %v581, %v573
        %v678 = vpack.c.b16 %v582, %v574
        %v679 = vpack.c.b16 %v583, %v575
        %v680 = vpack.c.b16 %v584, %v576
        %v681 = vpack.c.b16 %v593, %v585
        %v682 = vpack.c.b16 %v594, %v586
        %v683 = vpack.c.b16 %v595, %v587
        %v684 = vpack.c.b16 %v596, %v588
        %v685 = vpack.c.b16 %v597, %v589
        %v686 = vpack.c.b16 %v598, %v590
        %v687 = vpack.c.b16 %v599, %v591
        %v688 = vpack.c.b16 %v600, %v592
        %v689 = vpack.c.b16 %v609, %v601
        %v690 = vpack.c.b16 %v610, %v602
        %v691 = vpack.c.b16 %v611, %v603
        %v692 = vpack.c.b16 %v612, %v604
        %v693 = vpack.c.b16 %v613, %v605
        %v694 = vpack.c.b16 %v614, %v606
        %v695 = vpack.c.b16 %v615, %v607
        %v696 = vpack.c.b16 %v616, %v608
        %v697 = vpack.c.b16 %v625, %v617
        %v698 = vpack.c.b16 %v626, %v618
        %v699 = vpack.c.b16 %v627, %v619
        %v700 = vpack.c.b16 %v628, %v620
        %v701 = vpack.c.b16 %v629, %v621
        %v702 = vpack.c.b16 %v630, %v622
        %v703 = vpack.c.b16 %v631, %v623
        %v704 = vpack.c.b16 %v632, %v624
        %v705 = vpack.c.b16 %v641, %v633
        %v706 = vpack.c.b16 %v642, %v634
        %v707 = vpack.c.b16 %v643, %v635
        %v708 = vpack.c.b16 %v644, %v636
        %v709 = vpack.c.b16 %v645, %v637
        %v710 = vpack.c.b16 %v646, %v638
        %v711 = vpack.c.b16 %v647, %v639
        %v712 = vpack.c.b16 %v648, %v640
        %777 = vmatprep.subr.bf16.mxu0 %v650
        %778 = vmatpush1.bf16.msra.mxu0 %v649
        %779 = vmatprep.subr.bf16.mxu0 %v658
        %780 = vmatpush1.bf16.msra.mxu0 %v657
        %781 = vmatprep.subr.bf16.mxu0 %v666
        %782 = vmatpush1.bf16.msra.mxu0 %v665
        %783 = vmatprep.subr.bf16.mxu0 %v674
        %784 = vmatpush1.bf16.msra.mxu0 %v673
        %785 = vmatprep.subr.bf16.mxu0 %v682
        %786 = vmatpush1.bf16.msra.mxu0 %v681
        %787 = vmatprep.subr.bf16.mxu0 %v690
        %788 = vmatpush1.bf16.msra.mxu0 %v689
        %789 = vmatprep.subr.bf16.mxu0 %v698
        %790 = vmatpush1.bf16.msra.mxu0 %v697
        %791 = vmatprep.subr.bf16.mxu0 %v706
        %792 = vmatpush1.bf16.msra.mxu0 %v705
        %793 = vmatprep.subr.bf16.mxu0 0
        %794 = vmatpush1.bf16.msra.mxu0 0
        %795 = vmatprep.subr.bf16.mxu0 0
        %796 = vmatpush1.bf16.msra.mxu0 0
        %797 = vmatprep.subr.bf16.mxu0 0
        %798 = vmatpush1.bf16.msra.mxu0 0
        %799 = vmatprep.subr.bf16.mxu0 0
        %800 = vmatpush1.bf16.msra.mxu0 0
        %801 = vmatprep.subr.bf16.mxu0 0
        %802 = vmatpush1.bf16.msra.mxu0 0
        %803 = vmatprep.subr.bf16.mxu0 0
        %804 = vmatpush1.bf16.msra.mxu0 0
        %805 = vmatprep.subr.bf16.mxu0 0
        %806 = vmatpush1.bf16.msra.mxu0 0
        %807 = vmatprep.subr.bf16.mxu0 0
        %808 = vmatpush1.bf16.msra.mxu0 0
        %809 = vmatprep.mubr.bf16.mxu0 0
        %810 = vmatmul.mubr.bf16.gmra.mrb[0].mxu0 %v392
        %v811 = vpop.f32.mrb[0].mxu0
        %v812 = vadd.f32 0.0, %v811
        %v813 = vpop.f32.mrb[0].mxu0
        %v814 = vadd.f32 0.0, %v813
        %v815 = vpop.f32.mrb[0].mxu0
        %v816 = vpop.f32.mrb[0].mxu0
        %817 = vdwg.mxu0
        %818 = vmatprep.subr.bf16.mxu0 %v652
        %819 = vmatpush1.bf16.msra.mxu0 %v651
        %820 = vmatprep.subr.bf16.mxu0 %v660
        %821 = vmatpush1.bf16.msra.mxu0 %v659
        %822 = vmatprep.subr.bf16.mxu0 %v668
        %823 = vmatpush1.bf16.msra.mxu0 %v667
        %824 = vmatprep.subr.bf16.mxu0 %v676
        %825 = vmatpush1.bf16.msra.mxu0 %v675
        %826 = vmatprep.subr.bf16.mxu0 %v684
        %827 = vmatpush1.bf16.msra.mxu0 %v683
        %828 = vmatprep.subr.bf16.mxu0 %v692
        %829 = vmatpush1.bf16.msra.mxu0 %v691
        %830 = vmatprep.subr.bf16.mxu0 %v700
        %831 = vmatpush1.bf16.msra.mxu0 %v699
        %832 = vmatprep.subr.bf16.mxu0 %v708
        %833 = vmatpush1.bf16.msra.mxu0 %v707
        %834 = vmatprep.subr.bf16.mxu0 0
        %835 = vmatpush1.bf16.msra.mxu0 0
        %836 = vmatprep.subr.bf16.mxu0 0
        %837 = vmatpush1.bf16.msra.mxu0 0
        %838 = vmatprep.subr.bf16.mxu0 0
        %839 = vmatpush1.bf16.msra.mxu0 0
        %840 = vmatprep.subr.bf16.mxu0 0
        %841 = vmatpush1.bf16.msra.mxu0 0
        %842 = vmatprep.subr.bf16.mxu0 0
        %843 = vmatpush1.bf16.msra.mxu0 0
        %844 = vmatprep.subr.bf16.mxu0 0
        %845 = vmatpush1.bf16.msra.mxu0 0
        %846 = vmatprep.subr.bf16.mxu0 0
        %847 = vmatpush1.bf16.msra.mxu0 0
        %848 = vmatprep.subr.bf16.mxu0 0
        %849 = vmatpush1.bf16.msra.mxu0 0
        %850 = vmatprep.mubr.bf16.mxu0 0
        %851 = vmatmul.mubr.bf16.gmra.mrb[0].mxu0 %v392
        %v852 = vpop.f32.mrb[0].mxu0
        %v853 = vadd.f32 0.0, %v852
        %v854 = vpop.f32.mrb[0].mxu0
        %v855 = vadd.f32 0.0, %v854
        %v856 = vpop.f32.mrb[0].mxu0
        %v857 = vpop.f32.mrb[0].mxu0
        %858 = vdwg.mxu0
        %859 = vmatprep.subr.bf16.mxu0 %v654
        %860 = vmatpush1.bf16.msra.mxu0 %v653
        %861 = vmatprep.subr.bf16.mxu0 %v662
        %862 = vmatpush1.bf16.msra.mxu0 %v661
        %863 = vmatprep.subr.bf16.mxu0 %v670
        %864 = vmatpush1.bf16.msra.mxu0 %v669
        %865 = vmatprep.subr.bf16.mxu0 %v678
        %866 = vmatpush1.bf16.msra.mxu0 %v677
        %867 = vmatprep.subr.bf16.mxu0 %v686
        %868 = vmatpush1.bf16.msra.mxu0 %v685
        %869 = vmatprep.subr.bf16.mxu0 %v694
        %870 = vmatpush1.bf16.msra.mxu0 %v693
        %871 = vmatprep.subr.bf16.mxu0 %v702
        %872 = vmatpush1.bf16.msra.mxu0 %v701
        %873 = vmatprep.subr.bf16.mxu0 %v710
        %874 = vmatpush1.bf16.msra.mxu0 %v709
        %875 = vmatprep.subr.bf16.mxu0 0
        %876 = vmatpush1.bf16.msra.mxu0 0
        %877 = vmatprep.subr.bf16.mxu0 0
        %878 = vmatpush1.bf16.msra.mxu0 0
        %879 = vmatprep.subr.bf16.mxu0 0
        %880 = vmatpush1.bf16.msra.mxu0 0
        %881 = vmatprep.subr.bf16.mxu0 0
        %882 = vmatpush1.bf16.msra.mxu0 0
        %883 = vmatprep.subr.bf16.mxu0 0
        %884 = vmatpush1.bf16.msra.mxu0 0
        %885 = vmatprep.subr.bf16.mxu0 0
        %886 = vmatpush1.bf16.msra.mxu0 0
        %887 = vmatprep.subr.bf16.mxu0 0
        %888 = vmatpush1.bf16.msra.mxu0 0
        %889 = vmatprep.subr.bf16.mxu0 0
        %890 = vmatpush1.bf16.msra.mxu0 0
        %891 = vmatprep.mubr.bf16.mxu0 0
        %892 = vmatmul.mubr.bf16.gmra.mrb[0].mxu0 %v392
        %v893 = vpop.f32.mrb[0].mxu0
        %v894 = vadd.f32 0.0, %v893
        %v895 = vpop.f32.mrb[0].mxu0
        %v896 = vadd.f32 0.0, %v895
        %v897 = vpop.f32.mrb[0].mxu0
        %v898 = vpop.f32.mrb[0].mxu0
        %899 = vdwg.mxu0
        %900 = vmatprep.subr.bf16.mxu0 %v656
        %901 = vmatpush1.bf16.msra.mxu0 %v655
        %902 = vmatprep.subr.bf16.mxu0 %v664
        %903 = vmatpush1.bf16.msra.mxu0 %v663
        %904 = vmatprep.subr.bf16.mxu0 %v672
        %905 = vmatpush1.bf16.msra.mxu0 %v671
        %906 = vmatprep.subr.bf16.mxu0 %v680
        %907 = vmatpush1.bf16.msra.mxu0 %v679
        %908 = vmatprep.subr.bf16.mxu0 %v688
        %909 = vmatpush1.bf16.msra.mxu0 %v687
        %910 = vmatprep.subr.bf16.mxu0 %v696
        %911 = vmatpush1.bf16.msra.mxu0 %v695
        %912 = vmatprep.subr.bf16.mxu0 %v704
        %913 = vmatpush1.bf16.msra.mxu0 %v703
        %914 = vmatprep.subr.bf16.mxu0 %v712
        %915 = vmatpush1.bf16.msra.mxu0 %v711
        %916 = vmatprep.subr.bf16.mxu0 0
        %917 = vmatpush1.bf16.msra.mxu0 0
        %918 = vmatprep.subr.bf16.mxu0 0
        %919 = vmatpush1.bf16.msra.mxu0 0
        %920 = vmatprep.subr.bf16.mxu0 0
        %921 = vmatpush1.bf16.msra.mxu0 0
        %922 = vmatprep.subr.bf16.mxu0 0
        %923 = vmatpush1.bf16.msra.mxu0 0
        %924 = vmatprep.subr.bf16.mxu0 0
        %925 = vmatpush1.bf16.msra.mxu0 0
        %926 = vmatprep.subr.bf16.mxu0 0
        %927 = vmatpush1.bf16.msra.mxu0 0
        %928 = vmatprep.subr.bf16.mxu0 0
        %929 = vmatpush1.bf16.msra.mxu0 0
        %930 = vmatprep.subr.bf16.mxu0 0
        %931 = vmatpush1.bf16.msra.mxu0 0
        %932 = vmatprep.mubr.bf16.mxu0 0
        %933 = vmatmul.mubr.bf16.gmra.mrb[0].mxu0 %v392
        %v934 = vpop.f32.mrb[0].mxu0
        %v935 = vadd.f32 0.0, %v934
        %v936 = vpop.f32.mrb[0].mxu0
        %v937 = vadd.f32 0.0, %v936
        %v938 = vpop.f32.mrb[0].mxu0
        %v939 = vpop.f32.mrb[0].mxu0
        %940 = vdwg.mxu0
        %v949 = vcombine.low %v812, %v814
        %v950 = vcombine.low %v853, %v855
        %v952 = vunpack.c.l.s4 1983009808
        %v953 = vunpack.c.0.s8 %v952
        %v954 = vlaneseq
        %v955 = vshrl.u32 %v954, 7
        %v956 = vsub.s32 %v953, %v955
        %v957 = vrot.slane %v949, %v956
        %v959 = vunpack.c.l.s4 1983009808
        %v960 = vunpack.c.0.s8 %v959
        %v961 = vlaneseq
        %v962 = vshrl.u32 %v961, 7
        %v963 = vsub.s32 %v960, %v962
        %v964 = vrot.slane %v950, %v963
        %v965 = vcombine.low %v957, %v964
        %v966 = vcombine.low %v894, %v896
        %v967 = vcombine.low %v935, %v937
        %v969 = vunpack.c.l.s4 1983009808
        %v970 = vunpack.c.0.s8 %v969
        %v971 = vlaneseq
        %v972 = vshrl.u32 %v971, 7
        %v973 = vsub.s32 %v970, %v972
        %v974 = vrot.slane %v966, %v973
        %v976 = vunpack.c.l.s4 1983009808
        %v977 = vunpack.c.0.s8 %v976
        %v978 = vlaneseq
        %v979 = vshrl.u32 %v978, 7
        %v980 = vsub.s32 %v977, %v979
        %v981 = vrot.slane %v967, %v980
        %v982 = vcombine.low %v974, %v981
        %v985 = vadd.f32 %v387, %v965
        %v986 = vadd.f32 %v388, %v982
        %987 = vst [vmem:[#allocation2] sm:$0xff] %v985
        %988 = vst [vmem:[#allocation2 + $0x8] sm:$0xff] %v986
        %p989 = scmp.eq.s32.totalorder %s30, 2
        // Predicated region
        $region61: #{_forward_impl.3} parent=39 // pred_check
          %p990 = pneg %p989
        $region62: #{_forward_impl.3} parent=39 // pred_check_branch
          %992 = sbr.rel (%p990) target = $region64
        $region63: #{_forward_impl.3} parent=39 // pred_region
          %v993 = vld [vmem:[#allocation2] sm:$0xff]
          %v994 = vld [vmem:[#allocation2 + $0x8] sm:$0xff]
          %v995 = vld [vmem:[%s308] sm:$0xff]
          %v997 = vlaneseq
          %v998 = vshrl.u32 %v997, 7
          %v999 = vsub.s32 0, %v998
          %v1000 = vrot.slane %v995, %v999
          %v1001 = vlaneseq
          %v1002 = vshrl.u32 %v1001, 7
          %v1003 = vsub.s32 1, %v1002
          %v1004 = vrot.slane %v995, %v1003
          %v1005 = vlaneseq
          %v1006 = vshrl.u32 %v1005, 7
          %v1007 = vsub.s32 2, %v1006
          %v1008 = vrot.slane %v995, %v1007
          %v1009 = vlaneseq
          %v1010 = vshrl.u32 %v1009, 7
          %v1011 = vsub.s32 3, %v1010
          %v1012 = vrot.slane %v995, %v1011
          %v1013 = vlaneseq
          %v1014 = vshrl.u32 %v1013, 7
          %v1015 = vsub.s32 4, %v1014
          %v1016 = vrot.slane %v995, %v1015
          %v1017 = vlaneseq
          %v1018 = vshrl.u32 %v1017, 7
          %v1019 = vsub.s32 5, %v1018
          %v1020 = vrot.slane %v995, %v1019
          %v1021 = vlaneseq
          %v1022 = vshrl.u32 %v1021, 7
          %v1023 = vsub.s32 6, %v1022
          %v1024 = vrot.slane %v995, %v1023
          %v1025 = vlaneseq
          %v1026 = vshrl.u32 %v1025, 7
          %v1027 = vsub.s32 7, %v1026
          %v1028 = vrot.slane %v995, %v1027
          %v1029 = vcombine.low %v1000, %v1004
          %v1030 = vcombine.low %v1008, %v1012
          %v1032 = vunpack.c.l.s4 1983009808
          %v1033 = vunpack.c.0.s8 %v1032
          %v1034 = vlaneseq
          %v1035 = vshrl.u32 %v1034, 7
          %v1036 = vsub.s32 %v1033, %v1035
          %v1037 = vrot.slane %v1029, %v1036
          %v1039 = vunpack.c.l.s4 1983009808
          %v1040 = vunpack.c.0.s8 %v1039
          %v1041 = vlaneseq
          %v1042 = vshrl.u32 %v1041, 7
          %v1043 = vsub.s32 %v1040, %v1042
          %v1044 = vrot.slane %v1030, %v1043
          %v1045 = vcombine.low %v1037, %v1044
          %v1046 = vcombine.low %v1016, %v1020
          %v1047 = vcombine.low %v1024, %v1028
          %v1049 = vunpack.c.l.s4 1983009808
          %v1050 = vunpack.c.0.s8 %v1049
          %v1051 = vlaneseq
          %v1052 = vshrl.u32 %v1051, 7
          %v1053 = vsub.s32 %v1050, %v1052
          %v1054 = vrot.slane %v1046, %v1053
          %v1056 = vunpack.c.l.s4 1983009808
          %v1057 = vunpack.c.0.s8 %v1056
          %v1058 = vlaneseq
          %v1059 = vshrl.u32 %v1058, 7
          %v1060 = vsub.s32 %v1057, %v1059
          %v1061 = vrot.slane %v1047, %v1060
          %v1062 = vcombine.low %v1054, %v1061
          %v1065 = vadd.f32 %v993, %v1045
          %v1066 = vadd.f32 %v994, %v1062
          %v1067 = vld [vmem:[%s317] sm:$0xff]
          %v1068 = vld [vmem:[%s326] sm:$0xff]
          %v1071 = vcombine.high %v1065, %v1065
          %v1073 = vunpack.c.l.s4 1983009808
          %v1074 = vunpack.c.0.s8 %v1073
          %v1075 = vlaneseq
          %v1076 = vshrl.u32 %v1075, 7
          %v1077 = vsub.s32 %v1074, %v1076
          %v1078 = vrot.slane %v1065, %v1077
          %v1080 = vunpack.c.l.s4 1983009808
          %v1081 = vunpack.c.0.s8 %v1080
          %v1082 = vlaneseq
          %v1083 = vshrl.u32 %v1082, 7
          %v1084 = vsub.s32 %v1081, %v1083
          %v1085 = vrot.slane %v1071, %v1084
          %v1086 = vcombine.high %v1078, %v1078
          %v1087 = vcombine.high %v1085, %v1085
          %v1088 = vcombine.high %v1066, %v1066
          %v1090 = vunpack.c.l.s4 1983009808
          %v1091 = vunpack.c.0.s8 %v1090
          %v1092 = vlaneseq
          %v1093 = vshrl.u32 %v1092, 7
          %v1094 = vsub.s32 %v1091, %v1093
          %v1095 = vrot.slane %v1066, %v1094
          %v1097 = vunpack.c.l.s4 1983009808
          %v1098 = vunpack.c.0.s8 %v1097
          %v1099 = vlaneseq
          %v1100 = vshrl.u32 %v1099, 7
          %v1101 = vsub.s32 %v1098, %v1100
          %v1102 = vrot.slane %v1088, %v1101
          %v1103 = vcombine.high %v1095, %v1095
          %v1104 = vcombine.high %v1102, %v1102
          %vm1113 = vcmask 1041408
          %v1114 = vsel %vm1113, %v1078, 0.0
          %v1115 = vrot.slane %v1114, 4
          %v1116 = vadd.f32 %v1114, %v1115
          %v1117 = vrot.slane %v1116, 2
          %v1118 = vadd.f32 %v1116, %v1117
          %v1119 = vrot.slane %v1118, 1
          %v1120 = vadd.f32 %v1118, %v1119
          %v1121 = vsel %vm1113, %v1086, 0.0
          %v1122 = vrot.slane %v1121, 4
          %v1123 = vadd.f32 %v1121, %v1122
          %v1124 = vrot.slane %v1123, 2
          %v1125 = vadd.f32 %v1123, %v1124
          %v1126 = vrot.slane %v1125, 1
          %v1127 = vadd.f32 %v1125, %v1126
          %v1128 = vsel %vm1113, %v1085, 0.0
          %v1129 = vrot.slane %v1128, 4
          %v1130 = vadd.f32 %v1128, %v1129
          %v1131 = vrot.slane %v1130, 2
          %v1132 = vadd.f32 %v1130, %v1131
          %v1133 = vrot.slane %v1132, 1
          %v1134 = vadd.f32 %v1132, %v1133
          %v1135 = vsel %vm1113, %v1087, 0.0
          %v1136 = vrot.slane %v1135, 4
          %v1137 = vadd.f32 %v1135, %v1136
          %v1138 = vrot.slane %v1137, 2
          %v1139 = vadd.f32 %v1137, %v1138
          %v1140 = vrot.slane %v1139, 1
          %v1141 = vadd.f32 %v1139, %v1140
          %v1142 = vsel %vm1113, %v1095, 0.0
          %v1143 = vrot.slane %v1142, 4
          %v1144 = vadd.f32 %v1142, %v1143
          %v1145 = vrot.slane %v1144, 2
          %v1146 = vadd.f32 %v1144, %v1145
          %v1147 = vrot.slane %v1146, 1
          %v1148 = vadd.f32 %v1146, %v1147
          %v1149 = vsel %vm1113, %v1103, 0.0
          %v1150 = vrot.slane %v1149, 4
          %v1151 = vadd.f32 %v1149, %v1150
          %v1152 = vrot.slane %v1151, 2
          %v1153 = vadd.f32 %v1151, %v1152
          %v1154 = vrot.slane %v1153, 1
          %v1155 = vadd.f32 %v1153, %v1154
          %v1156 = vsel %vm1113, %v1102, 0.0
          %v1157 = vrot.slane %v1156, 4
          %v1158 = vadd.f32 %v1156, %v1157
          %v1159 = vrot.slane %v1158, 2
          %v1160 = vadd.f32 %v1158, %v1159
          %v1161 = vrot.slane %v1160, 1
          %v1162 = vadd.f32 %v1160, %v1161
          %v1163 = vsel %vm1113, %v1104, 0.0
          %v1164 = vrot.slane %v1163, 4
          %v1165 = vadd.f32 %v1163, %v1164
          %v1166 = vrot.slane %v1165, 2
          %v1167 = vadd.f32 %v1165, %v1166
          %v1168 = vrot.slane %v1167, 1
          %v1169 = vadd.f32 %v1167, %v1168
          %v1170 = vmul.f32 %v1120, 0.5
          %v1171 = vmul.f32 %v1127, 0.5
          %v1172 = vmul.f32 %v1134, 0.5
          %v1173 = vmul.f32 %v1141, 0.5
          %v1174 = vmul.f32 %v1148, 0.5
          %v1175 = vmul.f32 %v1155, 0.5
          %v1176 = vmul.f32 %v1162, 0.5
          %v1177 = vmul.f32 %v1169, 0.5
          %v1178 = vmul.f32 %v1065, %v1065
          %v1179 = vmul.f32 %v1066, %v1066
          %v1182 = vcombine.high %v1178, %v1178
          %v1184 = vunpack.c.l.s4 1983009808
          %v1185 = vunpack.c.0.s8 %v1184
          %v1186 = vlaneseq
          %v1187 = vshrl.u32 %v1186, 7
          %v1188 = vsub.s32 %v1185, %v1187
          %v1189 = vrot.slane %v1178, %v1188
          %v1191 = vunpack.c.l.s4 1983009808
          %v1192 = vunpack.c.0.s8 %v1191
          %v1193 = vlaneseq
          %v1194 = vshrl.u32 %v1193, 7
          %v1195 = vsub.s32 %v1192, %v1194
          %v1196 = vrot.slane %v1182, %v1195
          %v1197 = vcombine.high %v1189, %v1189
          %v1198 = vcombine.high %v1196, %v1196
          %v1199 = vcombine.high %v1179, %v1179
          %v1201 = vunpack.c.l.s4 1983009808
          %v1202 = vunpack.c.0.s8 %v1201
          %v1203 = vlaneseq
          %v1204 = vshrl.u32 %v1203, 7
          %v1205 = vsub.s32 %v1202, %v1204
          %v1206 = vrot.slane %v1179, %v1205
          %v1208 = vunpack.c.l.s4 1983009808
          %v1209 = vunpack.c.0.s8 %v1208
          %v1210 = vlaneseq
          %v1211 = vshrl.u32 %v1210, 7
          %v1212 = vsub.s32 %v1209, %v1211
          %v1213 = vrot.slane %v1199, %v1212
          %v1214 = vcombine.high %v1206, %v1206
          %v1215 = vcombine.high %v1213, %v1213
          %v1224 = vsel %vm1113, %v1189, 0.0
          %v1225 = vrot.slane %v1224, 4
          %v1226 = vadd.f32 %v1224, %v1225
          %v1227 = vrot.slane %v1226, 2
          %v1228 = vadd.f32 %v1226, %v1227
          %v1229 = vrot.slane %v1228, 1
          %v1230 = vadd.f32 %v1228, %v1229
          %v1231 = vsel %vm1113, %v1197, 0.0
          %v1232 = vrot.slane %v1231, 4
          %v1233 = vadd.f32 %v1231, %v1232
          %v1234 = vrot.slane %v1233, 2
          %v1235 = vadd.f32 %v1233, %v1234
          %v1236 = vrot.slane %v1235, 1
          %v1237 = vadd.f32 %v1235, %v1236
          %v1238 = vsel %vm1113, %v1196, 0.0
          %v1239 = vrot.slane %v1238, 4
          %v1240 = vadd.f32 %v1238, %v1239
          %v1241 = vrot.slane %v1240, 2
          %v1242 = vadd.f32 %v1240, %v1241
          %v1243 = vrot.slane %v1242, 1
          %v1244 = vadd.f32 %v1242, %v1243
          %v1245 = vsel %vm1113, %v1198, 0.0
          %v1246 = vrot.slane %v1245, 4
          %v1247 = vadd.f32 %v1245, %v1246
          %v1248 = vrot.slane %v1247, 2
          %v1249 = vadd.f32 %v1247, %v1248
          %v1250 = vrot.slane %v1249, 1
          %v1251 = vadd.f32 %v1249, %v1250
          %v1252 = vsel %vm1113, %v1206, 0.0
          %v1253 = vrot.slane %v1252, 4
          %v1254 = vadd.f32 %v1252, %v1253
          %v1255 = vrot.slane %v1254, 2
          %v1256 = vadd.f32 %v1254, %v1255
          %v1257 = vrot.slane %v1256, 1
          %v1258 = vadd.f32 %v1256, %v1257
          %v1259 = vsel %vm1113, %v1214, 0.0
          %v1260 = vrot.slane %v1259, 4
          %v1261 = vadd.f32 %v1259, %v1260
          %v1262 = vrot.slane %v1261, 2
          %v1263 = vadd.f32 %v1261, %v1262
          %v1264 = vrot.slane %v1263, 1
          %v1265 = vadd.f32 %v1263, %v1264
          %v1266 = vsel %vm1113, %v1213, 0.0
          %v1267 = vrot.slane %v1266, 4
          %v1268 = vadd.f32 %v1266, %v1267
          %v1269 = vrot.slane %v1268, 2
          %v1270 = vadd.f32 %v1268, %v1269
          %v1271 = vrot.slane %v1270, 1
          %v1272 = vadd.f32 %v1270, %v1271
          %v1273 = vsel %vm1113, %v1215, 0.0
          %v1274 = vrot.slane %v1273, 4
          %v1275 = vadd.f32 %v1273, %v1274
          %v1276 = vrot.slane %v1275, 2
          %v1277 = vadd.f32 %v1275, %v1276
          %v1278 = vrot.slane %v1277, 1
          %v1279 = vadd.f32 %v1277, %v1278
          %v1280 = vmul.f32 %v1230, 0.5
          %v1281 = vmul.f32 %v1237, 0.5
          %v1282 = vmul.f32 %v1244, 0.5
          %v1283 = vmul.f32 %v1251, 0.5
          %v1284 = vmul.f32 %v1258, 0.5
          %v1285 = vmul.f32 %v1265, 0.5
          %v1286 = vmul.f32 %v1272, 0.5
          %v1287 = vmul.f32 %v1279, 0.5
          %v1288 = vmul.f32 %v1170, %v1170
          %v1289 = vmul.f32 %v1171, %v1171
          %v1290 = vmul.f32 %v1172, %v1172
          %v1291 = vmul.f32 %v1173, %v1173
          %v1292 = vmul.f32 %v1174, %v1174
          %v1293 = vmul.f32 %v1175, %v1175
          %v1294 = vmul.f32 %v1176, %v1176
          %v1295 = vmul.f32 %v1177, %v1177
          %v1296 = vsub.f32 %v1280, %v1288
          %v1297 = vsub.f32 %v1281, %v1289
          %v1298 = vsub.f32 %v1282, %v1290
          %v1299 = vsub.f32 %v1283, %v1291
          %v1300 = vsub.f32 %v1284, %v1292
          %v1301 = vsub.f32 %v1285, %v1293
          %v1302 = vsub.f32 %v1286, %v1294
          %v1303 = vsub.f32 %v1287, %v1295
          %v1304 = vmax.f32 %v1296, 0.0
          %v1305 = vmax.f32 %v1297, 0.0
          %v1306 = vmax.f32 %v1298, 0.0
          %v1307 = vmax.f32 %v1299, 0.0
          %v1308 = vmax.f32 %v1300, 0.0
          %v1309 = vmax.f32 %v1301, 0.0
          %v1310 = vmax.f32 %v1302, 0.0
          %v1311 = vmax.f32 %v1303, 0.0
          %v1320 = vcombine.low %v1170, %v1171
          %v1321 = vcombine.low %v1172, %v1173
          %v1323 = vunpack.c.l.s4 1983009808
          %v1324 = vunpack.c.0.s8 %v1323
          %v1325 = vlaneseq
          %v1326 = vshrl.u32 %v1325, 7
          %v1327 = vsub.s32 %v1324, %v1326
          %v1328 = vrot.slane %v1320, %v1327
          %v1330 = vunpack.c.l.s4 1983009808
          %v1331 = vunpack.c.0.s8 %v1330
          %v1332 = vlaneseq
          %v1333 = vshrl.u32 %v1332, 7
          %v1334 = vsub.s32 %v1331, %v1333
          %v1335 = vrot.slane %v1321, %v1334
          %v1336 = vcombine.low %v1328, %v1335
          %v1337 = vcombine.low %v1174, %v1175
          %v1338 = vcombine.low %v1176, %v1177
          %v1340 = vunpack.c.l.s4 1983009808
          %v1341 = vunpack.c.0.s8 %v1340
          %v1342 = vlaneseq
          %v1343 = vshrl.u32 %v1342, 7
          %v1344 = vsub.s32 %v1341, %v1343
          %v1345 = vrot.slane %v1337, %v1344
          %v1347 = vunpack.c.l.s4 1983009808
          %v1348 = vunpack.c.0.s8 %v1347
          %v1349 = vlaneseq
          %v1350 = vshrl.u32 %v1349, 7
          %v1351 = vsub.s32 %v1348, %v1350
          %v1352 = vrot.slane %v1338, %v1351
          %v1353 = vcombine.low %v1345, %v1352
          %v1356 = vsub.f32 %v1065, %v1336
          %v1357 = vsub.f32 %v1066, %v1353
          %v1358 = vadd.f32 %v1304, 1e-05
          %v1359 = vadd.f32 %v1305, 1e-05
          %v1360 = vadd.f32 %v1306, 1e-05
          %v1361 = vadd.f32 %v1307, 1e-05
          %v1362 = vadd.f32 %v1308, 1e-05
          %v1363 = vadd.f32 %v1309, 1e-05
          %v1364 = vadd.f32 %v1310, 1e-05
          %v1365 = vadd.f32 %v1311, 1e-05
          %v1366 = vrsqrt.pop %v1358
          %v1367 = vrsqrt.pop %v1359
          %v1368 = vrsqrt.pop %v1360
          %v1369 = vrsqrt.pop %v1361
          %v1370 = vrsqrt.pop %v1362
          %v1371 = vrsqrt.pop %v1363
          %v1372 = vrsqrt.pop %v1364
          %v1373 = vrsqrt.pop %v1365
          %v1382 = vcombine.low %v1366, %v1367
          %v1383 = vcombine.low %v1368, %v1369
          %v1385 = vunpack.c.l.s4 1983009808
          %v1386 = vunpack.c.0.s8 %v1385
          %v1387 = vlaneseq
          %v1388 = vshrl.u32 %v1387, 7
          %v1389 = vsub.s32 %v1386, %v1388
          %v1390 = vrot.slane %v1382, %v1389
          %v1392 = vunpack.c.l.s4 1983009808
          %v1393 = vunpack.c.0.s8 %v1392
          %v1394 = vlaneseq
          %v1395 = vshrl.u32 %v1394, 7
          %v1396 = vsub.s32 %v1393, %v1395
          %v1397 = vrot.slane %v1383, %v1396
          %v1398 = vcombine.low %v1390, %v1397
          %v1399 = vcombine.low %v1370, %v1371
          %v1400 = vcombine.low %v1372, %v1373
          %v1402 = vunpack.c.l.s4 1983009808
          %v1403 = vunpack.c.0.s8 %v1402
          %v1404 = vlaneseq
          %v1405 = vshrl.u32 %v1404, 7
          %v1406 = vsub.s32 %v1403, %v1405
          %v1407 = vrot.slane %v1399, %v1406
          %v1409 = vunpack.c.l.s4 1983009808
          %v1410 = vunpack.c.0.s8 %v1409
          %v1411 = vlaneseq
          %v1412 = vshrl.u32 %v1411, 7
          %v1413 = vsub.s32 %v1410, %v1412
          %v1414 = vrot.slane %v1400, %v1413
          %v1415 = vcombine.low %v1407, %v1414
          %v1418 = vmul.f32 %v1356, %v1398
          %v1419 = vmul.f32 %v1357, %v1415
          %v1421 = vlaneseq
          %v1422 = vshrl.u32 %v1421, 7
          %v1423 = vsub.s32 0, %v1422
          %v1424 = vrot.slane %v1067, %v1423
          %v1425 = vlaneseq
          %v1426 = vshrl.u32 %v1425, 7
          %v1427 = vsub.s32 1, %v1426
          %v1428 = vrot.slane %v1067, %v1427
          %v1429 = vlaneseq
          %v1430 = vshrl.u32 %v1429, 7
          %v1431 = vsub.s32 2, %v1430
          %v1432 = vrot.slane %v1067, %v1431
          %v1433 = vlaneseq
          %v1434 = vshrl.u32 %v1433, 7
          %v1435 = vsub.s32 3, %v1434
          %v1436 = vrot.slane %v1067, %v1435
          %v1437 = vlaneseq
          %v1438 = vshrl.u32 %v1437, 7
          %v1439 = vsub.s32 4, %v1438
          %v1440 = vrot.slane %v1067, %v1439
          %v1441 = vlaneseq
          %v1442 = vshrl.u32 %v1441, 7
          %v1443 = vsub.s32 5, %v1442
          %v1444 = vrot.slane %v1067, %v1443
          %v1445 = vlaneseq
          %v1446 = vshrl.u32 %v1445, 7
          %v1447 = vsub.s32 6, %v1446
          %v1448 = vrot.slane %v1067, %v1447
          %v1449 = vlaneseq
          %v1450 = vshrl.u32 %v1449, 7
          %v1451 = vsub.s32 7, %v1450
          %v1452 = vrot.slane %v1067, %v1451
          %v1453 = vcombine.low %v1424, %v1428
          %v1454 = vcombine.low %v1432, %v1436
          %v1456 = vunpack.c.l.s4 1983009808
          %v1457 = vunpack.c.0.s8 %v1456
          %v1458 = vlaneseq
          %v1459 = vshrl.u32 %v1458, 7
          %v1460 = vsub.s32 %v1457, %v1459
          %v1461 = vrot.slane %v1453, %v1460
          %v1463 = vunpack.c.l.s4 1983009808
          %v1464 = vunpack.c.0.s8 %v1463
          %v1465 = vlaneseq
          %v1466 = vshrl.u32 %v1465, 7
          %v1467 = vsub.s32 %v1464, %v1466
          %v1468 = vrot.slane %v1454, %v1467
          %v1469 = vcombine.low %v1461, %v1468
          %v1470 = vcombine.low %v1440, %v1444
          %v1471 = vcombine.low %v1448, %v1452
          %v1473 = vunpack.c.l.s4 1983009808
          %v1474 = vunpack.c.0.s8 %v1473
          %v1475 = vlaneseq
          %v1476 = vshrl.u32 %v1475, 7
          %v1477 = vsub.s32 %v1474, %v1476
          %v1478 = vrot.slane %v1470, %v1477
          %v1480 = vunpack.c.l.s4 1983009808
          %v1481 = vunpack.c.0.s8 %v1480
          %v1482 = vlaneseq
          %v1483 = vshrl.u32 %v1482, 7
          %v1484 = vsub.s32 %v1481, %v1483
          %v1485 = vrot.slane %v1471, %v1484
          %v1486 = vcombine.low %v1478, %v1485
          %v1489 = vmul.f32 %v1418, %v1469
          %v1490 = vmul.f32 %v1419, %v1486
          %v1492 = vlaneseq
          %v1493 = vshrl.u32 %v1492, 7
          %v1494 = vsub.s32 0, %v1493
          %v1495 = vrot.slane %v1068, %v1494
          %v1496 = vlaneseq
          %v1497 = vshrl.u32 %v1496, 7
          %v1498 = vsub.s32 1, %v1497
          %v1499 = vrot.slane %v1068, %v1498
          %v1500 = vlaneseq
          %v1501 = vshrl.u32 %v1500, 7
          %v1502 = vsub.s32 2, %v1501
          %v1503 = vrot.slane %v1068, %v1502
          %v1504 = vlaneseq
          %v1505 = vshrl.u32 %v1504, 7
          %v1506 = vsub.s32 3, %v1505
          %v1507 = vrot.slane %v1068, %v1506
          %v1508 = vlaneseq
          %v1509 = vshrl.u32 %v1508, 7
          %v1510 = vsub.s32 4, %v1509
          %v1511 = vrot.slane %v1068, %v1510
          %v1512 = vlaneseq
          %v1513 = vshrl.u32 %v1512, 7
          %v1514 = vsub.s32 5, %v1513
          %v1515 = vrot.slane %v1068, %v1514
          %v1516 = vlaneseq
          %v1517 = vshrl.u32 %v1516, 7
          %v1518 = vsub.s32 6, %v1517
          %v1519 = vrot.slane %v1068, %v1518
          %v1520 = vlaneseq
          %v1521 = vshrl.u32 %v1520, 7
          %v1522 = vsub.s32 7, %v1521
          %v1523 = vrot.slane %v1068, %v1522
          %v1524 = vcombine.low %v1495, %v1499
          %v1525 = vcombine.low %v1503, %v1507
          %v1527 = vunpack.c.l.s4 1983009808
          %v1528 = vunpack.c.0.s8 %v1527
          %v1529 = vlaneseq
          %v1530 = vshrl.u32 %v1529, 7
          %v1531 = vsub.s32 %v1528, %v1530
          %v1532 = vrot.slane %v1524, %v1531
          %v1534 = vunpack.c.l.s4 1983009808
          %v1535 = vunpack.c.0.s8 %v1534
          %v1536 = vlaneseq
          %v1537 = vshrl.u32 %v1536, 7
          %v1538 = vsub.s32 %v1535, %v1537
          %v1539 = vrot.slane %v1525, %v1538
          %v1540 = vcombine.low %v1532, %v1539
          %v1541 = vcombine.low %v1511, %v1515
          %v1542 = vcombine.low %v1519, %v1523
          %v1544 = vunpack.c.l.s4 1983009808
          %v1545 = vunpack.c.0.s8 %v1544
          %v1546 = vlaneseq
          %v1547 = vshrl.u32 %v1546, 7
          %v1548 = vsub.s32 %v1545, %v1547
          %v1549 = vrot.slane %v1541, %v1548
          %v1551 = vunpack.c.l.s4 1983009808
          %v1552 = vunpack.c.0.s8 %v1551
          %v1553 = vlaneseq
          %v1554 = vshrl.u32 %v1553, 7
          %v1555 = vsub.s32 %v1552, %v1554
          %v1556 = vrot.slane %v1542, %v1555
          %v1557 = vcombine.low %v1549, %v1556
          %v1560 = vadd.f32 %v1489, %v1540
          %v1561 = vadd.f32 %v1490, %v1557
          %v1562 = vmax.f32 %v1560, 0.0
          %v1563 = vmax.f32 %v1561, 0.0
          %1564 = vst [vmem:[%s377] sm:$0xff] %v1562
          %1565 = vst [vmem:[%s377 + $0x8] sm:$0xff] %v1563
        $region64: #{_forward_impl.3} parent=39 // pred_fallthru
          _
        %s1566 = smul.u32 8, %s29
        %p1567 = scmp.lt.s32.totalorder %s1566, 15
        %s1568 = scalar_select %p1567, %s1566, 15
        %s1569 = smul.addr %s1568, 2
        %s1570 = scalar_lea.vmem %s5, %s1569
        // Predicated region
        $region65: #{_forward_impl.3} parent=39 // pred_check
          %p1571 = pneg %p182
        $region66: #{_forward_impl.3} parent=39 // pred_check_branch
          %1573 = sbr.rel (%p1571) target = $region68
        $region67: #{_forward_impl.3} parent=39 // pred_region
          %s1574 = smul.u32 8, %s29
        $region68: #{_forward_impl.3} parent=39 // pred_fallthru
          _
      $region40: #{_forward_impl.3} parent=5 // pred_fallthru
        _
      %p1575 = scmp.le.s32.totalorder 2, %s20
      // Predicated region
      $region69: #{_forward_impl.3} parent=5 // pred_check
        %p1576 = pneg %p1575
      $region70: #{_forward_impl.3} parent=5 // pred_check_branch
        %1578 = sbr.rel (%p1576) target = $region72
      $region71: #{_forward_impl.3} parent=5 // pred_region
        %s1579 = ssub.s32 %s20, 2
        // Predicated region
        $region73: #{_forward_impl.3} parent=71 // pred_check
          %p1580 = pneg %p188
        $region74: #{_forward_impl.3} parent=71 // pred_check_branch
          %1582 = sbr.rel (%p1580) target = $region76
        $region75: #{_forward_impl.3} parent=71 // pred_region
          %s1583 = smul.u32 8, %s31
          %p1584 = scmp.lt.s32.totalorder %s1583, 15
          %s1585 = scalar_select %p1584, %s1583, 15
          %s1586 = smul.addr %s1585, 2
          %s1587 = scalar_lea.vmem %s5, %s1586
        $region76: #{_forward_impl.3} parent=71 // pred_fallthru
          _
      $region72: #{_forward_impl.3} parent=5 // pred_fallthru
        _
    $region6: #{_forward_impl.3} parent=1 // loop_footer
      %s24 = sadd.s32 1, %s20
    $region7: #{_forward_impl.3} parent=1 // loop_footer_branch
      %19 = sbr.rel target = $region3
    $region8: #{_forward_impl.3} parent=1 // loop_exit
      _
    %1588 = vsyncpa [#allocation4], 1
    %s1589 = scalar_lea.sflag [#allocation4], 1
    %1590 = vsyncpa %s1589, 1
    %1591 = vsyncpa [#allocation6], 1
    %s1592 = scalar_lea.sflag [#allocation6], 1
    %1593 = vsyncpa %s1592, 1
    %1594 = vsyncpa [#allocation9], 1
    %s1595 = scalar_lea.sflag [#allocation9], 1
    %1596 = vsyncpa %s1595, 1

// kernel: _forward_impl.5
$region0: #{_forward_impl.5}
  #allocation0 [shape = 'u32[]', space=smem, size = 0x4, offset = 0x4, fixed_abs, tag = 'smem constant byte address 0x4 - core index']
  #allocation1 [shape = 'u32[144,128]{1,0:T(1,128)}', space=vmem, size = 0x12000, scoped, tag = 'internal scratch']
  %s0 = inlined_call_operand.vmem [shape: bf16[2,2048], index: 0, kind: input, shape index: {}]
  %s1 = inlined_call_operand.vmem [shape: bf16[2048,384], index: 1, kind: input, shape index: {}]
  %s2 = inlined_call_operand.vmem [shape: f32[1,384], index: 2, kind: input, shape index: {}]
  %s3 = inlined_call_operand.vmem [shape: f32[2,384], index: 3, kind: output, shape index: {}]
  %s4 = sld [smem:[#allocation0]]
  $region86: #{_forward_impl.5} parent=0
    _
  %s6 = ssub.s32 1, %s4
  %s7 = scalar_select 0, %s6, %s4
  $region1: #{_forward_impl.5} parent=0
    #allocation2 [shape = 'u8[1048576]{0}', space=vmem, size = 0x100000, scoped, tag = 'input window, operand 1']
    loop: start=0, step=1, limit=5
    $region2: #{_forward_impl.5} parent=1 // loop_pre_header
      _
    $region3: #{_forward_impl.5} parent=1 // loop_header
      %s9 = sphi 0, %s13
      %p10 = scmp.ge.s32.totalorder %s9, 5
      %s17 = sphi 0, %s17
      %s19 = sphi 0, %s17
      %s20 = sphi 0, %s19
      %s34 = sphi 0, %s20
      %s40 = sphi 0, %s42
      %s43 = sphi 0, %s40
      %s44 = sphi 0, %s43
      %s60 = sphi 0, %s44
      %s66 = sphi 0, %s68
      %s69 = sphi 0, %s66
      %s70 = sphi 0, %s69
      %s86 = sphi 0, %s70
      %s92 = sphi 0, %s94
      %s95 = sphi 0, %s92
      %s96 = sphi 0, %s95
      %s112 = sphi 0, %s96
    $region4: #{_forward_impl.5} parent=1 // loop_header_branch
      %12 = sbr.rel (%p10) target = $region8
    $region5: #{_forward_impl.5} parent=1 // loop_body
      %s14 = ssub.s32 %s9, 1
      %s15 = ssub.s32 %s9, 2
      %s16 = sadd.s32 %s9, 1
      %s18 = sadd.s32 %s17, 1
      %p21 = scmp.eq.s32.totalorder %s9, 2
      %p22 = scmp.ne.s32.totalorder %s17, %s19
      %p23 = scmp.eq.s32.totalorder %s9, 0
      %p24 = por %p22, %p23
      %p25 = scmp.ne.s32.totalorder %s17, %s19
      %p26 = scmp.eq.s32.totalorder %s14, 2
      %p27 = por %p25, %p26
      %p28 = scmp.ne.s32.totalorder %s19, %s20
      %p29 = scmp.eq.s32.totalorder %s14, 0
      %p30 = por %p28, %p29
      %p31 = scmp.ne.s32.totalorder %s19, %s20
      %p32 = scmp.eq.s32.totalorder %s15, 2
      %p33 = por %p31, %p32
      %p35 = scmp.ne.s32.totalorder %s20, %s34
      %p36 = scmp.eq.s32.totalorder %s15, 0
      %p37 = por %p35, %p36
      %s38 = ssub.s32 %s9, %s16
      %p39 = scmp.eq.s32.totalorder %s38, 0
      %s41 = sadd.s32 %s40, 1
      %s42 = scalar_select %p39, %s40, %s41
      %p45 = pneg %p39
      %p46 = scmp.eq.s32.totalorder %s9, 2
      %p47 = por %p45, %p46
      %p48 = scmp.ne.s32.totalorder %s40, %s43
      %p49 = scmp.eq.s32.totalorder %s9, 0
      %p50 = por %p48, %p49
      %p51 = scmp.ne.s32.totalorder %s40, %s43
      %p52 = scmp.eq.s32.totalorder %s14, 2
      %p53 = por %p51, %p52
      %p54 = scmp.ne.s32.totalorder %s43, %s44
      %p55 = scmp.eq.s32.totalorder %s14, 0
      %p56 = por %p54, %p55
      %p57 = scmp.ne.s32.totalorder %s43, %s44
      %p58 = scmp.eq.s32.totalorder %s15, 2
      %p59 = por %p57, %p58
      %p61 = scmp.ne.s32.totalorder %s44, %s60
      %p62 = scmp.eq.s32.totalorder %s15, 0
      %p63 = por %p61, %p62
      %s64 = ssub.s32 %s9, %s16
      %p65 = scmp.eq.s32.totalorder %s64, 0
      %s67 = sadd.s32 %s66, 1
      %s68 = scalar_select %p65, %s66, %s67
      %p71 = pneg %p65
      %p72 = scmp.eq.s32.totalorder %s9, 2
      %p73 = por %p71, %p72
      %p74 = scmp.ne.s32.totalorder %s66, %s69
      %p75 = scmp.eq.s32.totalorder %s9, 0
      %p76 = por %p74, %p75
      %p77 = scmp.ne.s32.totalorder %s66, %s69
      %p78 = scmp.eq.s32.totalorder %s14, 2
      %p79 = por %p77, %p78
      %p80 = scmp.ne.s32.totalorder %s69, %s70
      %p81 = scmp.eq.s32.totalorder %s14, 0
      %p82 = por %p80, %p81
      %p83 = scmp.ne.s32.totalorder %s69, %s70
      %p84 = scmp.eq.s32.totalorder %s15, 2
      %p85 = por %p83, %p84
      %p87 = scmp.ne.s32.totalorder %s70, %s86
      %p88 = scmp.eq.s32.totalorder %s15, 0
      %p89 = por %p87, %p88
      %s90 = ssub.s32 %s9, %s16
      %p91 = scmp.eq.s32.totalorder %s90, 0
      %s93 = sadd.s32 %s92, 1
      %s94 = scalar_select %p91, %s92, %s93
      %p97 = pneg %p91
      %p98 = scmp.eq.s32.totalorder %s9, 2
      %p99 = por %p97, %p98
      %p100 = scmp.ne.s32.totalorder %s92, %s95
      %p101 = scmp.eq.s32.totalorder %s9, 0
      %p102 = por %p100, %p101
      %p103 = scmp.ne.s32.totalorder %s92, %s95
      %p104 = scmp.eq.s32.totalorder %s14, 2
      %p105 = por %p103, %p104
      %p106 = scmp.ne.s32.totalorder %s95, %s96
      %p107 = scmp.eq.s32.totalorder %s14, 0
      %p108 = por %p106, %p107
      %p109 = scmp.ne.s32.totalorder %s95, %s96
      %p110 = scmp.eq.s32.totalorder %s15, 2
      %p111 = por %p109, %p110
      %p113 = scmp.ne.s32.totalorder %s96, %s112
      %p114 = scmp.eq.s32.totalorder %s15, 0
      %p115 = por %p113, %p114
      %p116 = scmp.le.s32.totalorder 1, %s9
      %p117 = scmp.lt.s32.totalorder %s9, 4
      %p118 = pnand %p116, %p117
      %p119 = pneg %p118
      // Predicated region
      $region9: #{_forward_impl.5} parent=5 // pred_check
        _
      $region10: #{_forward_impl.5} parent=5 // pred_check_branch
        %121 = sbr.rel (%p118) target = $region12
      $region11: #{_forward_impl.5} parent=5 // pred_region
        %s122 = ssub.s32 %s9, 1
        // Predicated region
        $region13: #{_forward_impl.5} parent=11 // pred_check
          %p123 = pneg %p30
        $region14: #{_forward_impl.5} parent=11 // pred_check_branch
          %125 = sbr.rel (%p123) target = $region16
        $region15: #{_forward_impl.5} parent=11 // pred_region
          _
        $region16: #{_forward_impl.5} parent=11 // pred_fallthru
          _
      $region12: #{_forward_impl.5} parent=5 // pred_fallthru
        _
      %p126 = scmp.lt.s32.totalorder %s9, 3
      // Predicated region
      $region17: #{_forward_impl.5} parent=5 // pred_check
        %p127 = pneg %p126
      $region18: #{_forward_impl.5} parent=5 // pred_check_branch
        %129 = sbr.rel (%p127) target = $region20
      $region19: #{_forward_impl.5} parent=5 // pred_region
        // Predicated region
        $region21: #{_forward_impl.5} parent=19 // pred_check
          %p130 = pneg %p50
        $region22: #{_forward_impl.5} parent=19 // pred_check_branch
          %132 = sbr.rel (%p130) target = $region24
        $region23: #{_forward_impl.5} parent=19 // pred_region
          %s133 = sand.u32 %s40, 1
          %s134 = sand.u32 %s40, 1
          %s135 = smul.addr %s134, 1024
          %s136 = scalar_lea.vmem [#allocation2], %s135
          %s137 = smul.addr %s9, 4
          %s138 = scalar_lea.vmem %s1, %s137
          // Predicated region
          $region25: #{_forward_impl.5} parent=23 // pred_check
            _
          $region26: #{_forward_impl.5} parent=23 // pred_check_branch
            %140 = sbr.rel (0) target = $region28
          $region27: #{_forward_impl.5} parent=23 // pred_region
            // Predicated region
            $region29: #{_forward_impl.5} parent=27 // pred_check
              _
            $region30: #{_forward_impl.5} parent=27 // pred_check_branch
              %142 = sbr.rel target = $region32
            $region31: #{_forward_impl.5} parent=27 // pred_region
              // Predicated region
              $region44: #{_forward_impl.5} parent=31 // pred_check
                _
              $region45: #{_forward_impl.5} parent=31 // pred_check_branch
                %667 = sbr.rel (0) target = $region47
              $region46: #{_forward_impl.5} parent=31 // pred_region
                loop: start=0, step=1, limit=1
                $region48: #{_forward_impl.5} parent=46 // loop_pre_header
                  _
                $region49: #{_forward_impl.5} parent=46 // loop_header
                  %s669 = sphi 0, %s673
                  %p670 = scmp.ge.s32.totalorder %s669, 1
                  %s674 = sphi %s138, %s138
                  %s675 = sphi %s136, %s136
                $region50: #{_forward_impl.5} parent=46 // loop_header_branch
                  %672 = sbr.rel (%p670) target = $region54
                $region51: #{_forward_impl.5} parent=46 // loop_body
                  _
                $region52: #{_forward_impl.5} parent=46 // loop_footer
                  %s673 = sadd.s32 1, %s669
                $region53: #{_forward_impl.5} parent=46 // loop_footer_branch
                  %668 = sbr.rel target = $region49
                $region54: #{_forward_impl.5} parent=46 // loop_exit
                  _
                loop: start=0, step=1, limit=1
                $region55: #{_forward_impl.5} parent=46 // loop_pre_header
                  _
                $region56: #{_forward_impl.5} parent=46 // loop_header
                  %s678 = sphi 0, %s682
                  %p679 = scmp.ge.s32.totalorder %s678, 1
                  %s683 = sphi %s138, %s138
                  %s684 = sphi %s136, %s136
                $region57: #{_forward_impl.5} parent=46 // loop_header_branch
                  %681 = sbr.rel (%p679) target = $region61
                $region58: #{_forward_impl.5} parent=46 // loop_body
                  %v685 = vld [vmem:[%s683] sm:$0xf]
                  %686 = vst [vmem:[%s684] sm:$0xf] %v685
                  %v687 = vld [vmem:[%s683 + $0xc] sm:$0xf]
                  %688 = vst [vmem:[%s684 + $0x4] sm:$0xf] %v687
                  %v689 = vld [vmem:[%s683 + $0x18] sm:$0xf]
                  %690 = vst [vmem:[%s684 + $0x8] sm:$0xf] %v689
                  %v691 = vld [vmem:[%s683 + $0x24] sm:$0xf]
                  %692 = vst [vmem:[%s684 + $0xc] sm:$0xf] %v691
                  %v693 = vld [vmem:[%s683 + $0x30] sm:$0xf]
                  %694 = vst [vmem:[%s684 + $0x10] sm:$0xf] %v693
                  %v695 = vld [vmem:[%s683 + $0x3c] sm:$0xf]
                  %696 = vst [vmem:[%s684 + $0x14] sm:$0xf] %v695
                  %v697 = vld [vmem:[%s683 + $0x48] sm:$0xf]
                  %698 = vst [vmem:[%s684 + $0x18] sm:$0xf] %v697
                  %v699 = vld [vmem:[%s683 + $0x54] sm:$0xf]
                  %700 = vst [vmem:[%s684 + $0x1c] sm:$0xf] %v699
                  %v701 = vld [vmem:[%s683 + $0x60] sm:$0xf]
                  %702 = vst [vmem:[%s684 + $0x20] sm:$0xf] %v701
                  %v703 = vld [vmem:[%s683 + $0x6c] sm:$0xf]
                  %704 = vst [vmem:[%s684 + $0x24] sm:$0xf] %v703
                  %v705 = vld [vmem:[%s683 + $0x78] sm:$0xf]
                  %706 = vst [vmem:[%s684 + $0x28] sm:$0xf] %v705
                  %v707 = vld [vmem:[%s683 + $0x84] sm:$0xf]
                  %708 = vst [vmem:[%s684 + $0x2c] sm:$0xf] %v707
                  %v709 = vld [vmem:[%s683 + $0x90] sm:$0xf]
                  %710 = vst [vmem:[%s684 + $0x30] sm:$0xf] %v709
                  %v711 = vld [vmem:[%s683 + $0x9c] sm:$0xf]
                  %712 = vst [vmem:[%s684 + $0x34] sm:$0xf] %v711
                  %v713 = vld [vmem:[%s683 + $0xa8] sm:$0xf]
                  %714 = vst [vmem:[%s684 + $0x38] sm:$0xf] %v713
                  %v715 = vld [vmem:[%s683 + $0xb4] sm:$0xf]
                  %716 = vst [vmem:[%s684 + $0x3c] sm:$0xf] %v715
                  %v717 = vld [vmem:[%s683 + $0xc0] sm:$0xf]
                  %718 = vst [vmem:[%s684 + $0x40] sm:$0xf] %v717
                  %v719 = vld [vmem:[%s683 + $0xcc] sm:$0xf]
                  %720 = vst [vmem:[%s684 + $0x44] sm:$0xf] %v719
                  %v721 = vld [vmem:[%s683 + $0xd8] sm:$0xf]
                  %722 = vst [vmem:[%s684 + $0x48] sm:$0xf] %v721
                  %v723 = vld [vmem:[%s683 + $0xe4] sm:$0xf]
                  %724 = vst [vmem:[%s684 + $0x4c] sm:$0xf] %v723
                  %v725 = vld [vmem:[%s683 + $0xf0] sm:$0xf]
                  %726 = vst [vmem:[%s684 + $0x50] sm:$0xf] %v725
                  %v727 = vld [vmem:[%s683 + $0xfc] sm:$0xf]
                  %728 = vst [vmem:[%s684 + $0x54] sm:$0xf] %v727
                  %v729 = vld [vmem:[%s683 + $0x108] sm:$0xf]
                  %730 = vst [vmem:[%s684 + $0x58] sm:$0xf] %v729
                  %v731 = vld [vmem:[%s683 + $0x114] sm:$0xf]
                  %732 = vst [vmem:[%s684 + $0x5c] sm:$0xf] %v731
                  %v733 = vld [vmem:[%s683 + $0x120] sm:$0xf]
                  %734 = vst [vmem:[%s684 + $0x60] sm:$0xf] %v733
                  %v735 = vld [vmem:[%s683 + $0x12c] sm:$0xf]
                  %736 = vst [vmem:[%s684 + $0x64] sm:$0xf] %v735
                  %v737 = vld [vmem:[%s683 + $0x138] sm:$0xf]
                  %738 = vst [vmem:[%s684 + $0x68] sm:$0xf] %v737
                  %v739 = vld [vmem:[%s683 + $0x144] sm:$0xf]
                  %740 = vst [vmem:[%s684 + $0x6c] sm:$0xf] %v739
                  %v741 = vld [vmem:[%s683 + $0x150] sm:$0xf]
                  %742 = vst [vmem:[%s684 + $0x70] sm:$0xf] %v741
                  %v743 = vld [vmem:[%s683 + $0x15c] sm:$0xf]
                  %744 = vst [vmem:[%s684 + $0x74] sm:$0xf] %v743
                  %v745 = vld [vmem:[%s683 + $0x168] sm:$0xf]
                  %746 = vst [vmem:[%s684 + $0x78] sm:$0xf] %v745
                  %v747 = vld [vmem:[%s683 + $0x174] sm:$0xf]
                  %748 = vst [vmem:[%s684 + $0x7c] sm:$0xf] %v747
                  %v749 = vld [vmem:[%s683 + $0x180] sm:$0xf]
                  %750 = vst [vmem:[%s684 + $0x80] sm:$0xf] %v749
                  %v751 = vld [vmem:[%s683 + $0x18c] sm:$0xf]
                  %752 = vst [vmem:[%s684 + $0x84] sm:$0xf] %v751
                  %v753 = vld [vmem:[%s683 + $0x198] sm:$0xf]
                  %754 = vst [vmem:[%s684 + $0x88] sm:$0xf] %v753
                  %v755 = vld [vmem:[%s683 + $0x1a4] sm:$0xf]
                  %756 = vst [vmem:[%s684 + $0x8c] sm:$0xf] %v755
                  %v757 = vld [vmem:[%s683 + $0x1b0] sm:$0xf]
                  %758 = vst [vmem:[%s684 + $0x90] sm:$0xf] %v757
                  %v759 = vld [vmem:[%s683 + $0x1bc] sm:$0xf]
                  %760 = vst [vmem:[%s684 + $0x94] sm:$0xf] %v759
                  %v761 = vld [vmem:[%s683 + $0x1c8] sm:$0xf]
                  %762 = vst [vmem:[%s684 + $0x98] sm:$0xf] %v761
                  %v763 = vld [vmem:[%s683 + $0x1d4] sm:$0xf]
                  %764 = vst [vmem:[%s684 + $0x9c] sm:$0xf] %v763
                  %v765 = vld [vmem:[%s683 + $0x1e0] sm:$0xf]
                  %766 = vst [vmem:[%s684 + $0xa0] sm:$0xf] %v765
                  %v767 = vld [vmem:[%s683 + $0x1ec] sm:$0xf]
                  %768 = vst [vmem:[%s684 + $0xa4] sm:$0xf] %v767
                  %v769 = vld [vmem:[%s683 + $0x1f8] sm:$0xf]
                  %770 = vst [vmem:[%s684 + $0xa8] sm:$0xf] %v769
                  %v771 = vld [vmem:[%s683 + $0x204] sm:$0xf]
                  %772 = vst [vmem:[%s684 + $0xac] sm:$0xf] %v771
                  %v773 = vld [vmem:[%s683 + $0x210] sm:$0xf]
                  %774 = vst [vmem:[%s684 + $0xb0] sm:$0xf] %v773
                  %v775 = vld [vmem:[%s683 + $0x21c] sm:$0xf]
                  %776 = vst [vmem:[%s684 + $0xb4] sm:$0xf] %v775
                  %v777 = vld [vmem:[%s683 + $0x228] sm:$0xf]
                  %778 = vst [vmem:[%s684 + $0xb8] sm:$0xf] %v777
                  %v779 = vld [vmem:[%s683 + $0x234] sm:$0xf]
                  %780 = vst [vmem:[%s684 + $0xbc] sm:$0xf] %v779
                  %v781 = vld [vmem:[%s683 + $0x240] sm:$0xf]
                  %782 = vst [vmem:[%s684 + $0xc0] sm:$0xf] %v781
                  %v783 = vld [vmem:[%s683 + $0x24c] sm:$0xf]
                  %784 = vst [vmem:[%s684 + $0xc4] sm:$0xf] %v783
                  %v785 = vld [vmem:[%s683 + $0x258] sm:$0xf]
                  %786 = vst [vmem:[%s684 + $0xc8] sm:$0xf] %v785
                  %v787 = vld [vmem:[%s683 + $0x264] sm:$0xf]
                  %788 = vst [vmem:[%s684 + $0xcc] sm:$0xf] %v787
                  %v789 = vld [vmem:[%s683 + $0x270] sm:$0xf]
                  %790 = vst [vmem:[%s684 + $0xd0] sm:$0xf] %v789
                  %v791 = vld [vmem:[%s683 + $0x27c] sm:$0xf]
                  %792 = vst [vmem:[%s684 + $0xd4] sm:$0xf] %v791
                  %v793 = vld [vmem:[%s683 + $0x288] sm:$0xf]
                  %794 = vst [vmem:[%s684 + $0xd8] sm:$0xf] %v793
                  %v795 = vld [vmem:[%s683 + $0x294] sm:$0xf]
                  %796 = vst [vmem:[%s684 + $0xdc] sm:$0xf] %v795
                  %v797 = vld [vmem:[%s683 + $0x2a0] sm:$0xf]
                  %798 = vst [vmem:[%s684 + $0xe0] sm:$0xf] %v797
                  %v799 = vld [vmem:[%s683 + $0x2ac] sm:$0xf]
                  %800 = vst [vmem:[%s684 + $0xe4] sm:$0xf] %v799
                  %v801 = vld [vmem:[%s683 + $0x2b8] sm:$0xf]
                  %802 = vst [vmem:[%s684 + $0xe8] sm:$0xf] %v801
                  %v803 = vld [vmem:[%s683 + $0x2c4] sm:$0xf]
                  %804 = vst [vmem:[%s684 + $0xec] sm:$0xf] %v803
                  %v805 = vld [vmem:[%s683 + $0x2d0] sm:$0xf]
                  %806 = vst [vmem:[%s684 + $0xf0] sm:$0xf] %v805
                  %v807 = vld [vmem:[%s683 + $0x2dc] sm:$0xf]
                  %808 = vst [vmem:[%s684 + $0xf4] sm:$0xf] %v807
                  %v809 = vld [vmem:[%s683 + $0x2e8] sm:$0xf]
                  %810 = vst [vmem:[%s684 + $0xf8] sm:$0xf] %v809
                  %v811 = vld [vmem:[%s683 + $0x2f4] sm:$0xf]
                  %812 = vst [vmem:[%s684 + $0xfc] sm:$0xf] %v811
                  %v813 = vld [vmem:[%s683 + $0x300] sm:$0xf]
                  %814 = vst [vmem:[%s684 + $0x100] sm:$0xf] %v813
                  %v815 = vld [vmem:[%s683 + $0x30c] sm:$0xf]
                  %816 = vst [vmem:[%s684 + $0x104] sm:$0xf] %v815
                  %v817 = vld [vmem:[%s683 + $0x318] sm:$0xf]
                  %818 = vst [vmem:[%s684 + $0x108] sm:$0xf] %v817
                  %v819 = vld [vmem:[%s683 + $0x324] sm:$0xf]
                  %820 = vst [vmem:[%s684 + $0x10c] sm:$0xf] %v819
                  %v821 = vld [vmem:[%s683 + $0x330] sm:$0xf]
                  %822 = vst [vmem:[%s684 + $0x110] sm:$0xf] %v821
                  %v823 = vld [vmem:[%s683 + $0x33c] sm:$0xf]
                  %824 = vst [vmem:[%s684 + $0x114] sm:$0xf] %v823
                  %v825 = vld [vmem:[%s683 + $0x348] sm:$0xf]
                  %826 = vst [vmem:[%s684 + $0x118] sm:$0xf] %v825
                  %v827 = vld [vmem:[%s683 + $0x354] sm:$0xf]
                  %828 = vst [vmem:[%s684 + $0x11c] sm:$0xf] %v827
                  %v829 = vld [vmem:[%s683 + $0x360] sm:$0xf]
                  %830 = vst [vmem:[%s684 + $0x120] sm:$0xf] %v829
                  %v831 = vld [vmem:[%s683 + $0x36c] sm:$0xf]
                  %832 = vst [vmem:[%s684 + $0x124] sm:$0xf] %v831
                  %v833 = vld [vmem:[%s683 + $0x378] sm:$0xf]
                  %834 = vst [vmem:[%s684 + $0x128] sm:$0xf] %v833
                  %v835 = vld [vmem:[%s683 + $0x384] sm:$0xf]
                  %836 = vst [vmem:[%s684 + $0x12c] sm:$0xf] %v835
                  %v837 = vld [vmem:[%s683 + $0x390] sm:$0xf]
                  %838 = vst [vmem:[%s684 + $0x130] sm:$0xf] %v837
                  %v839 = vld [vmem:[%s683 + $0x39c] sm:$0xf]
                  %840 = vst [vmem:[%s684 + $0x134] sm:$0xf] %v839
                  %v841 = vld [vmem:[%s683 + $0x3a8] sm:$0xf]
                  %842 = vst [vmem:[%s684 + $0x138] sm:$0xf] %v841
                  %v843 = vld [vmem:[%s683 + $0x3b4] sm:$0xf]
                  %844 = vst [vmem:[%s684 + $0x13c] sm:$0xf] %v843
                  %v845 = vld [vmem:[%s683 + $0x3c0] sm:$0xf]
                  %846 = vst [vmem:[%s684 + $0x140] sm:$0xf] %v845
                  %v847 = vld [vmem:[%s683 + $0x3cc] sm:$0xf]
                  %848 = vst [vmem:[%s684 + $0x144] sm:$0xf] %v847
                  %v849 = vld [vmem:[%s683 + $0x3d8] sm:$0xf]
                  %850 = vst [vmem:[%s684 + $0x148] sm:$0xf] %v849
                  %v851 = vld [vmem:[%s683 + $0x3e4] sm:$0xf]
                  %852 = vst [vmem:[%s684 + $0x14c] sm:$0xf] %v851
                  %v853 = vld [vmem:[%s683 + $0x3f0] sm:$0xf]
                  %854 = vst [vmem:[%s684 + $0x150] sm:$0xf] %v853
                  %v855 = vld [vmem:[%s683 + $0x3fc] sm:$0xf]
                  %856 = vst [vmem:[%s684 + $0x154] sm:$0xf] %v855
                  %v857 = vld [vmem:[%s683 + $0x408] sm:$0xf]
                  %858 = vst [vmem:[%s684 + $0x158] sm:$0xf] %v857
                  %v859 = vld [vmem:[%s683 + $0x414] sm:$0xf]
                  %860 = vst [vmem:[%s684 + $0x15c] sm:$0xf] %v859
                  %v861 = vld [vmem:[%s683 + $0x420] sm:$0xf]
                  %862 = vst [vmem:[%s684 + $0x160] sm:$0xf] %v861
                  %v863 = vld [vmem:[%s683 + $0x42c] sm:$0xf]
                  %864 = vst [vmem:[%s684 + $0x164] sm:$0xf] %v863
                  %v865 = vld [vmem:[%s683 + $0x438] sm:$0xf]
                  %866 = vst [vmem:[%s684 + $0x168] sm:$0xf] %v865
                  %v867 = vld [vmem:[%s683 + $0x444] sm:$0xf]
                  %868 = vst [vmem:[%s684 + $0x16c] sm:$0xf] %v867
                  %v869 = vld [vmem:[%s683 + $0x450] sm:$0xf]
                  %870 = vst [vmem:[%s684 + $0x170] sm:$0xf] %v869
                  %v871 = vld [vmem:[%s683 + $0x45c] sm:$0xf]
                  %872 = vst [vmem:[%s684 + $0x174] sm:$0xf] %v871
                  %v873 = vld [vmem:[%s683 + $0x468] sm:$0xf]
                  %874 = vst [vmem:[%s684 + $0x178] sm:$0xf] %v873
                  %v875 = vld [vmem:[%s683 + $0x474] sm:$0xf]
                  %876 = vst [vmem:[%s684 + $0x17c] sm:$0xf] %v875
                  %v877 = vld [vmem:[%s683 + $0x480] sm:$0xf]
                  %878 = vst [vmem:[%s684 + $0x180] sm:$0xf] %v877
                  %v879 = vld [vmem:[%s683 + $0x48c] sm:$0xf]
                  %880 = vst [vmem:[%s684 + $0x184] sm:$0xf] %v879
                  %v881 = vld [vmem:[%s683 + $0x498] sm:$0xf]
                  %882 = vst [vmem:[%s684 + $0x188] sm:$0xf] %v881
                  %v883 = vld [vmem:[%s683 + $0x4a4] sm:$0xf]
                  %884 = vst [vmem:[%s684 + $0x18c] sm:$0xf] %v883
                  %v885 = vld [vmem:[%s683 + $0x4b0] sm:$0xf]
                  %886 = vst [vmem:[%s684 + $0x190] sm:$0xf] %v885
                  %v887 = vld [vmem:[%s683 + $0x4bc] sm:$0xf]
                  %888 = vst [vmem:[%s684 + $0x194] sm:$0xf] %v887
                  %v889 = vld [vmem:[%s683 + $0x4c8] sm:$0xf]
                  %890 = vst [vmem:[%s684 + $0x198] sm:$0xf] %v889
                  %v891 = vld [vmem:[%s683 + $0x4d4] sm:$0xf]
                  %892 = vst [vmem:[%s684 + $0x19c] sm:$0xf] %v891
                  %v893 = vld [vmem:[%s683 + $0x4e0] sm:$0xf]
                  %894 = vst [vmem:[%s684 + $0x1a0] sm:$0xf] %v893
                  %v895 = vld [vmem:[%s683 + $0x4ec] sm:$0xf]
                  %896 = vst [vmem:[%s684 + $0x1a4] sm:$0xf] %v895
                  %v897 = vld [vmem:[%s683 + $0x4f8] sm:$0xf]
                  %898 = vst [vmem:[%s684 + $0x1a8] sm:$0xf] %v897
                  %v899 = vld [vmem:[%s683 + $0x504] sm:$0xf]
                  %900 = vst [vmem:[%s684 + $0x1ac] sm:$0xf] %v899
                  %v901 = vld [vmem:[%s683 + $0x510] sm:$0xf]
                  %902 = vst [vmem:[%s684 + $0x1b0] sm:$0xf] %v901
                  %v903 = vld [vmem:[%s683 + $0x51c] sm:$0xf]
                  %904 = vst [vmem:[%s684 + $0x1b4] sm:$0xf] %v903
                  %v905 = vld [vmem:[%s683 + $0x528] sm:$0xf]
                  %906 = vst [vmem:[%s684 + $0x1b8] sm:$0xf] %v905
                  %v907 = vld [vmem:[%s683 + $0x534] sm:$0xf]
                  %908 = vst [vmem:[%s684 + $0x1bc] sm:$0xf] %v907
                  %v909 = vld [vmem:[%s683 + $0x540] sm:$0xf]
                  %910 = vst [vmem:[%s684 + $0x1c0] sm:$0xf] %v909
                  %v911 = vld [vmem:[%s683 + $0x54c] sm:$0xf]
                  %912 = vst [vmem:[%s684 + $0x1c4] sm:$0xf] %v911
                  %v913 = vld [vmem:[%s683 + $0x558] sm:$0xf]
                  %914 = vst [vmem:[%s684 + $0x1c8] sm:$0xf] %v913
                  %v915 = vld [vmem:[%s683 + $0x564] sm:$0xf]
                  %916 = vst [vmem:[%s684 + $0x1cc] sm:$0xf] %v915
                  %v917 = vld [vmem:[%s683 + $0x570] sm:$0xf]
                  %918 = vst [vmem:[%s684 + $0x1d0] sm:$0xf] %v917
                  %v919 = vld [vmem:[%s683 + $0x57c] sm:$0xf]
                  %920 = vst [vmem:[%s684 + $0x1d4] sm:$0xf] %v919
                  %v921 = vld [vmem:[%s683 + $0x588] sm:$0xf]
                  %922 = vst [vmem:[%s684 + $0x1d8] sm:$0xf] %v921
                  %v923 = vld [vmem:[%s683 + $0x594] sm:$0xf]
                  %924 = vst [vmem:[%s684 + $0x1dc] sm:$0xf] %v923
                  %v925 = vld [vmem:[%s683 + $0x5a0] sm:$0xf]
                  %926 = vst [vmem:[%s684 + $0x1e0] sm:$0xf] %v925
                  %v927 = vld [vmem:[%s683 + $0x5ac] sm:$0xf]
                  %928 = vst [vmem:[%s684 + $0x1e4] sm:$0xf] %v927
                  %v929 = vld [vmem:[%s683 + $0x5b8] sm:$0xf]
                  %930 = vst [vmem:[%s684 + $0x1e8] sm:$0xf] %v929
                  %v931 = vld [vmem:[%s683 + $0x5c4] sm:$0xf]
                  %932 = vst [vmem:[%s684 + $0x1ec] sm:$0xf] %v931
                  %v933 = vld [vmem:[%s683 + $0x5d0] sm:$0xf]
                  %934 = vst [vmem:[%s684 + $0x1f0] sm:$0xf] %v933
                  %v935 = vld [vmem:[%s683 + $0x5dc] sm:$0xf]
                  %936 = vst [vmem:[%s684 + $0x1f4] sm:$0xf] %v935
                  %v937 = vld [vmem:[%s683 + $0x5e8] sm:$0xf]
                  %938 = vst [vmem:[%s684 + $0x1f8] sm:$0xf] %v937
                  %v939 = vld [vmem:[%s683 + $0x5f4] sm:$0xf]
                  %940 = vst [vmem:[%s684 + $0x1fc] sm:$0xf] %v939
                  %v941 = vld [vmem:[%s683 + $0x600] sm:$0xf]
                  %942 = vst [vmem:[%s684 + $0x200] sm:$0xf] %v941
                  %v943 = vld [vmem:[%s683 + $0x60c] sm:$0xf]
                  %944 = vst [vmem:[%s684 + $0x204] sm:$0xf] %v943
                  %v945 = vld [vmem:[%s683 + $0x618] sm:$0xf]
                  %946 = vst [vmem:[%s684 + $0x208] sm:$0xf] %v945
                  %v947 = vld [vmem:[%s683 + $0x624] sm:$0xf]
                  %948 = vst [vmem:[%s684 + $0x20c] sm:$0xf] %v947
                  %v949 = vld [vmem:[%s683 + $0x630] sm:$0xf]
                  %950 = vst [vmem:[%s684 + $0x210] sm:$0xf] %v949
                  %v951 = vld [vmem:[%s683 + $0x63c] sm:$0xf]
                  %952 = vst [vmem:[%s684 + $0x214] sm:$0xf] %v951
                  %v953 = vld [vmem:[%s683 + $0x648] sm:$0xf]
                  %954 = vst [vmem:[%s684 + $0x218] sm:$0xf] %v953
                  %v955 = vld [vmem:[%s683 + $0x654] sm:$0xf]
                  %956 = vst [vmem:[%s684 + $0x21c] sm:$0xf] %v955
                  %v957 = vld [vmem:[%s683 + $0x660] sm:$0xf]
                  %958 = vst [vmem:[%s684 + $0x220] sm:$0xf] %v957
                  %v959 = vld [vmem:[%s683 + $0x66c] sm:$0xf]
                  %960 = vst [vmem:[%s684 + $0x224] sm:$0xf] %v959
                  %v961 = vld [vmem:[%s683 + $0x678] sm:$0xf]
                  %962 = vst [vmem:[%s684 + $0x228] sm:$0xf] %v961
                  %v963 = vld [vmem:[%s683 + $0x684] sm:$0xf]
                  %964 = vst [vmem:[%s684 + $0x22c] sm:$0xf] %v963
                  %v965 = vld [vmem:[%s683 + $0x690] sm:$0xf]
                  %966 = vst [vmem:[%s684 + $0x230] sm:$0xf] %v965
                  %v967 = vld [vmem:[%s683 + $0x69c] sm:$0xf]
                  %968 = vst [vmem:[%s684 + $0x234] sm:$0xf] %v967
                  %v969 = vld [vmem:[%s683 + $0x6a8] sm:$0xf]
                  %970 = vst [vmem:[%s684 + $0x238] sm:$0xf] %v969
                  %v971 = vld [vmem:[%s683 + $0x6b4] sm:$0xf]
                  %972 = vst [vmem:[%s684 + $0x23c] sm:$0xf] %v971
                  %v973 = vld [vmem:[%s683 + $0x6c0] sm:$0xf]
                  %974 = vst [vmem:[%s684 + $0x240] sm:$0xf] %v973
                  %v975 = vld [vmem:[%s683 + $0x6cc] sm:$0xf]
                  %976 = vst [vmem:[%s684 + $0x244] sm:$0xf] %v975
                  %v977 = vld [vmem:[%s683 + $0x6d8] sm:$0xf]
                  %978 = vst [vmem:[%s684 + $0x248] sm:$0xf] %v977
                  %v979 = vld [vmem:[%s683 + $0x6e4] sm:$0xf]
                  %980 = vst [vmem:[%s684 + $0x24c] sm:$0xf] %v979
                  %v981 = vld [vmem:[%s683 + $0x6f0] sm:$0xf]
                  %982 = vst [vmem:[%s684 + $0x250] sm:$0xf] %v981
                  %v983 = vld [vmem:[%s683 + $0x6fc] sm:$0xf]
                  %984 = vst [vmem:[%s684 + $0x254] sm:$0xf] %v983
                  %v985 = vld [vmem:[%s683 + $0x708] sm:$0xf]
                  %986 = vst [vmem:[%s684 + $0x258] sm:$0xf] %v985
                  %v987 = vld [vmem:[%s683 + $0x714] sm:$0xf]
                  %988 = vst [vmem:[%s684 + $0x25c] sm:$0xf] %v987
                  %v989 = vld [vmem:[%s683 + $0x720] sm:$0xf]
                  %990 = vst [vmem:[%s684 + $0x260] sm:$0xf] %v989
                  %v991 = vld [vmem:[%s683 + $0x72c] sm:$0xf]
                  %992 = vst [vmem:[%s684 + $0x264] sm:$0xf] %v991
                  %v993 = vld [vmem:[%s683 + $0x738] sm:$0xf]
                  %994 = vst [vmem:[%s684 + $0x268] sm:$0xf] %v993
                  %v995 = vld [vmem:[%s683 + $0x744] sm:$0xf]
                  %996 = vst [vmem:[%s684 + $0x26c] sm:$0xf] %v995
                  %v997 = vld [vmem:[%s683 + $0x750] sm:$0xf]
                  %998 = vst [vmem:[%s684 + $0x270] sm:$0xf] %v997
                  %v999 = vld [vmem:[%s683 + $0x75c] sm:$0xf]
                  %1000 = vst [vmem:[%s684 + $0x274] sm:$0xf] %v999
                  %v1001 = vld [vmem:[%s683 + $0x768] sm:$0xf]
                  %1002 = vst [vmem:[%s684 + $0x278] sm:$0xf] %v1001
                  %v1003 = vld [vmem:[%s683 + $0x774] sm:$0xf]
                  %1004 = vst [vmem:[%s684 + $0x27c] sm:$0xf] %v1003
                  %v1005 = vld [vmem:[%s683 + $0x780] sm:$0xf]
                  %1006 = vst [vmem:[%s684 + $0x280] sm:$0xf] %v1005
                  %v1007 = vld [vmem:[%s683 + $0x78c] sm:$0xf]
                  %1008 = vst [vmem:[%s684 + $0x284] sm:$0xf] %v1007
                  %v1009 = vld [vmem:[%s683 + $0x798] sm:$0xf]
                  %1010 = vst [vmem:[%s684 + $0x288] sm:$0xf] %v1009
                  %v1011 = vld [vmem:[%s683 + $0x7a4] sm:$0xf]
                  %1012 = vst [vmem:[%s684 + $0x28c] sm:$0xf] %v1011
                  %v1013 = vld [vmem:[%s683 + $0x7b0] sm:$0xf]
                  %1014 = vst [vmem:[%s684 + $0x290] sm:$0xf] %v1013
                  %v1015 = vld [vmem:[%s683 + $0x7bc] sm:$0xf]
                  %1016 = vst [vmem:[%s684 + $0x294] sm:$0xf] %v1015
                  %v1017 = vld [vmem:[%s683 + $0x7c8] sm:$0xf]
                  %1018 = vst [vmem:[%s684 + $0x298] sm:$0xf] %v1017
                  %v1019 = vld [vmem:[%s683 + $0x7d4] sm:$0xf]
                  %1020 = vst [vmem:[%s684 + $0x29c] sm:$0xf] %v1019
                  %v1021 = vld [vmem:[%s683 + $0x7e0] sm:$0xf]
                  %1022 = vst [vmem:[%s684 + $0x2a0] sm:$0xf] %v1021
                  %v1023 = vld [vmem:[%s683 + $0x7ec] sm:$0xf]
                  %1024 = vst [vmem:[%s684 + $0x2a4] sm:$0xf] %v1023
                  %v1025 = vld [vmem:[%s683 + $0x7f8] sm:$0xf]
                  %1026 = vst [vmem:[%s684 + $0x2a8] sm:$0xf] %v1025
                  %v1027 = vld [vmem:[%s683 + $0x804] sm:$0xf]
                  %1028 = vst [vmem:[%s684 + $0x2ac] sm:$0xf] %v1027
                  %v1029 = vld [vmem:[%s683 + $0x810] sm:$0xf]
                  %1030 = vst [vmem:[%s684 + $0x2b0] sm:$0xf] %v1029
                  %v1031 = vld [vmem:[%s683 + $0x81c] sm:$0xf]
                  %1032 = vst [vmem:[%s684 + $0x2b4] sm:$0xf] %v1031
                  %v1033 = vld [vmem:[%s683 + $0x828] sm:$0xf]
                  %1034 = vst [vmem:[%s684 + $0x2b8] sm:$0xf] %v1033
                  %v1035 = vld [vmem:[%s683 + $0x834] sm:$0xf]
                  %1036 = vst [vmem:[%s684 + $0x2bc] sm:$0xf] %v1035
                  %v1037 = vld [vmem:[%s683 + $0x840] sm:$0xf]
                  %1038 = vst [vmem:[%s684 + $0x2c0] sm:$0xf] %v1037
                  %v1039 = vld [vmem:[%s683 + $0x84c] sm:$0xf]
                  %1040 = vst [vmem:[%s684 + $0x2c4] sm:$0xf] %v1039
                  %v1041 = vld [vmem:[%s683 + $0x858] sm:$0xf]
                  %1042 = vst [vmem:[%s684 + $0x2c8] sm:$0xf] %v1041
                  %v1043 = vld [vmem:[%s683 + $0x864] sm:$0xf]
                  %1044 = vst [vmem:[%s684 + $0x2cc] sm:$0xf] %v1043
                  %v1045 = vld [vmem:[%s683 + $0x870] sm:$0xf]
                  %1046 = vst [vmem:[%s684 + $0x2d0] sm:$0xf] %v1045
                  %v1047 = vld [vmem:[%s683 + $0x87c] sm:$0xf]
                  %1048 = vst [vmem:[%s684 + $0x2d4] sm:$0xf] %v1047
                  %v1049 = vld [vmem:[%s683 + $0x888] sm:$0xf]
                  %1050 = vst [vmem:[%s684 + $0x2d8] sm:$0xf] %v1049
                  %v1051 = vld [vmem:[%s683 + $0x894] sm:$0xf]
                  %1052 = vst [vmem:[%s684 + $0x2dc] sm:$0xf] %v1051
                  %v1053 = vld [vmem:[%s683 + $0x8a0] sm:$0xf]
                  %1054 = vst [vmem:[%s684 + $0x2e0] sm:$0xf] %v1053
                  %v1055 = vld [vmem:[%s683 + $0x8ac] sm:$0xf]
                  %1056 = vst [vmem:[%s684 + $0x2e4] sm:$0xf] %v1055
                  %v1057 = vld [vmem:[%s683 + $0x8b8] sm:$0xf]
                  %1058 = vst [vmem:[%s684 + $0x2e8] sm:$0xf] %v1057
                  %v1059 = vld [vmem:[%s683 + $0x8c4] sm:$0xf]
                  %1060 = vst [vmem:[%s684 + $0x2ec] sm:$0xf] %v1059
                  %v1061 = vld [vmem:[%s683 + $0x8d0] sm:$0xf]
                  %1062 = vst [vmem:[%s684 + $0x2f0] sm:$0xf] %v1061
                  %v1063 = vld [vmem:[%s683 + $0x8dc] sm:$0xf]
                  %1064 = vst [vmem:[%s684 + $0x2f4] sm:$0xf] %v1063
                  %v1065 = vld [vmem:[%s683 + $0x8e8] sm:$0xf]
                  %1066 = vst [vmem:[%s684 + $0x2f8] sm:$0xf] %v1065
                  %v1067 = vld [vmem:[%s683 + $0x8f4] sm:$0xf]
                  %1068 = vst [vmem:[%s684 + $0x2fc] sm:$0xf] %v1067
                  %v1069 = vld [vmem:[%s683 + $0x900] sm:$0xf]
                  %1070 = vst [vmem:[%s684 + $0x300] sm:$0xf] %v1069
                  %v1071 = vld [vmem:[%s683 + $0x90c] sm:$0xf]
                  %1072 = vst [vmem:[%s684 + $0x304] sm:$0xf] %v1071
                  %v1073 = vld [vmem:[%s683 + $0x918] sm:$0xf]
                  %1074 = vst [vmem:[%s684 + $0x308] sm:$0xf] %v1073
                  %v1075 = vld [vmem:[%s683 + $0x924] sm:$0xf]
                  %1076 = vst [vmem:[%s684 + $0x30c] sm:$0xf] %v1075
                  %v1077 = vld [vmem:[%s683 + $0x930] sm:$0xf]
                  %1078 = vst [vmem:[%s684 + $0x310] sm:$0xf] %v1077
                  %v1079 = vld [vmem:[%s683 + $0x93c] sm:$0xf]
                  %1080 = vst [vmem:[%s684 + $0x314] sm:$0xf] %v1079
                  %v1081 = vld [vmem:[%s683 + $0x948] sm:$0xf]
                  %1082 = vst [vmem:[%s684 + $0x318] sm:$0xf] %v1081
                  %v1083 = vld [vmem:[%s683 + $0x954] sm:$0xf]
                  %1084 = vst [vmem:[%s684 + $0x31c] sm:$0xf] %v1083
                  %v1085 = vld [vmem:[%s683 + $0x960] sm:$0xf]
                  %1086 = vst [vmem:[%s684 + $0x320] sm:$0xf] %v1085
                  %v1087 = vld [vmem:[%s683 + $0x96c] sm:$0xf]
                  %1088 = vst [vmem:[%s684 + $0x324] sm:$0xf] %v1087
                  %v1089 = vld [vmem:[%s683 + $0x978] sm:$0xf]
                  %1090 = vst [vmem:[%s684 + $0x328] sm:$0xf] %v1089
                  %v1091 = vld [vmem:[%s683 + $0x984] sm:$0xf]
                  %1092 = vst [vmem:[%s684 + $0x32c] sm:$0xf] %v1091
                  %v1093 = vld [vmem:[%s683 + $0x990] sm:$0xf]
                  %1094 = vst [vmem:[%s684 + $0x330] sm:$0xf] %v1093
                  %v1095 = vld [vmem:[%s683 + $0x99c] sm:$0xf]
                  %1096 = vst [vmem:[%s684 + $0x334] sm:$0xf] %v1095
                  %v1097 = vld [vmem:[%s683 + $0x9a8] sm:$0xf]
                  %1098 = vst [vmem:[%s684 + $0x338] sm:$0xf] %v1097
                  %v1099 = vld [vmem:[%s683 + $0x9b4] sm:$0xf]
                  %1100 = vst [vmem:[%s684 + $0x33c] sm:$0xf] %v1099
                  %v1101 = vld [vmem:[%s683 + $0x9c0] sm:$0xf]
                  %1102 = vst [vmem:[%s684 + $0x340] sm:$0xf] %v1101
                  %v1103 = vld [vmem:[%s683 + $0x9cc] sm:$0xf]
                  %1104 = vst [vmem:[%s684 + $0x344] sm:$0xf] %v1103
                  %v1105 = vld [vmem:[%s683 + $0x9d8] sm:$0xf]
                  %1106 = vst [vmem:[%s684 + $0x348] sm:$0xf] %v1105
                  %v1107 = vld [vmem:[%s683 + $0x9e4] sm:$0xf]
                  %1108 = vst [vmem:[%s684 + $0x34c] sm:$0xf] %v1107
                  %v1109 = vld [vmem:[%s683 + $0x9f0] sm:$0xf]
                  %1110 = vst [vmem:[%s684 + $0x350] sm:$0xf] %v1109
                  %v1111 = vld [vmem:[%s683 + $0x9fc] sm:$0xf]
                  %1112 = vst [vmem:[%s684 + $0x354] sm:$0xf] %v1111
                  %v1113 = vld [vmem:[%s683 + $0xa08] sm:$0xf]
                  %1114 = vst [vmem:[%s684 + $0x358] sm:$0xf] %v1113
                  %v1115 = vld [vmem:[%s683 + $0xa14] sm:$0xf]
                  %1116 = vst [vmem:[%s684 + $0x35c] sm:$0xf] %v1115
                  %v1117 = vld [vmem:[%s683 + $0xa20] sm:$0xf]
                  %1118 = vst [vmem:[%s684 + $0x360] sm:$0xf] %v1117
                  %v1119 = vld [vmem:[%s683 + $0xa2c] sm:$0xf]
                  %1120 = vst [vmem:[%s684 + $0x364] sm:$0xf] %v1119
                  %v1121 = vld [vmem:[%s683 + $0xa38] sm:$0xf]
                  %1122 = vst [vmem:[%s684 + $0x368] sm:$0xf] %v1121
                  %v1123 = vld [vmem:[%s683 + $0xa44] sm:$0xf]
                  %1124 = vst [vmem:[%s684 + $0x36c] sm:$0xf] %v1123
                  %v1125 = vld [vmem:[%s683 + $0xa50] sm:$0xf]
                  %1126 = vst [vmem:[%s684 + $0x370] sm:$0xf] %v1125
                  %v1127 = vld [vmem:[%s683 + $0xa5c] sm:$0xf]
                  %1128 = vst [vmem:[%s684 + $0x374] sm:$0xf] %v1127
                  %v1129 = vld [vmem:[%s683 + $0xa68] sm:$0xf]
                  %1130 = vst [vmem:[%s684 + $0x378] sm:$0xf] %v1129
                  %v1131 = vld [vmem:[%s683 + $0xa74] sm:$0xf]
                  %1132 = vst [vmem:[%s684 + $0x37c] sm:$0xf] %v1131
                  %v1133 = vld [vmem:[%s683 + $0xa80] sm:$0xf]
                  %1134 = vst [vmem:[%s684 + $0x380] sm:$0xf] %v1133
                  %v1135 = vld [vmem:[%s683 + $0xa8c] sm:$0xf]
                  %1136 = vst [vmem:[%s684 + $0x384] sm:$0xf] %v1135
                  %v1137 = vld [vmem:[%s683 + $0xa98] sm:$0xf]
                  %1138 = vst [vmem:[%s684 + $0x388] sm:$0xf] %v1137
                  %v1139 = vld [vmem:[%s683 + $0xaa4] sm:$0xf]
                  %1140 = vst [vmem:[%s684 + $0x38c] sm:$0xf] %v1139
                  %v1141 = vld [vmem:[%s683 + $0xab0] sm:$0xf]
                  %1142 = vst [vmem:[%s684 + $0x390] sm:$0xf] %v1141
                  %v1143 = vld [vmem:[%s683 + $0xabc] sm:$0xf]
                  %1144 = vst [vmem:[%s684 + $0x394] sm:$0xf] %v1143
                  %v1145 = vld [vmem:[%s683 + $0xac8] sm:$0xf]
                  %1146 = vst [vmem:[%s684 + $0x398] sm:$0xf] %v1145
                  %v1147 = vld [vmem:[%s683 + $0xad4] sm:$0xf]
                  %1148 = vst [vmem:[%s684 + $0x39c] sm:$0xf] %v1147
                  %v1149 = vld [vmem:[%s683 + $0xae0] sm:$0xf]
                  %1150 = vst [vmem:[%s684 + $0x3a0] sm:$0xf] %v1149
                  %v1151 = vld [vmem:[%s683 + $0xaec] sm:$0xf]
                  %1152 = vst [vmem:[%s684 + $0x3a4] sm:$0xf] %v1151
                  %v1153 = vld [vmem:[%s683 + $0xaf8] sm:$0xf]
                  %1154 = vst [vmem:[%s684 + $0x3a8] sm:$0xf] %v1153
                  %v1155 = vld [vmem:[%s683 + $0xb04] sm:$0xf]
                  %1156 = vst [vmem:[%s684 + $0x3ac] sm:$0xf] %v1155
                  %v1157 = vld [vmem:[%s683 + $0xb10] sm:$0xf]
                  %1158 = vst [vmem:[%s684 + $0x3b0] sm:$0xf] %v1157
                  %v1159 = vld [vmem:[%s683 + $0xb1c] sm:$0xf]
                  %1160 = vst [vmem:[%s684 + $0x3b4] sm:$0xf] %v1159
                  %v1161 = vld [vmem:[%s683 + $0xb28] sm:$0xf]
                  %1162 = vst [vmem:[%s684 + $0x3b8] sm:$0xf] %v1161
                  %v1163 = vld [vmem:[%s683 + $0xb34] sm:$0xf]
                  %1164 = vst [vmem:[%s684 + $0x3bc] sm:$0xf] %v1163
                  %v1165 = vld [vmem:[%s683 + $0xb40] sm:$0xf]
                  %1166 = vst [vmem:[%s684 + $0x3c0] sm:$0xf] %v1165
                  %v1167 = vld [vmem:[%s683 + $0xb4c] sm:$0xf]
                  %1168 = vst [vmem:[%s684 + $0x3c4] sm:$0xf] %v1167
                  %v1169 = vld [vmem:[%s683 + $0xb58] sm:$0xf]
                  %1170 = vst [vmem:[%s684 + $0x3c8] sm:$0xf] %v1169
                  %v1171 = vld [vmem:[%s683 + $0xb64] sm:$0xf]
                  %1172 = vst [vmem:[%s684 + $0x3cc] sm:$0xf] %v1171
                  %v1173 = vld [vmem:[%s683 + $0xb70] sm:$0xf]
                  %1174 = vst [vmem:[%s684 + $0x3d0] sm:$0xf] %v1173
                  %v1175 = vld [vmem:[%s683 + $0xb7c] sm:$0xf]
                  %1176 = vst [vmem:[%s684 + $0x3d4] sm:$0xf] %v1175
                  %v1177 = vld [vmem:[%s683 + $0xb88] sm:$0xf]
                  %1178 = vst [vmem:[%s684 + $0x3d8] sm:$0xf] %v1177
                  %v1179 = vld [vmem:[%s683 + $0xb94] sm:$0xf]
                  %1180 = vst [vmem:[%s684 + $0x3dc] sm:$0xf] %v1179
                  %v1181 = vld [vmem:[%s683 + $0xba0] sm:$0xf]
                  %1182 = vst [vmem:[%s684 + $0x3e0] sm:$0xf] %v1181
                  %v1183 = vld [vmem:[%s683 + $0xbac] sm:$0xf]
                  %1184 = vst [vmem:[%s684 + $0x3e4] sm:$0xf] %v1183
                  %v1185 = vld [vmem:[%s683 + $0xbb8] sm:$0xf]
                  %1186 = vst [vmem:[%s684 + $0x3e8] sm:$0xf] %v1185
                  %v1187 = vld [vmem:[%s683 + $0xbc4] sm:$0xf]
                  %1188 = vst [vmem:[%s684 + $0x3ec] sm:$0xf] %v1187
                  %v1189 = vld [vmem:[%s683 + $0xbd0] sm:$0xf]
                  %1190 = vst [vmem:[%s684 + $0x3f0] sm:$0xf] %v1189
                  %v1191 = vld [vmem:[%s683 + $0xbdc] sm:$0xf]
                  %1192 = vst [vmem:[%s684 + $0x3f4] sm:$0xf] %v1191
                  %v1193 = vld [vmem:[%s683 + $0xbe8] sm:$0xf]
                  %1194 = vst [vmem:[%s684 + $0x3f8] sm:$0xf] %v1193
                  %v1195 = vld [vmem:[%s683 + $0xbf4] sm:$0xf]
                  %1196 = vst [vmem:[%s684 + $0x3fc] sm:$0xf] %v1195
                $region59: #{_forward_impl.5} parent=46 // loop_footer
                  %s682 = sadd.s32 1, %s678
                $region60: #{_forward_impl.5} parent=46 // loop_footer_branch
                  %677 = sbr.rel target = $region56
                $region61: #{_forward_impl.5} parent=46 // loop_exit
                  _
              $region47: #{_forward_impl.5} parent=31 // pred_fallthru
                _
            $region32: #{_forward_impl.5} parent=27 // pred_fallthru
              _
            // Predicated region
            $region33: #{_forward_impl.5} parent=27 // pred_check
              _
            $region34: #{_forward_impl.5} parent=27 // pred_check_branch
              %144 = sbr.rel (0) target = $region36
            $region35: #{_forward_impl.5} parent=27 // pred_region
              loop: start=0, step=1, limit=1
              $region37: #{_forward_impl.5} parent=35 // loop_pre_header
                _
              $region38: #{_forward_impl.5} parent=35 // loop_header
                %s147 = sphi 0, %s151
                %p148 = scmp.ge.s32.totalorder %s147, 1
                %s152 = sphi %s138, %s138
                %s153 = sphi %s136, %s136
              $region39: #{_forward_impl.5} parent=35 // loop_header_branch
                %150 = sbr.rel (%p148) target = $region43
              $region40: #{_forward_impl.5} parent=35 // loop_body
                %v154 = vld [vmem:[%s152] sm:$0xf]
                %155 = vst [vmem:[%s153] sm:$0xf] %v154
                %v156 = vld [vmem:[%s152 + $0xc] sm:$0xf]
                %157 = vst [vmem:[%s153 + $0x4] sm:$0xf] %v156
                %v158 = vld [vmem:[%s152 + $0x18] sm:$0xf]
                %159 = vst [vmem:[%s153 + $0x8] sm:$0xf] %v158
                %v160 = vld [vmem:[%s152 + $0x24] sm:$0xf]
                %161 = vst [vmem:[%s153 + $0xc] sm:$0xf] %v160
                %v162 = vld [vmem:[%s152 + $0x30] sm:$0xf]
                %163 = vst [vmem:[%s153 + $0x10] sm:$0xf] %v162
                %v164 = vld [vmem:[%s152 + $0x3c] sm:$0xf]
                %165 = vst [vmem:[%s153 + $0x14] sm:$0xf] %v164
                %v166 = vld [vmem:[%s152 + $0x48] sm:$0xf]
                %167 = vst [vmem:[%s153 + $0x18] sm:$0xf] %v166
                %v168 = vld [vmem:[%s152 + $0x54] sm:$0xf]
                %169 = vst [vmem:[%s153 + $0x1c] sm:$0xf] %v168
                %v170 = vld [vmem:[%s152 + $0x60] sm:$0xf]
                %171 = vst [vmem:[%s153 + $0x20] sm:$0xf] %v170
                %v172 = vld [vmem:[%s152 + $0x6c] sm:$0xf]
                %173 = vst [vmem:[%s153 + $0x24] sm:$0xf] %v172
                %v174 = vld [vmem:[%s152 + $0x78] sm:$0xf]
                %175 = vst [vmem:[%s153 + $0x28] sm:$0xf] %v174
                %v176 = vld [vmem:[%s152 + $0x84] sm:$0xf]
                %177 = vst [vmem:[%s153 + $0x2c] sm:$0xf] %v176
                %v178 = vld [vmem:[%s152 + $0x90] sm:$0xf]
                %179 = vst [vmem:[%s153 + $0x30] sm:$0xf] %v178
                %v180 = vld [vmem:[%s152 + $0x9c] sm:$0xf]
                %181 = vst [vmem:[%s153 + $0x34] sm:$0xf] %v180
                %v182 = vld [vmem:[%s152 + $0xa8] sm:$0xf]
                %183 = vst [vmem:[%s153 + $0x38] sm:$0xf] %v182
                %v184 = vld [vmem:[%s152 + $0xb4] sm:$0xf]
                %185 = vst [vmem:[%s153 + $0x3c] sm:$0xf] %v184
                %v186 = vld [vmem:[%s152 + $0xc0] sm:$0xf]
                %187 = vst [vmem:[%s153 + $0x40] sm:$0xf] %v186
                %v188 = vld [vmem:[%s152 + $0xcc] sm:$0xf]
                %189 = vst [vmem:[%s153 + $0x44] sm:$0xf] %v188
                %v190 = vld [vmem:[%s152 + $0xd8] sm:$0xf]
                %191 = vst [vmem:[%s153 + $0x48] sm:$0xf] %v190
                %v192 = vld [vmem:[%s152 + $0xe4] sm:$0xf]
                %193 = vst [vmem:[%s153 + $0x4c] sm:$0xf] %v192
                %v194 = vld [vmem:[%s152 + $0xf0] sm:$0xf]
                %195 = vst [vmem:[%s153 + $0x50] sm:$0xf] %v194
                %v196 = vld [vmem:[%s152 + $0xfc] sm:$0xf]
                %197 = vst [vmem:[%s153 + $0x54] sm:$0xf] %v196
                %v198 = vld [vmem:[%s152 + $0x108] sm:$0xf]
                %199 = vst [vmem:[%s153 + $0x58] sm:$0xf] %v198
                %v200 = vld [vmem:[%s152 + $0x114] sm:$0xf]
                %201 = vst [vmem:[%s153 + $0x5c] sm:$0xf] %v200
                %v202 = vld [vmem:[%s152 + $0x120] sm:$0xf]
                %203 = vst [vmem:[%s153 + $0x60] sm:$0xf] %v202
                %v204 = vld [vmem:[%s152 + $0x12c] sm:$0xf]
                %205 = vst [vmem:[%s153 + $0x64] sm:$0xf] %v204
                %v206 = vld [vmem:[%s152 + $0x138] sm:$0xf]
                %207 = vst [vmem:[%s153 + $0x68] sm:$0xf] %v206
                %v208 = vld [vmem:[%s152 + $0x144] sm:$0xf]
                %209 = vst [vmem:[%s153 + $0x6c] sm:$0xf] %v208
                %v210 = vld [vmem:[%s152 + $0x150] sm:$0xf]
                %211 = vst [vmem:[%s153 + $0x70] sm:$0xf] %v210
                %v212 = vld [vmem:[%s152 + $0x15c] sm:$0xf]
                %213 = vst [vmem:[%s153 + $0x74] sm:$0xf] %v212
                %v214 = vld [vmem:[%s152 + $0x168] sm:$0xf]
                %215 = vst [vmem:[%s153 + $0x78] sm:$0xf] %v214
                %v216 = vld [vmem:[%s152 + $0x174] sm:$0xf]
                %217 = vst [vmem:[%s153 + $0x7c] sm:$0xf] %v216
                %v218 = vld [vmem:[%s152 + $0x180] sm:$0xf]
                %219 = vst [vmem:[%s153 + $0x80] sm:$0xf] %v218
                %v220 = vld [vmem:[%s152 + $0x18c] sm:$0xf]
                %221 = vst [vmem:[%s153 + $0x84] sm:$0xf] %v220
                %v222 = vld [vmem:[%s152 + $0x198] sm:$0xf]
                %223 = vst [vmem:[%s153 + $0x88] sm:$0xf] %v222
                %v224 = vld [vmem:[%s152 + $0x1a4] sm:$0xf]
                %225 = vst [vmem:[%s153 + $0x8c] sm:$0xf] %v224
                %v226 = vld [vmem:[%s152 + $0x1b0] sm:$0xf]
                %227 = vst [vmem:[%s153 + $0x90] sm:$0xf] %v226
                %v228 = vld [vmem:[%s152 + $0x1bc] sm:$0xf]
                %229 = vst [vmem:[%s153 + $0x94] sm:$0xf] %v228
                %v230 = vld [vmem:[%s152 + $0x1c8] sm:$0xf]
                %231 = vst [vmem:[%s153 + $0x98] sm:$0xf] %v230
                %v232 = vld [vmem:[%s152 + $0x1d4] sm:$0xf]
                %233 = vst [vmem:[%s153 + $0x9c] sm:$0xf] %v232
                %v234 = vld [vmem:[%s152 + $0x1e0] sm:$0xf]
                %235 = vst [vmem:[%s153 + $0xa0] sm:$0xf] %v234
                %v236 = vld [vmem:[%s152 + $0x1ec] sm:$0xf]
                %237 = vst [vmem:[%s153 + $0xa4] sm:$0xf] %v236
                %v238 = vld [vmem:[%s152 + $0x1f8] sm:$0xf]
                %239 = vst [vmem:[%s153 + $0xa8] sm:$0xf] %v238
                %v240 = vld [vmem:[%s152 + $0x204] sm:$0xf]
                %241 = vst [vmem:[%s153 + $0xac] sm:$0xf] %v240
                %v242 = vld [vmem:[%s152 + $0x210] sm:$0xf]
                %243 = vst [vmem:[%s153 + $0xb0] sm:$0xf] %v242
                %v244 = vld [vmem:[%s152 + $0x21c] sm:$0xf]
                %245 = vst [vmem:[%s153 + $0xb4] sm:$0xf] %v244
                %v246 = vld [vmem:[%s152 + $0x228] sm:$0xf]
                %247 = vst [vmem:[%s153 + $0xb8] sm:$0xf] %v246
                %v248 = vld [vmem:[%s152 + $0x234] sm:$0xf]
                %249 = vst [vmem:[%s153 + $0xbc] sm:$0xf] %v248
                %v250 = vld [vmem:[%s152 + $0x240] sm:$0xf]
                %251 = vst [vmem:[%s153 + $0xc0] sm:$0xf] %v250
                %v252 = vld [vmem:[%s152 + $0x24c] sm:$0xf]
                %253 = vst [vmem:[%s153 + $0xc4] sm:$0xf] %v252
                %v254 = vld [vmem:[%s152 + $0x258] sm:$0xf]
                %255 = vst [vmem:[%s153 + $0xc8] sm:$0xf] %v254
                %v256 = vld [vmem:[%s152 + $0x264] sm:$0xf]
                %257 = vst [vmem:[%s153 + $0xcc] sm:$0xf] %v256
                %v258 = vld [vmem:[%s152 + $0x270] sm:$0xf]
                %259 = vst [vmem:[%s153 + $0xd0] sm:$0xf] %v258
                %v260 = vld [vmem:[%s152 + $0x27c] sm:$0xf]
                %261 = vst [vmem:[%s153 + $0xd4] sm:$0xf] %v260
                %v262 = vld [vmem:[%s152 + $0x288] sm:$0xf]
                %263 = vst [vmem:[%s153 + $0xd8] sm:$0xf] %v262
                %v264 = vld [vmem:[%s152 + $0x294] sm:$0xf]
                %265 = vst [vmem:[%s153 + $0xdc] sm:$0xf] %v264
                %v266 = vld [vmem:[%s152 + $0x2a0] sm:$0xf]
                %267 = vst [vmem:[%s153 + $0xe0] sm:$0xf] %v266
                %v268 = vld [vmem:[%s152 + $0x2ac] sm:$0xf]
                %269 = vst [vmem:[%s153 + $0xe4] sm:$0xf] %v268
                %v270 = vld [vmem:[%s152 + $0x2b8] sm:$0xf]
                %271 = vst [vmem:[%s153 + $0xe8] sm:$0xf] %v270
                %v272 = vld [vmem:[%s152 + $0x2c4] sm:$0xf]
                %273 = vst [vmem:[%s153 + $0xec] sm:$0xf] %v272
                %v274 = vld [vmem:[%s152 + $0x2d0] sm:$0xf]
                %275 = vst [vmem:[%s153 + $0xf0] sm:$0xf] %v274
                %v276 = vld [vmem:[%s152 + $0x2dc] sm:$0xf]
                %277 = vst [vmem:[%s153 + $0xf4] sm:$0xf] %v276
                %v278 = vld [vmem:[%s152 + $0x2e8] sm:$0xf]
                %279 = vst [vmem:[%s153 + $0xf8] sm:$0xf] %v278
                %v280 = vld [vmem:[%s152 + $0x2f4] sm:$0xf]
                %281 = vst [vmem:[%s153 + $0xfc] sm:$0xf] %v280
                %v282 = vld [vmem:[%s152 + $0x300] sm:$0xf]
                %283 = vst [vmem:[%s153 + $0x100] sm:$0xf] %v282
                %v284 = vld [vmem:[%s152 + $0x30c] sm:$0xf]
                %285 = vst [vmem:[%s153 + $0x104] sm:$0xf] %v284
                %v286 = vld [vmem:[%s152 + $0x318] sm:$0xf]
                %287 = vst [vmem:[%s153 + $0x108] sm:$0xf] %v286
                %v288 = vld [vmem:[%s152 + $0x324] sm:$0xf]
                %289 = vst [vmem:[%s153 + $0x10c] sm:$0xf] %v288
                %v290 = vld [vmem:[%s152 + $0x330] sm:$0xf]
                %291 = vst [vmem:[%s153 + $0x110] sm:$0xf] %v290
                %v292 = vld [vmem:[%s152 + $0x33c] sm:$0xf]
                %293 = vst [vmem:[%s153 + $0x114] sm:$0xf] %v292
                %v294 = vld [vmem:[%s152 + $0x348] sm:$0xf]
                %295 = vst [vmem:[%s153 + $0x118] sm:$0xf] %v294
                %v296 = vld [vmem:[%s152 + $0x354] sm:$0xf]
                %297 = vst [vmem:[%s153 + $0x11c] sm:$0xf] %v296
                %v298 = vld [vmem:[%s152 + $0x360] sm:$0xf]
                %299 = vst [vmem:[%s153 + $0x120] sm:$0xf] %v298
                %v300 = vld [vmem:[%s152 + $0x36c] sm:$0xf]
                %301 = vst [vmem:[%s153 + $0x124] sm:$0xf] %v300
                %v302 = vld [vmem:[%s152 + $0x378] sm:$0xf]
                %303 = vst [vmem:[%s153 + $0x128] sm:$0xf] %v302
                %v304 = vld [vmem:[%s152 + $0x384] sm:$0xf]
                %305 = vst [vmem:[%s153 + $0x12c] sm:$0xf] %v304
                %v306 = vld [vmem:[%s152 + $0x390] sm:$0xf]
                %307 = vst [vmem:[%s153 + $0x130] sm:$0xf] %v306
                %v308 = vld [vmem:[%s152 + $0x39c] sm:$0xf]
                %309 = vst [vmem:[%s153 + $0x134] sm:$0xf] %v308
                %v310 = vld [vmem:[%s152 + $0x3a8] sm:$0xf]
                %311 = vst [vmem:[%s153 + $0x138] sm:$0xf] %v310
                %v312 = vld [vmem:[%s152 + $0x3b4] sm:$0xf]
                %313 = vst [vmem:[%s153 + $0x13c] sm:$0xf] %v312
                %v314 = vld [vmem:[%s152 + $0x3c0] sm:$0xf]
                %315 = vst [vmem:[%s153 + $0x140] sm:$0xf] %v314
                %v316 = vld [vmem:[%s152 + $0x3cc] sm:$0xf]
                %317 = vst [vmem:[%s153 + $0x144] sm:$0xf] %v316
                %v318 = vld [vmem:[%s152 + $0x3d8] sm:$0xf]
                %319 = vst [vmem:[%s153 + $0x148] sm:$0xf] %v318
                %v320 = vld [vmem:[%s152 + $0x3e4] sm:$0xf]
                %321 = vst [vmem:[%s153 + $0x14c] sm:$0xf] %v320
                %v322 = vld [vmem:[%s152 + $0x3f0] sm:$0xf]
                %323 = vst [vmem:[%s153 + $0x150] sm:$0xf] %v322
                %v324 = vld [vmem:[%s152 + $0x3fc] sm:$0xf]
                %325 = vst [vmem:[%s153 + $0x154] sm:$0xf] %v324
                %v326 = vld [vmem:[%s152 + $0x408] sm:$0xf]
                %327 = vst [vmem:[%s153 + $0x158] sm:$0xf] %v326
                %v328 = vld [vmem:[%s152 + $0x414] sm:$0xf]
                %329 = vst [vmem:[%s153 + $0x15c] sm:$0xf] %v328
                %v330 = vld [vmem:[%s152 + $0x420] sm:$0xf]
                %331 = vst [vmem:[%s153 + $0x160] sm:$0xf] %v330
                %v332 = vld [vmem:[%s152 + $0x42c] sm:$0xf]
                %333 = vst [vmem:[%s153 + $0x164] sm:$0xf] %v332
                %v334 = vld [vmem:[%s152 + $0x438] sm:$0xf]
                %335 = vst [vmem:[%s153 + $0x168] sm:$0xf] %v334
                %v336 = vld [vmem:[%s152 + $0x444] sm:$0xf]
                %337 = vst [vmem:[%s153 + $0x16c] sm:$0xf] %v336
                %v338 = vld [vmem:[%s152 + $0x450] sm:$0xf]
                %339 = vst [vmem:[%s153 + $0x170] sm:$0xf] %v338
                %v340 = vld [vmem:[%s152 + $0x45c] sm:$0xf]
                %341 = vst [vmem:[%s153 + $0x174] sm:$0xf] %v340
                %v342 = vld [vmem:[%s152 + $0x468] sm:$0xf]
                %343 = vst [vmem:[%s153 + $0x178] sm:$0xf] %v342
                %v344 = vld [vmem:[%s152 + $0x474] sm:$0xf]
                %345 = vst [vmem:[%s153 + $0x17c] sm:$0xf] %v344
                %v346 = vld [vmem:[%s152 + $0x480] sm:$0xf]
                %347 = vst [vmem:[%s153 + $0x180] sm:$0xf] %v346
                %v348 = vld [vmem:[%s152 + $0x48c] sm:$0xf]
                %349 = vst [vmem:[%s153 + $0x184] sm:$0xf] %v348
                %v350 = vld [vmem:[%s152 + $0x498] sm:$0xf]
                %351 = vst [vmem:[%s153 + $0x188] sm:$0xf] %v350
                %v352 = vld [vmem:[%s152 + $0x4a4] sm:$0xf]
                %353 = vst [vmem:[%s153 + $0x18c] sm:$0xf] %v352
                %v354 = vld [vmem:[%s152 + $0x4b0] sm:$0xf]
                %355 = vst [vmem:[%s153 + $0x190] sm:$0xf] %v354
                %v356 = vld [vmem:[%s152 + $0x4bc] sm:$0xf]
                %357 = vst [vmem:[%s153 + $0x194] sm:$0xf] %v356
                %v358 = vld [vmem:[%s152 + $0x4c8] sm:$0xf]
                %359 = vst [vmem:[%s153 + $0x198] sm:$0xf] %v358
                %v360 = vld [vmem:[%s152 + $0x4d4] sm:$0xf]
                %361 = vst [vmem:[%s153 + $0x19c] sm:$0xf] %v360
                %v362 = vld [vmem:[%s152 + $0x4e0] sm:$0xf]
                %363 = vst [vmem:[%s153 + $0x1a0] sm:$0xf] %v362
                %v364 = vld [vmem:[%s152 + $0x4ec] sm:$0xf]
                %365 = vst [vmem:[%s153 + $0x1a4] sm:$0xf] %v364
                %v366 = vld [vmem:[%s152 + $0x4f8] sm:$0xf]
                %367 = vst [vmem:[%s153 + $0x1a8] sm:$0xf] %v366
                %v368 = vld [vmem:[%s152 + $0x504] sm:$0xf]
                %369 = vst [vmem:[%s153 + $0x1ac] sm:$0xf] %v368
                %v370 = vld [vmem:[%s152 + $0x510] sm:$0xf]
                %371 = vst [vmem:[%s153 + $0x1b0] sm:$0xf] %v370
                %v372 = vld [vmem:[%s152 + $0x51c] sm:$0xf]
                %373 = vst [vmem:[%s153 + $0x1b4] sm:$0xf] %v372
                %v374 = vld [vmem:[%s152 + $0x528] sm:$0xf]
                %375 = vst [vmem:[%s153 + $0x1b8] sm:$0xf] %v374
                %v376 = vld [vmem:[%s152 + $0x534] sm:$0xf]
                %377 = vst [vmem:[%s153 + $0x1bc] sm:$0xf] %v376
                %v378 = vld [vmem:[%s152 + $0x540] sm:$0xf]
                %379 = vst [vmem:[%s153 + $0x1c0] sm:$0xf] %v378
                %v380 = vld [vmem:[%s152 + $0x54c] sm:$0xf]
                %381 = vst [vmem:[%s153 + $0x1c4] sm:$0xf] %v380
                %v382 = vld [vmem:[%s152 + $0x558] sm:$0xf]
                %383 = vst [vmem:[%s153 + $0x1c8] sm:$0xf] %v382
                %v384 = vld [vmem:[%s152 + $0x564] sm:$0xf]
                %385 = vst [vmem:[%s153 + $0x1cc] sm:$0xf] %v384
                %v386 = vld [vmem:[%s152 + $0x570] sm:$0xf]
                %387 = vst [vmem:[%s153 + $0x1d0] sm:$0xf] %v386
                %v388 = vld [vmem:[%s152 + $0x57c] sm:$0xf]
                %389 = vst [vmem:[%s153 + $0x1d4] sm:$0xf] %v388
                %v390 = vld [vmem:[%s152 + $0x588] sm:$0xf]
                %391 = vst [vmem:[%s153 + $0x1d8] sm:$0xf] %v390
                %v392 = vld [vmem:[%s152 + $0x594] sm:$0xf]
                %393 = vst [vmem:[%s153 + $0x1dc] sm:$0xf] %v392
                %v394 = vld [vmem:[%s152 + $0x5a0] sm:$0xf]
                %395 = vst [vmem:[%s153 + $0x1e0] sm:$0xf] %v394
                %v396 = vld [vmem:[%s152 + $0x5ac] sm:$0xf]
                %397 = vst [vmem:[%s153 + $0x1e4] sm:$0xf] %v396
                %v398 = vld [vmem:[%s152 + $0x5b8] sm:$0xf]
                %399 = vst [vmem:[%s153 + $0x1e8] sm:$0xf] %v398
                %v400 = vld [vmem:[%s152 + $0x5c4] sm:$0xf]
                %401 = vst [vmem:[%s153 + $0x1ec] sm:$0xf] %v400
                %v402 = vld [vmem:[%s152 + $0x5d0] sm:$0xf]
                %403 = vst [vmem:[%s153 + $0x1f0] sm:$0xf] %v402
                %v404 = vld [vmem:[%s152 + $0x5dc] sm:$0xf]
                %405 = vst [vmem:[%s153 + $0x1f4] sm:$0xf] %v404
                %v406 = vld [vmem:[%s152 + $0x5e8] sm:$0xf]
                %407 = vst [vmem:[%s153 + $0x1f8] sm:$0xf] %v406
                %v408 = vld [vmem:[%s152 + $0x5f4] sm:$0xf]
                %409 = vst [vmem:[%s153 + $0x1fc] sm:$0xf] %v408
                %v410 = vld [vmem:[%s152 + $0x600] sm:$0xf]
                %411 = vst [vmem:[%s153 + $0x200] sm:$0xf] %v410
                %v412 = vld [vmem:[%s152 + $0x60c] sm:$0xf]
                %413 = vst [vmem:[%s153 + $0x204] sm:$0xf] %v412
                %v414 = vld [vmem:[%s152 + $0x618] sm:$0xf]
                %415 = vst [vmem:[%s153 + $0x208] sm:$0xf] %v414
                %v416 = vld [vmem:[%s152 + $0x624] sm:$0xf]
                %417 = vst [vmem:[%s153 + $0x20c] sm:$0xf] %v416
                %v418 = vld [vmem:[%s152 + $0x630] sm:$0xf]
                %419 = vst [vmem:[%s153 + $0x210] sm:$0xf] %v418
                %v420 = vld [vmem:[%s152 + $0x63c] sm:$0xf]
                %421 = vst [vmem:[%s153 + $0x214] sm:$0xf] %v420
                %v422 = vld [vmem:[%s152 + $0x648] sm:$0xf]
                %423 = vst [vmem:[%s153 + $0x218] sm:$0xf] %v422
                %v424 = vld [vmem:[%s152 + $0x654] sm:$0xf]
                %425 = vst [vmem:[%s153 + $0x21c] sm:$0xf] %v424
                %v426 = vld [vmem:[%s152 + $0x660] sm:$0xf]
                %427 = vst [vmem:[%s153 + $0x220] sm:$0xf] %v426
                %v428 = vld [vmem:[%s152 + $0x66c] sm:$0xf]
                %429 = vst [vmem:[%s153 + $0x224] sm:$0xf] %v428
                %v430 = vld [vmem:[%s152 + $0x678] sm:$0xf]
                %431 = vst [vmem:[%s153 + $0x228] sm:$0xf] %v430
                %v432 = vld [vmem:[%s152 + $0x684] sm:$0xf]
                %433 = vst [vmem:[%s153 + $0x22c] sm:$0xf] %v432
                %v434 = vld [vmem:[%s152 + $0x690] sm:$0xf]
                %435 = vst [vmem:[%s153 + $0x230] sm:$0xf] %v434
                %v436 = vld [vmem:[%s152 + $0x69c] sm:$0xf]
                %437 = vst [vmem:[%s153 + $0x234] sm:$0xf] %v436
                %v438 = vld [vmem:[%s152 + $0x6a8] sm:$0xf]
                %439 = vst [vmem:[%s153 + $0x238] sm:$0xf] %v438
                %v440 = vld [vmem:[%s152 + $0x6b4] sm:$0xf]
                %441 = vst [vmem:[%s153 + $0x23c] sm:$0xf] %v440
                %v442 = vld [vmem:[%s152 + $0x6c0] sm:$0xf]
                %443 = vst [vmem:[%s153 + $0x240] sm:$0xf] %v442
                %v444 = vld [vmem:[%s152 + $0x6cc] sm:$0xf]
                %445 = vst [vmem:[%s153 + $0x244] sm:$0xf] %v444
                %v446 = vld [vmem:[%s152 + $0x6d8] sm:$0xf]
                %447 = vst [vmem:[%s153 + $0x248] sm:$0xf] %v446
                %v448 = vld [vmem:[%s152 + $0x6e4] sm:$0xf]
                %449 = vst [vmem:[%s153 + $0x24c] sm:$0xf] %v448
                %v450 = vld [vmem:[%s152 + $0x6f0] sm:$0xf]
                %451 = vst [vmem:[%s153 + $0x250] sm:$0xf] %v450
                %v452 = vld [vmem:[%s152 + $0x6fc] sm:$0xf]
                %453 = vst [vmem:[%s153 + $0x254] sm:$0xf] %v452
                %v454 = vld [vmem:[%s152 + $0x708] sm:$0xf]
                %455 = vst [vmem:[%s153 + $0x258] sm:$0xf] %v454
                %v456 = vld [vmem:[%s152 + $0x714] sm:$0xf]
                %457 = vst [vmem:[%s153 + $0x25c] sm:$0xf] %v456
                %v458 = vld [vmem:[%s152 + $0x720] sm:$0xf]
                %459 = vst [vmem:[%s153 + $0x260] sm:$0xf] %v458
                %v460 = vld [vmem:[%s152 + $0x72c] sm:$0xf]
                %461 = vst [vmem:[%s153 + $0x264] sm:$0xf] %v460
                %v462 = vld [vmem:[%s152 + $0x738] sm:$0xf]
                %463 = vst [vmem:[%s153 + $0x268] sm:$0xf] %v462
                %v464 = vld [vmem:[%s152 + $0x744] sm:$0xf]
                %465 = vst [vmem:[%s153 + $0x26c] sm:$0xf] %v464
                %v466 = vld [vmem:[%s152 + $0x750] sm:$0xf]
                %467 = vst [vmem:[%s153 + $0x270] sm:$0xf] %v466
                %v468 = vld [vmem:[%s152 + $0x75c] sm:$0xf]
                %469 = vst [vmem:[%s153 + $0x274] sm:$0xf] %v468
                %v470 = vld [vmem:[%s152 + $0x768] sm:$0xf]
                %471 = vst [vmem:[%s153 + $0x278] sm:$0xf] %v470
                %v472 = vld [vmem:[%s152 + $0x774] sm:$0xf]
                %473 = vst [vmem:[%s153 + $0x27c] sm:$0xf] %v472
                %v474 = vld [vmem:[%s152 + $0x780] sm:$0xf]
                %475 = vst [vmem:[%s153 + $0x280] sm:$0xf] %v474
                %v476 = vld [vmem:[%s152 + $0x78c] sm:$0xf]
                %477 = vst [vmem:[%s153 + $0x284] sm:$0xf] %v476
                %v478 = vld [vmem:[%s152 + $0x798] sm:$0xf]
                %479 = vst [vmem:[%s153 + $0x288] sm:$0xf] %v478
                %v480 = vld [vmem:[%s152 + $0x7a4] sm:$0xf]
                %481 = vst [vmem:[%s153 + $0x28c] sm:$0xf] %v480
                %v482 = vld [vmem:[%s152 + $0x7b0] sm:$0xf]
                %483 = vst [vmem:[%s153 + $0x290] sm:$0xf] %v482
                %v484 = vld [vmem:[%s152 + $0x7bc] sm:$0xf]
                %485 = vst [vmem:[%s153 + $0x294] sm:$0xf] %v484
                %v486 = vld [vmem:[%s152 + $0x7c8] sm:$0xf]
                %487 = vst [vmem:[%s153 + $0x298] sm:$0xf] %v486
                %v488 = vld [vmem:[%s152 + $0x7d4] sm:$0xf]
                %489 = vst [vmem:[%s153 + $0x29c] sm:$0xf] %v488
                %v490 = vld [vmem:[%s152 + $0x7e0] sm:$0xf]
                %491 = vst [vmem:[%s153 + $0x2a0] sm:$0xf] %v490
                %v492 = vld [vmem:[%s152 + $0x7ec] sm:$0xf]
                %493 = vst [vmem:[%s153 + $0x2a4] sm:$0xf] %v492
                %v494 = vld [vmem:[%s152 + $0x7f8] sm:$0xf]
                %495 = vst [vmem:[%s153 + $0x2a8] sm:$0xf] %v494
                %v496 = vld [vmem:[%s152 + $0x804] sm:$0xf]
                %497 = vst [vmem:[%s153 + $0x2ac] sm:$0xf] %v496
                %v498 = vld [vmem:[%s152 + $0x810] sm:$0xf]
                %499 = vst [vmem:[%s153 + $0x2b0] sm:$0xf] %v498
                %v500 = vld [vmem:[%s152 + $0x81c] sm:$0xf]
                %501 = vst [vmem:[%s153 + $0x2b4] sm:$0xf] %v500
                %v502 = vld [vmem:[%s152 + $0x828] sm:$0xf]
                %503 = vst [vmem:[%s153 + $0x2b8] sm:$0xf] %v502
                %v504 = vld [vmem:[%s152 + $0x834] sm:$0xf]
                %505 = vst [vmem:[%s153 + $0x2bc] sm:$0xf] %v504
                %v506 = vld [vmem:[%s152 + $0x840] sm:$0xf]
                %507 = vst [vmem:[%s153 + $0x2c0] sm:$0xf] %v506
                %v508 = vld [vmem:[%s152 + $0x84c] sm:$0xf]
                %509 = vst [vmem:[%s153 + $0x2c4] sm:$0xf] %v508
                %v510 = vld [vmem:[%s152 + $0x858] sm:$0xf]
                %511 = vst [vmem:[%s153 + $0x2c8] sm:$0xf] %v510
                %v512 = vld [vmem:[%s152 + $0x864] sm:$0xf]
                %513 = vst [vmem:[%s153 + $0x2cc] sm:$0xf] %v512
                %v514 = vld [vmem:[%s152 + $0x870] sm:$0xf]
                %515 = vst [vmem:[%s153 + $0x2d0] sm:$0xf] %v514
                %v516 = vld [vmem:[%s152 + $0x87c] sm:$0xf]
                %517 = vst [vmem:[%s153 + $0x2d4] sm:$0xf] %v516
                %v518 = vld [vmem:[%s152 + $0x888] sm:$0xf]
                %519 = vst [vmem:[%s153 + $0x2d8] sm:$0xf] %v518
                %v520 = vld [vmem:[%s152 + $0x894] sm:$0xf]
                %521 = vst [vmem:[%s153 + $0x2dc] sm:$0xf] %v520
                %v522 = vld [vmem:[%s152 + $0x8a0] sm:$0xf]
                %523 = vst [vmem:[%s153 + $0x2e0] sm:$0xf] %v522
                %v524 = vld [vmem:[%s152 + $0x8ac] sm:$0xf]
                %525 = vst [vmem:[%s153 + $0x2e4] sm:$0xf] %v524
                %v526 = vld [vmem:[%s152 + $0x8b8] sm:$0xf]
                %527 = vst [vmem:[%s153 + $0x2e8] sm:$0xf] %v526
                %v528 = vld [vmem:[%s152 + $0x8c4] sm:$0xf]
                %529 = vst [vmem:[%s153 + $0x2ec] sm:$0xf] %v528
                %v530 = vld [vmem:[%s152 + $0x8d0] sm:$0xf]
                %531 = vst [vmem:[%s153 + $0x2f0] sm:$0xf] %v530
                %v532 = vld [vmem:[%s152 + $0x8dc] sm:$0xf]
                %533 = vst [vmem:[%s153 + $0x2f4] sm:$0xf] %v532
                %v534 = vld [vmem:[%s152 + $0x8e8] sm:$0xf]
                %535 = vst [vmem:[%s153 + $0x2f8] sm:$0xf] %v534
                %v536 = vld [vmem:[%s152 + $0x8f4] sm:$0xf]
                %537 = vst [vmem:[%s153 + $0x2fc] sm:$0xf] %v536
                %v538 = vld [vmem:[%s152 + $0x900] sm:$0xf]
                %539 = vst [vmem:[%s153 + $0x300] sm:$0xf] %v538
                %v540 = vld [vmem:[%s152 + $0x90c] sm:$0xf]
                %541 = vst [vmem:[%s153 + $0x304] sm:$0xf] %v540
                %v542 = vld [vmem:[%s152 + $0x918] sm:$0xf]
                %543 = vst [vmem:[%s153 + $0x308] sm:$0xf] %v542
                %v544 = vld [vmem:[%s152 + $0x924] sm:$0xf]
                %545 = vst [vmem:[%s153 + $0x30c] sm:$0xf] %v544
                %v546 = vld [vmem:[%s152 + $0x930] sm:$0xf]
                %547 = vst [vmem:[%s153 + $0x310] sm:$0xf] %v546
                %v548 = vld [vmem:[%s152 + $0x93c] sm:$0xf]
                %549 = vst [vmem:[%s153 + $0x314] sm:$0xf] %v548
                %v550 = vld [vmem:[%s152 + $0x948] sm:$0xf]
                %551 = vst [vmem:[%s153 + $0x318] sm:$0xf] %v550
                %v552 = vld [vmem:[%s152 + $0x954] sm:$0xf]
                %553 = vst [vmem:[%s153 + $0x31c] sm:$0xf] %v552
                %v554 = vld [vmem:[%s152 + $0x960] sm:$0xf]
                %555 = vst [vmem:[%s153 + $0x320] sm:$0xf] %v554
                %v556 = vld [vmem:[%s152 + $0x96c] sm:$0xf]
                %557 = vst [vmem:[%s153 + $0x324] sm:$0xf] %v556
                %v558 = vld [vmem:[%s152 + $0x978] sm:$0xf]
                %559 = vst [vmem:[%s153 + $0x328] sm:$0xf] %v558
                %v560 = vld [vmem:[%s152 + $0x984] sm:$0xf]
                %561 = vst [vmem:[%s153 + $0x32c] sm:$0xf] %v560
                %v562 = vld [vmem:[%s152 + $0x990] sm:$0xf]
                %563 = vst [vmem:[%s153 + $0x330] sm:$0xf] %v562
                %v564 = vld [vmem:[%s152 + $0x99c] sm:$0xf]
                %565 = vst [vmem:[%s153 + $0x334] sm:$0xf] %v564
                %v566 = vld [vmem:[%s152 + $0x9a8] sm:$0xf]
                %567 = vst [vmem:[%s153 + $0x338] sm:$0xf] %v566
                %v568 = vld [vmem:[%s152 + $0x9b4] sm:$0xf]
                %569 = vst [vmem:[%s153 + $0x33c] sm:$0xf] %v568
                %v570 = vld [vmem:[%s152 + $0x9c0] sm:$0xf]
                %571 = vst [vmem:[%s153 + $0x340] sm:$0xf] %v570
                %v572 = vld [vmem:[%s152 + $0x9cc] sm:$0xf]
                %573 = vst [vmem:[%s153 + $0x344] sm:$0xf] %v572
                %v574 = vld [vmem:[%s152 + $0x9d8] sm:$0xf]
                %575 = vst [vmem:[%s153 + $0x348] sm:$0xf] %v574
                %v576 = vld [vmem:[%s152 + $0x9e4] sm:$0xf]
                %577 = vst [vmem:[%s153 + $0x34c] sm:$0xf] %v576
                %v578 = vld [vmem:[%s152 + $0x9f0] sm:$0xf]
                %579 = vst [vmem:[%s153 + $0x350] sm:$0xf] %v578
                %v580 = vld [vmem:[%s152 + $0x9fc] sm:$0xf]
                %581 = vst [vmem:[%s153 + $0x354] sm:$0xf] %v580
                %v582 = vld [vmem:[%s152 + $0xa08] sm:$0xf]
                %583 = vst [vmem:[%s153 + $0x358] sm:$0xf] %v582
                %v584 = vld [vmem:[%s152 + $0xa14] sm:$0xf]
                %585 = vst [vmem:[%s153 + $0x35c] sm:$0xf] %v584
                %v586 = vld [vmem:[%s152 + $0xa20] sm:$0xf]
                %587 = vst [vmem:[%s153 + $0x360] sm:$0xf] %v586
                %v588 = vld [vmem:[%s152 + $0xa2c] sm:$0xf]
                %589 = vst [vmem:[%s153 + $0x364] sm:$0xf] %v588
                %v590 = vld [vmem:[%s152 + $0xa38] sm:$0xf]
                %591 = vst [vmem:[%s153 + $0x368] sm:$0xf] %v590
                %v592 = vld [vmem:[%s152 + $0xa44] sm:$0xf]
                %593 = vst [vmem:[%s153 + $0x36c] sm:$0xf] %v592
                %v594 = vld [vmem:[%s152 + $0xa50] sm:$0xf]
                %595 = vst [vmem:[%s153 + $0x370] sm:$0xf] %v594
                %v596 = vld [vmem:[%s152 + $0xa5c] sm:$0xf]
                %597 = vst [vmem:[%s153 + $0x374] sm:$0xf] %v596
                %v598 = vld [vmem:[%s152 + $0xa68] sm:$0xf]
                %599 = vst [vmem:[%s153 + $0x378] sm:$0xf] %v598
                %v600 = vld [vmem:[%s152 + $0xa74] sm:$0xf]
                %601 = vst [vmem:[%s153 + $0x37c] sm:$0xf] %v600
                %v602 = vld [vmem:[%s152 + $0xa80] sm:$0xf]
                %603 = vst [vmem:[%s153 + $0x380] sm:$0xf] %v602
                %v604 = vld [vmem:[%s152 + $0xa8c] sm:$0xf]
                %605 = vst [vmem:[%s153 + $0x384] sm:$0xf] %v604
                %v606 = vld [vmem:[%s152 + $0xa98] sm:$0xf]
                %607 = vst [vmem:[%s153 + $0x388] sm:$0xf] %v606
                %v608 = vld [vmem:[%s152 + $0xaa4] sm:$0xf]
                %609 = vst [vmem:[%s153 + $0x38c] sm:$0xf] %v608
                %v610 = vld [vmem:[%s152 + $0xab0] sm:$0xf]
                %611 = vst [vmem:[%s153 + $0x390] sm:$0xf] %v610
                %v612 = vld [vmem:[%s152 + $0xabc] sm:$0xf]
                %613 = vst [vmem:[%s153 + $0x394] sm:$0xf] %v612
                %v614 = vld [vmem:[%s152 + $0xac8] sm:$0xf]
                %615 = vst [vmem:[%s153 + $0x398] sm:$0xf] %v614
                %v616 = vld [vmem:[%s152 + $0xad4] sm:$0xf]
                %617 = vst [vmem:[%s153 + $0x39c] sm:$0xf] %v616
                %v618 = vld [vmem:[%s152 + $0xae0] sm:$0xf]
                %619 = vst [vmem:[%s153 + $0x3a0] sm:$0xf] %v618
                %v620 = vld [vmem:[%s152 + $0xaec] sm:$0xf]
                %621 = vst [vmem:[%s153 + $0x3a4] sm:$0xf] %v620
                %v622 = vld [vmem:[%s152 + $0xaf8] sm:$0xf]
                %623 = vst [vmem:[%s153 + $0x3a8] sm:$0xf] %v622
                %v624 = vld [vmem:[%s152 + $0xb04] sm:$0xf]
                %625 = vst [vmem:[%s153 + $0x3ac] sm:$0xf] %v624
                %v626 = vld [vmem:[%s152 + $0xb10] sm:$0xf]
                %627 = vst [vmem:[%s153 + $0x3b0] sm:$0xf] %v626
                %v628 = vld [vmem:[%s152 + $0xb1c] sm:$0xf]
                %629 = vst [vmem:[%s153 + $0x3b4] sm:$0xf] %v628
                %v630 = vld [vmem:[%s152 + $0xb28] sm:$0xf]
                %631 = vst [vmem:[%s153 + $0x3b8] sm:$0xf] %v630
                %v632 = vld [vmem:[%s152 + $0xb34] sm:$0xf]
                %633 = vst [vmem:[%s153 + $0x3bc] sm:$0xf] %v632
                %v634 = vld [vmem:[%s152 + $0xb40] sm:$0xf]
                %635 = vst [vmem:[%s153 + $0x3c0] sm:$0xf] %v634
                %v636 = vld [vmem:[%s152 + $0xb4c] sm:$0xf]
                %637 = vst [vmem:[%s153 + $0x3c4] sm:$0xf] %v636
                %v638 = vld [vmem:[%s152 + $0xb58] sm:$0xf]
                %639 = vst [vmem:[%s153 + $0x3c8] sm:$0xf] %v638
                %v640 = vld [vmem:[%s152 + $0xb64] sm:$0xf]
                %641 = vst [vmem:[%s153 + $0x3cc] sm:$0xf] %v640
                %v642 = vld [vmem:[%s152 + $0xb70] sm:$0xf]
                %643 = vst [vmem:[%s153 + $0x3d0] sm:$0xf] %v642
                %v644 = vld [vmem:[%s152 + $0xb7c] sm:$0xf]
                %645 = vst [vmem:[%s153 + $0x3d4] sm:$0xf] %v644
                %v646 = vld [vmem:[%s152 + $0xb88] sm:$0xf]
                %647 = vst [vmem:[%s153 + $0x3d8] sm:$0xf] %v646
                %v648 = vld [vmem:[%s152 + $0xb94] sm:$0xf]
                %649 = vst [vmem:[%s153 + $0x3dc] sm:$0xf] %v648
                %v650 = vld [vmem:[%s152 + $0xba0] sm:$0xf]
                %651 = vst [vmem:[%s153 + $0x3e0] sm:$0xf] %v650
                %v652 = vld [vmem:[%s152 + $0xbac] sm:$0xf]
                %653 = vst [vmem:[%s153 + $0x3e4] sm:$0xf] %v652
                %v654 = vld [vmem:[%s152 + $0xbb8] sm:$0xf]
                %655 = vst [vmem:[%s153 + $0x3e8] sm:$0xf] %v654
                %v656 = vld [vmem:[%s152 + $0xbc4] sm:$0xf]
                %657 = vst [vmem:[%s153 + $0x3ec] sm:$0xf] %v656
                %v658 = vld [vmem:[%s152 + $0xbd0] sm:$0xf]
                %659 = vst [vmem:[%s153 + $0x3f0] sm:$0xf] %v658
                %v660 = vld [vmem:[%s152 + $0xbdc] sm:$0xf]
                %661 = vst [vmem:[%s153 + $0x3f4] sm:$0xf] %v660
                %v662 = vld [vmem:[%s152 + $0xbe8] sm:$0xf]
                %663 = vst [vmem:[%s153 + $0x3f8] sm:$0xf] %v662
                %v664 = vld [vmem:[%s152 + $0xbf4] sm:$0xf]
                %665 = vst [vmem:[%s153 + $0x3fc] sm:$0xf] %v664
              $region41: #{_forward_impl.5} parent=35 // loop_footer
                %s151 = sadd.s32 1, %s147
              $region42: #{_forward_impl.5} parent=35 // loop_footer_branch
                %146 = sbr.rel target = $region38
              $region43: #{_forward_impl.5} parent=35 // loop_exit
                _
            $region36: #{_forward_impl.5} parent=27 // pred_fallthru
              _
          $region28: #{_forward_impl.5} parent=23 // pred_fallthru
            _
          %1197 = vnop
        $region24: #{_forward_impl.5} parent=19 // pred_fallthru
          _
        // Predicated region
        $region62: #{_forward_impl.5} parent=19 // pred_check
          %p1198 = pneg %p76
        $region63: #{_forward_impl.5} parent=19 // pred_check_branch
          %1200 = sbr.rel (%p1198) target = $region65
        $region64: #{_forward_impl.5} parent=19 // pred_region
          %p1201 = scmp.lt.s32.totalorder %s9, 2
          %s1202 = scalar_select %p1201, %s9, 2
          %s1203 = scalar_lea.vmem %s2, %s1202
        $region65: #{_forward_impl.5} parent=19 // pred_fallthru
          _
      $region20: #{_forward_impl.5} parent=5 // pred_fallthru
        _
      %p1204 = scmp.le.s32.totalorder 1, %s9
      %p1205 = scmp.lt.s32.totalorder %s9, 4
      %p1206 = pnand %p1204, %p1205
      %p1207 = pneg %p1206
      // Predicated region
      $region66: #{_forward_impl.5} parent=5 // pred_check
        _
      $region67: #{_forward_impl.5} parent=5 // pred_check_branch
        %1209 = sbr.rel (%p1206) target = $region69
      $region68: #{_forward_impl.5} parent=5 // pred_region
        %s1210 = ssub.s32 %s9, 1
        %s1211 = sand.u32 %s43, 1
        %s1212 = sand.u32 %s43, 1
        %s1213 = smul.addr %s1212, 1024
        %s1214 = scalar_lea.vmem [#allocation2], %s1213
        // Predicated region
        $region70: #{_forward_impl.5} parent=68 // pred_check
          %p1215 = pneg %p56
        $region71: #{_forward_impl.5} parent=68 // pred_check_branch
          %1217 = sbr.rel (%p1215) target = $region73
        $region72: #{_forward_impl.5} parent=68 // pred_region
          _
        $region73: #{_forward_impl.5} parent=68 // pred_fallthru
          _
        %p1218 = pneg %p30
        %p1219 = pneg %p27
        %s1220 = sand.u32 %s43, 1
        %s1221 = sand.u32 %s43, 1
        %s1222 = smul.addr %s1221, 1024
        %s1223 = scalar_lea.vmem [#allocation2], %s1222
        %p1224 = pneg %p56
        %p1225 = pneg %p53
        %p1226 = scmp.lt.s32.totalorder %s14, 2
        %s1227 = scalar_select %p1226, %s14, 2
        %s1228 = scalar_lea.vmem %s2, %s1227
        %p1229 = pneg %p82
        %p1230 = pneg %p79
        %p1231 = pneg %p108
        %p1232 = pneg %p105
        %p1233 = scmp.lt.s32.totalorder %s14, 2
        %s1234 = scalar_select %p1233, %s14, 2
        %s1235 = smul.addr %s1234, 2
        %s1236 = scalar_lea.vmem %s3, %s1235
        %p1237 = scmp.lt.s32.totalorder %s14, 2
        %s1238 = scalar_select %p1237, %s14, 2
        %s1239 = scalar_lea.vmem %s2, %s1238
        %p1240 = scmp.lt.s32.totalorder %s14, 2
        %s1241 = scalar_select %p1240, %s14, 2
        %s1242 = smul.addr %s1241, 2
        %s1243 = scalar_lea.vmem %s3, %s1242
        %v1245 = vld [vmem:[%s0] sm:$0xff]
        %v1246 = vld [vmem:[%s0 + $0x8] sm:$0xff]
        %v1247 = vld [vmem:[%s1214] sm:$0xf]
        %v1248 = vld [vmem:[%s1214 + $0x4] sm:$0xf]
        %v1249 = vld [vmem:[%s1214 + $0x8] sm:$0xf]
        %v1250 = vld [vmem:[%s1214 + $0xc] sm:$0xf]
        %v1251 = vld [vmem:[%s1214 + $0x10] sm:$0xf]
        %v1252 = vld [vmem:[%s1214 + $0x14] sm:$0xf]
        %v1253 = vld [vmem:[%s1214 + $0x18] sm:$0xf]
        %v1254 = vld [vmem:[%s1214 + $0x1c] sm:$0xf]
        %v1255 = vld [vmem:[%s1214 + $0x20] sm:$0xf]
        %v1256 = vld [vmem:[%s1214 + $0x24] sm:$0xf]
        %v1257 = vld [vmem:[%s1214 + $0x28] sm:$0xf]
        %v1258 = vld [vmem:[%s1214 + $0x2c] sm:$0xf]
        %v1259 = vld [vmem:[%s1214 + $0x30] sm:$0xf]
        %v1260 = vld [vmem:[%s1214 + $0x34] sm:$0xf]
        %v1261 = vld [vmem:[%s1214 + $0x38] sm:$0xf]
        %v1262 = vld [vmem:[%s1214 + $0x3c] sm:$0xf]
        %v1263 = vld [vmem:[%s1214 + $0x40] sm:$0xf]
        %v1264 = vld [vmem:[%s1214 + $0x44] sm:$0xf]
        %v1265 = vld [vmem:[%s1214 + $0x48] sm:$0xf]
        %v1266 = vld [vmem:[%s1214 + $0x4c] sm:$0xf]
        %v1267 = vld [vmem:[%s1214 + $0x50] sm:$0xf]
        %v1268 = vld [vmem:[%s1214 + $0x54] sm:$0xf]
        %v1269 = vld [vmem:[%s1214 + $0x58] sm:$0xf]
        %v1270 = vld [vmem:[%s1214 + $0x5c] sm:$0xf]
        %v1271 = vld [vmem:[%s1214 + $0x60] sm:$0xf]
        %v1272 = vld [vmem:[%s1214 + $0x64] sm:$0xf]
        %v1273 = vld [vmem:[%s1214 + $0x68] sm:$0xf]
        %v1274 = vld [vmem:[%s1214 + $0x6c] sm:$0xf]
        %v1275 = vld [vmem:[%s1214 + $0x70] sm:$0xf]
        %v1276 = vld [vmem:[%s1214 + $0x74] sm:$0xf]
        %v1277 = vld [vmem:[%s1214 + $0x78] sm:$0xf]
        %v1278 = vld [vmem:[%s1214 + $0x7c] sm:$0xf]
        %v1279 = vld [vmem:[%s1214 + $0x80] sm:$0xf]
        %v1280 = vld [vmem:[%s1214 + $0x84] sm:$0xf]
        %v1281 = vld [vmem:[%s1214 + $0x88] sm:$0xf]
        %v1282 = vld [vmem:[%s1214 + $0x8c] sm:$0xf]
        %v1283 = vld [vmem:[%s1214 + $0x90] sm:$0xf]
        %v1284 = vld [vmem:[%s1214 + $0x94] sm:$0xf]
        %v1285 = vld [vmem:[%s1214 + $0x98] sm:$0xf]
        %v1286 = vld [vmem:[%s1214 + $0x9c] sm:$0xf]
        %v1287 = vld [vmem:[%s1214 + $0xa0] sm:$0xf]
        %v1288 = vld [vmem:[%s1214 + $0xa4] sm:$0xf]
        %v1289 = vld [vmem:[%s1214 + $0xa8] sm:$0xf]
        %v1290 = vld [vmem:[%s1214 + $0xac] sm:$0xf]
        %v1291 = vld [vmem:[%s1214 + $0xb0] sm:$0xf]
        %v1292 = vld [vmem:[%s1214 + $0xb4] sm:$0xf]
        %v1293 = vld [vmem:[%s1214 + $0xb8] sm:$0xf]
        %v1294 = vld [vmem:[%s1214 + $0xbc] sm:$0xf]
        %v1295 = vld [vmem:[%s1214 + $0xc0] sm:$0xf]
        %v1296 = vld [vmem:[%s1214 + $0xc4] sm:$0xf]
        %v1297 = vld [vmem:[%s1214 + $0xc8] sm:$0xf]
        %v1298 = vld [vmem:[%s1214 + $0xcc] sm:$0xf]
        %v1299 = vld [vmem:[%s1214 + $0xd0] sm:$0xf]
        %v1300 = vld [vmem:[%s1214 + $0xd4] sm:$0xf]
        %v1301 = vld [vmem:[%s1214 + $0xd8] sm:$0xf]
        %v1302 = vld [vmem:[%s1214 + $0xdc] sm:$0xf]
        %v1303 = vld [vmem:[%s1214 + $0xe0] sm:$0xf]
        %v1304 = vld [vmem:[%s1214 + $0xe4] sm:$0xf]
        %v1305 = vld [vmem:[%s1214 + $0xe8] sm:$0xf]
        %v1306 = vld [vmem:[%s1214 + $0xec] sm:$0xf]
        %v1307 = vld [vmem:[%s1214 + $0xf0] sm:$0xf]
        %v1308 = vld [vmem:[%s1214 + $0xf4] sm:$0xf]
        %v1309 = vld [vmem:[%s1214 + $0xf8] sm:$0xf]
        %v1310 = vld [vmem:[%s1214 + $0xfc] sm:$0xf]
        %v1311 = vld [vmem:[%s1214 + $0x100] sm:$0xf]
        %v1312 = vld [vmem:[%s1214 + $0x104] sm:$0xf]
        %v1313 = vld [vmem:[%s1214 + $0x108] sm:$0xf]
        %v1314 = vld [vmem:[%s1214 + $0x10c] sm:$0xf]
        %v1315 = vld [vmem:[%s1214 + $0x110] sm:$0xf]
        %v1316 = vld [vmem:[%s1214 + $0x114] sm:$0xf]
        %v1317 = vld [vmem:[%s1214 + $0x118] sm:$0xf]
        %v1318 = vld [vmem:[%s1214 + $0x11c] sm:$0xf]
        %v1319 = vld [vmem:[%s1214 + $0x120] sm:$0xf]
        %v1320 = vld [vmem:[%s1214 + $0x124] sm:$0xf]
        %v1321 = vld [vmem:[%s1214 + $0x128] sm:$0xf]
        %v1322 = vld [vmem:[%s1214 + $0x12c] sm:$0xf]
        %v1323 = vld [vmem:[%s1214 + $0x130] sm:$0xf]
        %v1324 = vld [vmem:[%s1214 + $0x134] sm:$0xf]
        %v1325 = vld [vmem:[%s1214 + $0x138] sm:$0xf]
        %v1326 = vld [vmem:[%s1214 + $0x13c] sm:$0xf]
        %v1327 = vld [vmem:[%s1214 + $0x140] sm:$0xf]
        %v1328 = vld [vmem:[%s1214 + $0x144] sm:$0xf]
        %v1329 = vld [vmem:[%s1214 + $0x148] sm:$0xf]
        %v1330 = vld [vmem:[%s1214 + $0x14c] sm:$0xf]
        %v1331 = vld [vmem:[%s1214 + $0x150] sm:$0xf]
        %v1332 = vld [vmem:[%s1214 + $0x154] sm:$0xf]
        %v1333 = vld [vmem:[%s1214 + $0x158] sm:$0xf]
        %v1334 = vld [vmem:[%s1214 + $0x15c] sm:$0xf]
        %v1335 = vld [vmem:[%s1214 + $0x160] sm:$0xf]
        %v1336 = vld [vmem:[%s1214 + $0x164] sm:$0xf]
        %v1337 = vld [vmem:[%s1214 + $0x168] sm:$0xf]
        %v1338 = vld [vmem:[%s1214 + $0x16c] sm:$0xf]
        %v1339 = vld [vmem:[%s1214 + $0x170] sm:$0xf]
        %v1340 = vld [vmem:[%s1214 + $0x174] sm:$0xf]
        %v1341 = vld [vmem:[%s1214 + $0x178] sm:$0xf]
        %v1342 = vld [vmem:[%s1214 + $0x17c] sm:$0xf]
        %v1343 = vld [vmem:[%s1214 + $0x180] sm:$0xf]
        %v1344 = vld [vmem:[%s1214 + $0x184] sm:$0xf]
        %v1345 = vld [vmem:[%s1214 + $0x188] sm:$0xf]
        %v1346 = vld [vmem:[%s1214 + $0x18c] sm:$0xf]
        %v1347 = vld [vmem:[%s1214 + $0x190] sm:$0xf]
        %v1348 = vld [vmem:[%s1214 + $0x194] sm:$0xf]
        %v1349 = vld [vmem:[%s1214 + $0x198] sm:$0xf]
        %v1350 = vld [vmem:[%s1214 + $0x19c] sm:$0xf]
        %v1351 = vld [vmem:[%s1214 + $0x1a0] sm:$0xf]
        %v1352 = vld [vmem:[%s1214 + $0x1a4] sm:$0xf]
        %v1353 = vld [vmem:[%s1214 + $0x1a8] sm:$0xf]
        %v1354 = vld [vmem:[%s1214 + $0x1ac] sm:$0xf]
        %v1355 = vld [vmem:[%s1214 + $0x1b0] sm:$0xf]
        %v1356 = vld [vmem:[%s1214 + $0x1b4] sm:$0xf]
        %v1357 = vld [vmem:[%s1214 + $0x1b8] sm:$0xf]
        %v1358 = vld [vmem:[%s1214 + $0x1bc] sm:$0xf]
        %v1359 = vld [vmem:[%s1214 + $0x1c0] sm:$0xf]
        %v1360 = vld [vmem:[%s1214 + $0x1c4] sm:$0xf]
        %v1361 = vld [vmem:[%s1214 + $0x1c8] sm:$0xf]
        %v1362 = vld [vmem:[%s1214 + $0x1cc] sm:$0xf]
        %v1363 = vld [vmem:[%s1214 + $0x1d0] sm:$0xf]
        %v1364 = vld [vmem:[%s1214 + $0x1d4] sm:$0xf]
        %v1365 = vld [vmem:[%s1214 + $0x1d8] sm:$0xf]
        %v1366 = vld [vmem:[%s1214 + $0x1dc] sm:$0xf]
        %v1367 = vld [vmem:[%s1214 + $0x1e0] sm:$0xf]
        %v1368 = vld [vmem:[%s1214 + $0x1e4] sm:$0xf]
        %v1369 = vld [vmem:[%s1214 + $0x1e8] sm:$0xf]
        %v1370 = vld [vmem:[%s1214 + $0x1ec] sm:$0xf]
        %v1371 = vld [vmem:[%s1214 + $0x1f0] sm:$0xf]
        %v1372 = vld [vmem:[%s1214 + $0x1f4] sm:$0xf]
        %v1373 = vld [vmem:[%s1214 + $0x1f8] sm:$0xf]
        %v1374 = vld [vmem:[%s1214 + $0x1fc] sm:$0xf]
        %v1375 = vld [vmem:[%s1214 + $0x200] sm:$0xf]
        %v1376 = vld [vmem:[%s1214 + $0x204] sm:$0xf]
        %v1377 = vld [vmem:[%s1214 + $0x208] sm:$0xf]
        %v1378 = vld [vmem:[%s1214 + $0x20c] sm:$0xf]
        %v1379 = vld [vmem:[%s1214 + $0x210] sm:$0xf]
        %v1380 = vld [vmem:[%s1214 + $0x214] sm:$0xf]
        %v1381 = vld [vmem:[%s1214 + $0x218] sm:$0xf]
        %v1382 = vld [vmem:[%s1214 + $0x21c] sm:$0xf]
        %v1383 = vld [vmem:[%s1214 + $0x220] sm:$0xf]
        %v1384 = vld [vmem:[%s1214 + $0x224] sm:$0xf]
        %v1385 = vld [vmem:[%s1214 + $0x228] sm:$0xf]
        %v1386 = vld [vmem:[%s1214 + $0x22c] sm:$0xf]
        %v1387 = vld [vmem:[%s1214 + $0x230] sm:$0xf]
        %v1388 = vld [vmem:[%s1214 + $0x234] sm:$0xf]
        %v1389 = vld [vmem:[%s1214 + $0x238] sm:$0xf]
        %v1390 = vld [vmem:[%s1214 + $0x23c] sm:$0xf]
        %v1391 = vld [vmem:[%s1214 + $0x240] sm:$0xf]
        %v1392 = vld [vmem:[%s1214 + $0x244] sm:$0xf]
        %v1393 = vld [vmem:[%s1214 + $0x248] sm:$0xf]
        %v1394 = vld [vmem:[%s1214 + $0x24c] sm:$0xf]
        %v1395 = vld [vmem:[%s1214 + $0x250] sm:$0xf]
        %v1396 = vld [vmem:[%s1214 + $0x254] sm:$0xf]
        %v1397 = vld [vmem:[%s1214 + $0x258] sm:$0xf]
        %v1398 = vld [vmem:[%s1214 + $0x25c] sm:$0xf]
        %v1399 = vld [vmem:[%s1214 + $0x260] sm:$0xf]
        %v1400 = vld [vmem:[%s1214 + $0x264] sm:$0xf]
        %v1401 = vld [vmem:[%s1214 + $0x268] sm:$0xf]
        %v1402 = vld [vmem:[%s1214 + $0x26c] sm:$0xf]
        %v1403 = vld [vmem:[%s1214 + $0x270] sm:$0xf]
        %v1404 = vld [vmem:[%s1214 + $0x274] sm:$0xf]
        %v1405 = vld [vmem:[%s1214 + $0x278] sm:$0xf]
        %v1406 = vld [vmem:[%s1214 + $0x27c] sm:$0xf]
        %v1407 = vld [vmem:[%s1214 + $0x280] sm:$0xf]
        %v1408 = vld [vmem:[%s1214 + $0x284] sm:$0xf]
        %v1409 = vld [vmem:[%s1214 + $0x288] sm:$0xf]
        %v1410 = vld [vmem:[%s1214 + $0x28c] sm:$0xf]
        %v1411 = vld [vmem:[%s1214 + $0x290] sm:$0xf]
        %v1412 = vld [vmem:[%s1214 + $0x294] sm:$0xf]
        %v1413 = vld [vmem:[%s1214 + $0x298] sm:$0xf]
        %v1414 = vld [vmem:[%s1214 + $0x29c] sm:$0xf]
        %v1415 = vld [vmem:[%s1214 + $0x2a0] sm:$0xf]
        %v1416 = vld [vmem:[%s1214 + $0x2a4] sm:$0xf]
        %v1417 = vld [vmem:[%s1214 + $0x2a8] sm:$0xf]
        %v1418 = vld [vmem:[%s1214 + $0x2ac] sm:$0xf]
        %v1419 = vld [vmem:[%s1214 + $0x2b0] sm:$0xf]
        %v1420 = vld [vmem:[%s1214 + $0x2b4] sm:$0xf]
        %v1421 = vld [vmem:[%s1214 + $0x2b8] sm:$0xf]
        %v1422 = vld [vmem:[%s1214 + $0x2bc] sm:$0xf]
        %v1423 = vld [vmem:[%s1214 + $0x2c0] sm:$0xf]
        %v1424 = vld [vmem:[%s1214 + $0x2c4] sm:$0xf]
        %v1425 = vld [vmem:[%s1214 + $0x2c8] sm:$0xf]
        %v1426 = vld [vmem:[%s1214 + $0x2cc] sm:$0xf]
        %v1427 = vld [vmem:[%s1214 + $0x2d0] sm:$0xf]
        %v1428 = vld [vmem:[%s1214 + $0x2d4] sm:$0xf]
        %v1429 = vld [vmem:[%s1214 + $0x2d8] sm:$0xf]
        %v1430 = vld [vmem:[%s1214 + $0x2dc] sm:$0xf]
        %v1431 = vld [vmem:[%s1214 + $0x2e0] sm:$0xf]
        %v1432 = vld [vmem:[%s1214 + $0x2e4] sm:$0xf]
        %v1433 = vld [vmem:[%s1214 + $0x2e8] sm:$0xf]
        %v1434 = vld [vmem:[%s1214 + $0x2ec] sm:$0xf]
        %v1435 = vld [vmem:[%s1214 + $0x2f0] sm:$0xf]
        %v1436 = vld [vmem:[%s1214 + $0x2f4] sm:$0xf]
        %v1437 = vld [vmem:[%s1214 + $0x2f8] sm:$0xf]
        %v1438 = vld [vmem:[%s1214 + $0x2fc] sm:$0xf]
        %v1439 = vld [vmem:[%s1214 + $0x300] sm:$0xf]
        %v1440 = vld [vmem:[%s1214 + $0x304] sm:$0xf]
        %v1441 = vld [vmem:[%s1214 + $0x308] sm:$0xf]
        %v1442 = vld [vmem:[%s1214 + $0x30c] sm:$0xf]
        %v1443 = vld [vmem:[%s1214 + $0x310] sm:$0xf]
        %v1444 = vld [vmem:[%s1214 + $0x314] sm:$0xf]
        %v1445 = vld [vmem:[%s1214 + $0x318] sm:$0xf]
        %v1446 = vld [vmem:[%s1214 + $0x31c] sm:$0xf]
        %v1447 = vld [vmem:[%s1214 + $0x320] sm:$0xf]
        %v1448 = vld [vmem:[%s1214 + $0x324] sm:$0xf]
        %v1449 = vld [vmem:[%s1214 + $0x328] sm:$0xf]
        %v1450 = vld [vmem:[%s1214 + $0x32c] sm:$0xf]
        %v1451 = vld [vmem:[%s1214 + $0x330] sm:$0xf]
        %v1452 = vld [vmem:[%s1214 + $0x334] sm:$0xf]
        %v1453 = vld [vmem:[%s1214 + $0x338] sm:$0xf]
        %v1454 = vld [vmem:[%s1214 + $0x33c] sm:$0xf]
        %v1455 = vld [vmem:[%s1214 + $0x340] sm:$0xf]
        %v1456 = vld [vmem:[%s1214 + $0x344] sm:$0xf]
        %v1457 = vld [vmem:[%s1214 + $0x348] sm:$0xf]
        %v1458 = vld [vmem:[%s1214 + $0x34c] sm:$0xf]
        %v1459 = vld [vmem:[%s1214 + $0x350] sm:$0xf]
        %v1460 = vld [vmem:[%s1214 + $0x354] sm:$0xf]
        %v1461 = vld [vmem:[%s1214 + $0x358] sm:$0xf]
        %v1462 = vld [vmem:[%s1214 + $0x35c] sm:$0xf]
        %v1463 = vld [vmem:[%s1214 + $0x360] sm:$0xf]
        %v1464 = vld [vmem:[%s1214 + $0x364] sm:$0xf]
        %v1465 = vld [vmem:[%s1214 + $0x368] sm:$0xf]
        %v1466 = vld [vmem:[%s1214 + $0x36c] sm:$0xf]
        %v1467 = vld [vmem:[%s1214 + $0x370] sm:$0xf]
        %v1468 = vld [vmem:[%s1214 + $0x374] sm:$0xf]
        %v1469 = vld [vmem:[%s1214 + $0x378] sm:$0xf]
        %v1470 = vld [vmem:[%s1214 + $0x37c] sm:$0xf]
        %v1471 = vld [vmem:[%s1214 + $0x380] sm:$0xf]
        %v1472 = vld [vmem:[%s1214 + $0x384] sm:$0xf]
        %v1473 = vld [vmem:[%s1214 + $0x388] sm:$0xf]
        %v1474 = vld [vmem:[%s1214 + $0x38c] sm:$0xf]
        %v1475 = vld [vmem:[%s1214 + $0x390] sm:$0xf]
        %v1476 = vld [vmem:[%s1214 + $0x394] sm:$0xf]
        %v1477 = vld [vmem:[%s1214 + $0x398] sm:$0xf]
        %v1478 = vld [vmem:[%s1214 + $0x39c] sm:$0xf]
        %v1479 = vld [vmem:[%s1214 + $0x3a0] sm:$0xf]
        %v1480 = vld [vmem:[%s1214 + $0x3a4] sm:$0xf]
        %v1481 = vld [vmem:[%s1214 + $0x3a8] sm:$0xf]
        %v1482 = vld [vmem:[%s1214 + $0x3ac] sm:$0xf]
        %v1483 = vld [vmem:[%s1214 + $0x3b0] sm:$0xf]
        %v1484 = vld [vmem:[%s1214 + $0x3b4] sm:$0xf]
        %v1485 = vld [vmem:[%s1214 + $0x3b8] sm:$0xf]
        %v1486 = vld [vmem:[%s1214 + $0x3bc] sm:$0xf]
        %v1487 = vld [vmem:[%s1214 + $0x3c0] sm:$0xf]
        %v1488 = vld [vmem:[%s1214 + $0x3c4] sm:$0xf]
        %v1489 = vld [vmem:[%s1214 + $0x3c8] sm:$0xf]
        %v1490 = vld [vmem:[%s1214 + $0x3cc] sm:$0xf]
        %v1491 = vld [vmem:[%s1214 + $0x3d0] sm:$0xf]
        %v1492 = vld [vmem:[%s1214 + $0x3d4] sm:$0xf]
        %v1493 = vld [vmem:[%s1214 + $0x3d8] sm:$0xf]
        %v1494 = vld [vmem:[%s1214 + $0x3dc] sm:$0xf]
        %v1495 = vld [vmem:[%s1214 + $0x3e0] sm:$0xf]
        %v1496 = vld [vmem:[%s1214 + $0x3e4] sm:$0xf]
        %v1497 = vld [vmem:[%s1214 + $0x3e8] sm:$0xf]
        %v1498 = vld [vmem:[%s1214 + $0x3ec] sm:$0xf]
        %v1499 = vld [vmem:[%s1214 + $0x3f0] sm:$0xf]
        %v1500 = vld [vmem:[%s1214 + $0x3f4] sm:$0xf]
        %v1501 = vld [vmem:[%s1214 + $0x3f8] sm:$0xf]
        %v1502 = vld [vmem:[%s1214 + $0x3fc] sm:$0xf]
        %v1503 = vld [vmem:[%s1239] sm:$0x1]
        %v1505 = vlaneseq
        %v1506 = vshrl.u32 %v1505, 7
        %v1507 = vsub.s32 0, %v1506
        %v1508 = vrot.slane %v1503, %v1507
        %v1512 = vcombine.high %v1245, %v1245
        %v1514 = vunpack.c.l.s4 1966171168
        %v1515 = vunpack.c.0.s8 %v1514
        %v1516 = vlaneseq
        %v1517 = vshrl.u32 %v1516, 7
        %v1518 = vsub.s32 %v1515, %v1517
        %v1519 = vrot.slane %v1245, %v1518
        %v1521 = vunpack.c.l.s4 1966171168
        %v1522 = vunpack.c.0.s8 %v1521
        %v1523 = vlaneseq
        %v1524 = vshrl.u32 %v1523, 7
        %v1525 = vsub.s32 %v1522, %v1524
        %v1526 = vrot.slane %v1512, %v1525
        %v1527 = vcombine.high %v1519, %v1519
        %v1528 = vcombine.high %v1526, %v1526
        %v1530 = vunpack.c.l.s4 1966171168
        %v1531 = vunpack.c.0.s8 %v1530
        %v1532 = vlaneseq
        %v1533 = vshrl.u32 %v1532, 7
        %v1534 = vsub.s32 %v1531, %v1533
        %v1535 = vrot.slane %v1519, %v1534
        %v1537 = vunpack.c.l.s4 1966171168
        %v1538 = vunpack.c.0.s8 %v1537
        %v1539 = vlaneseq
        %v1540 = vshrl.u32 %v1539, 7
        %v1541 = vsub.s32 %v1538, %v1540
        %v1542 = vrot.slane %v1526, %v1541
        %v1544 = vunpack.c.l.s4 1966171168
        %v1545 = vunpack.c.0.s8 %v1544
        %v1546 = vlaneseq
        %v1547 = vshrl.u32 %v1546, 7
        %v1548 = vsub.s32 %v1545, %v1547
        %v1549 = vrot.slane %v1527, %v1548
        %v1551 = vunpack.c.l.s4 1966171168
        %v1552 = vunpack.c.0.s8 %v1551
        %v1553 = vlaneseq
        %v1554 = vshrl.u32 %v1553, 7
        %v1555 = vsub.s32 %v1552, %v1554
        %v1556 = vrot.slane %v1528, %v1555
        %v1557 = vcombine.high %v1535, %v1535
        %v1558 = vcombine.high %v1542, %v1542
        %v1559 = vcombine.high %v1549, %v1549
        %v1560 = vcombine.high %v1556, %v1556
        %v1561 = vcombine.high %v1246, %v1246
        %v1563 = vunpack.c.l.s4 1966171168
        %v1564 = vunpack.c.0.s8 %v1563
        %v1565 = vlaneseq
        %v1566 = vshrl.u32 %v1565, 7
        %v1567 = vsub.s32 %v1564, %v1566
        %v1568 = vrot.slane %v1246, %v1567
        %v1570 = vunpack.c.l.s4 1966171168
        %v1571 = vunpack.c.0.s8 %v1570
        %v1572 = vlaneseq
        %v1573 = vshrl.u32 %v1572, 7
        %v1574 = vsub.s32 %v1571, %v1573
        %v1575 = vrot.slane %v1561, %v1574
        %v1576 = vcombine.high %v1568, %v1568
        %v1577 = vcombine.high %v1575, %v1575
        %v1579 = vunpack.c.l.s4 1966171168
        %v1580 = vunpack.c.0.s8 %v1579
        %v1581 = vlaneseq
        %v1582 = vshrl.u32 %v1581, 7
        %v1583 = vsub.s32 %v1580, %v1582
        %v1584 = vrot.slane %v1568, %v1583
        %v1586 = vunpack.c.l.s4 1966171168
        %v1587 = vunpack.c.0.s8 %v1586
        %v1588 = vlaneseq
        %v1589 = vshrl.u32 %v1588, 7
        %v1590 = vsub.s32 %v1587, %v1589
        %v1591 = vrot.slane %v1575, %v1590
        %v1593 = vunpack.c.l.s4 1966171168
        %v1594 = vunpack.c.0.s8 %v1593
        %v1595 = vlaneseq
        %v1596 = vshrl.u32 %v1595, 7
        %v1597 = vsub.s32 %v1594, %v1596
        %v1598 = vrot.slane %v1576, %v1597
        %v1600 = vunpack.c.l.s4 1966171168
        %v1601 = vunpack.c.0.s8 %v1600
        %v1602 = vlaneseq
        %v1603 = vshrl.u32 %v1602, 7
        %v1604 = vsub.s32 %v1601, %v1603
        %v1605 = vrot.slane %v1577, %v1604
        %v1606 = vcombine.high %v1584, %v1584
        %v1607 = vcombine.high %v1591, %v1591
        %v1608 = vcombine.high %v1598, %v1598
        %v1609 = vcombine.high %v1605, %v1605
        %v1882 = vunpack.c.l.b16 %v1247
        %v1883 = vunpack.c.l.b16 %v1248
        %v1884 = vunpack.c.l.b16 %v1249
        %v1885 = vunpack.c.l.b16 %v1250
        %v1886 = vunpack.c.l.b16 %v1251
        %v1887 = vunpack.c.l.b16 %v1252
        %v1888 = vunpack.c.l.b16 %v1253
        %v1889 = vunpack.c.l.b16 %v1254
        %v1890 = vunpack.c.l.b16 %v1255
        %v1891 = vunpack.c.l.b16 %v1256
        %v1892 = vunpack.c.l.b16 %v1257
        %v1893 = vunpack.c.l.b16 %v1258
        %v1894 = vunpack.c.l.b16 %v1259
        %v1895 = vunpack.c.l.b16 %v1260
        %v1896 = vunpack.c.l.b16 %v1261
        %v1897 = vunpack.c.l.b16 %v1262
        %v1898 = vunpack.c.l.b16 %v1263
        %v1899 = vunpack.c.l.b16 %v1264
        %v1900 = vunpack.c.l.b16 %v1265
        %v1901 = vunpack.c.l.b16 %v1266
        %v1902 = vunpack.c.l.b16 %v1267
        %v1903 = vunpack.c.l.b16 %v1268
        %v1904 = vunpack.c.l.b16 %v1269
        %v1905 = vunpack.c.l.b16 %v1270
        %v1906 = vunpack.c.l.b16 %v1271
        %v1907 = vunpack.c.l.b16 %v1272
        %v1908 = vunpack.c.l.b16 %v1273
        %v1909 = vunpack.c.l.b16 %v1274
        %v1910 = vunpack.c.l.b16 %v1275
        %v1911 = vunpack.c.l.b16 %v1276
        %v1912 = vunpack.c.l.b16 %v1277
        %v1913 = vunpack.c.l.b16 %v1278
        %v1914 = vunpack.c.l.b16 %v1279
        %v1915 = vunpack.c.l.b16 %v1280
        %v1916 = vunpack.c.l.b16 %v1281
        %v1917 = vunpack.c.l.b16 %v1282
        %v1918 = vunpack.c.l.b16 %v1283
        %v1919 = vunpack.c.l.b16 %v1284
        %v1920 = vunpack.c.l.b16 %v1285
        %v1921 = vunpack.c.l.b16 %v1286
        %v1922 = vunpack.c.l.b16 %v1287
        %v1923 = vunpack.c.l.b16 %v1288
        %v1924 = vunpack.c.l.b16 %v1289
        %v1925 = vunpack.c.l.b16 %v1290
        %v1926 = vunpack.c.l.b16 %v1291
        %v1927 = vunpack.c.l.b16 %v1292
        %v1928 = vunpack.c.l.b16 %v1293
        %v1929 = vunpack.c.l.b16 %v1294
        %v1930 = vunpack.c.l.b16 %v1295
        %v1931 = vunpack.c.l.b16 %v1296
        %v1932 = vunpack.c.l.b16 %v1297
        %v1933 = vunpack.c.l.b16 %v1298
        %v1934 = vunpack.c.l.b16 %v1299
        %v1935 = vunpack.c.l.b16 %v1300
        %v1936 = vunpack.c.l.b16 %v1301
        %v1937 = vunpack.c.l.b16 %v1302
        %v1938 = vunpack.c.l.b16 %v1303
        %v1939 = vunpack.c.l.b16 %v1304
        %v1940 = vunpack.c.l.b16 %v1305
        %v1941 = vunpack.c.l.b16 %v1306
        %v1942 = vunpack.c.l.b16 %v1307
        %v1943 = vunpack.c.l.b16 %v1308
        %v1944 = vunpack.c.l.b16 %v1309
        %v1945 = vunpack.c.l.b16 %v1310
        %v1946 = vunpack.c.l.b16 %v1311
        %v1947 = vunpack.c.l.b16 %v1312
        %v1948 = vunpack.c.l.b16 %v1313
        %v1949 = vunpack.c.l.b16 %v1314
        %v1950 = vunpack.c.l.b16 %v1315
        %v1951 = vunpack.c.l.b16 %v1316
        %v1952 = vunpack.c.l.b16 %v1317
        %v1953 = vunpack.c.l.b16 %v1318
        %v1954 = vunpack.c.l.b16 %v1319
        %v1955 = vunpack.c.l.b16 %v1320
        %v1956 = vunpack.c.l.b16 %v1321
        %v1957 = vunpack.c.l.b16 %v1322
        %v1958 = vunpack.c.l.b16 %v1323
        %v1959 = vunpack.c.l.b16 %v1324
        %v1960 = vunpack.c.l.b16 %v1325
        %v1961 = vunpack.c.l.b16 %v1326
        %v1962 = vunpack.c.l.b16 %v1327
        %v1963 = vunpack.c.l.b16 %v1328
        %v1964 = vunpack.c.l.b16 %v1329
        %v1965 = vunpack.c.l.b16 %v1330
        %v1966 = vunpack.c.l.b16 %v1331
        %v1967 = vunpack.c.l.b16 %v1332
        %v1968 = vunpack.c.l.b16 %v1333
        %v1969 = vunpack.c.l.b16 %v1334
        %v1970 = vunpack.c.l.b16 %v1335
        %v1971 = vunpack.c.l.b16 %v1336
        %v1972 = vunpack.c.l.b16 %v1337
        %v1973 = vunpack.c.l.b16 %v1338
        %v1974 = vunpack.c.l.b16 %v1339
        %v1975 = vunpack.c.l.b16 %v1340
        %v1976 = vunpack.c.l.b16 %v1341
        %v1977 = vunpack.c.l.b16 %v1342
        %v1978 = vunpack.c.l.b16 %v1343
        %v1979 = vunpack.c.l.b16 %v1344
        %v1980 = vunpack.c.l.b16 %v1345
        %v1981 = vunpack.c.l.b16 %v1346
        %v1982 = vunpack.c.l.b16 %v1347
        %v1983 = vunpack.c.l.b16 %v1348
        %v1984 = vunpack.c.l.b16 %v1349
        %v1985 = vunpack.c.l.b16 %v1350
        %v1986 = vunpack.c.l.b16 %v1351
        %v1987 = vunpack.c.l.b16 %v1352
        %v1988 = vunpack.c.l.b16 %v1353
        %v1989 = vunpack.c.l.b16 %v1354
        %v1990 = vunpack.c.l.b16 %v1355
        %v1991 = vunpack.c.l.b16 %v1356
        %v1992 = vunpack.c.l.b16 %v1357
        %v1993 = vunpack.c.l.b16 %v1358
        %v1994 = vunpack.c.l.b16 %v1359
        %v1995 = vunpack.c.l.b16 %v1360
        %v1996 = vunpack.c.l.b16 %v1361
        %v1997 = vunpack.c.l.b16 %v1362
        %v1998 = vunpack.c.l.b16 %v1363
        %v1999 = vunpack.c.l.b16 %v1364
        %v2000 = vunpack.c.l.b16 %v1365
        %v2001 = vunpack.c.l.b16 %v1366
        %v2002 = vunpack.c.l.b16 %v1367
        %v2003 = vunpack.c.l.b16 %v1368
        %v2004 = vunpack.c.l.b16 %v1369
        %v2005 = vunpack.c.l.b16 %v1370
        %v2006 = vunpack.c.l.b16 %v1371
        %v2007 = vunpack.c.l.b16 %v1372
        %v2008 = vunpack.c.l.b16 %v1373
        %v2009 = vunpack.c.l.b16 %v1374
        %v2010 = vunpack.c.l.b16 %v1375
        %v2011 = vunpack.c.l.b16 %v1376
        %v2012 = vunpack.c.l.b16 %v1377
        %v2013 = vunpack.c.l.b16 %v1378
        %v2014 = vunpack.c.l.b16 %v1379
        %v2015 = vunpack.c.l.b16 %v1380
        %v2016 = vunpack.c.l.b16 %v1381
        %v2017 = vunpack.c.l.b16 %v1382
        %v2018 = vunpack.c.l.b16 %v1383
        %v2019 = vunpack.c.l.b16 %v1384
        %v2020 = vunpack.c.l.b16 %v1385
        %v2021 = vunpack.c.l.b16 %v1386
        %v2022 = vunpack.c.l.b16 %v1387
        %v2023 = vunpack.c.l.b16 %v1388
        %v2024 = vunpack.c.l.b16 %v1389
        %v2025 = vunpack.c.l.b16 %v1390
        %v2026 = vunpack.c.l.b16 %v1391
        %v2027 = vunpack.c.l.b16 %v1392
        %v2028 = vunpack.c.l.b16 %v1393
        %v2029 = vunpack.c.l.b16 %v1394
        %v2030 = vunpack.c.l.b16 %v1395
        %v2031 = vunpack.c.l.b16 %v1396
        %v2032 = vunpack.c.l.b16 %v1397
        %v2033 = vunpack.c.l.b16 %v1398
        %v2034 = vunpack.c.l.b16 %v1399
        %v2035 = vunpack.c.l.b16 %v1400
        %v2036 = vunpack.c.l.b16 %v1401
        %v2037 = vunpack.c.l.b16 %v1402
        %v2038 = vunpack.c.l.b16 %v1403
        %v2039 = vunpack.c.l.b16 %v1404
        %v2040 = vunpack.c.l.b16 %v1405
        %v2041 = vunpack.c.l.b16 %v1406
        %v2042 = vunpack.c.l.b16 %v1407
        %v2043 = vunpack.c.l.b16 %v1408
        %v2044 = vunpack.c.l.b16 %v1409
        %v2045 = vunpack.c.l.b16 %v1410
        %v2046 = vunpack.c.l.b16 %v1411
        %v2047 = vunpack.c.l.b16 %v1412
        %v2048 = vunpack.c.l.b16 %v1413
        %v2049 = vunpack.c.l.b16 %v1414
        %v2050 = vunpack.c.l.b16 %v1415
        %v2051 = vunpack.c.l.b16 %v1416
        %v2052 = vunpack.c.l.b16 %v1417
        %v2053 = vunpack.c.l.b16 %v1418
        %v2054 = vunpack.c.l.b16 %v1419
        %v2055 = vunpack.c.l.b16 %v1420
        %v2056 = vunpack.c.l.b16 %v1421
        %v2057 = vunpack.c.l.b16 %v1422
        %v2058 = vunpack.c.l.b16 %v1423
        %v2059 = vunpack.c.l.b16 %v1424
        %v2060 = vunpack.c.l.b16 %v1425
        %v2061 = vunpack.c.l.b16 %v1426
        %v2062 = vunpack.c.l.b16 %v1427
        %v2063 = vunpack.c.l.b16 %v1428
        %v2064 = vunpack.c.l.b16 %v1429
        %v2065 = vunpack.c.l.b16 %v1430
        %v2066 = vunpack.c.l.b16 %v1431
        %v2067 = vunpack.c.l.b16 %v1432
        %v2068 = vunpack.c.l.b16 %v1433
        %v2069 = vunpack.c.l.b16 %v1434
        %v2070 = vunpack.c.l.b16 %v1435
        %v2071 = vunpack.c.l.b16 %v1436
        %v2072 = vunpack.c.l.b16 %v1437
        %v2073 = vunpack.c.l.b16 %v1438
        %v2074 = vunpack.c.l.b16 %v1439
        %v2075 = vunpack.c.l.b16 %v1440
        %v2076 = vunpack.c.l.b16 %v1441
        %v2077 = vunpack.c.l.b16 %v1442
        %v2078 = vunpack.c.l.b16 %v1443
        %v2079 = vunpack.c.l.b16 %v1444
        %v2080 = vunpack.c.l.b16 %v1445
        %v2081 = vunpack.c.l.b16 %v1446
        %v2082 = vunpack.c.l.b16 %v1447
        %v2083 = vunpack.c.l.b16 %v1448
        %v2084 = vunpack.c.l.b16 %v1449
        %v2085 = vunpack.c.l.b16 %v1450
        %v2086 = vunpack.c.l.b16 %v1451
        %v2087 = vunpack.c.l.b16 %v1452
        %v2088 = vunpack.c.l.b16 %v1453
        %v2089 = vunpack.c.l.b16 %v1454
        %v2090 = vunpack.c.l.b16 %v1455
        %v2091 = vunpack.c.l.b16 %v1456
        %v2092 = vunpack.c.l.b16 %v1457
        %v2093 = vunpack.c.l.b16 %v1458
        %v2094 = vunpack.c.l.b16 %v1459
        %v2095 = vunpack.c.l.b16 %v1460
        %v2096 = vunpack.c.l.b16 %v1461
        %v2097 = vunpack.c.l.b16 %v1462
        %v2098 = vunpack.c.l.b16 %v1463
        %v2099 = vunpack.c.l.b16 %v1464
        %v2100 = vunpack.c.l.b16 %v1465
        %v2101 = vunpack.c.l.b16 %v1466
        %v2102 = vunpack.c.l.b16 %v1467
        %v2103 = vunpack.c.l.b16 %v1468
        %v2104 = vunpack.c.l.b16 %v1469
        %v2105 = vunpack.c.l.b16 %v1470
        %v2106 = vunpack.c.l.b16 %v1471
        %v2107 = vunpack.c.l.b16 %v1472
        %v2108 = vunpack.c.l.b16 %v1473
        %v2109 = vunpack.c.l.b16 %v1474
        %v2110 = vunpack.c.l.b16 %v1475
        %v2111 = vunpack.c.l.b16 %v1476
        %v2112 = vunpack.c.l.b16 %v1477
        %v2113 = vunpack.c.l.b16 %v1478
        %v2114 = vunpack.c.l.b16 %v1479
        %v2115 = vunpack.c.l.b16 %v1480
        %v2116 = vunpack.c.l.b16 %v1481
        %v2117 = vunpack.c.l.b16 %v1482
        %v2118 = vunpack.c.l.b16 %v1483
        %v2119 = vunpack.c.l.b16 %v1484
        %v2120 = vunpack.c.l.b16 %v1485
        %v2121 = vunpack.c.l.b16 %v1486
        %v2122 = vunpack.c.l.b16 %v1487
        %v2123 = vunpack.c.l.b16 %v1488
        %v2124 = vunpack.c.l.b16 %v1489
        %v2125 = vunpack.c.l.b16 %v1490
        %v2126 = vunpack.c.l.b16 %v1491
        %v2127 = vunpack.c.l.b16 %v1492
        %v2128 = vunpack.c.l.b16 %v1493
        %v2129 = vunpack.c.l.b16 %v1494
        %v2130 = vunpack.c.l.b16 %v1495
        %v2131 = vunpack.c.l.b16 %v1496
        %v2132 = vunpack.c.l.b16 %v1497
        %v2133 = vunpack.c.l.b16 %v1498
        %v2134 = vunpack.c.l.b16 %v1499
        %v2135 = vunpack.c.l.b16 %v1500
        %v2136 = vunpack.c.l.b16 %v1501
        %v2137 = vunpack.c.l.b16 %v1502
        %v2138 = vpack.c.b16 %v1883, %v1882
        %v2139 = vpack.c.b16 %v1885, %v1884
        %v2140 = vpack.c.b16 %v1887, %v1886
        %v2141 = vpack.c.b16 %v1889, %v1888
        %v2142 = vpack.c.b16 %v1891, %v1890
        %v2143 = vpack.c.b16 %v1893, %v1892
        %v2144 = vpack.c.b16 %v1895, %v1894
        %v2145 = vpack.c.b16 %v1897, %v1896
        %v2146 = vpack.c.b16 %v1899, %v1898
        %v2147 = vpack.c.b16 %v1901, %v1900
        %v2148 = vpack.c.b16 %v1903, %v1902
        %v2149 = vpack.c.b16 %v1905, %v1904
        %v2150 = vpack.c.b16 %v1907, %v1906
        %v2151 = vpack.c.b16 %v1909, %v1908
        %v2152 = vpack.c.b16 %v1911, %v1910
        %v2153 = vpack.c.b16 %v1913, %v1912
        %v2154 = vpack.c.b16 %v1915, %v1914
        %v2155 = vpack.c.b16 %v1917, %v1916
        %v2156 = vpack.c.b16 %v1919, %v1918
        %v2157 = vpack.c.b16 %v1921, %v1920
        %v2158 = vpack.c.b16 %v1923, %v1922
        %v2159 = vpack.c.b16 %v1925, %v1924
        %v2160 = vpack.c.b16 %v1927, %v1926
        %v2161 = vpack.c.b16 %v1929, %v1928
        %v2162 = vpack.c.b16 %v1931, %v1930
        %v2163 = vpack.c.b16 %v1933, %v1932
        %v2164 = vpack.c.b16 %v1935, %v1934
        %v2165 = vpack.c.b16 %v1937, %v1936
        %v2166 = vpack.c.b16 %v1939, %v1938
        %v2167 = vpack.c.b16 %v1941, %v1940
        %v2168 = vpack.c.b16 %v1943, %v1942
        %v2169 = vpack.c.b16 %v1945, %v1944
        %v2170 = vpack.c.b16 %v1947, %v1946
        %v2171 = vpack.c.b16 %v1949, %v1948
        %v2172 = vpack.c.b16 %v1951, %v1950
        %v2173 = vpack.c.b16 %v1953, %v1952
        %v2174 = vpack.c.b16 %v1955, %v1954
        %v2175 = vpack.c.b16 %v1957, %v1956
        %v2176 = vpack.c.b16 %v1959, %v1958
        %v2177 = vpack.c.b16 %v1961, %v1960
        %v2178 = vpack.c.b16 %v1963, %v1962
        %v2179 = vpack.c.b16 %v1965, %v1964
        %v2180 = vpack.c.b16 %v1967, %v1966
        %v2181 = vpack.c.b16 %v1969, %v1968
        %v2182 = vpack.c.b16 %v1971, %v1970
        %v2183 = vpack.c.b16 %v1973, %v1972
        %v2184 = vpack.c.b16 %v1975, %v1974
        %v2185 = vpack.c.b16 %v1977, %v1976
        %v2186 = vpack.c.b16 %v1979, %v1978
        %v2187 = vpack.c.b16 %v1981, %v1980
        %v2188 = vpack.c.b16 %v1983, %v1982
        %v2189 = vpack.c.b16 %v1985, %v1984
        %v2190 = vpack.c.b16 %v1987, %v1986
        %v2191 = vpack.c.b16 %v1989, %v1988
        %v2192 = vpack.c.b16 %v1991, %v1990
        %v2193 = vpack.c.b16 %v1993, %v1992
        %v2194 = vpack.c.b16 %v1995, %v1994
        %v2195 = vpack.c.b16 %v1997, %v1996
        %v2196 = vpack.c.b16 %v1999, %v1998
        %v2197 = vpack.c.b16 %v2001, %v2000
        %v2198 = vpack.c.b16 %v2003, %v2002
        %v2199 = vpack.c.b16 %v2005, %v2004
        %v2200 = vpack.c.b16 %v2007, %v2006
        %v2201 = vpack.c.b16 %v2009, %v2008
        %v2202 = vpack.c.b16 %v2011, %v2010
        %v2203 = vpack.c.b16 %v2013, %v2012
        %v2204 = vpack.c.b16 %v2015, %v2014
        %v2205 = vpack.c.b16 %v2017, %v2016
        %v2206 = vpack.c.b16 %v2019, %v2018
        %v2207 = vpack.c.b16 %v2021, %v2020
        %v2208 = vpack.c.b16 %v2023, %v2022
        %v2209 = vpack.c.b16 %v2025, %v2024
        %v2210 = vpack.c.b16 %v2027, %v2026
        %v2211 = vpack.c.b16 %v2029, %v2028
        %v2212 = vpack.c.b16 %v2031, %v2030
        %v2213 = vpack.c.b16 %v2033, %v2032
        %v2214 = vpack.c.b16 %v2035, %v2034
        %v2215 = vpack.c.b16 %v2037, %v2036
        %v2216 = vpack.c.b16 %v2039, %v2038
        %v2217 = vpack.c.b16 %v2041, %v2040
        %v2218 = vpack.c.b16 %v2043, %v2042
        %v2219 = vpack.c.b16 %v2045, %v2044
        %v2220 = vpack.c.b16 %v2047, %v2046
        %v2221 = vpack.c.b16 %v2049, %v2048
        %v2222 = vpack.c.b16 %v2051, %v2050
        %v2223 = vpack.c.b16 %v2053, %v2052
        %v2224 = vpack.c.b16 %v2055, %v2054
        %v2225 = vpack.c.b16 %v2057, %v2056
        %v2226 = vpack.c.b16 %v2059, %v2058
        %v2227 = vpack.c.b16 %v2061, %v2060
        %v2228 = vpack.c.b16 %v2063, %v2062
        %v2229 = vpack.c.b16 %v2065, %v2064
        %v2230 = vpack.c.b16 %v2067, %v2066
        %v2231 = vpack.c.b16 %v2069, %v2068
        %v2232 = vpack.c.b16 %v2071, %v2070
        %v2233 = vpack.c.b16 %v2073, %v2072
        %v2234 = vpack.c.b16 %v2075, %v2074
        %v2235 = vpack.c.b16 %v2077, %v2076
        %v2236 = vpack.c.b16 %v2079, %v2078
        %v2237 = vpack.c.b16 %v2081, %v2080
        %v2238 = vpack.c.b16 %v2083, %v2082
        %v2239 = vpack.c.b16 %v2085, %v2084
        %v2240 = vpack.c.b16 %v2087, %v2086
        %v2241 = vpack.c.b16 %v2089, %v2088
        %v2242 = vpack.c.b16 %v2091, %v2090
        %v2243 = vpack.c.b16 %v2093, %v2092
        %v2244 = vpack.c.b16 %v2095, %v2094
        %v2245 = vpack.c.b16 %v2097, %v2096
        %v2246 = vpack.c.b16 %v2099, %v2098
        %v2247 = vpack.c.b16 %v2101, %v2100
        %v2248 = vpack.c.b16 %v2103, %v2102
        %v2249 = vpack.c.b16 %v2105, %v2104
        %v2250 = vpack.c.b16 %v2107, %v2106
        %v2251 = vpack.c.b16 %v2109, %v2108
        %v2252 = vpack.c.b16 %v2111, %v2110
        %v2253 = vpack.c.b16 %v2113, %v2112
        %v2254 = vpack.c.b16 %v2115, %v2114
        %v2255 = vpack.c.b16 %v2117, %v2116
        %v2256 = vpack.c.b16 %v2119, %v2118
        %v2257 = vpack.c.b16 %v2121, %v2120
        %v2258 = vpack.c.b16 %v2123, %v2122
        %v2259 = vpack.c.b16 %v2125, %v2124
        %v2260 = vpack.c.b16 %v2127, %v2126
        %v2261 = vpack.c.b16 %v2129, %v2128
        %v2262 = vpack.c.b16 %v2131, %v2130
        %v2263 = vpack.c.b16 %v2133, %v2132
        %v2264 = vpack.c.b16 %v2135, %v2134
        %v2265 = vpack.c.b16 %v2137, %v2136
        %2394 = vmatprep.subr.bf16.mxu0 0
        %2395 = vmatpush1.bf16.msra.mxu0 %v2138
        %2396 = vmatprep.subr.bf16.mxu0 0
        %2397 = vmatpush1.bf16.msra.mxu0 %v2139
        %2398 = vmatprep.subr.bf16.mxu0 0
        %2399 = vmatpush1.bf16.msra.mxu0 %v2140
        %2400 = vmatprep.subr.bf16.mxu0 0
        %2401 = vmatpush1.bf16.msra.mxu0 %v2141
        %2402 = vmatprep.subr.bf16.mxu0 0
        %2403 = vmatpush1.bf16.msra.mxu0 %v2142
        %2404 = vmatprep.subr.bf16.mxu0 0
        %2405 = vmatpush1.bf16.msra.mxu0 %v2143
        %2406 = vmatprep.subr.bf16.mxu0 0
        %2407 = vmatpush1.bf16.msra.mxu0 %v2144
        %2408 = vmatprep.subr.bf16.mxu0 0
        %2409 = vmatpush1.bf16.msra.mxu0 %v2145
        %2410 = vmatprep.subr.bf16.mxu0 0
        %2411 = vmatpush1.bf16.msra.mxu0 %v2146
        %2412 = vmatprep.subr.bf16.mxu0 0
        %2413 = vmatpush1.bf16.msra.mxu0 %v2147
        %2414 = vmatprep.subr.bf16.mxu0 0
        %2415 = vmatpush1.bf16.msra.mxu0 %v2148
        %2416 = vmatprep.subr.bf16.mxu0 0
        %2417 = vmatpush1.bf16.msra.mxu0 %v2149
        %2418 = vmatprep.subr.bf16.mxu0 0
        %2419 = vmatpush1.bf16.msra.mxu0 %v2150
        %2420 = vmatprep.subr.bf16.mxu0 0
        %2421 = vmatpush1.bf16.msra.mxu0 %v2151
        %2422 = vmatprep.subr.bf16.mxu0 0
        %2423 = vmatpush1.bf16.msra.mxu0 %v2152
        %2424 = vmatprep.subr.bf16.mxu0 0
        %2425 = vmatpush1.bf16.msra.mxu0 %v2153
        %2426 = vmatprep.mubr.bf16.mxu0 %v1549
        %2427 = vmatmul.mubr.bf16.gmra.mrb[0].mxu0 %v1535
        %v2428 = vpop.f32.mrb[0].mxu0
        %v2429 = vadd.f32 %v1508, %v2428
        %v2430 = vpop.f32.mrb[0].mxu0
        %v2431 = vpop.f32.mrb[0].mxu0
        %v2432 = vpop.f32.mrb[0].mxu0
        %2433 = vdwg.mxu0
        %2434 = vmatprep.subr.bf16.mxu0 0
        %2435 = vmatpush1.bf16.msra.mxu0 %v2154
        %2436 = vmatprep.subr.bf16.mxu0 0
        %2437 = vmatpush1.bf16.msra.mxu0 %v2155
        %2438 = vmatprep.subr.bf16.mxu0 0
        %2439 = vmatpush1.bf16.msra.mxu0 %v2156
        %2440 = vmatprep.subr.bf16.mxu0 0
        %2441 = vmatpush1.bf16.msra.mxu0 %v2157
        %2442 = vmatprep.subr.bf16.mxu0 0
        %2443 = vmatpush1.bf16.msra.mxu0 %v2158
        %2444 = vmatprep.subr.bf16.mxu0 0
        %2445 = vmatpush1.bf16.msra.mxu0 %v2159
        %2446 = vmatprep.subr.bf16.mxu0 0
        %2447 = vmatpush1.bf16.msra.mxu0 %v2160
        %2448 = vmatprep.subr.bf16.mxu0 0
        %2449 = vmatpush1.bf16.msra.mxu0 %v2161
        %2450 = vmatprep.subr.bf16.mxu0 0
        %2451 = vmatpush1.bf16.msra.mxu0 %v2162
        %2452 = vmatprep.subr.bf16.mxu0 0
        %2453 = vmatpush1.bf16.msra.mxu0 %v2163
        %2454 = vmatprep.subr.bf16.mxu0 0
        %2455 = vmatpush1.bf16.msra.mxu0 %v2164
        %2456 = vmatprep.subr.bf16.mxu0 0
        %2457 = vmatpush1.bf16.msra.mxu0 %v2165
        %2458 = vmatprep.subr.bf16.mxu0 0
        %2459 = vmatpush1.bf16.msra.mxu0 %v2166
        %2460 = vmatprep.subr.bf16.mxu0 0
        %2461 = vmatpush1.bf16.msra.mxu0 %v2167
        %2462 = vmatprep.subr.bf16.mxu0 0
        %2463 = vmatpush1.bf16.msra.mxu0 %v2168
        %2464 = vmatprep.subr.bf16.mxu0 0
        %2465 = vmatpush1.bf16.msra.mxu0 %v2169
        %2466 = vmatprep.mubr.bf16.mxu0 %v1559
        %2467 = vmatmul.mubr.bf16.gmra.mrb[0].mxu0 %v1557
        %v2468 = vpop.f32.mrb[0].mxu0
        %v2469 = vadd.f32 %v2429, %v2468
        %v2470 = vpop.f32.mrb[0].mxu0
        %v2471 = vpop.f32.mrb[0].mxu0
        %v2472 = vpop.f32.mrb[0].mxu0
        %2473 = vdwg.mxu0
        %2474 = vmatprep.subr.bf16.mxu0 0
        %2475 = vmatpush1.bf16.msra.mxu0 %v2170
        %2476 = vmatprep.subr.bf16.mxu0 0
        %2477 = vmatpush1.bf16.msra.mxu0 %v2171
        %2478 = vmatprep.subr.bf16.mxu0 0
        %2479 = vmatpush1.bf16.msra.mxu0 %v2172
        %2480 = vmatprep.subr.bf16.mxu0 0
        %2481 = vmatpush1.bf16.msra.mxu0 %v2173
        %2482 = vmatprep.subr.bf16.mxu0 0
        %2483 = vmatpush1.bf16.msra.mxu0 %v2174
        %2484 = vmatprep.subr.bf16.mxu0 0
        %2485 = vmatpush1.bf16.msra.mxu0 %v2175
        %2486 = vmatprep.subr.bf16.mxu0 0
        %2487 = vmatpush1.bf16.msra.mxu0 %v2176
        %2488 = vmatprep.subr.bf16.mxu0 0
        %2489 = vmatpush1.bf16.msra.mxu0 %v2177
        %2490 = vmatprep.subr.bf16.mxu0 0
        %2491 = vmatpush1.bf16.msra.mxu0 %v2178
        %2492 = vmatprep.subr.bf16.mxu0 0
        %2493 = vmatpush1.bf16.msra.mxu0 %v2179
        %2494 = vmatprep.subr.bf16.mxu0 0
        %2495 = vmatpush1.bf16.msra.mxu0 %v2180
        %2496 = vmatprep.subr.bf16.mxu0 0
        %2497 = vmatpush1.bf16.msra.mxu0 %v2181
        %2498 = vmatprep.subr.bf16.mxu0 0
        %2499 = vmatpush1.bf16.msra.mxu0 %v2182
        %2500 = vmatprep.subr.bf16.mxu0 0
        %2501 = vmatpush1.bf16.msra.mxu0 %v2183
        %2502 = vmatprep.subr.bf16.mxu0 0
        %2503 = vmatpush1.bf16.msra.mxu0 %v2184
        %2504 = vmatprep.subr.bf16.mxu0 0
        %2505 = vmatpush1.bf16.msra.mxu0 %v2185
        %2506 = vmatprep.mubr.bf16.mxu0 %v1556
        %2507 = vmatmul.mubr.bf16.gmra.mrb[0].mxu0 %v1542
        %v2508 = vpop.f32.mrb[0].mxu0
        %v2509 = vadd.f32 %v2469, %v2508
        %v2510 = vpop.f32.mrb[0].mxu0
        %v2511 = vpop.f32.mrb[0].mxu0
        %v2512 = vpop.f32.mrb[0].mxu0
        %2513 = vdwg.mxu0
        %2514 = vmatprep.subr.bf16.mxu0 0
        %2515 = vmatpush1.bf16.msra.mxu0 %v2186
        %2516 = vmatprep.subr.bf16.mxu0 0
        %2517 = vmatpush1.bf16.msra.mxu0 %v2187
        %2518 = vmatprep.subr.bf16.mxu0 0
        %2519 = vmatpush1.bf16.msra.mxu0 %v2188
        %2520 = vmatprep.subr.bf16.mxu0 0
        %2521 = vmatpush1.bf16.msra.mxu0 %v2189
        %2522 = vmatprep.subr.bf16.mxu0 0
        %2523 = vmatpush1.bf16.msra.mxu0 %v2190
        %2524 = vmatprep.subr.bf16.mxu0 0
        %2525 = vmatpush1.bf16.msra.mxu0 %v2191
        %2526 = vmatprep.subr.bf16.mxu0 0
        %2527 = vmatpush1.bf16.msra.mxu0 %v2192
        %2528 = vmatprep.subr.bf16.mxu0 0
        %2529 = vmatpush1.bf16.msra.mxu0 %v2193
        %2530 = vmatprep.subr.bf16.mxu0 0
        %2531 = vmatpush1.bf16.msra.mxu0 %v2194
        %2532 = vmatprep.subr.bf16.mxu0 0
        %2533 = vmatpush1.bf16.msra.mxu0 %v2195
        %2534 = vmatprep.subr.bf16.mxu0 0
        %2535 = vmatpush1.bf16.msra.mxu0 %v2196
        %2536 = vmatprep.subr.bf16.mxu0 0
        %2537 = vmatpush1.bf16.msra.mxu0 %v2197
        %2538 = vmatprep.subr.bf16.mxu0 0
        %2539 = vmatpush1.bf16.msra.mxu0 %v2198
        %2540 = vmatprep.subr.bf16.mxu0 0
        %2541 = vmatpush1.bf16.msra.mxu0 %v2199
        %2542 = vmatprep.subr.bf16.mxu0 0
        %2543 = vmatpush1.bf16.msra.mxu0 %v2200
        %2544 = vmatprep.subr.bf16.mxu0 0
        %2545 = vmatpush1.bf16.msra.mxu0 %v2201
        %2546 = vmatprep.mubr.bf16.mxu0 %v1560
        %2547 = vmatmul.mubr.bf16.gmra.mrb[0].mxu0 %v1558
        %v2548 = vpop.f32.mrb[0].mxu0
        %v2549 = vadd.f32 %v2509, %v2548
        %v2550 = vpop.f32.mrb[0].mxu0
        %v2551 = vpop.f32.mrb[0].mxu0
        %v2552 = vpop.f32.mrb[0].mxu0
        %2553 = vdwg.mxu0
        %2554 = vmatprep.subr.bf16.mxu0 0
        %2555 = vmatpush1.bf16.msra.mxu0 %v2202
        %2556 = vmatprep.subr.bf16.mxu0 0
        %2557 = vmatpush1.bf16.msra.mxu0 %v2203
        %2558 = vmatprep.subr.bf16.mxu0 0
        %2559 = vmatpush1.bf16.msra.mxu0 %v2204
        %2560 = vmatprep.subr.bf16.mxu0 0
        %2561 = vmatpush1.bf16.msra.mxu0 %v2205
        %2562 = vmatprep.subr.bf16.mxu0 0
        %2563 = vmatpush1.bf16.msra.mxu0 %v2206
        %2564 = vmatprep.subr.bf16.mxu0 0
        %2565 = vmatpush1.bf16.msra.mxu0 %v2207
        %2566 = vmatprep.subr.bf16.mxu0 0
        %2567 = vmatpush1.bf16.msra.mxu0 %v2208
        %2568 = vmatprep.subr.bf16.mxu0 0
        %2569 = vmatpush1.bf16.msra.mxu0 %v2209
        %2570 = vmatprep.subr.bf16.mxu0 0
        %2571 = vmatpush1.bf16.msra.mxu0 %v2210
        %2572 = vmatprep.subr.bf16.mxu0 0
        %2573 = vmatpush1.bf16.msra.mxu0 %v2211
        %2574 = vmatprep.subr.bf16.mxu0 0
        %2575 = vmatpush1.bf16.msra.mxu0 %v2212
        %2576 = vmatprep.subr.bf16.mxu0 0
        %2577 = vmatpush1.bf16.msra.mxu0 %v2213
        %2578 = vmatprep.subr.bf16.mxu0 0
        %2579 = vmatpush1.bf16.msra.mxu0 %v2214
        %2580 = vmatprep.subr.bf16.mxu0 0
        %2581 = vmatpush1.bf16.msra.mxu0 %v2215
        %2582 = vmatprep.subr.bf16.mxu0 0
        %2583 = vmatpush1.bf16.msra.mxu0 %v2216
        %2584 = vmatprep.subr.bf16.mxu0 0
        %2585 = vmatpush1.bf16.msra.mxu0 %v2217
        %2586 = vmatprep.mubr.bf16.mxu0 %v1598
        %2587 = vmatmul.mubr.bf16.gmra.mrb[0].mxu0 %v1584
        %v2588 = vpop.f32.mrb[0].mxu0
        %v2589 = vadd.f32 %v2549, %v2588
        %v2590 = vpop.f32.mrb[0].mxu0
        %v2591 = vpop.f32.mrb[0].mxu0
        %v2592 = vpop.f32.mrb[0].mxu0
        %2593 = vdwg.mxu0
        %2594 = vmatprep.subr.bf16.mxu0 0
        %2595 = vmatpush1.bf16.msra.mxu0 %v2218
        %2596 = vmatprep.subr.bf16.mxu0 0
        %2597 = vmatpush1.bf16.msra.mxu0 %v2219
        %2598 = vmatprep.subr.bf16.mxu0 0
        %2599 = vmatpush1.bf16.msra.mxu0 %v2220
        %2600 = vmatprep.subr.bf16.mxu0 0
        %2601 = vmatpush1.bf16.msra.mxu0 %v2221
        %2602 = vmatprep.subr.bf16.mxu0 0
        %2603 = vmatpush1.bf16.msra.mxu0 %v2222
        %2604 = vmatprep.subr.bf16.mxu0 0
        %2605 = vmatpush1.bf16.msra.mxu0 %v2223
        %2606 = vmatprep.subr.bf16.mxu0 0
        %2607 = vmatpush1.bf16.msra.mxu0 %v2224
        %2608 = vmatprep.subr.bf16.mxu0 0
        %2609 = vmatpush1.bf16.msra.mxu0 %v2225
        %2610 = vmatprep.subr.bf16.mxu0 0
        %2611 = vmatpush1.bf16.msra.mxu0 %v2226
        %2612 = vmatprep.subr.bf16.mxu0 0
        %2613 = vmatpush1.bf16.msra.mxu0 %v2227
        %2614 = vmatprep.subr.bf16.mxu0 0
        %2615 = vmatpush1.bf16.msra.mxu0 %v2228
        %2616 = vmatprep.subr.bf16.mxu0 0
        %2617 = vmatpush1.bf16.msra.mxu0 %v2229
        %2618 = vmatprep.subr.bf16.mxu0 0
        %2619 = vmatpush1.bf16.msra.mxu0 %v2230
        %2620 = vmatprep.subr.bf16.mxu0 0
        %2621 = vmatpush1.bf16.msra.mxu0 %v2231
        %2622 = vmatprep.subr.bf16.mxu0 0
        %2623 = vmatpush1.bf16.msra.mxu0 %v2232
        %2624 = vmatprep.subr.bf16.mxu0 0
        %2625 = vmatpush1.bf16.msra.mxu0 %v2233
        %2626 = vmatprep.mubr.bf16.mxu0 %v1608
        %2627 = vmatmul.mubr.bf16.gmra.mrb[0].mxu0 %v1606
        %v2628 = vpop.f32.mrb[0].mxu0
        %v2629 = vadd.f32 %v2589, %v2628
        %v2630 = vpop.f32.mrb[0].mxu0
        %v2631 = vpop.f32.mrb[0].mxu0
        %v2632 = vpop.f32.mrb[0].mxu0
        %2633 = vdwg.mxu0
        %2634 = vmatprep.subr.bf16.mxu0 0
        %2635 = vmatpush1.bf16.msra.mxu0 %v2234
        %2636 = vmatprep.subr.bf16.mxu0 0
        %2637 = vmatpush1.bf16.msra.mxu0 %v2235
        %2638 = vmatprep.subr.bf16.mxu0 0
        %2639 = vmatpush1.bf16.msra.mxu0 %v2236
        %2640 = vmatprep.subr.bf16.mxu0 0
        %2641 = vmatpush1.bf16.msra.mxu0 %v2237
        %2642 = vmatprep.subr.bf16.mxu0 0
        %2643 = vmatpush1.bf16.msra.mxu0 %v2238
        %2644 = vmatprep.subr.bf16.mxu0 0
        %2645 = vmatpush1.bf16.msra.mxu0 %v2239
        %2646 = vmatprep.subr.bf16.mxu0 0
        %2647 = vmatpush1.bf16.msra.mxu0 %v2240
        %2648 = vmatprep.subr.bf16.mxu0 0
        %2649 = vmatpush1.bf16.msra.mxu0 %v2241
        %2650 = vmatprep.subr.bf16.mxu0 0
        %2651 = vmatpush1.bf16.msra.mxu0 %v2242
        %2652 = vmatprep.subr.bf16.mxu0 0
        %2653 = vmatpush1.bf16.msra.mxu0 %v2243
        %2654 = vmatprep.subr.bf16.mxu0 0
        %2655 = vmatpush1.bf16.msra.mxu0 %v2244
        %2656 = vmatprep.subr.bf16.mxu0 0
        %2657 = vmatpush1.bf16.msra.mxu0 %v2245
        %2658 = vmatprep.subr.bf16.mxu0 0
        %2659 = vmatpush1.bf16.msra.mxu0 %v2246
        %2660 = vmatprep.subr.bf16.mxu0 0
        %2661 = vmatpush1.bf16.msra.mxu0 %v2247
        %2662 = vmatprep.subr.bf16.mxu0 0
        %2663 = vmatpush1.bf16.msra.mxu0 %v2248
        %2664 = vmatprep.subr.bf16.mxu0 0
        %2665 = vmatpush1.bf16.msra.mxu0 %v2249
        %2666 = vmatprep.mubr.bf16.mxu0 %v1605
        %2667 = vmatmul.mubr.bf16.gmra.mrb[0].mxu0 %v1591
        %v2668 = vpop.f32.mrb[0].mxu0
        %v2669 = vadd.f32 %v2629, %v2668
        %v2670 = vpop.f32.mrb[0].mxu0
        %v2671 = vpop.f32.mrb[0].mxu0
        %v2672 = vpop.f32.mrb[0].mxu0
        %2673 = vdwg.mxu0
        %2674 = vmatprep.subr.bf16.mxu0 0
        %2675 = vmatpush1.bf16.msra.mxu0 %v2250
        %2676 = vmatprep.subr.bf16.mxu0 0
        %2677 = vmatpush1.bf16.msra.mxu0 %v2251
        %2678 = vmatprep.subr.bf16.mxu0 0
        %2679 = vmatpush1.bf16.msra.mxu0 %v2252
        %2680 = vmatprep.subr.bf16.mxu0 0
        %2681 = vmatpush1.bf16.msra.mxu0 %v2253
        %2682 = vmatprep.subr.bf16.mxu0 0
        %2683 = vmatpush1.bf16.msra.mxu0 %v2254
        %2684 = vmatprep.subr.bf16.mxu0 0
        %2685 = vmatpush1.bf16.msra.mxu0 %v2255
        %2686 = vmatprep.subr.bf16.mxu0 0
        %2687 = vmatpush1.bf16.msra.mxu0 %v2256
        %2688 = vmatprep.subr.bf16.mxu0 0
        %2689 = vmatpush1.bf16.msra.mxu0 %v2257
        %2690 = vmatprep.subr.bf16.mxu0 0
        %2691 = vmatpush1.bf16.msra.mxu0 %v2258
        %2692 = vmatprep.subr.bf16.mxu0 0
        %2693 = vmatpush1.bf16.msra.mxu0 %v2259
        %2694 = vmatprep.subr.bf16.mxu0 0
        %2695 = vmatpush1.bf16.msra.mxu0 %v2260
        %2696 = vmatprep.subr.bf16.mxu0 0
        %2697 = vmatpush1.bf16.msra.mxu0 %v2261
        %2698 = vmatprep.subr.bf16.mxu0 0
        %2699 = vmatpush1.bf16.msra.mxu0 %v2262
        %2700 = vmatprep.subr.bf16.mxu0 0
        %2701 = vmatpush1.bf16.msra.mxu0 %v2263
        %2702 = vmatprep.subr.bf16.mxu0 0
        %2703 = vmatpush1.bf16.msra.mxu0 %v2264
        %2704 = vmatprep.subr.bf16.mxu0 0
        %2705 = vmatpush1.bf16.msra.mxu0 %v2265
        %2706 = vmatprep.mubr.bf16.mxu0 %v1609
        %2707 = vmatmul.mubr.bf16.gmra.mrb[0].mxu0 %v1607
        %v2708 = vpop.f32.mrb[0].mxu0
        %v2709 = vadd.f32 %v2669, %v2708
        %v2710 = vpop.f32.mrb[0].mxu0
        %v2711 = vpop.f32.mrb[0].mxu0
        %v2712 = vpop.f32.mrb[0].mxu0
        %2713 = vdwg.mxu0
        %2714 = vst [vmem:[%s1243] sm:$0x3] %v2709
        %p2715 = scmp.lt.s32.totalorder %s14, 2
        %s2716 = scalar_select %p2715, %s14, 2
        %s2717 = smul.addr %s2716, 2
        %s2718 = scalar_lea.vmem %s3, %s2717
        // Predicated region
        $region74: #{_forward_impl.5} parent=68 // pred_check
          %p2719 = pneg %p105
        $region75: #{_forward_impl.5} parent=68 // pred_check_branch
          %2721 = sbr.rel (%p2719) target = $region77
        $region76: #{_forward_impl.5} parent=68 // pred_region
          _
        $region77: #{_forward_impl.5} parent=68 // pred_fallthru
          _
      $region69: #{_forward_impl.5} parent=5 // pred_fallthru
        _
      %p2722 = scmp.le.s32.totalorder 2, %s9
      // Predicated region
      $region78: #{_forward_impl.5} parent=5 // pred_check
        %p2723 = pneg %p2722
      $region79: #{_forward_impl.5} parent=5 // pred_check_branch
        %2725 = sbr.rel (%p2723) target = $region81
      $region80: #{_forward_impl.5} parent=5 // pred_region
        %s2726 = ssub.s32 %s9, 2
        // Predicated region
        $region82: #{_forward_impl.5} parent=80 // pred_check
          %p2727 = pneg %p111
        $region83: #{_forward_impl.5} parent=80 // pred_check_branch
          %2729 = sbr.rel (%p2727) target = $region85
        $region84: #{_forward_impl.5} parent=80 // pred_region
          %p2730 = scmp.lt.s32.totalorder %s15, 2
          %s2731 = scalar_select %p2730, %s15, 2
          %s2732 = smul.addr %s2731, 2
          %s2733 = scalar_lea.vmem %s3, %s2732
        $region85: #{_forward_impl.5} parent=80 // pred_fallthru
          _
      $region81: #{_forward_impl.5} parent=5 // pred_fallthru
        _
    $region6: #{_forward_impl.5} parent=1 // loop_footer
      %s13 = sadd.s32 1, %s9
    $region7: #{_forward_impl.5} parent=1 // loop_footer_branch
      %8 = sbr.rel target = $region3
    $region8: #{_forward_impl.5} parent=1 // loop_exit
      _

// kernel: _forward_impl.4
$region0: #{_forward_impl.4}
  #allocation0 [shape = 'u32[]', space=smem, size = 0x4, offset = 0x4, fixed_abs, tag = 'smem constant byte address 0x4 - core index']
  #allocation1 [shape = 'u32[144,128]{1,0:T(1,128)}', space=vmem, size = 0x12000, scoped, tag = 'internal scratch']
  %s0 = inlined_call_operand.vmem [shape: f32[2,2048], index: 0, kind: input, shape index: {}]
  %s1 = inlined_call_operand.hbm [shape: bf16[2048,128], index: 1, kind: input, shape index: {}]
  %s2 = inlined_call_operand.vmem [shape: f32[1,128], index: 2, kind: input, shape index: {}]
  %s3 = inlined_call_operand.vmem [shape: f32[1,128], index: 3, kind: input, shape index: {}]
  %s4 = inlined_call_operand.vmem [shape: f32[1,128], index: 4, kind: input, shape index: {}]
  %s5 = inlined_call_operand.hbm [shape: bf16[128,2048], index: 5, kind: input, shape index: {}]
  %s6 = inlined_call_operand.vmem [shape: f32[1,2048], index: 6, kind: input, shape index: {}]
  %s7 = inlined_call_operand.vmem [shape: f32[1,2048], index: 7, kind: input, shape index: {}]
  %s8 = inlined_call_operand.vmem [shape: f32[1,2048], index: 8, kind: input, shape index: {}]
  %s9 = inlined_call_operand.hbm [shape: f32[2,128], index: 9, kind: output, shape index: {0}]
  %s10 = inlined_call_operand.vmem [shape: bf16[2,2048], index: 10, kind: output, shape index: {1}]
  %11 = xla_tuple %s9, %s10
  %s12 = sld [smem:[#allocation0]]
  $region62: #{_forward_impl.4} parent=0
    _
  %s14 = ssub.s32 1, %s12
  %s15 = scalar_select 0, %s14, %s12
  $region1: #{_forward_impl.4} parent=0
    #allocation2 [shape = 'u8[524288]{0}', space=vmem, size = 0x80000, scoped, tag = 'input window, operand 1, single buffered']
    #allocation3 [shape = 's32[1]{0}', space=sflag, size = 0x4, scoped, tag = 'scoped memory for _forward_impl.4']
    #allocation4 [shape = 's32[1]{0}', space=sflag, size = 0x4, scoped, tag = 'scoped memory for _forward_impl.4']
    #allocation5 [shape = 'u8[524288]{0}', space=vmem, size = 0x80000, scoped, tag = 'input window, operand 5, single buffered']
    #allocation6 [shape = 's32[1]{0}', space=sflag, size = 0x4, scoped, tag = 'scoped memory for _forward_impl.4']
    #allocation7 [shape = 'u8[1024]{0}', space=vmem, size = 0x400, scoped, tag = 'output window, operand 0, single buffered']
    %16 = vsyncpa [#allocation3], 0
    %17 = vsyncpa [#allocation6], 0
    %18 = vsyncpa [#allocation4], 0
    // Predicated region
    $region2: #{_forward_impl.4} parent=1 // pred_check
      _
    $region3: #{_forward_impl.4} parent=1 // pred_check_branch
      %20 = sbr.rel (0) target = $region5
    $region4: #{_forward_impl.4} parent=1 // pred_region
      _
    $region5: #{_forward_impl.4} parent=1 // pred_fallthru
      _
    // Predicated region
    $region6: #{_forward_impl.4} parent=1 // pred_check
      _
    $region7: #{_forward_impl.4} parent=1 // pred_check_branch
      %22 = sbr.rel (0) target = $region9
    $region8: #{_forward_impl.4} parent=1 // pred_region
      %s24 = ssub.s32 16384, 16384
      %25 = vsyncadd [#allocation3], %s24
      %s26 = sshll.u32 [#allocation2], 4
      %s27 = int_to_ptr.vmem [resolvable:$true] %s26
      %32 = dma.hbm_to_vmem [thread:$0]  %s1, 16384, %s27, [#allocation3], 64, 64, 4
    $region9: #{_forward_impl.4} parent=1 // pred_fallthru
      _
    // Predicated region
    $region10: #{_forward_impl.4} parent=1 // pred_check
      _
    $region11: #{_forward_impl.4} parent=1 // pred_check_branch
      %34 = sbr.rel (0) target = $region13
    $region12: #{_forward_impl.4} parent=1 // pred_region
      _
    $region13: #{_forward_impl.4} parent=1 // pred_fallthru
      _
    // Predicated region
    $region14: #{_forward_impl.4} parent=1 // pred_check
      _
    $region15: #{_forward_impl.4} parent=1 // pred_check_branch
      %36 = sbr.rel (0) target = $region17
    $region16: #{_forward_impl.4} parent=1 // pred_region
      _
    $region17: #{_forward_impl.4} parent=1 // pred_fallthru
      _
    // Predicated region
    $region18: #{_forward_impl.4} parent=1 // pred_check
      _
    $region19: #{_forward_impl.4} parent=1 // pred_check_branch
      %38 = sbr.rel (0) target = $region21
    $region20: #{_forward_impl.4} parent=1 // pred_region
      _
    $region21: #{_forward_impl.4} parent=1 // pred_fallthru
      _
    // Predicated region
    $region22: #{_forward_impl.4} parent=1 // pred_check
      _
    $region23: #{_forward_impl.4} parent=1 // pred_check_branch
      %40 = sbr.rel (0) target = $region25
    $region24: #{_forward_impl.4} parent=1 // pred_region
      %s42 = ssub.s32 16384, 16384
      %43 = vsyncadd [#allocation6], %s42
      %s44 = sshll.u32 [#allocation5], 4
      %s45 = int_to_ptr.vmem [resolvable:$true] %s44
      %50 = dma.hbm_to_vmem [thread:$0]  %s5, 16384, %s45, [#allocation6], 1024, 1024, 64
    $region25: #{_forward_impl.4} parent=1 // pred_fallthru
      _
    // Predicated region
    $region26: #{_forward_impl.4} parent=1 // pred_check
      _
    $region27: #{_forward_impl.4} parent=1 // pred_check_branch
      %52 = sbr.rel (0) target = $region29
    $region28: #{_forward_impl.4} parent=1 // pred_region
      _
    $region29: #{_forward_impl.4} parent=1 // pred_fallthru
      _
    // Predicated region
    $region30: #{_forward_impl.4} parent=1 // pred_check
      _
    $region31: #{_forward_impl.4} parent=1 // pred_check_branch
      %54 = sbr.rel (0) target = $region33
    $region32: #{_forward_impl.4} parent=1 // pred_region
      _
    $region33: #{_forward_impl.4} parent=1 // pred_fallthru
      _
    // Predicated region
    $region34: #{_forward_impl.4} parent=1 // pred_check
      _
    $region35: #{_forward_impl.4} parent=1 // pred_check_branch
      %56 = sbr.rel (0) target = $region37
    $region36: #{_forward_impl.4} parent=1 // pred_region
      _
    $region37: #{_forward_impl.4} parent=1 // pred_fallthru
      _
    // Predicated region
    $region38: #{_forward_impl.4} parent=1 // pred_check
      _
    $region39: #{_forward_impl.4} parent=1 // pred_check_branch
      %58 = sbr.rel (0) target = $region41
    $region40: #{_forward_impl.4} parent=1 // pred_region
      %59 = dma.done [#allocation3], 16384
    $region41: #{_forward_impl.4} parent=1 // pred_fallthru
      _
    // Predicated region
    $region42: #{_forward_impl.4} parent=1 // pred_check
      _
    $region43: #{_forward_impl.4} parent=1 // pred_check_branch
      %61 = sbr.rel (0) target = $region45
    $region44: #{_forward_impl.4} parent=1 // pred_region
      %62 = dma.done [#allocation6], 16384
    $region45: #{_forward_impl.4} parent=1 // pred_fallthru
      _
    %v64 = vld [vmem:[%s0] sm:$0xff]
    %v65 = vld [vmem:[%s0 + $0x8] sm:$0xff]
    %v66 = vld [vmem:[%s0 + $0x10] sm:$0xff]
    %v67 = vld [vmem:[%s0 + $0x18] sm:$0xff]
    %v72 = vcombine.high %v64, %v64
    %v74 = vunpack.c.l.s4 1983009808
    %v75 = vunpack.c.0.s8 %v74
    %v76 = vlaneseq
    %v77 = vshrl.u32 %v76, 7
    %v78 = vsub.s32 %v75, %v77
    %v79 = vrot.slane %v64, %v78
    %v81 = vunpack.c.l.s4 1983009808
    %v82 = vunpack.c.0.s8 %v81
    %v83 = vlaneseq
    %v84 = vshrl.u32 %v83, 7
    %v85 = vsub.s32 %v82, %v84
    %v86 = vrot.slane %v72, %v85
    %v87 = vcombine.high %v79, %v79
    %v88 = vcombine.high %v86, %v86
    %v89 = vcombine.high %v65, %v65
    %v91 = vunpack.c.l.s4 1983009808
    %v92 = vunpack.c.0.s8 %v91
    %v93 = vlaneseq
    %v94 = vshrl.u32 %v93, 7
    %v95 = vsub.s32 %v92, %v94
    %v96 = vrot.slane %v65, %v95
    %v98 = vunpack.c.l.s4 1983009808
    %v99 = vunpack.c.0.s8 %v98
    %v100 = vlaneseq
    %v101 = vshrl.u32 %v100, 7
    %v102 = vsub.s32 %v99, %v101
    %v103 = vrot.slane %v89, %v102
    %v104 = vcombine.high %v96, %v96
    %v105 = vcombine.high %v103, %v103
    %v106 = vcombine.high %v66, %v66
    %v108 = vunpack.c.l.s4 1983009808
    %v109 = vunpack.c.0.s8 %v108
    %v110 = vlaneseq
    %v111 = vshrl.u32 %v110, 7
    %v112 = vsub.s32 %v109, %v111
    %v113 = vrot.slane %v66, %v112
    %v115 = vunpack.c.l.s4 1983009808
    %v116 = vunpack.c.0.s8 %v115
    %v117 = vlaneseq
    %v118 = vshrl.u32 %v117, 7
    %v119 = vsub.s32 %v116, %v118
    %v120 = vrot.slane %v106, %v119
    %v121 = vcombine.high %v113, %v113
    %v122 = vcombine.high %v120, %v120
    %v123 = vcombine.high %v67, %v67
    %v125 = vunpack.c.l.s4 1983009808
    %v126 = vunpack.c.0.s8 %v125
    %v127 = vlaneseq
    %v128 = vshrl.u32 %v127, 7
    %v129 = vsub.s32 %v126, %v128
    %v130 = vrot.slane %v67, %v129
    %v132 = vunpack.c.l.s4 1983009808
    %v133 = vunpack.c.0.s8 %v132
    %v134 = vlaneseq
    %v135 = vshrl.u32 %v134, 7
    %v136 = vsub.s32 %v133, %v135
    %v137 = vrot.slane %v123, %v136
    %v138 = vcombine.high %v130, %v130
    %v139 = vcombine.high %v137, %v137
    %v156 = vpack.c.bf16 %v79, %v79
    %v157 = vpack.c.bf16 %v87, %v87
    %v158 = vpack.c.bf16 %v86, %v86
    %v159 = vpack.c.bf16 %v88, %v88
    %v160 = vpack.c.bf16 %v96, %v96
    %v161 = vpack.c.bf16 %v104, %v104
    %v162 = vpack.c.bf16 %v103, %v103
    %v163 = vpack.c.bf16 %v105, %v105
    %v164 = vpack.c.bf16 %v113, %v113
    %v165 = vpack.c.bf16 %v121, %v121
    %v166 = vpack.c.bf16 %v120, %v120
    %v167 = vpack.c.bf16 %v122, %v122
    %v168 = vpack.c.bf16 %v130, %v130
    %v169 = vpack.c.bf16 %v138, %v138
    %v170 = vpack.c.bf16 %v137, %v137
    %v171 = vpack.c.bf16 %v139, %v139
    %v172 = vld [vmem:[#allocation2] sm:$0xf]
    %v173 = vld [vmem:[#allocation2 + $0x4] sm:$0xf]
    %v174 = vld [vmem:[#allocation2 + $0x8] sm:$0xf]
    %v175 = vld [vmem:[#allocation2 + $0xc] sm:$0xf]
    %v176 = vld [vmem:[#allocation2 + $0x10] sm:$0xf]
    %v177 = vld [vmem:[#allocation2 + $0x14] sm:$0xf]
    %v178 = vld [vmem:[#allocation2 + $0x18] sm:$0xf]
    %v179 = vld [vmem:[#allocation2 + $0x1c] sm:$0xf]
    %v180 = vld [vmem:[#allocation2 + $0x20] sm:$0xf]
    %v181 = vld [vmem:[#allocation2 + $0x24] sm:$0xf]
    %v182 = vld [vmem:[#allocation2 + $0x28] sm:$0xf]
    %v183 = vld [vmem:[#allocation2 + $0x2c] sm:$0xf]
    %v184 = vld [vmem:[#allocation2 + $0x30] sm:$0xf]
    %v185 = vld [vmem:[#allocation2 + $0x34] sm:$0xf]
    %v186 = vld [vmem:[#allocation2 + $0x38] sm:$0xf]
    %v187 = vld [vmem:[#allocation2 + $0x3c] sm:$0xf]
    %v188 = vld [vmem:[#allocation2 + $0x40] sm:$0xf]
    %v189 = vld [vmem:[#allocation2 + $0x44] sm:$0xf]
    %v190 = vld [vmem:[#allocation2 + $0x48] sm:$0xf]
    %v191 = vld [vmem:[#allocation2 + $0x4c] sm:$0xf]
    %v192 = vld [vmem:[#allocation2 + $0x50] sm:$0xf]
    %v193 = vld [vmem:[#allocation2 + $0x54] sm:$0xf]
    %v194 = vld [vmem:[#allocation2 + $0x58] sm:$0xf]
    %v195 = vld [vmem:[#allocation2 + $0x5c] sm:$0xf]
    %v196 = vld [vmem:[#allocation2 + $0x60] sm:$0xf]
    %v197 = vld [vmem:[#allocation2 + $0x64] sm:$0xf]
    %v198 = vld [vmem:[#allocation2 + $0x68] sm:$0xf]
    %v199 = vld [vmem:[#allocation2 + $0x6c] sm:$0xf]
    %v200 = vld [vmem:[#allocation2 + $0x70] sm:$0xf]
    %v201 = vld [vmem:[#allocation2 + $0x74] sm:$0xf]
    %v202 = vld [vmem:[#allocation2 + $0x78] sm:$0xf]
    %v203 = vld [vmem:[#allocation2 + $0x7c] sm:$0xf]
    %v204 = vld [vmem:[#allocation2 + $0x80] sm:$0xf]
    %v205 = vld [vmem:[#allocation2 + $0x84] sm:$0xf]
    %v206 = vld [vmem:[#allocation2 + $0x88] sm:$0xf]
    %v207 = vld [vmem:[#allocation2 + $0x8c] sm:$0xf]
    %v208 = vld [vmem:[#allocation2 + $0x90] sm:$0xf]
    %v209 = vld [vmem:[#allocation2 + $0x94] sm:$0xf]
    %v210 = vld [vmem:[#allocation2 + $0x98] sm:$0xf]
    %v211 = vld [vmem:[#allocation2 + $0x9c] sm:$0xf]
    %v212 = vld [vmem:[#allocation2 + $0xa0] sm:$0xf]
    %v213 = vld [vmem:[#allocation2 + $0xa4] sm:$0xf]
    %v214 = vld [vmem:[#allocation2 + $0xa8] sm:$0xf]
    %v215 = vld [vmem:[#allocation2 + $0xac] sm:$0xf]
    %v216 = vld [vmem:[#allocation2 + $0xb0] sm:$0xf]
    %v217 = vld [vmem:[#allocation2 + $0xb4] sm:$0xf]
    %v218 = vld [vmem:[#allocation2 + $0xb8] sm:$0xf]
    %v219 = vld [vmem:[#allocation2 + $0xbc] sm:$0xf]
    %v220 = vld [vmem:[#allocation2 + $0xc0] sm:$0xf]
    %v221 = vld [vmem:[#allocation2 + $0xc4] sm:$0xf]
    %v222 = vld [vmem:[#allocation2 + $0xc8] sm:$0xf]
    %v223 = vld [vmem:[#allocation2 + $0xcc] sm:$0xf]
    %v224 = vld [vmem:[#allocation2 + $0xd0] sm:$0xf]
    %v225 = vld [vmem:[#allocation2 + $0xd4] sm:$0xf]
    %v226 = vld [vmem:[#allocation2 + $0xd8] sm:$0xf]
    %v227 = vld [vmem:[#allocation2 + $0xdc] sm:$0xf]
    %v228 = vld [vmem:[#allocation2 + $0xe0] sm:$0xf]
    %v229 = vld [vmem:[#allocation2 + $0xe4] sm:$0xf]
    %v230 = vld [vmem:[#allocation2 + $0xe8] sm:$0xf]
    %v231 = vld [vmem:[#allocation2 + $0xec] sm:$0xf]
    %v232 = vld [vmem:[#allocation2 + $0xf0] sm:$0xf]
    %v233 = vld [vmem:[#allocation2 + $0xf4] sm:$0xf]
    %v234 = vld [vmem:[#allocation2 + $0xf8] sm:$0xf]
    %v235 = vld [vmem:[#allocation2 + $0xfc] sm:$0xf]
    %v236 = vld [vmem:[#allocation2 + $0x100] sm:$0xf]
    %v237 = vld [vmem:[#allocation2 + $0x104] sm:$0xf]
    %v238 = vld [vmem:[#allocation2 + $0x108] sm:$0xf]
    %v239 = vld [vmem:[#allocation2 + $0x10c] sm:$0xf]
    %v240 = vld [vmem:[#allocation2 + $0x110] sm:$0xf]
    %v241 = vld [vmem:[#allocation2 + $0x114] sm:$0xf]
    %v242 = vld [vmem:[#allocation2 + $0x118] sm:$0xf]
    %v243 = vld [vmem:[#allocation2 + $0x11c] sm:$0xf]
    %v244 = vld [vmem:[#allocation2 + $0x120] sm:$0xf]
    %v245 = vld [vmem:[#allocation2 + $0x124] sm:$0xf]
    %v246 = vld [vmem:[#allocation2 + $0x128] sm:$0xf]
    %v247 = vld [vmem:[#allocation2 + $0x12c] sm:$0xf]
    %v248 = vld [vmem:[#allocation2 + $0x130] sm:$0xf]
    %v249 = vld [vmem:[#allocation2 + $0x134] sm:$0xf]
    %v250 = vld [vmem:[#allocation2 + $0x138] sm:$0xf]
    %v251 = vld [vmem:[#allocation2 + $0x13c] sm:$0xf]
    %v252 = vld [vmem:[#allocation2 + $0x140] sm:$0xf]
    %v253 = vld [vmem:[#allocation2 + $0x144] sm:$0xf]
    %v254 = vld [vmem:[#allocation2 + $0x148] sm:$0xf]
    %v255 = vld [vmem:[#allocation2 + $0x14c] sm:$0xf]
    %v256 = vld [vmem:[#allocation2 + $0x150] sm:$0xf]
    %v257 = vld [vmem:[#allocation2 + $0x154] sm:$0xf]
    %v258 = vld [vmem:[#allocation2 + $0x158] sm:$0xf]
    %v259 = vld [vmem:[#allocation2 + $0x15c] sm:$0xf]
    %v260 = vld [vmem:[#allocation2 + $0x160] sm:$0xf]
    %v261 = vld [vmem:[#allocation2 + $0x164] sm:$0xf]
    %v262 = vld [vmem:[#allocation2 + $0x168] sm:$0xf]
    %v263 = vld [vmem:[#allocation2 + $0x16c] sm:$0xf]
    %v264 = vld [vmem:[#allocation2 + $0x170] sm:$0xf]
    %v265 = vld [vmem:[#allocation2 + $0x174] sm:$0xf]
    %v266 = vld [vmem:[#allocation2 + $0x178] sm:$0xf]
    %v267 = vld [vmem:[#allocation2 + $0x17c] sm:$0xf]
    %v268 = vld [vmem:[#allocation2 + $0x180] sm:$0xf]
    %v269 = vld [vmem:[#allocation2 + $0x184] sm:$0xf]
    %v270 = vld [vmem:[#allocation2 + $0x188] sm:$0xf]
    %v271 = vld [vmem:[#allocation2 + $0x18c] sm:$0xf]
    %v272 = vld [vmem:[#allocation2 + $0x190] sm:$0xf]
    %v273 = vld [vmem:[#allocation2 + $0x194] sm:$0xf]
    %v274 = vld [vmem:[#allocation2 + $0x198] sm:$0xf]
    %v275 = vld [vmem:[#allocation2 + $0x19c] sm:$0xf]
    %v276 = vld [vmem:[#allocation2 + $0x1a0] sm:$0xf]
    %v277 = vld [vmem:[#allocation2 + $0x1a4] sm:$0xf]
    %v278 = vld [vmem:[#allocation2 + $0x1a8] sm:$0xf]
    %v279 = vld [vmem:[#allocation2 + $0x1ac] sm:$0xf]
    %v280 = vld [vmem:[#allocation2 + $0x1b0] sm:$0xf]
    %v281 = vld [vmem:[#allocation2 + $0x1b4] sm:$0xf]
    %v282 = vld [vmem:[#allocation2 + $0x1b8] sm:$0xf]
    %v283 = vld [vmem:[#allocation2 + $0x1bc] sm:$0xf]
    %v284 = vld [vmem:[#allocation2 + $0x1c0] sm:$0xf]
    %v285 = vld [vmem:[#allocation2 + $0x1c4] sm:$0xf]
    %v286 = vld [vmem:[#allocation2 + $0x1c8] sm:$0xf]
    %v287 = vld [vmem:[#allocation2 + $0x1cc] sm:$0xf]
    %v288 = vld [vmem:[#allocation2 + $0x1d0] sm:$0xf]
    %v289 = vld [vmem:[#allocation2 + $0x1d4] sm:$0xf]
    %v290 = vld [vmem:[#allocation2 + $0x1d8] sm:$0xf]
    %v291 = vld [vmem:[#allocation2 + $0x1dc] sm:$0xf]
    %v292 = vld [vmem:[#allocation2 + $0x1e0] sm:$0xf]
    %v293 = vld [vmem:[#allocation2 + $0x1e4] sm:$0xf]
    %v294 = vld [vmem:[#allocation2 + $0x1e8] sm:$0xf]
    %v295 = vld [vmem:[#allocation2 + $0x1ec] sm:$0xf]
    %v296 = vld [vmem:[#allocation2 + $0x1f0] sm:$0xf]
    %v297 = vld [vmem:[#allocation2 + $0x1f4] sm:$0xf]
    %v298 = vld [vmem:[#allocation2 + $0x1f8] sm:$0xf]
    %v299 = vld [vmem:[#allocation2 + $0x1fc] sm:$0xf]
    %v300 = vld [vmem:[#allocation2 + $0x200] sm:$0xf]
    %v301 = vld [vmem:[#allocation2 + $0x204] sm:$0xf]
    %v302 = vld [vmem:[#allocation2 + $0x208] sm:$0xf]
    %v303 = vld [vmem:[#allocation2 + $0x20c] sm:$0xf]
    %v304 = vld [vmem:[#allocation2 + $0x210] sm:$0xf]
    %v305 = vld [vmem:[#allocation2 + $0x214] sm:$0xf]
    %v306 = vld [vmem:[#allocation2 + $0x218] sm:$0xf]
    %v307 = vld [vmem:[#allocation2 + $0x21c] sm:$0xf]
    %v308 = vld [vmem:[#allocation2 + $0x220] sm:$0xf]
    %v309 = vld [vmem:[#allocation2 + $0x224] sm:$0xf]
    %v310 = vld [vmem:[#allocation2 + $0x228] sm:$0xf]
    %v311 = vld [vmem:[#allocation2 + $0x22c] sm:$0xf]
    %v312 = vld [vmem:[#allocation2 + $0x230] sm:$0xf]
    %v313 = vld [vmem:[#allocation2 + $0x234] sm:$0xf]
    %v314 = vld [vmem:[#allocation2 + $0x238] sm:$0xf]
    %v315 = vld [vmem:[#allocation2 + $0x23c] sm:$0xf]
    %v316 = vld [vmem:[#allocation2 + $0x240] sm:$0xf]
    %v317 = vld [vmem:[#allocation2 + $0x244] sm:$0xf]
    %v318 = vld [vmem:[#allocation2 + $0x248] sm:$0xf]
    %v319 = vld [vmem:[#allocation2 + $0x24c] sm:$0xf]
    %v320 = vld [vmem:[#allocation2 + $0x250] sm:$0xf]
    %v321 = vld [vmem:[#allocation2 + $0x254] sm:$0xf]
    %v322 = vld [vmem:[#allocation2 + $0x258] sm:$0xf]
    %v323 = vld [vmem:[#allocation2 + $0x25c] sm:$0xf]
    %v324 = vld [vmem:[#allocation2 + $0x260] sm:$0xf]
    %v325 = vld [vmem:[#allocation2 + $0x264] sm:$0xf]
    %v326 = vld [vmem:[#allocation2 + $0x268] sm:$0xf]
    %v327 = vld [vmem:[#allocation2 + $0x26c] sm:$0xf]
    %v328 = vld [vmem:[#allocation2 + $0x270] sm:$0xf]
    %v329 = vld [vmem:[#allocation2 + $0x274] sm:$0xf]
    %v330 = vld [vmem:[#allocation2 + $0x278] sm:$0xf]
    %v331 = vld [vmem:[#allocation2 + $0x27c] sm:$0xf]
    %v332 = vld [vmem:[#allocation2 + $0x280] sm:$0xf]
    %v333 = vld [vmem:[#allocation2 + $0x284] sm:$0xf]
    %v334 = vld [vmem:[#allocation2 + $0x288] sm:$0xf]
    %v335 = vld [vmem:[#allocation2 + $0x28c] sm:$0xf]
    %v336 = vld [vmem:[#allocation2 + $0x290] sm:$0xf]
    %v337 = vld [vmem:[#allocation2 + $0x294] sm:$0xf]
    %v338 = vld [vmem:[#allocation2 + $0x298] sm:$0xf]
    %v339 = vld [vmem:[#allocation2 + $0x29c] sm:$0xf]
    %v340 = vld [vmem:[#allocation2 + $0x2a0] sm:$0xf]
    %v341 = vld [vmem:[#allocation2 + $0x2a4] sm:$0xf]
    %v342 = vld [vmem:[#allocation2 + $0x2a8] sm:$0xf]
    %v343 = vld [vmem:[#allocation2 + $0x2ac] sm:$0xf]
    %v344 = vld [vmem:[#allocation2 + $0x2b0] sm:$0xf]
    %v345 = vld [vmem:[#allocation2 + $0x2b4] sm:$0xf]
    %v346 = vld [vmem:[#allocation2 + $0x2b8] sm:$0xf]
    %v347 = vld [vmem:[#allocation2 + $0x2bc] sm:$0xf]
    %v348 = vld [vmem:[#allocation2 + $0x2c0] sm:$0xf]
    %v349 = vld [vmem:[#allocation2 + $0x2c4] sm:$0xf]
    %v350 = vld [vmem:[#allocation2 + $0x2c8] sm:$0xf]
    %v351 = vld [vmem:[#allocation2 + $0x2cc] sm:$0xf]
    %v352 = vld [vmem:[#allocation2 + $0x2d0] sm:$0xf]
    %v353 = vld [vmem:[#allocation2 + $0x2d4] sm:$0xf]
    %v354 = vld [vmem:[#allocation2 + $0x2d8] sm:$0xf]
    %v355 = vld [vmem:[#allocation2 + $0x2dc] sm:$0xf]
    %v356 = vld [vmem:[#allocation2 + $0x2e0] sm:$0xf]
    %v357 = vld [vmem:[#allocation2 + $0x2e4] sm:$0xf]
    %v358 = vld [vmem:[#allocation2 + $0x2e8] sm:$0xf]
    %v359 = vld [vmem:[#allocation2 + $0x2ec] sm:$0xf]
    %v360 = vld [vmem:[#allocation2 + $0x2f0] sm:$0xf]
    %v361 = vld [vmem:[#allocation2 + $0x2f4] sm:$0xf]
    %v362 = vld [vmem:[#allocation2 + $0x2f8] sm:$0xf]
    %v363 = vld [vmem:[#allocation2 + $0x2fc] sm:$0xf]
    %v364 = vld [vmem:[#allocation2 + $0x300] sm:$0xf]
    %v365 = vld [vmem:[#allocation2 + $0x304] sm:$0xf]
    %v366 = vld [vmem:[#allocation2 + $0x308] sm:$0xf]
    %v367 = vld [vmem:[#allocation2 + $0x30c] sm:$0xf]
    %v368 = vld [vmem:[#allocation2 + $0x310] sm:$0xf]
    %v369 = vld [vmem:[#allocation2 + $0x314] sm:$0xf]
    %v370 = vld [vmem:[#allocation2 + $0x318] sm:$0xf]
    %v371 = vld [vmem:[#allocation2 + $0x31c] sm:$0xf]
    %v372 = vld [vmem:[#allocation2 + $0x320] sm:$0xf]
    %v373 = vld [vmem:[#allocation2 + $0x324] sm:$0xf]
    %v374 = vld [vmem:[#allocation2 + $0x328] sm:$0xf]
    %v375 = vld [vmem:[#allocation2 + $0x32c] sm:$0xf]
    %v376 = vld [vmem:[#allocation2 + $0x330] sm:$0xf]
    %v377 = vld [vmem:[#allocation2 + $0x334] sm:$0xf]
    %v378 = vld [vmem:[#allocation2 + $0x338] sm:$0xf]
    %v379 = vld [vmem:[#allocation2 + $0x33c] sm:$0xf]
    %v380 = vld [vmem:[#allocation2 + $0x340] sm:$0xf]
    %v381 = vld [vmem:[#allocation2 + $0x344] sm:$0xf]
    %v382 = vld [vmem:[#allocation2 + $0x348] sm:$0xf]
    %v383 = vld [vmem:[#allocation2 + $0x34c] sm:$0xf]
    %v384 = vld [vmem:[#allocation2 + $0x350] sm:$0xf]
    %v385 = vld [vmem:[#allocation2 + $0x354] sm:$0xf]
    %v386 = vld [vmem:[#allocation2 + $0x358] sm:$0xf]
    %v387 = vld [vmem:[#allocation2 + $0x35c] sm:$0xf]
    %v388 = vld [vmem:[#allocation2 + $0x360] sm:$0xf]
    %v389 = vld [vmem:[#allocation2 + $0x364] sm:$0xf]
    %v390 = vld [vmem:[#allocation2 + $0x368] sm:$0xf]
    %v391 = vld [vmem:[#allocation2 + $0x36c] sm:$0xf]
    %v392 = vld [vmem:[#allocation2 + $0x370] sm:$0xf]
    %v393 = vld [vmem:[#allocation2 + $0x374] sm:$0xf]
    %v394 = vld [vmem:[#allocation2 + $0x378] sm:$0xf]
    %v395 = vld [vmem:[#allocation2 + $0x37c] sm:$0xf]
    %v396 = vld [vmem:[#allocation2 + $0x380] sm:$0xf]
    %v397 = vld [vmem:[#allocation2 + $0x384] sm:$0xf]
    %v398 = vld [vmem:[#allocation2 + $0x388] sm:$0xf]
    %v399 = vld [vmem:[#allocation2 + $0x38c] sm:$0xf]
    %v400 = vld [vmem:[#allocation2 + $0x390] sm:$0xf]
    %v401 = vld [vmem:[#allocation2 + $0x394] sm:$0xf]
    %v402 = vld [vmem:[#allocation2 + $0x398] sm:$0xf]
    %v403 = vld [vmem:[#allocation2 + $0x39c] sm:$0xf]
    %v404 = vld [vmem:[#allocation2 + $0x3a0] sm:$0xf]
    %v405 = vld [vmem:[#allocation2 + $0x3a4] sm:$0xf]
    %v406 = vld [vmem:[#allocation2 + $0x3a8] sm:$0xf]
    %v407 = vld [vmem:[#allocation2 + $0x3ac] sm:$0xf]
    %v408 = vld [vmem:[#allocation2 + $0x3b0] sm:$0xf]
    %v409 = vld [vmem:[#allocation2 + $0x3b4] sm:$0xf]
    %v410 = vld [vmem:[#allocation2 + $0x3b8] sm:$0xf]
    %v411 = vld [vmem:[#allocation2 + $0x3bc] sm:$0xf]
    %v412 = vld [vmem:[#allocation2 + $0x3c0] sm:$0xf]
    %v413 = vld [vmem:[#allocation2 + $0x3c4] sm:$0xf]
    %v414 = vld [vmem:[#allocation2 + $0x3c8] sm:$0xf]
    %v415 = vld [vmem:[#allocation2 + $0x3cc] sm:$0xf]
    %v416 = vld [vmem:[#allocation2 + $0x3d0] sm:$0xf]
    %v417 = vld [vmem:[#allocation2 + $0x3d4] sm:$0xf]
    %v418 = vld [vmem:[#allocation2 + $0x3d8] sm:$0xf]
    %v419 = vld [vmem:[#allocation2 + $0x3dc] sm:$0xf]
    %v420 = vld [vmem:[#allocation2 + $0x3e0] sm:$0xf]
    %v421 = vld [vmem:[#allocation2 + $0x3e4] sm:$0xf]
    %v422 = vld [vmem:[#allocation2 + $0x3e8] sm:$0xf]
    %v423 = vld [vmem:[#allocation2 + $0x3ec] sm:$0xf]
    %v424 = vld [vmem:[#allocation2 + $0x3f0] sm:$0xf]
    %v425 = vld [vmem:[#allocation2 + $0x3f4] sm:$0xf]
    %v426 = vld [vmem:[#allocation2 + $0x3f8] sm:$0xf]
    %v427 = vld [vmem:[#allocation2 + $0x3fc] sm:$0xf]
    %v428 = vld [vmem:[%s2] sm:$0x1]
    %v430 = vlaneseq
    %v431 = vshrl.u32 %v430, 7
    %v432 = vsub.s32 0, %v431
    %v433 = vrot.slane %v428, %v432
    %v691 = vunpack.c.l.b16 %v172
    %v692 = vunpack.c.l.b16 %v173
    %v693 = vunpack.c.l.b16 %v174
    %v694 = vunpack.c.l.b16 %v175
    %v695 = vunpack.c.l.b16 %v176
    %v696 = vunpack.c.l.b16 %v177
    %v697 = vunpack.c.l.b16 %v178
    %v698 = vunpack.c.l.b16 %v179
    %v699 = vunpack.c.l.b16 %v180
    %v700 = vunpack.c.l.b16 %v181
    %v701 = vunpack.c.l.b16 %v182
    %v702 = vunpack.c.l.b16 %v183
    %v703 = vunpack.c.l.b16 %v184
    %v704 = vunpack.c.l.b16 %v185
    %v705 = vunpack.c.l.b16 %v186
    %v706 = vunpack.c.l.b16 %v187
    %v707 = vunpack.c.l.b16 %v188
    %v708 = vunpack.c.l.b16 %v189
    %v709 = vunpack.c.l.b16 %v190
    %v710 = vunpack.c.l.b16 %v191
    %v711 = vunpack.c.l.b16 %v192
    %v712 = vunpack.c.l.b16 %v193
    %v713 = vunpack.c.l.b16 %v194
    %v714 = vunpack.c.l.b16 %v195
    %v715 = vunpack.c.l.b16 %v196
    %v716 = vunpack.c.l.b16 %v197
    %v717 = vunpack.c.l.b16 %v198
    %v718 = vunpack.c.l.b16 %v199
    %v719 = vunpack.c.l.b16 %v200
    %v720 = vunpack.c.l.b16 %v201
    %v721 = vunpack.c.l.b16 %v202
    %v722 = vunpack.c.l.b16 %v203
    %v723 = vunpack.c.l.b16 %v204
    %v724 = vunpack.c.l.b16 %v205
    %v725 = vunpack.c.l.b16 %v206
    %v726 = vunpack.c.l.b16 %v207
    %v727 = vunpack.c.l.b16 %v208
    %v728 = vunpack.c.l.b16 %v209
    %v729 = vunpack.c.l.b16 %v210
    %v730 = vunpack.c.l.b16 %v211
    %v731 = vunpack.c.l.b16 %v212
    %v732 = vunpack.c.l.b16 %v213
    %v733 = vunpack.c.l.b16 %v214
    %v734 = vunpack.c.l.b16 %v215
    %v735 = vunpack.c.l.b16 %v216
    %v736 = vunpack.c.l.b16 %v217
    %v737 = vunpack.c.l.b16 %v218
    %v738 = vunpack.c.l.b16 %v219
    %v739 = vunpack.c.l.b16 %v220
    %v740 = vunpack.c.l.b16 %v221
    %v741 = vunpack.c.l.b16 %v222
    %v742 = vunpack.c.l.b16 %v223
    %v743 = vunpack.c.l.b16 %v224
    %v744 = vunpack.c.l.b16 %v225
    %v745 = vunpack.c.l.b16 %v226
    %v746 = vunpack.c.l.b16 %v227
    %v747 = vunpack.c.l.b16 %v228
    %v748 = vunpack.c.l.b16 %v229
    %v749 = vunpack.c.l.b16 %v230
    %v750 = vunpack.c.l.b16 %v231
    %v751 = vunpack.c.l.b16 %v232
    %v752 = vunpack.c.l.b16 %v233
    %v753 = vunpack.c.l.b16 %v234
    %v754 = vunpack.c.l.b16 %v235
    %v755 = vunpack.c.l.b16 %v236
    %v756 = vunpack.c.l.b16 %v237
    %v757 = vunpack.c.l.b16 %v238
    %v758 = vunpack.c.l.b16 %v239
    %v759 = vunpack.c.l.b16 %v240
    %v760 = vunpack.c.l.b16 %v241
    %v761 = vunpack.c.l.b16 %v242
    %v762 = vunpack.c.l.b16 %v243
    %v763 = vunpack.c.l.b16 %v244
    %v764 = vunpack.c.l.b16 %v245
    %v765 = vunpack.c.l.b16 %v246
    %v766 = vunpack.c.l.b16 %v247
    %v767 = vunpack.c.l.b16 %v248
    %v768 = vunpack.c.l.b16 %v249
    %v769 = vunpack.c.l.b16 %v250
    %v770 = vunpack.c.l.b16 %v251
    %v771 = vunpack.c.l.b16 %v252
    %v772 = vunpack.c.l.b16 %v253
    %v773 = vunpack.c.l.b16 %v254
    %v774 = vunpack.c.l.b16 %v255
    %v775 = vunpack.c.l.b16 %v256
    %v776 = vunpack.c.l.b16 %v257
    %v777 = vunpack.c.l.b16 %v258
    %v778 = vunpack.c.l.b16 %v259
    %v779 = vunpack.c.l.b16 %v260
    %v780 = vunpack.c.l.b16 %v261
    %v781 = vunpack.c.l.b16 %v262
    %v782 = vunpack.c.l.b16 %v263
    %v783 = vunpack.c.l.b16 %v264
    %v784 = vunpack.c.l.b16 %v265
    %v785 = vunpack.c.l.b16 %v266
    %v786 = vunpack.c.l.b16 %v267
    %v787 = vunpack.c.l.b16 %v268
    %v788 = vunpack.c.l.b16 %v269
    %v789 = vunpack.c.l.b16 %v270
    %v790 = vunpack.c.l.b16 %v271
    %v791 = vunpack.c.l.b16 %v272
    %v792 = vunpack.c.l.b16 %v273
    %v793 = vunpack.c.l.b16 %v274
    %v794 = vunpack.c.l.b16 %v275
    %v795 = vunpack.c.l.b16 %v276
    %v796 = vunpack.c.l.b16 %v277
    %v797 = vunpack.c.l.b16 %v278
    %v798 = vunpack.c.l.b16 %v279
    %v799 = vunpack.c.l.b16 %v280
    %v800 = vunpack.c.l.b16 %v281
    %v801 = vunpack.c.l.b16 %v282
    %v802 = vunpack.c.l.b16 %v283
    %v803 = vunpack.c.l.b16 %v284
    %v804 = vunpack.c.l.b16 %v285
    %v805 = vunpack.c.l.b16 %v286
    %v806 = vunpack.c.l.b16 %v287
    %v807 = vunpack.c.l.b16 %v288
    %v808 = vunpack.c.l.b16 %v289
    %v809 = vunpack.c.l.b16 %v290
    %v810 = vunpack.c.l.b16 %v291
    %v811 = vunpack.c.l.b16 %v292
    %v812 = vunpack.c.l.b16 %v293
    %v813 = vunpack.c.l.b16 %v294
    %v814 = vunpack.c.l.b16 %v295
    %v815 = vunpack.c.l.b16 %v296
    %v816 = vunpack.c.l.b16 %v297
    %v817 = vunpack.c.l.b16 %v298
    %v818 = vunpack.c.l.b16 %v299
    %v819 = vunpack.c.l.b16 %v300
    %v820 = vunpack.c.l.b16 %v301
    %v821 = vunpack.c.l.b16 %v302
    %v822 = vunpack.c.l.b16 %v303
    %v823 = vunpack.c.l.b16 %v304
    %v824 = vunpack.c.l.b16 %v305
    %v825 = vunpack.c.l.b16 %v306
    %v826 = vunpack.c.l.b16 %v307
    %v827 = vunpack.c.l.b16 %v308
    %v828 = vunpack.c.l.b16 %v309
    %v829 = vunpack.c.l.b16 %v310
    %v830 = vunpack.c.l.b16 %v311
    %v831 = vunpack.c.l.b16 %v312
    %v832 = vunpack.c.l.b16 %v313
    %v833 = vunpack.c.l.b16 %v314
    %v834 = vunpack.c.l.b16 %v315
    %v835 = vunpack.c.l.b16 %v316
    %v836 = vunpack.c.l.b16 %v317
    %v837 = vunpack.c.l.b16 %v318
    %v838 = vunpack.c.l.b16 %v319
    %v839 = vunpack.c.l.b16 %v320
    %v840 = vunpack.c.l.b16 %v321
    %v841 = vunpack.c.l.b16 %v322
    %v842 = vunpack.c.l.b16 %v323
    %v843 = vunpack.c.l.b16 %v324
    %v844 = vunpack.c.l.b16 %v325
    %v845 = vunpack.c.l.b16 %v326
    %v846 = vunpack.c.l.b16 %v327
    %v847 = vunpack.c.l.b16 %v328
    %v848 = vunpack.c.l.b16 %v329
    %v849 = vunpack.c.l.b16 %v330
    %v850 = vunpack.c.l.b16 %v331
    %v851 = vunpack.c.l.b16 %v332
    %v852 = vunpack.c.l.b16 %v333
    %v853 = vunpack.c.l.b16 %v334
    %v854 = vunpack.c.l.b16 %v335
    %v855 = vunpack.c.l.b16 %v336
    %v856 = vunpack.c.l.b16 %v337
    %v857 = vunpack.c.l.b16 %v338
    %v858 = vunpack.c.l.b16 %v339
    %v859 = vunpack.c.l.b16 %v340
    %v860 = vunpack.c.l.b16 %v341
    %v861 = vunpack.c.l.b16 %v342
    %v862 = vunpack.c.l.b16 %v343
    %v863 = vunpack.c.l.b16 %v344
    %v864 = vunpack.c.l.b16 %v345
    %v865 = vunpack.c.l.b16 %v346
    %v866 = vunpack.c.l.b16 %v347
    %v867 = vunpack.c.l.b16 %v348
    %v868 = vunpack.c.l.b16 %v349
    %v869 = vunpack.c.l.b16 %v350
    %v870 = vunpack.c.l.b16 %v351
    %v871 = vunpack.c.l.b16 %v352
    %v872 = vunpack.c.l.b16 %v353
    %v873 = vunpack.c.l.b16 %v354
    %v874 = vunpack.c.l.b16 %v355
    %v875 = vunpack.c.l.b16 %v356
    %v876 = vunpack.c.l.b16 %v357
    %v877 = vunpack.c.l.b16 %v358
    %v878 = vunpack.c.l.b16 %v359
    %v879 = vunpack.c.l.b16 %v360
    %v880 = vunpack.c.l.b16 %v361
    %v881 = vunpack.c.l.b16 %v362
    %v882 = vunpack.c.l.b16 %v363
    %v883 = vunpack.c.l.b16 %v364
    %v884 = vunpack.c.l.b16 %v365
    %v885 = vunpack.c.l.b16 %v366
    %v886 = vunpack.c.l.b16 %v367
    %v887 = vunpack.c.l.b16 %v368
    %v888 = vunpack.c.l.b16 %v369
    %v889 = vunpack.c.l.b16 %v370
    %v890 = vunpack.c.l.b16 %v371
    %v891 = vunpack.c.l.b16 %v372
    %v892 = vunpack.c.l.b16 %v373
    %v893 = vunpack.c.l.b16 %v374
    %v894 = vunpack.c.l.b16 %v375
    %v895 = vunpack.c.l.b16 %v376
    %v896 = vunpack.c.l.b16 %v377
    %v897 = vunpack.c.l.b16 %v378
    %v898 = vunpack.c.l.b16 %v379
    %v899 = vunpack.c.l.b16 %v380
    %v900 = vunpack.c.l.b16 %v381
    %v901 = vunpack.c.l.b16 %v382
    %v902 = vunpack.c.l.b16 %v383
    %v903 = vunpack.c.l.b16 %v384
    %v904 = vunpack.c.l.b16 %v385
    %v905 = vunpack.c.l.b16 %v386
    %v906 = vunpack.c.l.b16 %v387
    %v907 = vunpack.c.l.b16 %v388
    %v908 = vunpack.c.l.b16 %v389
    %v909 = vunpack.c.l.b16 %v390
    %v910 = vunpack.c.l.b16 %v391
    %v911 = vunpack.c.l.b16 %v392
    %v912 = vunpack.c.l.b16 %v393
    %v913 = vunpack.c.l.b16 %v394
    %v914 = vunpack.c.l.b16 %v395
    %v915 = vunpack.c.l.b16 %v396
    %v916 = vunpack.c.l.b16 %v397
    %v917 = vunpack.c.l.b16 %v398
    %v918 = vunpack.c.l.b16 %v399
    %v919 = vunpack.c.l.b16 %v400
    %v920 = vunpack.c.l.b16 %v401
    %v921 = vunpack.c.l.b16 %v402
    %v922 = vunpack.c.l.b16 %v403
    %v923 = vunpack.c.l.b16 %v404
    %v924 = vunpack.c.l.b16 %v405
    %v925 = vunpack.c.l.b16 %v406
    %v926 = vunpack.c.l.b16 %v407
    %v927 = vunpack.c.l.b16 %v408
    %v928 = vunpack.c.l.b16 %v409
    %v929 = vunpack.c.l.b16 %v410
    %v930 = vunpack.c.l.b16 %v411
    %v931 = vunpack.c.l.b16 %v412
    %v932 = vunpack.c.l.b16 %v413
    %v933 = vunpack.c.l.b16 %v414
    %v934 = vunpack.c.l.b16 %v415
    %v935 = vunpack.c.l.b16 %v416
    %v936 = vunpack.c.l.b16 %v417
    %v937 = vunpack.c.l.b16 %v418
    %v938 = vunpack.c.l.b16 %v419
    %v939 = vunpack.c.l.b16 %v420
    %v940 = vunpack.c.l.b16 %v421
    %v941 = vunpack.c.l.b16 %v422
    %v942 = vunpack.c.l.b16 %v423
    %v943 = vunpack.c.l.b16 %v424
    %v944 = vunpack.c.l.b16 %v425
    %v945 = vunpack.c.l.b16 %v426
    %v946 = vunpack.c.l.b16 %v427
    %v947 = vpack.c.b16 %v692, %v691
    %v948 = vpack.c.b16 %v694, %v693
    %v949 = vpack.c.b16 %v696, %v695
    %v950 = vpack.c.b16 %v698, %v697
    %v951 = vpack.c.b16 %v700, %v699
    %v952 = vpack.c.b16 %v702, %v701
    %v953 = vpack.c.b16 %v704, %v703
    %v954 = vpack.c.b16 %v706, %v705
    %v955 = vpack.c.b16 %v708, %v707
    %v956 = vpack.c.b16 %v710, %v709
    %v957 = vpack.c.b16 %v712, %v711
    %v958 = vpack.c.b16 %v714, %v713
    %v959 = vpack.c.b16 %v716, %v715
    %v960 = vpack.c.b16 %v718, %v717
    %v961 = vpack.c.b16 %v720, %v719
    %v962 = vpack.c.b16 %v722, %v721
    %v963 = vpack.c.b16 %v724, %v723
    %v964 = vpack.c.b16 %v726, %v725
    %v965 = vpack.c.b16 %v728, %v727
    %v966 = vpack.c.b16 %v730, %v729
    %v967 = vpack.c.b16 %v732, %v731
    %v968 = vpack.c.b16 %v734, %v733
    %v969 = vpack.c.b16 %v736, %v735
    %v970 = vpack.c.b16 %v738, %v737
    %v971 = vpack.c.b16 %v740, %v739
    %v972 = vpack.c.b16 %v742, %v741
    %v973 = vpack.c.b16 %v744, %v743
    %v974 = vpack.c.b16 %v746, %v745
    %v975 = vpack.c.b16 %v748, %v747
    %v976 = vpack.c.b16 %v750, %v749
    %v977 = vpack.c.b16 %v752, %v751
    %v978 = vpack.c.b16 %v754, %v753
    %v979 = vpack.c.b16 %v756, %v755
    %v980 = vpack.c.b16 %v758, %v757
    %v981 = vpack.c.b16 %v760, %v759
    %v982 = vpack.c.b16 %v762, %v761
    %v983 = vpack.c.b16 %v764, %v763
    %v984 = vpack.c.b16 %v766, %v765
    %v985 = vpack.c.b16 %v768, %v767
    %v986 = vpack.c.b16 %v770, %v769
    %v987 = vpack.c.b16 %v772, %v771
    %v988 = vpack.c.b16 %v774, %v773
    %v989 = vpack.c.b16 %v776, %v775
    %v990 = vpack.c.b16 %v778, %v777
    %v991 = vpack.c.b16 %v780, %v779
    %v992 = vpack.c.b16 %v782, %v781
    %v993 = vpack.c.b16 %v784, %v783
    %v994 = vpack.c.b16 %v786, %v785
    %v995 = vpack.c.b16 %v788, %v787
    %v996 = vpack.c.b16 %v790, %v789
    %v997 = vpack.c.b16 %v792, %v791
    %v998 = vpack.c.b16 %v794, %v793
    %v999 = vpack.c.b16 %v796, %v795
    %v1000 = vpack.c.b16 %v798, %v797
    %v1001 = vpack.c.b16 %v800, %v799
    %v1002 = vpack.c.b16 %v802, %v801
    %v1003 = vpack.c.b16 %v804, %v803
    %v1004 = vpack.c.b16 %v806, %v805
    %v1005 = vpack.c.b16 %v808, %v807
    %v1006 = vpack.c.b16 %v810, %v809
    %v1007 = vpack.c.b16 %v812, %v811
    %v1008 = vpack.c.b16 %v814, %v813
    %v1009 = vpack.c.b16 %v816, %v815
    %v1010 = vpack.c.b16 %v818, %v817
    %v1011 = vpack.c.b16 %v820, %v819
    %v1012 = vpack.c.b16 %v822, %v821
    %v1013 = vpack.c.b16 %v824, %v823
    %v1014 = vpack.c.b16 %v826, %v825
    %v1015 = vpack.c.b16 %v828, %v827
    %v1016 = vpack.c.b16 %v830, %v829
    %v1017 = vpack.c.b16 %v832, %v831
    %v1018 = vpack.c.b16 %v834, %v833
    %v1019 = vpack.c.b16 %v836, %v835
    %v1020 = vpack.c.b16 %v838, %v837
    %v1021 = vpack.c.b16 %v840, %v839
    %v1022 = vpack.c.b16 %v842, %v841
    %v1023 = vpack.c.b16 %v844, %v843
    %v1024 = vpack.c.b16 %v846, %v845
    %v1025 = vpack.c.b16 %v848, %v847
    %v1026 = vpack.c.b16 %v850, %v849
    %v1027 = vpack.c.b16 %v852, %v851
    %v1028 = vpack.c.b16 %v854, %v853
    %v1029 = vpack.c.b16 %v856, %v855
    %v1030 = vpack.c.b16 %v858, %v857
    %v1031 = vpack.c.b16 %v860, %v859
    %v1032 = vpack.c.b16 %v862, %v861
    %v1033 = vpack.c.b16 %v864, %v863
    %v1034 = vpack.c.b16 %v866, %v865
    %v1035 = vpack.c.b16 %v868, %v867
    %v1036 = vpack.c.b16 %v870, %v869
    %v1037 = vpack.c.b16 %v872, %v871
    %v1038 = vpack.c.b16 %v874, %v873
    %v1039 = vpack.c.b16 %v876, %v875
    %v1040 = vpack.c.b16 %v878, %v877
    %v1041 = vpack.c.b16 %v880, %v879
    %v1042 = vpack.c.b16 %v882, %v881
    %v1043 = vpack.c.b16 %v884, %v883
    %v1044 = vpack.c.b16 %v886, %v885
    %v1045 = vpack.c.b16 %v888, %v887
    %v1046 = vpack.c.b16 %v890, %v889
    %v1047 = vpack.c.b16 %v892, %v891
    %v1048 = vpack.c.b16 %v894, %v893
    %v1049 = vpack.c.b16 %v896, %v895
    %v1050 = vpack.c.b16 %v898, %v897
    %v1051 = vpack.c.b16 %v900, %v899
    %v1052 = vpack.c.b16 %v902, %v901
    %v1053 = vpack.c.b16 %v904, %v903
    %v1054 = vpack.c.b16 %v906, %v905
    %v1055 = vpack.c.b16 %v908, %v907
    %v1056 = vpack.c.b16 %v910, %v909
    %v1057 = vpack.c.b16 %v912, %v911
    %v1058 = vpack.c.b16 %v914, %v913
    %v1059 = vpack.c.b16 %v916, %v915
    %v1060 = vpack.c.b16 %v918, %v917
    %v1061 = vpack.c.b16 %v920, %v919
    %v1062 = vpack.c.b16 %v922, %v921
    %v1063 = vpack.c.b16 %v924, %v923
    %v1064 = vpack.c.b16 %v926, %v925
    %v1065 = vpack.c.b16 %v928, %v927
    %v1066 = vpack.c.b16 %v930, %v929
    %v1067 = vpack.c.b16 %v932, %v931
    %v1068 = vpack.c.b16 %v934, %v933
    %v1069 = vpack.c.b16 %v936, %v935
    %v1070 = vpack.c.b16 %v938, %v937
    %v1071 = vpack.c.b16 %v940, %v939
    %v1072 = vpack.c.b16 %v942, %v941
    %v1073 = vpack.c.b16 %v944, %v943
    %v1074 = vpack.c.b16 %v946, %v945
    %1203 = vmatprep.subr.bf16.mxu0 0
    %1204 = vmatpush1.bf16.msra.mxu0 %v947
    %1205 = vmatprep.subr.bf16.mxu0 0
    %1206 = vmatpush1.bf16.msra.mxu0 %v948
    %1207 = vmatprep.subr.bf16.mxu0 0
    %1208 = vmatpush1.bf16.msra.mxu0 %v949
    %1209 = vmatprep.subr.bf16.mxu0 0
    %1210 = vmatpush1.bf16.msra.mxu0 %v950
    %1211 = vmatprep.subr.bf16.mxu0 0
    %1212 = vmatpush1.bf16.msra.mxu0 %v951
    %1213 = vmatprep.subr.bf16.mxu0 0
    %1214 = vmatpush1.bf16.msra.mxu0 %v952
    %1215 = vmatprep.subr.bf16.mxu0 0
    %1216 = vmatpush1.bf16.msra.mxu0 %v953
    %1217 = vmatprep.subr.bf16.mxu0 0
    %1218 = vmatpush1.bf16.msra.mxu0 %v954
    %1219 = vmatprep.subr.bf16.mxu0 0
    %1220 = vmatpush1.bf16.msra.mxu0 %v955
    %1221 = vmatprep.subr.bf16.mxu0 0
    %1222 = vmatpush1.bf16.msra.mxu0 %v956
    %1223 = vmatprep.subr.bf16.mxu0 0
    %1224 = vmatpush1.bf16.msra.mxu0 %v957
    %1225 = vmatprep.subr.bf16.mxu0 0
    %1226 = vmatpush1.bf16.msra.mxu0 %v958
    %1227 = vmatprep.subr.bf16.mxu0 0
    %1228 = vmatpush1.bf16.msra.mxu0 %v959
    %1229 = vmatprep.subr.bf16.mxu0 0
    %1230 = vmatpush1.bf16.msra.mxu0 %v960
    %1231 = vmatprep.subr.bf16.mxu0 0
    %1232 = vmatpush1.bf16.msra.mxu0 %v961
    %1233 = vmatprep.subr.bf16.mxu0 0
    %1234 = vmatpush1.bf16.msra.mxu0 %v962
    %1235 = vmatprep.mubr.bf16.mxu0 %v157
    %1236 = vmatmul.mubr.bf16.gmra.mrb[0].mxu0 %v156
    %v1237 = vpop.f32.mrb[0].mxu0
    %v1238 = vadd.f32 %v433, %v1237
    %v1239 = vpop.f32.mrb[0].mxu0
    %v1240 = vpop.f32.mrb[0].mxu0
    %v1241 = vpop.f32.mrb[0].mxu0
    %1242 = vdwg.mxu0
    %1243 = vmatprep.subr.bf16.mxu0 0
    %1244 = vmatpush1.bf16.msra.mxu0 %v963
    %1245 = vmatprep.subr.bf16.mxu0 0
    %1246 = vmatpush1.bf16.msra.mxu0 %v964
    %1247 = vmatprep.subr.bf16.mxu0 0
    %1248 = vmatpush1.bf16.msra.mxu0 %v965
    %1249 = vmatprep.subr.bf16.mxu0 0
    %1250 = vmatpush1.bf16.msra.mxu0 %v966
    %1251 = vmatprep.subr.bf16.mxu0 0
    %1252 = vmatpush1.bf16.msra.mxu0 %v967
    %1253 = vmatprep.subr.bf16.mxu0 0
    %1254 = vmatpush1.bf16.msra.mxu0 %v968
    %1255 = vmatprep.subr.bf16.mxu0 0
    %1256 = vmatpush1.bf16.msra.mxu0 %v969
    %1257 = vmatprep.subr.bf16.mxu0 0
    %1258 = vmatpush1.bf16.msra.mxu0 %v970
    %1259 = vmatprep.subr.bf16.mxu0 0
    %1260 = vmatpush1.bf16.msra.mxu0 %v971
    %1261 = vmatprep.subr.bf16.mxu0 0
    %1262 = vmatpush1.bf16.msra.mxu0 %v972
    %1263 = vmatprep.subr.bf16.mxu0 0
    %1264 = vmatpush1.bf16.msra.mxu0 %v973
    %1265 = vmatprep.subr.bf16.mxu0 0
    %1266 = vmatpush1.bf16.msra.mxu0 %v974
    %1267 = vmatprep.subr.bf16.mxu0 0
    %1268 = vmatpush1.bf16.msra.mxu0 %v975
    %1269 = vmatprep.subr.bf16.mxu0 0
    %1270 = vmatpush1.bf16.msra.mxu0 %v976
    %1271 = vmatprep.subr.bf16.mxu0 0
    %1272 = vmatpush1.bf16.msra.mxu0 %v977
    %1273 = vmatprep.subr.bf16.mxu0 0
    %1274 = vmatpush1.bf16.msra.mxu0 %v978
    %1275 = vmatprep.mubr.bf16.mxu0 %v159
    %1276 = vmatmul.mubr.bf16.gmra.mrb[0].mxu0 %v158
    %v1277 = vpop.f32.mrb[0].mxu0
    %v1278 = vadd.f32 %v1238, %v1277
    %v1279 = vpop.f32.mrb[0].mxu0
    %v1280 = vpop.f32.mrb[0].mxu0
    %v1281 = vpop.f32.mrb[0].mxu0
    %1282 = vdwg.mxu0
    %1283 = vmatprep.subr.bf16.mxu0 0
    %1284 = vmatpush1.bf16.msra.mxu0 %v979
    %1285 = vmatprep.subr.bf16.mxu0 0
    %1286 = vmatpush1.bf16.msra.mxu0 %v980
    %1287 = vmatprep.subr.bf16.mxu0 0
    %1288 = vmatpush1.bf16.msra.mxu0 %v981
    %1289 = vmatprep.subr.bf16.mxu0 0
    %1290 = vmatpush1.bf16.msra.mxu0 %v982
    %1291 = vmatprep.subr.bf16.mxu0 0
    %1292 = vmatpush1.bf16.msra.mxu0 %v983
    %1293 = vmatprep.subr.bf16.mxu0 0
    %1294 = vmatpush1.bf16.msra.mxu0 %v984
    %1295 = vmatprep.subr.bf16.mxu0 0
    %1296 = vmatpush1.bf16.msra.mxu0 %v985
    %1297 = vmatprep.subr.bf16.mxu0 0
    %1298 = vmatpush1.bf16.msra.mxu0 %v986
    %1299 = vmatprep.subr.bf16.mxu0 0
    %1300 = vmatpush1.bf16.msra.mxu0 %v987
    %1301 = vmatprep.subr.bf16.mxu0 0
    %1302 = vmatpush1.bf16.msra.mxu0 %v988
    %1303 = vmatprep.subr.bf16.mxu0 0
    %1304 = vmatpush1.bf16.msra.mxu0 %v989
    %1305 = vmatprep.subr.bf16.mxu0 0
    %1306 = vmatpush1.bf16.msra.mxu0 %v990
    %1307 = vmatprep.subr.bf16.mxu0 0
    %1308 = vmatpush1.bf16.msra.mxu0 %v991
    %1309 = vmatprep.subr.bf16.mxu0 0
    %1310 = vmatpush1.bf16.msra.mxu0 %v992
    %1311 = vmatprep.subr.bf16.mxu0 0
    %1312 = vmatpush1.bf16.msra.mxu0 %v993
    %1313 = vmatprep.subr.bf16.mxu0 0
    %1314 = vmatpush1.bf16.msra.mxu0 %v994
    %1315 = vmatprep.mubr.bf16.mxu0 %v161
    %1316 = vmatmul.mubr.bf16.gmra.mrb[0].mxu0 %v160
    %v1317 = vpop.f32.mrb[0].mxu0
    %v1318 = vadd.f32 %v1278, %v1317
    %v1319 = vpop.f32.mrb[0].mxu0
    %v1320 = vpop.f32.mrb[0].mxu0
    %v1321 = vpop.f32.mrb[0].mxu0
    %1322 = vdwg.mxu0
    %1323 = vmatprep.subr.bf16.mxu0 0
    %1324 = vmatpush1.bf16.msra.mxu0 %v995
    %1325 = vmatprep.subr.bf16.mxu0 0
    %1326 = vmatpush1.bf16.msra.mxu0 %v996
    %1327 = vmatprep.subr.bf16.mxu0 0
    %1328 = vmatpush1.bf16.msra.mxu0 %v997
    %1329 = vmatprep.subr.bf16.mxu0 0
    %1330 = vmatpush1.bf16.msra.mxu0 %v998
    %1331 = vmatprep.subr.bf16.mxu0 0
    %1332 = vmatpush1.bf16.msra.mxu0 %v999
    %1333 = vmatprep.subr.bf16.mxu0 0
    %1334 = vmatpush1.bf16.msra.mxu0 %v1000
    %1335 = vmatprep.subr.bf16.mxu0 0
    %1336 = vmatpush1.bf16.msra.mxu0 %v1001
    %1337 = vmatprep.subr.bf16.mxu0 0
    %1338 = vmatpush1.bf16.msra.mxu0 %v1002
    %1339 = vmatprep.subr.bf16.mxu0 0
    %1340 = vmatpush1.bf16.msra.mxu0 %v1003
    %1341 = vmatprep.subr.bf16.mxu0 0
    %1342 = vmatpush1.bf16.msra.mxu0 %v1004
    %1343 = vmatprep.subr.bf16.mxu0 0
    %1344 = vmatpush1.bf16.msra.mxu0 %v1005
    %1345 = vmatprep.subr.bf16.mxu0 0
    %1346 = vmatpush1.bf16.msra.mxu0 %v1006
    %1347 = vmatprep.subr.bf16.mxu0 0
    %1348 = vmatpush1.bf16.msra.mxu0 %v1007
    %1349 = vmatprep.subr.bf16.mxu0 0
    %1350 = vmatpush1.bf16.msra.mxu0 %v1008
    %1351 = vmatprep.subr.bf16.mxu0 0
    %1352 = vmatpush1.bf16.msra.mxu0 %v1009
    %1353 = vmatprep.subr.bf16.mxu0 0
    %1354 = vmatpush1.bf16.msra.mxu0 %v1010
    %1355 = vmatprep.mubr.bf16.mxu0 %v163
    %1356 = vmatmul.mubr.bf16.gmra.mrb[0].mxu0 %v162
    %v1357 = vpop.f32.mrb[0].mxu0
    %v1358 = vadd.f32 %v1318, %v1357
    %v1359 = vpop.f32.mrb[0].mxu0
    %v1360 = vpop.f32.mrb[0].mxu0
    %v1361 = vpop.f32.mrb[0].mxu0
    %1362 = vdwg.mxu0
    %1363 = vmatprep.subr.bf16.mxu0 0
    %1364 = vmatpush1.bf16.msra.mxu0 %v1011
    %1365 = vmatprep.subr.bf16.mxu0 0
    %1366 = vmatpush1.bf16.msra.mxu0 %v1012
    %1367 = vmatprep.subr.bf16.mxu0 0
    %1368 = vmatpush1.bf16.msra.mxu0 %v1013
    %1369 = vmatprep.subr.bf16.mxu0 0
    %1370 = vmatpush1.bf16.msra.mxu0 %v1014
    %1371 = vmatprep.subr.bf16.mxu0 0
    %1372 = vmatpush1.bf16.msra.mxu0 %v1015
    %1373 = vmatprep.subr.bf16.mxu0 0
    %1374 = vmatpush1.bf16.msra.mxu0 %v1016
    %1375 = vmatprep.subr.bf16.mxu0 0
    %1376 = vmatpush1.bf16.msra.mxu0 %v1017
    %1377 = vmatprep.subr.bf16.mxu0 0
    %1378 = vmatpush1.bf16.msra.mxu0 %v1018
    %1379 = vmatprep.subr.bf16.mxu0 0
    %1380 = vmatpush1.bf16.msra.mxu0 %v1019
    %1381 = vmatprep.subr.bf16.mxu0 0
    %1382 = vmatpush1.bf16.msra.mxu0 %v1020
    %1383 = vmatprep.subr.bf16.mxu0 0
    %1384 = vmatpush1.bf16.msra.mxu0 %v1021
    %1385 = vmatprep.subr.bf16.mxu0 0
    %1386 = vmatpush1.bf16.msra.mxu0 %v1022
    %1387 = vmatprep.subr.bf16.mxu0 0
    %1388 = vmatpush1.bf16.msra.mxu0 %v1023
    %1389 = vmatprep.subr.bf16.mxu0 0
    %1390 = vmatpush1.bf16.msra.mxu0 %v1024
    %1391 = vmatprep.subr.bf16.mxu0 0
    %1392 = vmatpush1.bf16.msra.mxu0 %v1025
    %1393 = vmatprep.subr.bf16.mxu0 0
    %1394 = vmatpush1.bf16.msra.mxu0 %v1026
    %1395 = vmatprep.mubr.bf16.mxu0 %v165
    %1396 = vmatmul.mubr.bf16.gmra.mrb[0].mxu0 %v164
    %v1397 = vpop.f32.mrb[0].mxu0
    %v1398 = vadd.f32 %v1358, %v1397
    %v1399 = vpop.f32.mrb[0].mxu0
    %v1400 = vpop.f32.mrb[0].mxu0
    %v1401 = vpop.f32.mrb[0].mxu0
    %1402 = vdwg.mxu0
    %1403 = vmatprep.subr.bf16.mxu0 0
    %1404 = vmatpush1.bf16.msra.mxu0 %v1027
    %1405 = vmatprep.subr.bf16.mxu0 0
    %1406 = vmatpush1.bf16.msra.mxu0 %v1028
    %1407 = vmatprep.subr.bf16.mxu0 0
    %1408 = vmatpush1.bf16.msra.mxu0 %v1029
    %1409 = vmatprep.subr.bf16.mxu0 0
    %1410 = vmatpush1.bf16.msra.mxu0 %v1030
    %1411 = vmatprep.subr.bf16.mxu0 0
    %1412 = vmatpush1.bf16.msra.mxu0 %v1031
    %1413 = vmatprep.subr.bf16.mxu0 0
    %1414 = vmatpush1.bf16.msra.mxu0 %v1032
    %1415 = vmatprep.subr.bf16.mxu0 0
    %1416 = vmatpush1.bf16.msra.mxu0 %v1033
    %1417 = vmatprep.subr.bf16.mxu0 0
    %1418 = vmatpush1.bf16.msra.mxu0 %v1034
    %1419 = vmatprep.subr.bf16.mxu0 0
    %1420 = vmatpush1.bf16.msra.mxu0 %v1035
    %1421 = vmatprep.subr.bf16.mxu0 0
    %1422 = vmatpush1.bf16.msra.mxu0 %v1036
    %1423 = vmatprep.subr.bf16.mxu0 0
    %1424 = vmatpush1.bf16.msra.mxu0 %v1037
    %1425 = vmatprep.subr.bf16.mxu0 0
    %1426 = vmatpush1.bf16.msra.mxu0 %v1038
    %1427 = vmatprep.subr.bf16.mxu0 0
    %1428 = vmatpush1.bf16.msra.mxu0 %v1039
    %1429 = vmatprep.subr.bf16.mxu0 0
    %1430 = vmatpush1.bf16.msra.mxu0 %v1040
    %1431 = vmatprep.subr.bf16.mxu0 0
    %1432 = vmatpush1.bf16.msra.mxu0 %v1041
    %1433 = vmatprep.subr.bf16.mxu0 0
    %1434 = vmatpush1.bf16.msra.mxu0 %v1042
    %1435 = vmatprep.mubr.bf16.mxu0 %v167
    %1436 = vmatmul.mubr.bf16.gmra.mrb[0].mxu0 %v166
    %v1437 = vpop.f32.mrb[0].mxu0
    %v1438 = vadd.f32 %v1398, %v1437
    %v1439 = vpop.f32.mrb[0].mxu0
    %v1440 = vpop.f32.mrb[0].mxu0
    %v1441 = vpop.f32.mrb[0].mxu0
    %1442 = vdwg.mxu0
    %1443 = vmatprep.subr.bf16.mxu0 0
    %1444 = vmatpush1.bf16.msra.mxu0 %v1043
    %1445 = vmatprep.subr.bf16.mxu0 0
    %1446 = vmatpush1.bf16.msra.mxu0 %v1044
    %1447 = vmatprep.subr.bf16.mxu0 0
    %1448 = vmatpush1.bf16.msra.mxu0 %v1045
    %1449 = vmatprep.subr.bf16.mxu0 0
    %1450 = vmatpush1.bf16.msra.mxu0 %v1046
    %1451 = vmatprep.subr.bf16.mxu0 0
    %1452 = vmatpush1.bf16.msra.mxu0 %v1047
    %1453 = vmatprep.subr.bf16.mxu0 0
    %1454 = vmatpush1.bf16.msra.mxu0 %v1048
    %1455 = vmatprep.subr.bf16.mxu0 0
    %1456 = vmatpush1.bf16.msra.mxu0 %v1049
    %1457 = vmatprep.subr.bf16.mxu0 0
    %1458 = vmatpush1.bf16.msra.mxu0 %v1050
    %1459 = vmatprep.subr.bf16.mxu0 0
    %1460 = vmatpush1.bf16.msra.mxu0 %v1051
    %1461 = vmatprep.subr.bf16.mxu0 0
    %1462 = vmatpush1.bf16.msra.mxu0 %v1052
    %1463 = vmatprep.subr.bf16.mxu0 0
    %1464 = vmatpush1.bf16.msra.mxu0 %v1053
    %1465 = vmatprep.subr.bf16.mxu0 0
    %1466 = vmatpush1.bf16.msra.mxu0 %v1054
    %1467 = vmatprep.subr.bf16.mxu0 0
    %1468 = vmatpush1.bf16.msra.mxu0 %v1055
    %1469 = vmatprep.subr.bf16.mxu0 0
    %1470 = vmatpush1.bf16.msra.mxu0 %v1056
    %1471 = vmatprep.subr.bf16.mxu0 0
    %1472 = vmatpush1.bf16.msra.mxu0 %v1057
    %1473 = vmatprep.subr.bf16.mxu0 0
    %1474 = vmatpush1.bf16.msra.mxu0 %v1058
    %1475 = vmatprep.mubr.bf16.mxu0 %v169
    %1476 = vmatmul.mubr.bf16.gmra.mrb[0].mxu0 %v168
    %v1477 = vpop.f32.mrb[0].mxu0
    %v1478 = vadd.f32 %v1438, %v1477
    %v1479 = vpop.f32.mrb[0].mxu0
    %v1480 = vpop.f32.mrb[0].mxu0
    %v1481 = vpop.f32.mrb[0].mxu0
    %1482 = vdwg.mxu0
    %1483 = vmatprep.subr.bf16.mxu0 0
    %1484 = vmatpush1.bf16.msra.mxu0 %v1059
    %1485 = vmatprep.subr.bf16.mxu0 0
    %1486 = vmatpush1.bf16.msra.mxu0 %v1060
    %1487 = vmatprep.subr.bf16.mxu0 0
    %1488 = vmatpush1.bf16.msra.mxu0 %v1061
    %1489 = vmatprep.subr.bf16.mxu0 0
    %1490 = vmatpush1.bf16.msra.mxu0 %v1062
    %1491 = vmatprep.subr.bf16.mxu0 0
    %1492 = vmatpush1.bf16.msra.mxu0 %v1063
    %1493 = vmatprep.subr.bf16.mxu0 0
    %1494 = vmatpush1.bf16.msra.mxu0 %v1064
    %1495 = vmatprep.subr.bf16.mxu0 0
    %1496 = vmatpush1.bf16.msra.mxu0 %v1065
    %1497 = vmatprep.subr.bf16.mxu0 0
    %1498 = vmatpush1.bf16.msra.mxu0 %v1066
    %1499 = vmatprep.subr.bf16.mxu0 0
    %1500 = vmatpush1.bf16.msra.mxu0 %v1067
    %1501 = vmatprep.subr.bf16.mxu0 0
    %1502 = vmatpush1.bf16.msra.mxu0 %v1068
    %1503 = vmatprep.subr.bf16.mxu0 0
    %1504 = vmatpush1.bf16.msra.mxu0 %v1069
    %1505 = vmatprep.subr.bf16.mxu0 0
    %1506 = vmatpush1.bf16.msra.mxu0 %v1070
    %1507 = vmatprep.subr.bf16.mxu0 0
    %1508 = vmatpush1.bf16.msra.mxu0 %v1071
    %1509 = vmatprep.subr.bf16.mxu0 0
    %1510 = vmatpush1.bf16.msra.mxu0 %v1072
    %1511 = vmatprep.subr.bf16.mxu0 0
    %1512 = vmatpush1.bf16.msra.mxu0 %v1073
    %1513 = vmatprep.subr.bf16.mxu0 0
    %1514 = vmatpush1.bf16.msra.mxu0 %v1074
    %1515 = vmatprep.mubr.bf16.mxu0 %v171
    %1516 = vmatmul.mubr.bf16.gmra.mrb[0].mxu0 %v170
    %v1517 = vpop.f32.mrb[0].mxu0
    %v1518 = vadd.f32 %v1478, %v1517
    %v1519 = vpop.f32.mrb[0].mxu0
    %v1520 = vpop.f32.mrb[0].mxu0
    %v1521 = vpop.f32.mrb[0].mxu0
    %1522 = vdwg.mxu0
    %v1523 = vld [vmem:[%s3] sm:$0x1]
    %v1524 = vld [vmem:[%s4] sm:$0x1]
    %vm1525 = vcmask 1041408
    %v1526 = vsel %vm1525, %v1518, 0.0
    %v1527 = vrot.slane %v1526, 4
    %v1528 = vadd.f32 %v1526, %v1527
    %v1529 = vrot.slane %v1528, 2
    %v1530 = vadd.f32 %v1528, %v1529
    %v1531 = vrot.slane %v1530, 1
    %v1532 = vadd.f32 %v1530, %v1531
    %v1533 = vmul.f32 %v1532, 0.5
    %v1534 = vmul.f32 %v1518, %v1518
    %v1535 = vsel %vm1525, %v1534, 0.0
    %v1536 = vrot.slane %v1535, 4
    %v1537 = vadd.f32 %v1535, %v1536
    %v1538 = vrot.slane %v1537, 2
    %v1539 = vadd.f32 %v1537, %v1538
    %v1540 = vrot.slane %v1539, 1
    %v1541 = vadd.f32 %v1539, %v1540
    %v1542 = vmul.f32 %v1541, 0.5
    %v1543 = vmul.f32 %v1533, %v1533
    %v1544 = vsub.f32 %v1542, %v1543
    %v1545 = vmax.f32 %v1544, 0.0
    %v1546 = vsub.f32 %v1518, %v1533
    %v1547 = vadd.f32 %v1545, 1e-05
    %v1548 = vrsqrt.pop %v1547
    %v1549 = vmul.f32 %v1546, %v1548
    %v1551 = vlaneseq
    %v1552 = vshrl.u32 %v1551, 7
    %v1553 = vsub.s32 0, %v1552
    %v1554 = vrot.slane %v1523, %v1553
    %v1556 = vmul.f32 %v1549, %v1554
    %v1558 = vlaneseq
    %v1559 = vshrl.u32 %v1558, 7
    %v1560 = vsub.s32 0, %v1559
    %v1561 = vrot.slane %v1524, %v1560
    %v1563 = vadd.f32 %v1556, %v1561
    %v1564 = vmax.f32 %v1563, 0.0
    %1565 = vst [vmem:[#allocation7] sm:$0x3] %v1564
    %v1566 = vpack.c.bf16 %v1564, %v1564
    %v1567 = vld [vmem:[#allocation5] sm:$0xff]
    %v1568 = vld [vmem:[#allocation5 + $0x8] sm:$0xff]
    %v1569 = vld [vmem:[#allocation5 + $0x10] sm:$0xff]
    %v1570 = vld [vmem:[#allocation5 + $0x18] sm:$0xff]
    %v1571 = vld [vmem:[#allocation5 + $0x20] sm:$0xff]
    %v1572 = vld [vmem:[#allocation5 + $0x28] sm:$0xff]
    %v1573 = vld [vmem:[#allocation5 + $0x30] sm:$0xff]
    %v1574 = vld [vmem:[#allocation5 + $0x38] sm:$0xff]
    %v1575 = vld [vmem:[#allocation5 + $0x40] sm:$0xff]
    %v1576 = vld [vmem:[#allocation5 + $0x48] sm:$0xff]
    %v1577 = vld [vmem:[#allocation5 + $0x50] sm:$0xff]
    %v1578 = vld [vmem:[#allocation5 + $0x58] sm:$0xff]
    %v1579 = vld [vmem:[#allocation5 + $0x60] sm:$0xff]
    %v1580 = vld [vmem:[#allocation5 + $0x68] sm:$0xff]
    %v1581 = vld [vmem:[#allocation5 + $0x70] sm:$0xff]
    %v1582 = vld [vmem:[#allocation5 + $0x78] sm:$0xff]
    %v1583 = vld [vmem:[#allocation5 + $0x80] sm:$0xff]
    %v1584 = vld [vmem:[#allocation5 + $0x88] sm:$0xff]
    %v1585 = vld [vmem:[#allocation5 + $0x90] sm:$0xff]
    %v1586 = vld [vmem:[#allocation5 + $0x98] sm:$0xff]
    %v1587 = vld [vmem:[#allocation5 + $0xa0] sm:$0xff]
    %v1588 = vld [vmem:[#allocation5 + $0xa8] sm:$0xff]
    %v1589 = vld [vmem:[#allocation5 + $0xb0] sm:$0xff]
    %v1590 = vld [vmem:[#allocation5 + $0xb8] sm:$0xff]
    %v1591 = vld [vmem:[#allocation5 + $0xc0] sm:$0xff]
    %v1592 = vld [vmem:[#allocation5 + $0xc8] sm:$0xff]
    %v1593 = vld [vmem:[#allocation5 + $0xd0] sm:$0xff]
    %v1594 = vld [vmem:[#allocation5 + $0xd8] sm:$0xff]
    %v1595 = vld [vmem:[#allocation5 + $0xe0] sm:$0xff]
    %v1596 = vld [vmem:[#allocation5 + $0xe8] sm:$0xff]
    %v1597 = vld [vmem:[#allocation5 + $0xf0] sm:$0xff]
    %v1598 = vld [vmem:[#allocation5 + $0xf8] sm:$0xff]
    %v1599 = vld [vmem:[#allocation5 + $0x100] sm:$0xff]
    %v1600 = vld [vmem:[#allocation5 + $0x108] sm:$0xff]
    %v1601 = vld [vmem:[#allocation5 + $0x110] sm:$0xff]
    %v1602 = vld [vmem:[#allocation5 + $0x118] sm:$0xff]
    %v1603 = vld [vmem:[#allocation5 + $0x120] sm:$0xff]
    %v1604 = vld [vmem:[#allocation5 + $0x128] sm:$0xff]
    %v1605 = vld [vmem:[#allocation5 + $0x130] sm:$0xff]
    %v1606 = vld [vmem:[#allocation5 + $0x138] sm:$0xff]
    %v1607 = vld [vmem:[#allocation5 + $0x140] sm:$0xff]
    %v1608 = vld [vmem:[#allocation5 + $0x148] sm:$0xff]
    %v1609 = vld [vmem:[#allocation5 + $0x150] sm:$0xff]
    %v1610 = vld [vmem:[#allocation5 + $0x158] sm:$0xff]
    %v1611 = vld [vmem:[#allocation5 + $0x160] sm:$0xff]
    %v1612 = vld [vmem:[#allocation5 + $0x168] sm:$0xff]
    %v1613 = vld [vmem:[#allocation5 + $0x170] sm:$0xff]
    %v1614 = vld [vmem:[#allocation5 + $0x178] sm:$0xff]
    %v1615 = vld [vmem:[#allocation5 + $0x180] sm:$0xff]
    %v1616 = vld [vmem:[#allocation5 + $0x188] sm:$0xff]
    %v1617 = vld [vmem:[#allocation5 + $0x190] sm:$0xff]
    %v1618 = vld [vmem:[#allocation5 + $0x198] sm:$0xff]
    %v1619 = vld [vmem:[#allocation5 + $0x1a0] sm:$0xff]
    %v1620 = vld [vmem:[#allocation5 + $0x1a8] sm:$0xff]
    %v1621 = vld [vmem:[#allocation5 + $0x1b0] sm:$0xff]
    %v1622 = vld [vmem:[#allocation5 + $0x1b8] sm:$0xff]
    %v1623 = vld [vmem:[#allocation5 + $0x1c0] sm:$0xff]
    %v1624 = vld [vmem:[#allocation5 + $0x1c8] sm:$0xff]
    %v1625 = vld [vmem:[#allocation5 + $0x1d0] sm:$0xff]
    %v1626 = vld [vmem:[#allocation5 + $0x1d8] sm:$0xff]
    %v1627 = vld [vmem:[#allocation5 + $0x1e0] sm:$0xff]
    %v1628 = vld [vmem:[#allocation5 + $0x1e8] sm:$0xff]
    %v1629 = vld [vmem:[#allocation5 + $0x1f0] sm:$0xff]
    %v1630 = vld [vmem:[#allocation5 + $0x1f8] sm:$0xff]
    %v1631 = vld [vmem:[#allocation5 + $0x200] sm:$0xff]
    %v1632 = vld [vmem:[#allocation5 + $0x208] sm:$0xff]
    %v1633 = vld [vmem:[#allocation5 + $0x210] sm:$0xff]
    %v1634 = vld [vmem:[#allocation5 + $0x218] sm:$0xff]
    %v1635 = vld [vmem:[#allocation5 + $0x220] sm:$0xff]
    %v1636 = vld [vmem:[#allocation5 + $0x228] sm:$0xff]
    %v1637 = vld [vmem:[#allocation5 + $0x230] sm:$0xff]
    %v1638 = vld [vmem:[#allocation5 + $0x238] sm:$0xff]
    %v1639 = vld [vmem:[#allocation5 + $0x240] sm:$0xff]
    %v1640 = vld [vmem:[#allocation5 + $0x248] sm:$0xff]
    %v1641 = vld [vmem:[#allocation5 + $0x250] sm:$0xff]
    %v1642 = vld [vmem:[#allocation5 + $0x258] sm:$0xff]
    %v1643 = vld [vmem:[#allocation5 + $0x260] sm:$0xff]
    %v1644 = vld [vmem:[#allocation5 + $0x268] sm:$0xff]
    %v1645 = vld [vmem:[#allocation5 + $0x270] sm:$0xff]
    %v1646 = vld [vmem:[#allocation5 + $0x278] sm:$0xff]
    %v1647 = vld [vmem:[#allocation5 + $0x280] sm:$0xff]
    %v1648 = vld [vmem:[#allocation5 + $0x288] sm:$0xff]
    %v1649 = vld [vmem:[#allocation5 + $0x290] sm:$0xff]
    %v1650 = vld [vmem:[#allocation5 + $0x298] sm:$0xff]
    %v1651 = vld [vmem:[#allocation5 + $0x2a0] sm:$0xff]
    %v1652 = vld [vmem:[#allocation5 + $0x2a8] sm:$0xff]
    %v1653 = vld [vmem:[#allocation5 + $0x2b0] sm:$0xff]
    %v1654 = vld [vmem:[#allocation5 + $0x2b8] sm:$0xff]
    %v1655 = vld [vmem:[#allocation5 + $0x2c0] sm:$0xff]
    %v1656 = vld [vmem:[#allocation5 + $0x2c8] sm:$0xff]
    %v1657 = vld [vmem:[#allocation5 + $0x2d0] sm:$0xff]
    %v1658 = vld [vmem:[#allocation5 + $0x2d8] sm:$0xff]
    %v1659 = vld [vmem:[#allocation5 + $0x2e0] sm:$0xff]
    %v1660 = vld [vmem:[#allocation5 + $0x2e8] sm:$0xff]
    %v1661 = vld [vmem:[#allocation5 + $0x2f0] sm:$0xff]
    %v1662 = vld [vmem:[#allocation5 + $0x2f8] sm:$0xff]
    %v1663 = vld [vmem:[#allocation5 + $0x300] sm:$0xff]
    %v1664 = vld [vmem:[#allocation5 + $0x308] sm:$0xff]
    %v1665 = vld [vmem:[#allocation5 + $0x310] sm:$0xff]
    %v1666 = vld [vmem:[#allocation5 + $0x318] sm:$0xff]
    %v1667 = vld [vmem:[#allocation5 + $0x320] sm:$0xff]
    %v1668 = vld [vmem:[#allocation5 + $0x328] sm:$0xff]
    %v1669 = vld [vmem:[#allocation5 + $0x330] sm:$0xff]
    %v1670 = vld [vmem:[#allocation5 + $0x338] sm:$0xff]
    %v1671 = vld [vmem:[#allocation5 + $0x340] sm:$0xff]
    %v1672 = vld [vmem:[#allocation5 + $0x348] sm:$0xff]
    %v1673 = vld [vmem:[#allocation5 + $0x350] sm:$0xff]
    %v1674 = vld [vmem:[#allocation5 + $0x358] sm:$0xff]
    %v1675 = vld [vmem:[#allocation5 + $0x360] sm:$0xff]
    %v1676 = vld [vmem:[#allocation5 + $0x368] sm:$0xff]
    %v1677 = vld [vmem:[#allocation5 + $0x370] sm:$0xff]
    %v1678 = vld [vmem:[#allocation5 + $0x378] sm:$0xff]
    %v1679 = vld [vmem:[#allocation5 + $0x380] sm:$0xff]
    %v1680 = vld [vmem:[#allocation5 + $0x388] sm:$0xff]
    %v1681 = vld [vmem:[#allocation5 + $0x390] sm:$0xff]
    %v1682 = vld [vmem:[#allocation5 + $0x398] sm:$0xff]
    %v1683 = vld [vmem:[#allocation5 + $0x3a0] sm:$0xff]
    %v1684 = vld [vmem:[#allocation5 + $0x3a8] sm:$0xff]
    %v1685 = vld [vmem:[#allocation5 + $0x3b0] sm:$0xff]
    %v1686 = vld [vmem:[#allocation5 + $0x3b8] sm:$0xff]
    %v1687 = vld [vmem:[#allocation5 + $0x3c0] sm:$0xff]
    %v1688 = vld [vmem:[#allocation5 + $0x3c8] sm:$0xff]
    %v1689 = vld [vmem:[#allocation5 + $0x3d0] sm:$0xff]
    %v1690 = vld [vmem:[#allocation5 + $0x3d8] sm:$0xff]
    %v1691 = vld [vmem:[#allocation5 + $0x3e0] sm:$0xff]
    %v1692 = vld [vmem:[#allocation5 + $0x3e8] sm:$0xff]
    %v1693 = vld [vmem:[#allocation5 + $0x3f0] sm:$0xff]
    %v1694 = vld [vmem:[#allocation5 + $0x3f8] sm:$0xff]
    %v1695 = vld [vmem:[%s6] sm:$0xff]
    %v1696 = vld [vmem:[%s6 + $0x8] sm:$0xff]
    %v1699 = vlaneseq
    %v1700 = vshrl.u32 %v1699, 7
    %v1701 = vsub.s32 0, %v1700
    %v1702 = vrot.slane %v1695, %v1701
    %v1703 = vlaneseq
    %v1704 = vshrl.u32 %v1703, 7
    %v1705 = vsub.s32 1, %v1704
    %v1706 = vrot.slane %v1695, %v1705
    %v1707 = vlaneseq
    %v1708 = vshrl.u32 %v1707, 7
    %v1709 = vsub.s32 2, %v1708
    %v1710 = vrot.slane %v1695, %v1709
    %v1711 = vlaneseq
    %v1712 = vshrl.u32 %v1711, 7
    %v1713 = vsub.s32 3, %v1712
    %v1714 = vrot.slane %v1695, %v1713
    %v1715 = vlaneseq
    %v1716 = vshrl.u32 %v1715, 7
    %v1717 = vsub.s32 4, %v1716
    %v1718 = vrot.slane %v1695, %v1717
    %v1719 = vlaneseq
    %v1720 = vshrl.u32 %v1719, 7
    %v1721 = vsub.s32 5, %v1720
    %v1722 = vrot.slane %v1695, %v1721
    %v1723 = vlaneseq
    %v1724 = vshrl.u32 %v1723, 7
    %v1725 = vsub.s32 6, %v1724
    %v1726 = vrot.slane %v1695, %v1725
    %v1727 = vlaneseq
    %v1728 = vshrl.u32 %v1727, 7
    %v1729 = vsub.s32 7, %v1728
    %v1730 = vrot.slane %v1695, %v1729
    %v1731 = vlaneseq
    %v1732 = vshrl.u32 %v1731, 7
    %v1733 = vsub.s32 0, %v1732
    %v1734 = vrot.slane %v1696, %v1733
    %v1735 = vlaneseq
    %v1736 = vshrl.u32 %v1735, 7
    %v1737 = vsub.s32 1, %v1736
    %v1738 = vrot.slane %v1696, %v1737
    %v1739 = vlaneseq
    %v1740 = vshrl.u32 %v1739, 7
    %v1741 = vsub.s32 2, %v1740
    %v1742 = vrot.slane %v1696, %v1741
    %v1743 = vlaneseq
    %v1744 = vshrl.u32 %v1743, 7
    %v1745 = vsub.s32 3, %v1744
    %v1746 = vrot.slane %v1696, %v1745
    %v1747 = vlaneseq
    %v1748 = vshrl.u32 %v1747, 7
    %v1749 = vsub.s32 4, %v1748
    %v1750 = vrot.slane %v1696, %v1749
    %v1751 = vlaneseq
    %v1752 = vshrl.u32 %v1751, 7
    %v1753 = vsub.s32 5, %v1752
    %v1754 = vrot.slane %v1696, %v1753
    %v1755 = vlaneseq
    %v1756 = vshrl.u32 %v1755, 7
    %v1757 = vsub.s32 6, %v1756
    %v1758 = vrot.slane %v1696, %v1757
    %v1759 = vlaneseq
    %v1760 = vshrl.u32 %v1759, 7
    %v1761 = vsub.s32 7, %v1760
    %v1762 = vrot.slane %v1696, %v1761
    %v1907 = vunpack.c.l.b16 %v1567
    %v1908 = vunpack.c.h.b16 %v1567
    %v1909 = vunpack.c.l.b16 %v1568
    %v1910 = vunpack.c.h.b16 %v1568
    %v1911 = vunpack.c.l.b16 %v1569
    %v1912 = vunpack.c.h.b16 %v1569
    %v1913 = vunpack.c.l.b16 %v1570
    %v1914 = vunpack.c.h.b16 %v1570
    %v1915 = vunpack.c.l.b16 %v1571
    %v1916 = vunpack.c.h.b16 %v1571
    %v1917 = vunpack.c.l.b16 %v1572
    %v1918 = vunpack.c.h.b16 %v1572
    %v1919 = vunpack.c.l.b16 %v1573
    %v1920 = vunpack.c.h.b16 %v1573
    %v1921 = vunpack.c.l.b16 %v1574
    %v1922 = vunpack.c.h.b16 %v1574
    %v1923 = vunpack.c.l.b16 %v1575
    %v1924 = vunpack.c.h.b16 %v1575
    %v1925 = vunpack.c.l.b16 %v1576
    %v1926 = vunpack.c.h.b16 %v1576
    %v1927 = vunpack.c.l.b16 %v1577
    %v1928 = vunpack.c.h.b16 %v1577
    %v1929 = vunpack.c.l.b16 %v1578
    %v1930 = vunpack.c.h.b16 %v1578
    %v1931 = vunpack.c.l.b16 %v1579
    %v1932 = vunpack.c.h.b16 %v1579
    %v1933 = vunpack.c.l.b16 %v1580
    %v1934 = vunpack.c.h.b16 %v1580
    %v1935 = vunpack.c.l.b16 %v1581
    %v1936 = vunpack.c.h.b16 %v1581
    %v1937 = vunpack.c.l.b16 %v1582
    %v1938 = vunpack.c.h.b16 %v1582
    %v1939 = vunpack.c.l.b16 %v1583
    %v1940 = vunpack.c.h.b16 %v1583
    %v1941 = vunpack.c.l.b16 %v1584
    %v1942 = vunpack.c.h.b16 %v1584
    %v1943 = vunpack.c.l.b16 %v1585
    %v1944 = vunpack.c.h.b16 %v1585
    %v1945 = vunpack.c.l.b16 %v1586
    %v1946 = vunpack.c.h.b16 %v1586
    %v1947 = vunpack.c.l.b16 %v1587
    %v1948 = vunpack.c.h.b16 %v1587
    %v1949 = vunpack.c.l.b16 %v1588
    %v1950 = vunpack.c.h.b16 %v1588
    %v1951 = vunpack.c.l.b16 %v1589
    %v1952 = vunpack.c.h.b16 %v1589
    %v1953 = vunpack.c.l.b16 %v1590
    %v1954 = vunpack.c.h.b16 %v1590
    %v1955 = vunpack.c.l.b16 %v1591
    %v1956 = vunpack.c.h.b16 %v1591
    %v1957 = vunpack.c.l.b16 %v1592
    %v1958 = vunpack.c.h.b16 %v1592
    %v1959 = vunpack.c.l.b16 %v1593
    %v1960 = vunpack.c.h.b16 %v1593
    %v1961 = vunpack.c.l.b16 %v1594
    %v1962 = vunpack.c.h.b16 %v1594
    %v1963 = vunpack.c.l.b16 %v1595
    %v1964 = vunpack.c.h.b16 %v1595
    %v1965 = vunpack.c.l.b16 %v1596
    %v1966 = vunpack.c.h.b16 %v1596
    %v1967 = vunpack.c.l.b16 %v1597
    %v1968 = vunpack.c.h.b16 %v1597
    %v1969 = vunpack.c.l.b16 %v1598
    %v1970 = vunpack.c.h.b16 %v1598
    %v1971 = vunpack.c.l.b16 %v1599
    %v1972 = vunpack.c.h.b16 %v1599
    %v1973 = vunpack.c.l.b16 %v1600
    %v1974 = vunpack.c.h.b16 %v1600
    %v1975 = vunpack.c.l.b16 %v1601
    %v1976 = vunpack.c.h.b16 %v1601
    %v1977 = vunpack.c.l.b16 %v1602
    %v1978 = vunpack.c.h.b16 %v1602
    %v1979 = vunpack.c.l.b16 %v1603
    %v1980 = vunpack.c.h.b16 %v1603
    %v1981 = vunpack.c.l.b16 %v1604
    %v1982 = vunpack.c.h.b16 %v1604
    %v1983 = vunpack.c.l.b16 %v1605
    %v1984 = vunpack.c.h.b16 %v1605
    %v1985 = vunpack.c.l.b16 %v1606
    %v1986 = vunpack.c.h.b16 %v1606
    %v1987 = vunpack.c.l.b16 %v1607
    %v1988 = vunpack.c.h.b16 %v1607
    %v1989 = vunpack.c.l.b16 %v1608
    %v1990 = vunpack.c.h.b16 %v1608
    %v1991 = vunpack.c.l.b16 %v1609
    %v1992 = vunpack.c.h.b16 %v1609
    %v1993 = vunpack.c.l.b16 %v1610
    %v1994 = vunpack.c.h.b16 %v1610
    %v1995 = vunpack.c.l.b16 %v1611
    %v1996 = vunpack.c.h.b16 %v1611
    %v1997 = vunpack.c.l.b16 %v1612
    %v1998 = vunpack.c.h.b16 %v1612
    %v1999 = vunpack.c.l.b16 %v1613
    %v2000 = vunpack.c.h.b16 %v1613
    %v2001 = vunpack.c.l.b16 %v1614
    %v2002 = vunpack.c.h.b16 %v1614
    %v2003 = vunpack.c.l.b16 %v1615
    %v2004 = vunpack.c.h.b16 %v1615
    %v2005 = vunpack.c.l.b16 %v1616
    %v2006 = vunpack.c.h.b16 %v1616
    %v2007 = vunpack.c.l.b16 %v1617
    %v2008 = vunpack.c.h.b16 %v1617
    %v2009 = vunpack.c.l.b16 %v1618
    %v2010 = vunpack.c.h.b16 %v1618
    %v2011 = vunpack.c.l.b16 %v1619
    %v2012 = vunpack.c.h.b16 %v1619
    %v2013 = vunpack.c.l.b16 %v1620
    %v2014 = vunpack.c.h.b16 %v1620
    %v2015 = vunpack.c.l.b16 %v1621
    %v2016 = vunpack.c.h.b16 %v1621
    %v2017 = vunpack.c.l.b16 %v1622
    %v2018 = vunpack.c.h.b16 %v1622
    %v2019 = vunpack.c.l.b16 %v1623
    %v2020 = vunpack.c.h.b16 %v1623
    %v2021 = vunpack.c.l.b16 %v1624
    %v2022 = vunpack.c.h.b16 %v1624
    %v2023 = vunpack.c.l.b16 %v1625
    %v2024 = vunpack.c.h.b16 %v1625
    %v2025 = vunpack.c.l.b16 %v1626
    %v2026 = vunpack.c.h.b16 %v1626
    %v2027 = vunpack.c.l.b16 %v1627
    %v2028 = vunpack.c.h.b16 %v1627
    %v2029 = vunpack.c.l.b16 %v1628
    %v2030 = vunpack.c.h.b16 %v1628
    %v2031 = vunpack.c.l.b16 %v1629
    %v2032 = vunpack.c.h.b16 %v1629
    %v2033 = vunpack.c.l.b16 %v1630
    %v2034 = vunpack.c.h.b16 %v1630
    %v2035 = vunpack.c.l.b16 %v1631
    %v2036 = vunpack.c.h.b16 %v1631
    %v2037 = vunpack.c.l.b16 %v1632
    %v2038 = vunpack.c.h.b16 %v1632
    %v2039 = vunpack.c.l.b16 %v1633
    %v2040 = vunpack.c.h.b16 %v1633
    %v2041 = vunpack.c.l.b16 %v1634
    %v2042 = vunpack.c.h.b16 %v1634
    %v2043 = vunpack.c.l.b16 %v1635
    %v2044 = vunpack.c.h.b16 %v1635
    %v2045 = vunpack.c.l.b16 %v1636
    %v2046 = vunpack.c.h.b16 %v1636
    %v2047 = vunpack.c.l.b16 %v1637
    %v2048 = vunpack.c.h.b16 %v1637
    %v2049 = vunpack.c.l.b16 %v1638
    %v2050 = vunpack.c.h.b16 %v1638
    %v2051 = vunpack.c.l.b16 %v1639
    %v2052 = vunpack.c.h.b16 %v1639
    %v2053 = vunpack.c.l.b16 %v1640
    %v2054 = vunpack.c.h.b16 %v1640
    %v2055 = vunpack.c.l.b16 %v1641
    %v2056 = vunpack.c.h.b16 %v1641
    %v2057 = vunpack.c.l.b16 %v1642
    %v2058 = vunpack.c.h.b16 %v1642
    %v2059 = vunpack.c.l.b16 %v1643
    %v2060 = vunpack.c.h.b16 %v1643
    %v2061 = vunpack.c.l.b16 %v1644
    %v2062 = vunpack.c.h.b16 %v1644
    %v2063 = vunpack.c.l.b16 %v1645
    %v2064 = vunpack.c.h.b16 %v1645
    %v2065 = vunpack.c.l.b16 %v1646
    %v2066 = vunpack.c.h.b16 %v1646
    %v2067 = vunpack.c.l.b16 %v1647
    %v2068 = vunpack.c.h.b16 %v1647
    %v2069 = vunpack.c.l.b16 %v1648
    %v2070 = vunpack.c.h.b16 %v1648
    %v2071 = vunpack.c.l.b16 %v1649
    %v2072 = vunpack.c.h.b16 %v1649
    %v2073 = vunpack.c.l.b16 %v1650
    %v2074 = vunpack.c.h.b16 %v1650
    %v2075 = vunpack.c.l.b16 %v1651
    %v2076 = vunpack.c.h.b16 %v1651
    %v2077 = vunpack.c.l.b16 %v1652
    %v2078 = vunpack.c.h.b16 %v1652
    %v2079 = vunpack.c.l.b16 %v1653
    %v2080 = vunpack.c.h.b16 %v1653
    %v2081 = vunpack.c.l.b16 %v1654
    %v2082 = vunpack.c.h.b16 %v1654
    %v2083 = vunpack.c.l.b16 %v1655
    %v2084 = vunpack.c.h.b16 %v1655
    %v2085 = vunpack.c.l.b16 %v1656
    %v2086 = vunpack.c.h.b16 %v1656
    %v2087 = vunpack.c.l.b16 %v1657
    %v2088 = vunpack.c.h.b16 %v1657
    %v2089 = vunpack.c.l.b16 %v1658
    %v2090 = vunpack.c.h.b16 %v1658
    %v2091 = vunpack.c.l.b16 %v1659
    %v2092 = vunpack.c.h.b16 %v1659
    %v2093 = vunpack.c.l.b16 %v1660
    %v2094 = vunpack.c.h.b16 %v1660
    %v2095 = vunpack.c.l.b16 %v1661
    %v2096 = vunpack.c.h.b16 %v1661
    %v2097 = vunpack.c.l.b16 %v1662
    %v2098 = vunpack.c.h.b16 %v1662
    %v2099 = vunpack.c.l.b16 %v1663
    %v2100 = vunpack.c.h.b16 %v1663
    %v2101 = vunpack.c.l.b16 %v1664
    %v2102 = vunpack.c.h.b16 %v1664
    %v2103 = vunpack.c.l.b16 %v1665
    %v2104 = vunpack.c.h.b16 %v1665
    %v2105 = vunpack.c.l.b16 %v1666
    %v2106 = vunpack.c.h.b16 %v1666
    %v2107 = vunpack.c.l.b16 %v1667
    %v2108 = vunpack.c.h.b16 %v1667
    %v2109 = vunpack.c.l.b16 %v1668
    %v2110 = vunpack.c.h.b16 %v1668
    %v2111 = vunpack.c.l.b16 %v1669
    %v2112 = vunpack.c.h.b16 %v1669
    %v2113 = vunpack.c.l.b16 %v1670
    %v2114 = vunpack.c.h.b16 %v1670
    %v2115 = vunpack.c.l.b16 %v1671
    %v2116 = vunpack.c.h.b16 %v1671
    %v2117 = vunpack.c.l.b16 %v1672
    %v2118 = vunpack.c.h.b16 %v1672
    %v2119 = vunpack.c.l.b16 %v1673
    %v2120 = vunpack.c.h.b16 %v1673
    %v2121 = vunpack.c.l.b16 %v1674
    %v2122 = vunpack.c.h.b16 %v1674
    %v2123 = vunpack.c.l.b16 %v1675
    %v2124 = vunpack.c.h.b16 %v1675
    %v2125 = vunpack.c.l.b16 %v1676
    %v2126 = vunpack.c.h.b16 %v1676
    %v2127 = vunpack.c.l.b16 %v1677
    %v2128 = vunpack.c.h.b16 %v1677
    %v2129 = vunpack.c.l.b16 %v1678
    %v2130 = vunpack.c.h.b16 %v1678
    %v2131 = vunpack.c.l.b16 %v1679
    %v2132 = vunpack.c.h.b16 %v1679
    %v2133 = vunpack.c.l.b16 %v1680
    %v2134 = vunpack.c.h.b16 %v1680
    %v2135 = vunpack.c.l.b16 %v1681
    %v2136 = vunpack.c.h.b16 %v1681
    %v2137 = vunpack.c.l.b16 %v1682
    %v2138 = vunpack.c.h.b16 %v1682
    %v2139 = vunpack.c.l.b16 %v1683
    %v2140 = vunpack.c.h.b16 %v1683
    %v2141 = vunpack.c.l.b16 %v1684
    %v2142 = vunpack.c.h.b16 %v1684
    %v2143 = vunpack.c.l.b16 %v1685
    %v2144 = vunpack.c.h.b16 %v1685
    %v2145 = vunpack.c.l.b16 %v1686
    %v2146 = vunpack.c.h.b16 %v1686
    %v2147 = vunpack.c.l.b16 %v1687
    %v2148 = vunpack.c.h.b16 %v1687
    %v2149 = vunpack.c.l.b16 %v1688
    %v2150 = vunpack.c.h.b16 %v1688
    %v2151 = vunpack.c.l.b16 %v1689
    %v2152 = vunpack.c.h.b16 %v1689
    %v2153 = vunpack.c.l.b16 %v1690
    %v2154 = vunpack.c.h.b16 %v1690
    %v2155 = vunpack.c.l.b16 %v1691
    %v2156 = vunpack.c.h.b16 %v1691
    %v2157 = vunpack.c.l.b16 %v1692
    %v2158 = vunpack.c.h.b16 %v1692
    %v2159 = vunpack.c.l.b16 %v1693
    %v2160 = vunpack.c.h.b16 %v1693
    %v2161 = vunpack.c.l.b16 %v1694
    %v2162 = vunpack.c.h.b16 %v1694
    %v2163 = vpack.c.b16 %v1923, %v1907
    %v2164 = vpack.c.b16 %v1924, %v1908
    %v2165 = vpack.c.b16 %v1925, %v1909
    %v2166 = vpack.c.b16 %v1926, %v1910
    %v2167 = vpack.c.b16 %v1927, %v1911
    %v2168 = vpack.c.b16 %v1928, %v1912
    %v2169 = vpack.c.b16 %v1929, %v1913
    %v2170 = vpack.c.b16 %v1930, %v1914
    %v2171 = vpack.c.b16 %v1931, %v1915
    %v2172 = vpack.c.b16 %v1932, %v1916
    %v2173 = vpack.c.b16 %v1933, %v1917
    %v2174 = vpack.c.b16 %v1934, %v1918
    %v2175 = vpack.c.b16 %v1935, %v1919
    %v2176 = vpack.c.b16 %v1936, %v1920
    %v2177 = vpack.c.b16 %v1937, %v1921
    %v2178 = vpack.c.b16 %v1938, %v1922
    %v2179 = vpack.c.b16 %v1955, %v1939
    %v2180 = vpack.c.b16 %v1956, %v1940
    %v2181 = vpack.c.b16 %v1957, %v1941
    %v2182 = vpack.c.b16 %v1958, %v1942
    %v2183 = vpack.c.b16 %v1959, %v1943
    %v2184 = vpack.c.b16 %v1960, %v1944
    %v2185 = vpack.c.b16 %v1961, %v1945
    %v2186 = vpack.c.b16 %v1962, %v1946
    %v2187 = vpack.c.b16 %v1963, %v1947
    %v2188 = vpack.c.b16 %v1964, %v1948
    %v2189 = vpack.c.b16 %v1965, %v1949
    %v2190 = vpack.c.b16 %v1966, %v1950
    %v2191 = vpack.c.b16 %v1967, %v1951
    %v2192 = vpack.c.b16 %v1968, %v1952
    %v2193 = vpack.c.b16 %v1969, %v1953
    %v2194 = vpack.c.b16 %v1970, %v1954
    %v2195 = vpack.c.b16 %v1987, %v1971
    %v2196 = vpack.c.b16 %v1988, %v1972
    %v2197 = vpack.c.b16 %v1989, %v1973
    %v2198 = vpack.c.b16 %v1990, %v1974
    %v2199 = vpack.c.b16 %v1991, %v1975
    %v2200 = vpack.c.b16 %v1992, %v1976
    %v2201 = vpack.c.b16 %v1993, %v1977
    %v2202 = vpack.c.b16 %v1994, %v1978
    %v2203 = vpack.c.b16 %v1995, %v1979
    %v2204 = vpack.c.b16 %v1996, %v1980
    %v2205 = vpack.c.b16 %v1997, %v1981
    %v2206 = vpack.c.b16 %v1998, %v1982
    %v2207 = vpack.c.b16 %v1999, %v1983
    %v2208 = vpack.c.b16 %v2000, %v1984
    %v2209 = vpack.c.b16 %v2001, %v1985
    %v2210 = vpack.c.b16 %v2002, %v1986
    %v2211 = vpack.c.b16 %v2019, %v2003
    %v2212 = vpack.c.b16 %v2020, %v2004
    %v2213 = vpack.c.b16 %v2021, %v2005
    %v2214 = vpack.c.b16 %v2022, %v2006
    %v2215 = vpack.c.b16 %v2023, %v2007
    %v2216 = vpack.c.b16 %v2024, %v2008
    %v2217 = vpack.c.b16 %v2025, %v2009
    %v2218 = vpack.c.b16 %v2026, %v2010
    %v2219 = vpack.c.b16 %v2027, %v2011
    %v2220 = vpack.c.b16 %v2028, %v2012
    %v2221 = vpack.c.b16 %v2029, %v2013
    %v2222 = vpack.c.b16 %v2030, %v2014
    %v2223 = vpack.c.b16 %v2031, %v2015
    %v2224 = vpack.c.b16 %v2032, %v2016
    %v2225 = vpack.c.b16 %v2033, %v2017
    %v2226 = vpack.c.b16 %v2034, %v2018
    %v2227 = vpack.c.b16 %v2051, %v2035
    %v2228 = vpack.c.b16 %v2052, %v2036
    %v2229 = vpack.c.b16 %v2053, %v2037
    %v2230 = vpack.c.b16 %v2054, %v2038
    %v2231 = vpack.c.b16 %v2055, %v2039
    %v2232 = vpack.c.b16 %v2056, %v2040
    %v2233 = vpack.c.b16 %v2057, %v2041
    %v2234 = vpack.c.b16 %v2058, %v2042
    %v2235 = vpack.c.b16 %v2059, %v2043
    %v2236 = vpack.c.b16 %v2060, %v2044
    %v2237 = vpack.c.b16 %v2061, %v2045
    %v2238 = vpack.c.b16 %v2062, %v2046
    %v2239 = vpack.c.b16 %v2063, %v2047
    %v2240 = vpack.c.b16 %v2064, %v2048
    %v2241 = vpack.c.b16 %v2065, %v2049
    %v2242 = vpack.c.b16 %v2066, %v2050
    %v2243 = vpack.c.b16 %v2083, %v2067
    %v2244 = vpack.c.b16 %v2084, %v2068
    %v2245 = vpack.c.b16 %v2085, %v2069
    %v2246 = vpack.c.b16 %v2086, %v2070
    %v2247 = vpack.c.b16 %v2087, %v2071
    %v2248 = vpack.c.b16 %v2088, %v2072
    %v2249 = vpack.c.b16 %v2089, %v2073
    %v2250 = vpack.c.b16 %v2090, %v2074
    %v2251 = vpack.c.b16 %v2091, %v2075
    %v2252 = vpack.c.b16 %v2092, %v2076
    %v2253 = vpack.c.b16 %v2093, %v2077
    %v2254 = vpack.c.b16 %v2094, %v2078
    %v2255 = vpack.c.b16 %v2095, %v2079
    %v2256 = vpack.c.b16 %v2096, %v2080
    %v2257 = vpack.c.b16 %v2097, %v2081
    %v2258 = vpack.c.b16 %v2098, %v2082
    %v2259 = vpack.c.b16 %v2115, %v2099
    %v2260 = vpack.c.b16 %v2116, %v2100
    %v2261 = vpack.c.b16 %v2117, %v2101
    %v2262 = vpack.c.b16 %v2118, %v2102
    %v2263 = vpack.c.b16 %v2119, %v2103
    %v2264 = vpack.c.b16 %v2120, %v2104
    %v2265 = vpack.c.b16 %v2121, %v2105
    %v2266 = vpack.c.b16 %v2122, %v2106
    %v2267 = vpack.c.b16 %v2123, %v2107
    %v2268 = vpack.c.b16 %v2124, %v2108
    %v2269 = vpack.c.b16 %v2125, %v2109
    %v2270 = vpack.c.b16 %v2126, %v2110
    %v2271 = vpack.c.b16 %v2127, %v2111
    %v2272 = vpack.c.b16 %v2128, %v2112
    %v2273 = vpack.c.b16 %v2129, %v2113
    %v2274 = vpack.c.b16 %v2130, %v2114
    %v2275 = vpack.c.b16 %v2147, %v2131
    %v2276 = vpack.c.b16 %v2148, %v2132
    %v2277 = vpack.c.b16 %v2149, %v2133
    %v2278 = vpack.c.b16 %v2150, %v2134
    %v2279 = vpack.c.b16 %v2151, %v2135
    %v2280 = vpack.c.b16 %v2152, %v2136
    %v2281 = vpack.c.b16 %v2153, %v2137
    %v2282 = vpack.c.b16 %v2154, %v2138
    %v2283 = vpack.c.b16 %v2155, %v2139
    %v2284 = vpack.c.b16 %v2156, %v2140
    %v2285 = vpack.c.b16 %v2157, %v2141
    %v2286 = vpack.c.b16 %v2158, %v2142
    %v2287 = vpack.c.b16 %v2159, %v2143
    %v2288 = vpack.c.b16 %v2160, %v2144
    %v2289 = vpack.c.b16 %v2161, %v2145
    %v2290 = vpack.c.b16 %v2162, %v2146
    %2419 = vmatprep.subr.bf16.mxu0 %v2164
    %2420 = vmatpush1.bf16.msra.mxu0 %v2163
    %2421 = vmatprep.subr.bf16.mxu0 %v2180
    %2422 = vmatpush1.bf16.msra.mxu0 %v2179
    %2423 = vmatprep.subr.bf16.mxu0 %v2196
    %2424 = vmatpush1.bf16.msra.mxu0 %v2195
    %2425 = vmatprep.subr.bf16.mxu0 %v2212
    %2426 = vmatpush1.bf16.msra.mxu0 %v2211
    %2427 = vmatprep.subr.bf16.mxu0 %v2228
    %2428 = vmatpush1.bf16.msra.mxu0 %v2227
    %2429 = vmatprep.subr.bf16.mxu0 %v2244
    %2430 = vmatpush1.bf16.msra.mxu0 %v2243
    %2431 = vmatprep.subr.bf16.mxu0 %v2260
    %2432 = vmatpush1.bf16.msra.mxu0 %v2259
    %2433 = vmatprep.subr.bf16.mxu0 %v2276
    %2434 = vmatpush1.bf16.msra.mxu0 %v2275
    %2435 = vmatprep.subr.bf16.mxu0 0
    %2436 = vmatpush1.bf16.msra.mxu0 0
    %2437 = vmatprep.subr.bf16.mxu0 0
    %2438 = vmatpush1.bf16.msra.mxu0 0
    %2439 = vmatprep.subr.bf16.mxu0 0
    %2440 = vmatpush1.bf16.msra.mxu0 0
    %2441 = vmatprep.subr.bf16.mxu0 0
    %2442 = vmatpush1.bf16.msra.mxu0 0
    %2443 = vmatprep.subr.bf16.mxu0 0
    %2444 = vmatpush1.bf16.msra.mxu0 0
    %2445 = vmatprep.subr.bf16.mxu0 0
    %2446 = vmatpush1.bf16.msra.mxu0 0
    %2447 = vmatprep.subr.bf16.mxu0 0
    %2448 = vmatpush1.bf16.msra.mxu0 0
    %2449 = vmatprep.subr.bf16.mxu0 0
    %2450 = vmatpush1.bf16.msra.mxu0 0
    %2451 = vmatprep.mubr.bf16.mxu0 0
    %2452 = vmatmul.mubr.bf16.gmra.mrb[0].mxu0 %v1566
    %v2453 = vpop.f32.mrb[0].mxu0
    %v2454 = vadd.f32 %v1702, %v2453
    %v2455 = vpop.f32.mrb[0].mxu0
    %v2456 = vadd.f32 %v1706, %v2455
    %v2457 = vpop.f32.mrb[0].mxu0
    %v2458 = vpop.f32.mrb[0].mxu0
    %2459 = vdwg.mxu0
    %2460 = vmatprep.subr.bf16.mxu0 %v2166
    %2461 = vmatpush1.bf16.msra.mxu0 %v2165
    %2462 = vmatprep.subr.bf16.mxu0 %v2182
    %2463 = vmatpush1.bf16.msra.mxu0 %v2181
    %2464 = vmatprep.subr.bf16.mxu0 %v2198
    %2465 = vmatpush1.bf16.msra.mxu0 %v2197
    %2466 = vmatprep.subr.bf16.mxu0 %v2214
    %2467 = vmatpush1.bf16.msra.mxu0 %v2213
    %2468 = vmatprep.subr.bf16.mxu0 %v2230
    %2469 = vmatpush1.bf16.msra.mxu0 %v2229
    %2470 = vmatprep.subr.bf16.mxu0 %v2246
    %2471 = vmatpush1.bf16.msra.mxu0 %v2245
    %2472 = vmatprep.subr.bf16.mxu0 %v2262
    %2473 = vmatpush1.bf16.msra.mxu0 %v2261
    %2474 = vmatprep.subr.bf16.mxu0 %v2278
    %2475 = vmatpush1.bf16.msra.mxu0 %v2277
    %2476 = vmatprep.subr.bf16.mxu0 0
    %2477 = vmatpush1.bf16.msra.mxu0 0
    %2478 = vmatprep.subr.bf16.mxu0 0
    %2479 = vmatpush1.bf16.msra.mxu0 0
    %2480 = vmatprep.subr.bf16.mxu0 0
    %2481 = vmatpush1.bf16.msra.mxu0 0
    %2482 = vmatprep.subr.bf16.mxu0 0
    %2483 = vmatpush1.bf16.msra.mxu0 0
    %2484 = vmatprep.subr.bf16.mxu0 0
    %2485 = vmatpush1.bf16.msra.mxu0 0
    %2486 = vmatprep.subr.bf16.mxu0 0
    %2487 = vmatpush1.bf16.msra.mxu0 0
    %2488 = vmatprep.subr.bf16.mxu0 0
    %2489 = vmatpush1.bf16.msra.mxu0 0
    %2490 = vmatprep.subr.bf16.mxu0 0
    %2491 = vmatpush1.bf16.msra.mxu0 0
    %2492 = vmatprep.mubr.bf16.mxu0 0
    %2493 = vmatmul.mubr.bf16.gmra.mrb[0].mxu0 %v1566
    %v2494 = vpop.f32.mrb[0].mxu0
    %v2495 = vadd.f32 %v1710, %v2494
    %v2496 = vpop.f32.mrb[0].mxu0
    %v2497 = vadd.f32 %v1714, %v2496
    %v2498 = vpop.f32.mrb[0].mxu0
    %v2499 = vpop.f32.mrb[0].mxu0
    %2500 = vdwg.mxu0
    %2501 = vmatprep.subr.bf16.mxu0 %v2168
    %2502 = vmatpush1.bf16.msra.mxu0 %v2167
    %2503 = vmatprep.subr.bf16.mxu0 %v2184
    %2504 = vmatpush1.bf16.msra.mxu0 %v2183
    %2505 = vmatprep.subr.bf16.mxu0 %v2200
    %2506 = vmatpush1.bf16.msra.mxu0 %v2199
    %2507 = vmatprep.subr.bf16.mxu0 %v2216
    %2508 = vmatpush1.bf16.msra.mxu0 %v2215
    %2509 = vmatprep.subr.bf16.mxu0 %v2232
    %2510 = vmatpush1.bf16.msra.mxu0 %v2231
    %2511 = vmatprep.subr.bf16.mxu0 %v2248
    %2512 = vmatpush1.bf16.msra.mxu0 %v2247
    %2513 = vmatprep.subr.bf16.mxu0 %v2264
    %2514 = vmatpush1.bf16.msra.mxu0 %v2263
    %2515 = vmatprep.subr.bf16.mxu0 %v2280
    %2516 = vmatpush1.bf16.msra.mxu0 %v2279
    %2517 = vmatprep.subr.bf16.mxu0 0
    %2518 = vmatpush1.bf16.msra.mxu0 0
    %2519 = vmatprep.subr.bf16.mxu0 0
    %2520 = vmatpush1.bf16.msra.mxu0 0
    %2521 = vmatprep.subr.bf16.mxu0 0
    %2522 = vmatpush1.bf16.msra.mxu0 0
    %2523 = vmatprep.subr.bf16.mxu0 0
    %2524 = vmatpush1.bf16.msra.mxu0 0
    %2525 = vmatprep.subr.bf16.mxu0 0
    %2526 = vmatpush1.bf16.msra.mxu0 0
    %2527 = vmatprep.subr.bf16.mxu0 0
    %2528 = vmatpush1.bf16.msra.mxu0 0
    %2529 = vmatprep.subr.bf16.mxu0 0
    %2530 = vmatpush1.bf16.msra.mxu0 0
    %2531 = vmatprep.subr.bf16.mxu0 0
    %2532 = vmatpush1.bf16.msra.mxu0 0
    %2533 = vmatprep.mubr.bf16.mxu0 0
    %2534 = vmatmul.mubr.bf16.gmra.mrb[0].mxu0 %v1566
    %v2535 = vpop.f32.mrb[0].mxu0
    %v2536 = vadd.f32 %v1718, %v2535
    %v2537 = vpop.f32.mrb[0].mxu0
    %v2538 = vadd.f32 %v1722, %v2537
    %v2539 = vpop.f32.mrb[0].mxu0
    %v2540 = vpop.f32.mrb[0].mxu0
    %2541 = vdwg.mxu0
    %2542 = vmatprep.subr.bf16.mxu0 %v2170
    %2543 = vmatpush1.bf16.msra.mxu0 %v2169
    %2544 = vmatprep.subr.bf16.mxu0 %v2186
    %2545 = vmatpush1.bf16.msra.mxu0 %v2185
    %2546 = vmatprep.subr.bf16.mxu0 %v2202
    %2547 = vmatpush1.bf16.msra.mxu0 %v2201
    %2548 = vmatprep.subr.bf16.mxu0 %v2218
    %2549 = vmatpush1.bf16.msra.mxu0 %v2217
    %2550 = vmatprep.subr.bf16.mxu0 %v2234
    %2551 = vmatpush1.bf16.msra.mxu0 %v2233
    %2552 = vmatprep.subr.bf16.mxu0 %v2250
    %2553 = vmatpush1.bf16.msra.mxu0 %v2249
    %2554 = vmatprep.subr.bf16.mxu0 %v2266
    %2555 = vmatpush1.bf16.msra.mxu0 %v2265
    %2556 = vmatprep.subr.bf16.mxu0 %v2282
    %2557 = vmatpush1.bf16.msra.mxu0 %v2281
    %2558 = vmatprep.subr.bf16.mxu0 0
    %2559 = vmatpush1.bf16.msra.mxu0 0
    %2560 = vmatprep.subr.bf16.mxu0 0
    %2561 = vmatpush1.bf16.msra.mxu0 0
    %2562 = vmatprep.subr.bf16.mxu0 0
    %2563 = vmatpush1.bf16.msra.mxu0 0
    %2564 = vmatprep.subr.bf16.mxu0 0
    %2565 = vmatpush1.bf16.msra.mxu0 0
    %2566 = vmatprep.subr.bf16.mxu0 0
    %2567 = vmatpush1.bf16.msra.mxu0 0
    %2568 = vmatprep.subr.bf16.mxu0 0
    %2569 = vmatpush1.bf16.msra.mxu0 0
    %2570 = vmatprep.subr.bf16.mxu0 0
    %2571 = vmatpush1.bf16.msra.mxu0 0
    %2572 = vmatprep.subr.bf16.mxu0 0
    %2573 = vmatpush1.bf16.msra.mxu0 0
    %2574 = vmatprep.mubr.bf16.mxu0 0
    %2575 = vmatmul.mubr.bf16.gmra.mrb[0].mxu0 %v1566
    %v2576 = vpop.f32.mrb[0].mxu0
    %v2577 = vadd.f32 %v1726, %v2576
    %v2578 = vpop.f32.mrb[0].mxu0
    %v2579 = vadd.f32 %v1730, %v2578
    %v2580 = vpop.f32.mrb[0].mxu0
    %v2581 = vpop.f32.mrb[0].mxu0
    %2582 = vdwg.mxu0
    %2583 = vmatprep.subr.bf16.mxu0 %v2172
    %2584 = vmatpush1.bf16.msra.mxu0 %v2171
    %2585 = vmatprep.subr.bf16.mxu0 %v2188
    %2586 = vmatpush1.bf16.msra.mxu0 %v2187
    %2587 = vmatprep.subr.bf16.mxu0 %v2204
    %2588 = vmatpush1.bf16.msra.mxu0 %v2203
    %2589 = vmatprep.subr.bf16.mxu0 %v2220
    %2590 = vmatpush1.bf16.msra.mxu0 %v2219
    %2591 = vmatprep.subr.bf16.mxu0 %v2236
    %2592 = vmatpush1.bf16.msra.mxu0 %v2235
    %2593 = vmatprep.subr.bf16.mxu0 %v2252
    %2594 = vmatpush1.bf16.msra.mxu0 %v2251
    %2595 = vmatprep.subr.bf16.mxu0 %v2268
    %2596 = vmatpush1.bf16.msra.mxu0 %v2267
    %2597 = vmatprep.subr.bf16.mxu0 %v2284
    %2598 = vmatpush1.bf16.msra.mxu0 %v2283
    %2599 = vmatprep.subr.bf16.mxu0 0
    %2600 = vmatpush1.bf16.msra.mxu0 0
    %2601 = vmatprep.subr.bf16.mxu0 0
    %2602 = vmatpush1.bf16.msra.mxu0 0
    %2603 = vmatprep.subr.bf16.mxu0 0
    %2604 = vmatpush1.bf16.msra.mxu0 0
    %2605 = vmatprep.subr.bf16.mxu0 0
    %2606 = vmatpush1.bf16.msra.mxu0 0
    %2607 = vmatprep.subr.bf16.mxu0 0
    %2608 = vmatpush1.bf16.msra.mxu0 0
    %2609 = vmatprep.subr.bf16.mxu0 0
    %2610 = vmatpush1.bf16.msra.mxu0 0
    %2611 = vmatprep.subr.bf16.mxu0 0
    %2612 = vmatpush1.bf16.msra.mxu0 0
    %2613 = vmatprep.subr.bf16.mxu0 0
    %2614 = vmatpush1.bf16.msra.mxu0 0
    %2615 = vmatprep.mubr.bf16.mxu0 0
    %2616 = vmatmul.mubr.bf16.gmra.mrb[0].mxu0 %v1566
    %v2617 = vpop.f32.mrb[0].mxu0
    %v2618 = vadd.f32 %v1734, %v2617
    %v2619 = vpop.f32.mrb[0].mxu0
    %v2620 = vadd.f32 %v1738, %v2619
    %v2621 = vpop.f32.mrb[0].mxu0
    %v2622 = vpop.f32.mrb[0].mxu0
    %2623 = vdwg.mxu0
    %2624 = vmatprep.subr.bf16.mxu0 %v2174
    %2625 = vmatpush1.bf16.msra.mxu0 %v2173
    %2626 = vmatprep.subr.bf16.mxu0 %v2190
    %2627 = vmatpush1.bf16.msra.mxu0 %v2189
    %2628 = vmatprep.subr.bf16.mxu0 %v2206
    %2629 = vmatpush1.bf16.msra.mxu0 %v2205
    %2630 = vmatprep.subr.bf16.mxu0 %v2222
    %2631 = vmatpush1.bf16.msra.mxu0 %v2221
    %2632 = vmatprep.subr.bf16.mxu0 %v2238
    %2633 = vmatpush1.bf16.msra.mxu0 %v2237
    %2634 = vmatprep.subr.bf16.mxu0 %v2254
    %2635 = vmatpush1.bf16.msra.mxu0 %v2253
    %2636 = vmatprep.subr.bf16.mxu0 %v2270
    %2637 = vmatpush1.bf16.msra.mxu0 %v2269
    %2638 = vmatprep.subr.bf16.mxu0 %v2286
    %2639 = vmatpush1.bf16.msra.mxu0 %v2285
    %2640 = vmatprep.subr.bf16.mxu0 0
    %2641 = vmatpush1.bf16.msra.mxu0 0
    %2642 = vmatprep.subr.bf16.mxu0 0
    %2643 = vmatpush1.bf16.msra.mxu0 0
    %2644 = vmatprep.subr.bf16.mxu0 0
    %2645 = vmatpush1.bf16.msra.mxu0 0
    %2646 = vmatprep.subr.bf16.mxu0 0
    %2647 = vmatpush1.bf16.msra.mxu0 0
    %2648 = vmatprep.subr.bf16.mxu0 0
    %2649 = vmatpush1.bf16.msra.mxu0 0
    %2650 = vmatprep.subr.bf16.mxu0 0
    %2651 = vmatpush1.bf16.msra.mxu0 0
    %2652 = vmatprep.subr.bf16.mxu0 0
    %2653 = vmatpush1.bf16.msra.mxu0 0
    %2654 = vmatprep.subr.bf16.mxu0 0
    %2655 = vmatpush1.bf16.msra.mxu0 0
    %2656 = vmatprep.mubr.bf16.mxu0 0
    %2657 = vmatmul.mubr.bf16.gmra.mrb[0].mxu0 %v1566
    %v2658 = vpop.f32.mrb[0].mxu0
    %v2659 = vadd.f32 %v1742, %v2658
    %v2660 = vpop.f32.mrb[0].mxu0
    %v2661 = vadd.f32 %v1746, %v2660
    %v2662 = vpop.f32.mrb[0].mxu0
    %v2663 = vpop.f32.mrb[0].mxu0
    %2664 = vdwg.mxu0
    %2665 = vmatprep.subr.bf16.mxu0 %v2176
    %2666 = vmatpush1.bf16.msra.mxu0 %v2175
    %2667 = vmatprep.subr.bf16.mxu0 %v2192
    %2668 = vmatpush1.bf16.msra.mxu0 %v2191
    %2669 = vmatprep.subr.bf16.mxu0 %v2208
    %2670 = vmatpush1.bf16.msra.mxu0 %v2207
    %2671 = vmatprep.subr.bf16.mxu0 %v2224
    %2672 = vmatpush1.bf16.msra.mxu0 %v2223
    %2673 = vmatprep.subr.bf16.mxu0 %v2240
    %2674 = vmatpush1.bf16.msra.mxu0 %v2239
    %2675 = vmatprep.subr.bf16.mxu0 %v2256
    %2676 = vmatpush1.bf16.msra.mxu0 %v2255
    %2677 = vmatprep.subr.bf16.mxu0 %v2272
    %2678 = vmatpush1.bf16.msra.mxu0 %v2271
    %2679 = vmatprep.subr.bf16.mxu0 %v2288
    %2680 = vmatpush1.bf16.msra.mxu0 %v2287
    %2681 = vmatprep.subr.bf16.mxu0 0
    %2682 = vmatpush1.bf16.msra.mxu0 0
    %2683 = vmatprep.subr.bf16.mxu0 0
    %2684 = vmatpush1.bf16.msra.mxu0 0
    %2685 = vmatprep.subr.bf16.mxu0 0
    %2686 = vmatpush1.bf16.msra.mxu0 0
    %2687 = vmatprep.subr.bf16.mxu0 0
    %2688 = vmatpush1.bf16.msra.mxu0 0
    %2689 = vmatprep.subr.bf16.mxu0 0
    %2690 = vmatpush1.bf16.msra.mxu0 0
    %2691 = vmatprep.subr.bf16.mxu0 0
    %2692 = vmatpush1.bf16.msra.mxu0 0
    %2693 = vmatprep.subr.bf16.mxu0 0
    %2694 = vmatpush1.bf16.msra.mxu0 0
    %2695 = vmatprep.subr.bf16.mxu0 0
    %2696 = vmatpush1.bf16.msra.mxu0 0
    %2697 = vmatprep.mubr.bf16.mxu0 0
    %2698 = vmatmul.mubr.bf16.gmra.mrb[0].mxu0 %v1566
    %v2699 = vpop.f32.mrb[0].mxu0
    %v2700 = vadd.f32 %v1750, %v2699
    %v2701 = vpop.f32.mrb[0].mxu0
    %v2702 = vadd.f32 %v1754, %v2701
    %v2703 = vpop.f32.mrb[0].mxu0
    %v2704 = vpop.f32.mrb[0].mxu0
    %2705 = vdwg.mxu0
    %2706 = vmatprep.subr.bf16.mxu0 %v2178
    %2707 = vmatpush1.bf16.msra.mxu0 %v2177
    %2708 = vmatprep.subr.bf16.mxu0 %v2194
    %2709 = vmatpush1.bf16.msra.mxu0 %v2193
    %2710 = vmatprep.subr.bf16.mxu0 %v2210
    %2711 = vmatpush1.bf16.msra.mxu0 %v2209
    %2712 = vmatprep.subr.bf16.mxu0 %v2226
    %2713 = vmatpush1.bf16.msra.mxu0 %v2225
    %2714 = vmatprep.subr.bf16.mxu0 %v2242
    %2715 = vmatpush1.bf16.msra.mxu0 %v2241
    %2716 = vmatprep.subr.bf16.mxu0 %v2258
    %2717 = vmatpush1.bf16.msra.mxu0 %v2257
    %2718 = vmatprep.subr.bf16.mxu0 %v2274
    %2719 = vmatpush1.bf16.msra.mxu0 %v2273
    %2720 = vmatprep.subr.bf16.mxu0 %v2290
    %2721 = vmatpush1.bf16.msra.mxu0 %v2289
    %2722 = vmatprep.subr.bf16.mxu0 0
    %2723 = vmatpush1.bf16.msra.mxu0 0
    %2724 = vmatprep.subr.bf16.mxu0 0
    %2725 = vmatpush1.bf16.msra.mxu0 0
    %2726 = vmatprep.subr.bf16.mxu0 0
    %2727 = vmatpush1.bf16.msra.mxu0 0
    %2728 = vmatprep.subr.bf16.mxu0 0
    %2729 = vmatpush1.bf16.msra.mxu0 0
    %2730 = vmatprep.subr.bf16.mxu0 0
    %2731 = vmatpush1.bf16.msra.mxu0 0
    %2732 = vmatprep.subr.bf16.mxu0 0
    %2733 = vmatpush1.bf16.msra.mxu0 0
    %2734 = vmatprep.subr.bf16.mxu0 0
    %2735 = vmatpush1.bf16.msra.mxu0 0
    %2736 = vmatprep.subr.bf16.mxu0 0
    %2737 = vmatpush1.bf16.msra.mxu0 0
    %2738 = vmatprep.mubr.bf16.mxu0 0
    %2739 = vmatmul.mubr.bf16.gmra.mrb[0].mxu0 %v1566
    %v2740 = vpop.f32.mrb[0].mxu0
    %v2741 = vadd.f32 %v1758, %v2740
    %v2742 = vpop.f32.mrb[0].mxu0
    %v2743 = vadd.f32 %v1762, %v2742
    %v2744 = vpop.f32.mrb[0].mxu0
    %v2745 = vpop.f32.mrb[0].mxu0
    %2746 = vdwg.mxu0
    %v2747 = vld [vmem:[%s7] sm:$0xff]
    %v2748 = vld [vmem:[%s7 + $0x8] sm:$0xff]
    %v2749 = vld [vmem:[%s8] sm:$0xff]
    %v2750 = vld [vmem:[%s8 + $0x8] sm:$0xff]
    %v2751 = vsel %vm1525, %v2454, 0.0
    %v2752 = vrot.slane %v2751, 4
    %v2753 = vadd.f32 %v2751, %v2752
    %v2754 = vrot.slane %v2753, 2
    %v2755 = vadd.f32 %v2753, %v2754
    %v2756 = vrot.slane %v2755, 1
    %v2757 = vadd.f32 %v2755, %v2756
    %v2758 = vsel %vm1525, %v2456, 0.0
    %v2759 = vrot.slane %v2758, 4
    %v2760 = vadd.f32 %v2758, %v2759
    %v2761 = vrot.slane %v2760, 2
    %v2762 = vadd.f32 %v2760, %v2761
    %v2763 = vrot.slane %v2762, 1
    %v2764 = vadd.f32 %v2762, %v2763
    %v2765 = vsel %vm1525, %v2495, 0.0
    %v2766 = vrot.slane %v2765, 4
    %v2767 = vadd.f32 %v2765, %v2766
    %v2768 = vrot.slane %v2767, 2
    %v2769 = vadd.f32 %v2767, %v2768
    %v2770 = vrot.slane %v2769, 1
    %v2771 = vadd.f32 %v2769, %v2770
    %v2772 = vsel %vm1525, %v2497, 0.0
    %v2773 = vrot.slane %v2772, 4
    %v2774 = vadd.f32 %v2772, %v2773
    %v2775 = vrot.slane %v2774, 2
    %v2776 = vadd.f32 %v2774, %v2775
    %v2777 = vrot.slane %v2776, 1
    %v2778 = vadd.f32 %v2776, %v2777
    %v2779 = vsel %vm1525, %v2536, 0.0
    %v2780 = vrot.slane %v2779, 4
    %v2781 = vadd.f32 %v2779, %v2780
    %v2782 = vrot.slane %v2781, 2
    %v2783 = vadd.f32 %v2781, %v2782
    %v2784 = vrot.slane %v2783, 1
    %v2785 = vadd.f32 %v2783, %v2784
    %v2786 = vsel %vm1525, %v2538, 0.0
    %v2787 = vrot.slane %v2786, 4
    %v2788 = vadd.f32 %v2786, %v2787
    %v2789 = vrot.slane %v2788, 2
    %v2790 = vadd.f32 %v2788, %v2789
    %v2791 = vrot.slane %v2790, 1
    %v2792 = vadd.f32 %v2790, %v2791
    %v2793 = vsel %vm1525, %v2577, 0.0
    %v2794 = vrot.slane %v2793, 4
    %v2795 = vadd.f32 %v2793, %v2794
    %v2796 = vrot.slane %v2795, 2
    %v2797 = vadd.f32 %v2795, %v2796
    %v2798 = vrot.slane %v2797, 1
    %v2799 = vadd.f32 %v2797, %v2798
    %v2800 = vsel %vm1525, %v2579, 0.0
    %v2801 = vrot.slane %v2800, 4
    %v2802 = vadd.f32 %v2800, %v2801
    %v2803 = vrot.slane %v2802, 2
    %v2804 = vadd.f32 %v2802, %v2803
    %v2805 = vrot.slane %v2804, 1
    %v2806 = vadd.f32 %v2804, %v2805
    %v2807 = vsel %vm1525, %v2618, 0.0
    %v2808 = vrot.slane %v2807, 4
    %v2809 = vadd.f32 %v2807, %v2808
    %v2810 = vrot.slane %v2809, 2
    %v2811 = vadd.f32 %v2809, %v2810
    %v2812 = vrot.slane %v2811, 1
    %v2813 = vadd.f32 %v2811, %v2812
    %v2814 = vsel %vm1525, %v2620, 0.0
    %v2815 = vrot.slane %v2814, 4
    %v2816 = vadd.f32 %v2814, %v2815
    %v2817 = vrot.slane %v2816, 2
    %v2818 = vadd.f32 %v2816, %v2817
    %v2819 = vrot.slane %v2818, 1
    %v2820 = vadd.f32 %v2818, %v2819
    %v2821 = vsel %vm1525, %v2659, 0.0
    %v2822 = vrot.slane %v2821, 4
    %v2823 = vadd.f32 %v2821, %v2822
    %v2824 = vrot.slane %v2823, 2
    %v2825 = vadd.f32 %v2823, %v2824
    %v2826 = vrot.slane %v2825, 1
    %v2827 = vadd.f32 %v2825, %v2826
    %v2828 = vsel %vm1525, %v2661, 0.0
    %v2829 = vrot.slane %v2828, 4
    %v2830 = vadd.f32 %v2828, %v2829
    %v2831 = vrot.slane %v2830, 2
    %v2832 = vadd.f32 %v2830, %v2831
    %v2833 = vrot.slane %v2832, 1
    %v2834 = vadd.f32 %v2832, %v2833
    %v2835 = vsel %vm1525, %v2700, 0.0
    %v2836 = vrot.slane %v2835, 4
    %v2837 = vadd.f32 %v2835, %v2836
    %v2838 = vrot.slane %v2837, 2
    %v2839 = vadd.f32 %v2837, %v2838
    %v2840 = vrot.slane %v2839, 1
    %v2841 = vadd.f32 %v2839, %v2840
    %v2842 = vsel %vm1525, %v2702, 0.0
    %v2843 = vrot.slane %v2842, 4
    %v2844 = vadd.f32 %v2842, %v2843
    %v2845 = vrot.slane %v2844, 2
    %v2846 = vadd.f32 %v2844, %v2845
    %v2847 = vrot.slane %v2846, 1
    %v2848 = vadd.f32 %v2846, %v2847
    %v2849 = vsel %vm1525, %v2741, 0.0
    %v2850 = vrot.slane %v2849, 4
    %v2851 = vadd.f32 %v2849, %v2850
    %v2852 = vrot.slane %v2851, 2
    %v2853 = vadd.f32 %v2851, %v2852
    %v2854 = vrot.slane %v2853, 1
    %v2855 = vadd.f32 %v2853, %v2854
    %v2856 = vsel %vm1525, %v2743, 0.0
    %v2857 = vrot.slane %v2856, 4
    %v2858 = vadd.f32 %v2856, %v2857
    %v2859 = vrot.slane %v2858, 2
    %v2860 = vadd.f32 %v2858, %v2859
    %v2861 = vrot.slane %v2860, 1
    %v2862 = vadd.f32 %v2860, %v2861
    %v2863 = vmul.f32 %v2757, 0.5
    %v2864 = vmul.f32 %v2764, 0.5
    %v2865 = vmul.f32 %v2771, 0.5
    %v2866 = vmul.f32 %v2778, 0.5
    %v2867 = vmul.f32 %v2785, 0.5
    %v2868 = vmul.f32 %v2792, 0.5
    %v2869 = vmul.f32 %v2799, 0.5
    %v2870 = vmul.f32 %v2806, 0.5
    %v2871 = vmul.f32 %v2813, 0.5
    %v2872 = vmul.f32 %v2820, 0.5
    %v2873 = vmul.f32 %v2827, 0.5
    %v2874 = vmul.f32 %v2834, 0.5
    %v2875 = vmul.f32 %v2841, 0.5
    %v2876 = vmul.f32 %v2848, 0.5
    %v2877 = vmul.f32 %v2855, 0.5
    %v2878 = vmul.f32 %v2862, 0.5
    %v2879 = vmul.f32 %v2454, %v2454
    %v2880 = vmul.f32 %v2456, %v2456
    %v2881 = vmul.f32 %v2495, %v2495
    %v2882 = vmul.f32 %v2497, %v2497
    %v2883 = vmul.f32 %v2536, %v2536
    %v2884 = vmul.f32 %v2538, %v2538
    %v2885 = vmul.f32 %v2577, %v2577
    %v2886 = vmul.f32 %v2579, %v2579
    %v2887 = vmul.f32 %v2618, %v2618
    %v2888 = vmul.f32 %v2620, %v2620
    %v2889 = vmul.f32 %v2659, %v2659
    %v2890 = vmul.f32 %v2661, %v2661
    %v2891 = vmul.f32 %v2700, %v2700
    %v2892 = vmul.f32 %v2702, %v2702
    %v2893 = vmul.f32 %v2741, %v2741
    %v2894 = vmul.f32 %v2743, %v2743
    %v2895 = vsel %vm1525, %v2879, 0.0
    %v2896 = vrot.slane %v2895, 4
    %v2897 = vadd.f32 %v2895, %v2896
    %v2898 = vrot.slane %v2897, 2
    %v2899 = vadd.f32 %v2897, %v2898
    %v2900 = vrot.slane %v2899, 1
    %v2901 = vadd.f32 %v2899, %v2900
    %v2902 = vsel %vm1525, %v2880, 0.0
    %v2903 = vrot.slane %v2902, 4
    %v2904 = vadd.f32 %v2902, %v2903
    %v2905 = vrot.slane %v2904, 2
    %v2906 = vadd.f32 %v2904, %v2905
    %v2907 = vrot.slane %v2906, 1
    %v2908 = vadd.f32 %v2906, %v2907
    %v2909 = vsel %vm1525, %v2881, 0.0
    %v2910 = vrot.slane %v2909, 4
    %v2911 = vadd.f32 %v2909, %v2910
    %v2912 = vrot.slane %v2911, 2
    %v2913 = vadd.f32 %v2911, %v2912
    %v2914 = vrot.slane %v2913, 1
    %v2915 = vadd.f32 %v2913, %v2914
    %v2916 = vsel %vm1525, %v2882, 0.0
    %v2917 = vrot.slane %v2916, 4
    %v2918 = vadd.f32 %v2916, %v2917
    %v2919 = vrot.slane %v2918, 2
    %v2920 = vadd.f32 %v2918, %v2919
    %v2921 = vrot.slane %v2920, 1
    %v2922 = vadd.f32 %v2920, %v2921
    %v2923 = vsel %vm1525, %v2883, 0.0
    %v2924 = vrot.slane %v2923, 4
    %v2925 = vadd.f32 %v2923, %v2924
    %v2926 = vrot.slane %v2925, 2
    %v2927 = vadd.f32 %v2925, %v2926
    %v2928 = vrot.slane %v2927, 1
    %v2929 = vadd.f32 %v2927, %v2928
    %v2930 = vsel %vm1525, %v2884, 0.0
    %v2931 = vrot.slane %v2930, 4
    %v2932 = vadd.f32 %v2930, %v2931
    %v2933 = vrot.slane %v2932, 2
    %v2934 = vadd.f32 %v2932, %v2933
    %v2935 = vrot.slane %v2934, 1
    %v2936 = vadd.f32 %v2934, %v2935
    %v2937 = vsel %vm1525, %v2885, 0.0
    %v2938 = vrot.slane %v2937, 4
    %v2939 = vadd.f32 %v2937, %v2938
    %v2940 = vrot.slane %v2939, 2
    %v2941 = vadd.f32 %v2939, %v2940
    %v2942 = vrot.slane %v2941, 1
    %v2943 = vadd.f32 %v2941, %v2942
    %v2944 = vsel %vm1525, %v2886, 0.0
    %v2945 = vrot.slane %v2944, 4
    %v2946 = vadd.f32 %v2944, %v2945
    %v2947 = vrot.slane %v2946, 2
    %v2948 = vadd.f32 %v2946, %v2947
    %v2949 = vrot.slane %v2948, 1
    %v2950 = vadd.f32 %v2948, %v2949
    %v2951 = vsel %vm1525, %v2887, 0.0
    %v2952 = vrot.slane %v2951, 4
    %v2953 = vadd.f32 %v2951, %v2952
    %v2954 = vrot.slane %v2953, 2
    %v2955 = vadd.f32 %v2953, %v2954
    %v2956 = vrot.slane %v2955, 1
    %v2957 = vadd.f32 %v2955, %v2956
    %v2958 = vsel %vm1525, %v2888, 0.0
    %v2959 = vrot.slane %v2958, 4
    %v2960 = vadd.f32 %v2958, %v2959
    %v2961 = vrot.slane %v2960, 2
    %v2962 = vadd.f32 %v2960, %v2961
    %v2963 = vrot.slane %v2962, 1
    %v2964 = vadd.f32 %v2962, %v2963
    %v2965 = vsel %vm1525, %v2889, 0.0
    %v2966 = vrot.slane %v2965, 4
    %v2967 = vadd.f32 %v2965, %v2966
    %v2968 = vrot.slane %v2967, 2
    %v2969 = vadd.f32 %v2967, %v2968
    %v2970 = vrot.slane %v2969, 1
    %v2971 = vadd.f32 %v2969, %v2970
    %v2972 = vsel %vm1525, %v2890, 0.0
    %v2973 = vrot.slane %v2972, 4
    %v2974 = vadd.f32 %v2972, %v2973
    %v2975 = vrot.slane %v2974, 2
    %v2976 = vadd.f32 %v2974, %v2975
    %v2977 = vrot.slane %v2976, 1
    %v2978 = vadd.f32 %v2976, %v2977
    %v2979 = vsel %vm1525, %v2891, 0.0
    %v2980 = vrot.slane %v2979, 4
    %v2981 = vadd.f32 %v2979, %v2980
    %v2982 = vrot.slane %v2981, 2
    %v2983 = vadd.f32 %v2981, %v2982
    %v2984 = vrot.slane %v2983, 1
    %v2985 = vadd.f32 %v2983, %v2984
    %v2986 = vsel %vm1525, %v2892, 0.0
    %v2987 = vrot.slane %v2986, 4
    %v2988 = vadd.f32 %v2986, %v2987
    %v2989 = vrot.slane %v2988, 2
    %v2990 = vadd.f32 %v2988, %v2989
    %v2991 = vrot.slane %v2990, 1
    %v2992 = vadd.f32 %v2990, %v2991
    %v2993 = vsel %vm1525, %v2893, 0.0
    %v2994 = vrot.slane %v2993, 4
    %v2995 = vadd.f32 %v2993, %v2994
    %v2996 = vrot.slane %v2995, 2
    %v2997 = vadd.f32 %v2995, %v2996
    %v2998 = vrot.slane %v2997, 1
    %v2999 = vadd.f32 %v2997, %v2998
    %v3000 = vsel %vm1525, %v2894, 0.0
    %v3001 = vrot.slane %v3000, 4
    %v3002 = vadd.f32 %v3000, %v3001
    %v3003 = vrot.slane %v3002, 2
    %v3004 = vadd.f32 %v3002, %v3003
    %v3005 = vrot.slane %v3004, 1
    %v3006 = vadd.f32 %v3004, %v3005
    %v3007 = vmul.f32 %v2901, 0.5
    %v3008 = vmul.f32 %v2908, 0.5
    %v3009 = vmul.f32 %v2915, 0.5
    %v3010 = vmul.f32 %v2922, 0.5
    %v3011 = vmul.f32 %v2929, 0.5
    %v3012 = vmul.f32 %v2936, 0.5
    %v3013 = vmul.f32 %v2943, 0.5
    %v3014 = vmul.f32 %v2950, 0.5
    %v3015 = vmul.f32 %v2957, 0.5
    %v3016 = vmul.f32 %v2964, 0.5
    %v3017 = vmul.f32 %v2971, 0.5
    %v3018 = vmul.f32 %v2978, 0.5
    %v3019 = vmul.f32 %v2985, 0.5
    %v3020 = vmul.f32 %v2992, 0.5
    %v3021 = vmul.f32 %v2999, 0.5
    %v3022 = vmul.f32 %v3006, 0.5
    %v3023 = vmul.f32 %v2863, %v2863
    %v3024 = vmul.f32 %v2864, %v2864
    %v3025 = vmul.f32 %v2865, %v2865
    %v3026 = vmul.f32 %v2866, %v2866
    %v3027 = vmul.f32 %v2867, %v2867
    %v3028 = vmul.f32 %v2868, %v2868
    %v3029 = vmul.f32 %v2869, %v2869
    %v3030 = vmul.f32 %v2870, %v2870
    %v3031 = vmul.f32 %v2871, %v2871
    %v3032 = vmul.f32 %v2872, %v2872
    %v3033 = vmul.f32 %v2873, %v2873
    %v3034 = vmul.f32 %v2874, %v2874
    %v3035 = vmul.f32 %v2875, %v2875
    %v3036 = vmul.f32 %v2876, %v2876
    %v3037 = vmul.f32 %v2877, %v2877
    %v3038 = vmul.f32 %v2878, %v2878
    %v3039 = vsub.f32 %v3007, %v3023
    %v3040 = vsub.f32 %v3008, %v3024
    %v3041 = vsub.f32 %v3009, %v3025
    %v3042 = vsub.f32 %v3010, %v3026
    %v3043 = vsub.f32 %v3011, %v3027
    %v3044 = vsub.f32 %v3012, %v3028
    %v3045 = vsub.f32 %v3013, %v3029
    %v3046 = vsub.f32 %v3014, %v3030
    %v3047 = vsub.f32 %v3015, %v3031
    %v3048 = vsub.f32 %v3016, %v3032
    %v3049 = vsub.f32 %v3017, %v3033
    %v3050 = vsub.f32 %v3018, %v3034
    %v3051 = vsub.f32 %v3019, %v3035
    %v3052 = vsub.f32 %v3020, %v3036
    %v3053 = vsub.f32 %v3021, %v3037
    %v3054 = vsub.f32 %v3022, %v3038
    %v3055 = vmax.f32 %v3039, 0.0
    %v3056 = vmax.f32 %v3040, 0.0
    %v3057 = vmax.f32 %v3041, 0.0
    %v3058 = vmax.f32 %v3042, 0.0
    %v3059 = vmax.f32 %v3043, 0.0
    %v3060 = vmax.f32 %v3044, 0.0
    %v3061 = vmax.f32 %v3045, 0.0
    %v3062 = vmax.f32 %v3046, 0.0
    %v3063 = vmax.f32 %v3047, 0.0
    %v3064 = vmax.f32 %v3048, 0.0
    %v3065 = vmax.f32 %v3049, 0.0
    %v3066 = vmax.f32 %v3050, 0.0
    %v3067 = vmax.f32 %v3051, 0.0
    %v3068 = vmax.f32 %v3052, 0.0
    %v3069 = vmax.f32 %v3053, 0.0
    %v3070 = vmax.f32 %v3054, 0.0
    %v3071 = vsub.f32 %v2454, %v2863
    %v3072 = vsub.f32 %v2456, %v2864
    %v3073 = vsub.f32 %v2495, %v2865
    %v3074 = vsub.f32 %v2497, %v2866
    %v3075 = vsub.f32 %v2536, %v2867
    %v3076 = vsub.f32 %v2538, %v2868
    %v3077 = vsub.f32 %v2577, %v2869
    %v3078 = vsub.f32 %v2579, %v2870
    %v3079 = vsub.f32 %v2618, %v2871
    %v3080 = vsub.f32 %v2620, %v2872
    %v3081 = vsub.f32 %v2659, %v2873
    %v3082 = vsub.f32 %v2661, %v2874
    %v3083 = vsub.f32 %v2700, %v2875
    %v3084 = vsub.f32 %v2702, %v2876
    %v3085 = vsub.f32 %v2741, %v2877
    %v3086 = vsub.f32 %v2743, %v2878
    %v3087 = vadd.f32 %v3055, 1e-05
    %v3088 = vadd.f32 %v3056, 1e-05
    %v3089 = vadd.f32 %v3057, 1e-05
    %v3090 = vadd.f32 %v3058, 1e-05
    %v3091 = vadd.f32 %v3059, 1e-05
    %v3092 = vadd.f32 %v3060, 1e-05
    %v3093 = vadd.f32 %v3061, 1e-05
    %v3094 = vadd.f32 %v3062, 1e-05
    %v3095 = vadd.f32 %v3063, 1e-05
    %v3096 = vadd.f32 %v3064, 1e-05
    %v3097 = vadd.f32 %v3065, 1e-05
    %v3098 = vadd.f32 %v3066, 1e-05
    %v3099 = vadd.f32 %v3067, 1e-05
    %v3100 = vadd.f32 %v3068, 1e-05
    %v3101 = vadd.f32 %v3069, 1e-05
    %v3102 = vadd.f32 %v3070, 1e-05
    %v3103 = vrsqrt.pop %v3087
    %v3104 = vrsqrt.pop %v3088
    %v3105 = vrsqrt.pop %v3089
    %v3106 = vrsqrt.pop %v3090
    %v3107 = vrsqrt.pop %v3091
    %v3108 = vrsqrt.pop %v3092
    %v3109 = vrsqrt.pop %v3093
    %v3110 = vrsqrt.pop %v3094
    %v3111 = vrsqrt.pop %v3095
    %v3112 = vrsqrt.pop %v3096
    %v3113 = vrsqrt.pop %v3097
    %v3114 = vrsqrt.pop %v3098
    %v3115 = vrsqrt.pop %v3099
    %v3116 = vrsqrt.pop %v3100
    %v3117 = vrsqrt.pop %v3101
    %v3118 = vrsqrt.pop %v3102
    %v3119 = vmul.f32 %v3071, %v3103
    %v3120 = vmul.f32 %v3072, %v3104
    %v3121 = vmul.f32 %v3073, %v3105
    %v3122 = vmul.f32 %v3074, %v3106
    %v3123 = vmul.f32 %v3075, %v3107
    %v3124 = vmul.f32 %v3076, %v3108
    %v3125 = vmul.f32 %v3077, %v3109
    %v3126 = vmul.f32 %v3078, %v3110
    %v3127 = vmul.f32 %v3079, %v3111
    %v3128 = vmul.f32 %v3080, %v3112
    %v3129 = vmul.f32 %v3081, %v3113
    %v3130 = vmul.f32 %v3082, %v3114
    %v3131 = vmul.f32 %v3083, %v3115
    %v3132 = vmul.f32 %v3084, %v3116
    %v3133 = vmul.f32 %v3085, %v3117
    %v3134 = vmul.f32 %v3086, %v3118
    %v3137 = vlaneseq
    %v3138 = vshrl.u32 %v3137, 7
    %v3139 = vsub.s32 0, %v3138
    %v3140 = vrot.slane %v2747, %v3139
    %v3141 = vlaneseq
    %v3142 = vshrl.u32 %v3141, 7
    %v3143 = vsub.s32 1, %v3142
    %v3144 = vrot.slane %v2747, %v3143
    %v3145 = vlaneseq
    %v3146 = vshrl.u32 %v3145, 7
    %v3147 = vsub.s32 2, %v3146
    %v3148 = vrot.slane %v2747, %v3147
    %v3149 = vlaneseq
    %v3150 = vshrl.u32 %v3149, 7
    %v3151 = vsub.s32 3, %v3150
    %v3152 = vrot.slane %v2747, %v3151
    %v3153 = vlaneseq
    %v3154 = vshrl.u32 %v3153, 7
    %v3155 = vsub.s32 4, %v3154
    %v3156 = vrot.slane %v2747, %v3155
    %v3157 = vlaneseq
    %v3158 = vshrl.u32 %v3157, 7
    %v3159 = vsub.s32 5, %v3158
    %v3160 = vrot.slane %v2747, %v3159
    %v3161 = vlaneseq
    %v3162 = vshrl.u32 %v3161, 7
    %v3163 = vsub.s32 6, %v3162
    %v3164 = vrot.slane %v2747, %v3163
    %v3165 = vlaneseq
    %v3166 = vshrl.u32 %v3165, 7
    %v3167 = vsub.s32 7, %v3166
    %v3168 = vrot.slane %v2747, %v3167
    %v3169 = vlaneseq
    %v3170 = vshrl.u32 %v3169, 7
    %v3171 = vsub.s32 0, %v3170
    %v3172 = vrot.slane %v2748, %v3171
    %v3173 = vlaneseq
    %v3174 = vshrl.u32 %v3173, 7
    %v3175 = vsub.s32 1, %v3174
    %v3176 = vrot.slane %v2748, %v3175
    %v3177 = vlaneseq
    %v3178 = vshrl.u32 %v3177, 7
    %v3179 = vsub.s32 2, %v3178
    %v3180 = vrot.slane %v2748, %v3179
    %v3181 = vlaneseq
    %v3182 = vshrl.u32 %v3181, 7
    %v3183 = vsub.s32 3, %v3182
    %v3184 = vrot.slane %v2748, %v3183
    %v3185 = vlaneseq
    %v3186 = vshrl.u32 %v3185, 7
    %v3187 = vsub.s32 4, %v3186
    %v3188 = vrot.slane %v2748, %v3187
    %v3189 = vlaneseq
    %v3190 = vshrl.u32 %v3189, 7
    %v3191 = vsub.s32 5, %v3190
    %v3192 = vrot.slane %v2748, %v3191
    %v3193 = vlaneseq
    %v3194 = vshrl.u32 %v3193, 7
    %v3195 = vsub.s32 6, %v3194
    %v3196 = vrot.slane %v2748, %v3195
    %v3197 = vlaneseq
    %v3198 = vshrl.u32 %v3197, 7
    %v3199 = vsub.s32 7, %v3198
    %v3200 = vrot.slane %v2748, %v3199
    %v3217 = vmul.f32 %v3119, %v3140
    %v3218 = vmul.f32 %v3120, %v3144
    %v3219 = vmul.f32 %v3121, %v3148
    %v3220 = vmul.f32 %v3122, %v3152
    %v3221 = vmul.f32 %v3123, %v3156
    %v3222 = vmul.f32 %v3124, %v3160
    %v3223 = vmul.f32 %v3125, %v3164
    %v3224 = vmul.f32 %v3126, %v3168
    %v3225 = vmul.f32 %v3127, %v3172
    %v3226 = vmul.f32 %v3128, %v3176
    %v3227 = vmul.f32 %v3129, %v3180
    %v3228 = vmul.f32 %v3130, %v3184
    %v3229 = vmul.f32 %v3131, %v3188
    %v3230 = vmul.f32 %v3132, %v3192
    %v3231 = vmul.f32 %v3133, %v3196
    %v3232 = vmul.f32 %v3134, %v3200
    %v3235 = vlaneseq
    %v3236 = vshrl.u32 %v3235, 7
    %v3237 = vsub.s32 0, %v3236
    %v3238 = vrot.slane %v2749, %v3237
    %v3239 = vlaneseq
    %v3240 = vshrl.u32 %v3239, 7
    %v3241 = vsub.s32 1, %v3240
    %v3242 = vrot.slane %v2749, %v3241
    %v3243 = vlaneseq
    %v3244 = vshrl.u32 %v3243, 7
    %v3245 = vsub.s32 2, %v3244
    %v3246 = vrot.slane %v2749, %v3245
    %v3247 = vlaneseq
    %v3248 = vshrl.u32 %v3247, 7
    %v3249 = vsub.s32 3, %v3248
    %v3250 = vrot.slane %v2749, %v3249
    %v3251 = vlaneseq
    %v3252 = vshrl.u32 %v3251, 7
    %v3253 = vsub.s32 4, %v3252
    %v3254 = vrot.slane %v2749, %v3253
    %v3255 = vlaneseq
    %v3256 = vshrl.u32 %v3255, 7
    %v3257 = vsub.s32 5, %v3256
    %v3258 = vrot.slane %v2749, %v3257
    %v3259 = vlaneseq
    %v3260 = vshrl.u32 %v3259, 7
    %v3261 = vsub.s32 6, %v3260
    %v3262 = vrot.slane %v2749, %v3261
    %v3263 = vlaneseq
    %v3264 = vshrl.u32 %v3263, 7
    %v3265 = vsub.s32 7, %v3264
    %v3266 = vrot.slane %v2749, %v3265
    %v3267 = vlaneseq
    %v3268 = vshrl.u32 %v3267, 7
    %v3269 = vsub.s32 0, %v3268
    %v3270 = vrot.slane %v2750, %v3269
    %v3271 = vlaneseq
    %v3272 = vshrl.u32 %v3271, 7
    %v3273 = vsub.s32 1, %v3272
    %v3274 = vrot.slane %v2750, %v3273
    %v3275 = vlaneseq
    %v3276 = vshrl.u32 %v3275, 7
    %v3277 = vsub.s32 2, %v3276
    %v3278 = vrot.slane %v2750, %v3277
    %v3279 = vlaneseq
    %v3280 = vshrl.u32 %v3279, 7
    %v3281 = vsub.s32 3, %v3280
    %v3282 = vrot.slane %v2750, %v3281
    %v3283 = vlaneseq
    %v3284 = vshrl.u32 %v3283, 7
    %v3285 = vsub.s32 4, %v3284
    %v3286 = vrot.slane %v2750, %v3285
    %v3287 = vlaneseq
    %v3288 = vshrl.u32 %v3287, 7
    %v3289 = vsub.s32 5, %v3288
    %v3290 = vrot.slane %v2750, %v3289
    %v3291 = vlaneseq
    %v3292 = vshrl.u32 %v3291, 7
    %v3293 = vsub.s32 6, %v3292
    %v3294 = vrot.slane %v2750, %v3293
    %v3295 = vlaneseq
    %v3296 = vshrl.u32 %v3295, 7
    %v3297 = vsub.s32 7, %v3296
    %v3298 = vrot.slane %v2750, %v3297
    %v3315 = vadd.f32 %v3217, %v3238
    %v3316 = vadd.f32 %v3218, %v3242
    %v3317 = vadd.f32 %v3219, %v3246
    %v3318 = vadd.f32 %v3220, %v3250
    %v3319 = vadd.f32 %v3221, %v3254
    %v3320 = vadd.f32 %v3222, %v3258
    %v3321 = vadd.f32 %v3223, %v3262
    %v3322 = vadd.f32 %v3224, %v3266
    %v3323 = vadd.f32 %v3225, %v3270
    %v3324 = vadd.f32 %v3226, %v3274
    %v3325 = vadd.f32 %v3227, %v3278
    %v3326 = vadd.f32 %v3228, %v3282
    %v3327 = vadd.f32 %v3229, %v3286
    %v3328 = vadd.f32 %v3230, %v3290
    %v3329 = vadd.f32 %v3231, %v3294
    %v3330 = vadd.f32 %v3232, %v3298
    %v3331 = vmax.f32 %v3315, 0.0
    %v3332 = vmax.f32 %v3316, 0.0
    %v3333 = vmax.f32 %v3317, 0.0
    %v3334 = vmax.f32 %v3318, 0.0
    %v3335 = vmax.f32 %v3319, 0.0
    %v3336 = vmax.f32 %v3320, 0.0
    %v3337 = vmax.f32 %v3321, 0.0
    %v3338 = vmax.f32 %v3322, 0.0
    %v3339 = vmax.f32 %v3323, 0.0
    %v3340 = vmax.f32 %v3324, 0.0
    %v3341 = vmax.f32 %v3325, 0.0
    %v3342 = vmax.f32 %v3326, 0.0
    %v3343 = vmax.f32 %v3327, 0.0
    %v3344 = vmax.f32 %v3328, 0.0
    %v3345 = vmax.f32 %v3329, 0.0
    %v3346 = vmax.f32 %v3330, 0.0
    %v3347 = vpack.c.bf16 %v3331, %v3331
    %v3348 = vpack.c.bf16 %v3332, %v3332
    %v3349 = vpack.c.bf16 %v3333, %v3333
    %v3350 = vpack.c.bf16 %v3334, %v3334
    %v3351 = vpack.c.bf16 %v3335, %v3335
    %v3352 = vpack.c.bf16 %v3336, %v3336
    %v3353 = vpack.c.bf16 %v3337, %v3337
    %v3354 = vpack.c.bf16 %v3338, %v3338
    %v3355 = vpack.c.bf16 %v3339, %v3339
    %v3356 = vpack.c.bf16 %v3340, %v3340
    %v3357 = vpack.c.bf16 %v3341, %v3341
    %v3358 = vpack.c.bf16 %v3342, %v3342
    %v3359 = vpack.c.bf16 %v3343, %v3343
    %v3360 = vpack.c.bf16 %v3344, %v3344
    %v3361 = vpack.c.bf16 %v3345, %v3345
    %v3362 = vpack.c.bf16 %v3346, %v3346
    %v3379 = vcombine.low %v3347, %v3348
    %v3380 = vcombine.low %v3349, %v3350
    %v3381 = vcombine.low %v3351, %v3352
    %v3382 = vcombine.low %v3353, %v3354
    %v3384 = vunpack.c.l.s4 1966171168
    %v3385 = vunpack.c.0.s8 %v3384
    %v3386 = vlaneseq
    %v3387 = vshrl.u32 %v3386, 7
    %v3388 = vsub.s32 %v3385, %v3387
    %v3389 = vrot.slane %v3379, %v3388
    %v3391 = vunpack.c.l.s4 1966171168
    %v3392 = vunpack.c.0.s8 %v3391
    %v3393 = vlaneseq
    %v3394 = vshrl.u32 %v3393, 7
    %v3395 = vsub.s32 %v3392, %v3394
    %v3396 = vrot.slane %v3380, %v3395
    %v3398 = vunpack.c.l.s4 1966171168
    %v3399 = vunpack.c.0.s8 %v3398
    %v3400 = vlaneseq
    %v3401 = vshrl.u32 %v3400, 7
    %v3402 = vsub.s32 %v3399, %v3401
    %v3403 = vrot.slane %v3381, %v3402
    %v3405 = vunpack.c.l.s4 1966171168
    %v3406 = vunpack.c.0.s8 %v3405
    %v3407 = vlaneseq
    %v3408 = vshrl.u32 %v3407, 7
    %v3409 = vsub.s32 %v3406, %v3408
    %v3410 = vrot.slane %v3382, %v3409
    %v3411 = vcombine.low %v3389, %v3396
    %v3412 = vcombine.low %v3403, %v3410
    %v3414 = vunpack.c.l.s4 1966171168
    %v3415 = vunpack.c.0.s8 %v3414
    %v3416 = vlaneseq
    %v3417 = vshrl.u32 %v3416, 7
    %v3418 = vsub.s32 %v3415, %v3417
    %v3419 = vrot.slane %v3411, %v3418
    %v3421 = vunpack.c.l.s4 1966171168
    %v3422 = vunpack.c.0.s8 %v3421
    %v3423 = vlaneseq
    %v3424 = vshrl.u32 %v3423, 7
    %v3425 = vsub.s32 %v3422, %v3424
    %v3426 = vrot.slane %v3412, %v3425
    %v3427 = vcombine.low %v3419, %v3426
    %v3428 = vcombine.low %v3355, %v3356
    %v3429 = vcombine.low %v3357, %v3358
    %v3430 = vcombine.low %v3359, %v3360
    %v3431 = vcombine.low %v3361, %v3362
    %v3433 = vunpack.c.l.s4 1966171168
    %v3434 = vunpack.c.0.s8 %v3433
    %v3435 = vlaneseq
    %v3436 = vshrl.u32 %v3435, 7
    %v3437 = vsub.s32 %v3434, %v3436
    %v3438 = vrot.slane %v3428, %v3437
    %v3440 = vunpack.c.l.s4 1966171168
    %v3441 = vunpack.c.0.s8 %v3440
    %v3442 = vlaneseq
    %v3443 = vshrl.u32 %v3442, 7
    %v3444 = vsub.s32 %v3441, %v3443
    %v3445 = vrot.slane %v3429, %v3444
    %v3447 = vunpack.c.l.s4 1966171168
    %v3448 = vunpack.c.0.s8 %v3447
    %v3449 = vlaneseq
    %v3450 = vshrl.u32 %v3449, 7
    %v3451 = vsub.s32 %v3448, %v3450
    %v3452 = vrot.slane %v3430, %v3451
    %v3454 = vunpack.c.l.s4 1966171168
    %v3455 = vunpack.c.0.s8 %v3454
    %v3456 = vlaneseq
    %v3457 = vshrl.u32 %v3456, 7
    %v3458 = vsub.s32 %v3455, %v3457
    %v3459 = vrot.slane %v3431, %v3458
    %v3460 = vcombine.low %v3438, %v3445
    %v3461 = vcombine.low %v3452, %v3459
    %v3463 = vunpack.c.l.s4 1966171168
    %v3464 = vunpack.c.0.s8 %v3463
    %v3465 = vlaneseq
    %v3466 = vshrl.u32 %v3465, 7
    %v3467 = vsub.s32 %v3464, %v3466
    %v3468 = vrot.slane %v3460, %v3467
    %v3470 = vunpack.c.l.s4 1966171168
    %v3471 = vunpack.c.0.s8 %v3470
    %v3472 = vlaneseq
    %v3473 = vshrl.u32 %v3472, 7
    %v3474 = vsub.s32 %v3471, %v3473
    %v3475 = vrot.slane %v3461, %v3474
    %v3476 = vcombine.low %v3468, %v3475
    %3479 = vst [vmem:[%s10] sm:$0xff] %v3427
    %3480 = vst [vmem:[%s10 + $0x8] sm:$0xff] %v3476
    // Predicated region
    $region46: #{_forward_impl.4} parent=1 // pred_check
      _
    $region47: #{_forward_impl.4} parent=1 // pred_check_branch
      %3482 = sbr.rel (0) target = $region49
    $region48: #{_forward_impl.4} parent=1 // pred_region
      %s3484 = ssub.s32 32, 32
      %3485 = vsyncadd [#allocation4], %s3484
      %s3487 = sshll.u32 [#allocation7], 4
      %s3488 = int_to_ptr.vmem [resolvable:$true] %s3487
      %3490 = dma.vmem_to_hbm [thread:$0]  %s3488, 32, %s9, [#allocation4]
    $region49: #{_forward_impl.4} parent=1 // pred_fallthru
      _
    // Predicated region
    $region50: #{_forward_impl.4} parent=1 // pred_check
      _
    $region51: #{_forward_impl.4} parent=1 // pred_check_branch
      %3492 = sbr.rel (0) target = $region53
    $region52: #{_forward_impl.4} parent=1 // pred_region
      _
    $region53: #{_forward_impl.4} parent=1 // pred_fallthru
      _
    // Predicated region
    $region54: #{_forward_impl.4} parent=1 // pred_check
      _
    $region55: #{_forward_impl.4} parent=1 // pred_check_branch
      %3494 = sbr.rel (0) target = $region57
    $region56: #{_forward_impl.4} parent=1 // pred_region
      %3495 = dma.done [#allocation4], 32
    $region57: #{_forward_impl.4} parent=1 // pred_fallthru
      _
    // Predicated region
    $region58: #{_forward_impl.4} parent=1 // pred_check
      _
    $region59: #{_forward_impl.4} parent=1 // pred_check_branch
      %3497 = sbr.rel (0) target = $region61
    $region60: #{_forward_impl.4} parent=1 // pred_region
      _
    $region61: #{_forward_impl.4} parent=1 // pred_fallthru
      _
    %3498 = vsyncpa [#allocation3], 1
    %3499 = vsyncpa [#allocation6], 1
    %3500 = vsyncpa [#allocation4], 1

</llo_original>
